<compile_context>
chip_gen: v7x
topology: tpu7x:2x2x1
jax: 0.10.0
libtpu: 0.0.40
codegen_flags: <defaults>
</compile_context>

<pallas_src>
import jax
import jax.numpy as jnp
from jax import lax
from jax.experimental import pallas as pl
from jax.experimental.pallas import tpu as pltpu


def _tpu_generation():
    """Best-effort TPU generation (4/5/6/7); 0 if unknown."""
    try:
        kind = jax.devices()[0].device_kind.lower()
    except Exception:
        return 0
    for g in (7, 6, 5, 4):
        if f"v{g}" in kind:
            return g
    return 0


# ----------------------------------------------------------------------------
# Kernel factory
# ----------------------------------------------------------------------------
def _make_kernel(*, taps, tap_phase, stride, R, Wo_pad, Cin_eff, Cout_g,
                 G_eff, relu, use_concat_k, n_chunks):
    T = len(taps)
    M = R * Wo_pad

    def load_tap(x_ref, g, row0, rows, kh, kw):
        # output pixel (ho, wo) with tap (kh, kw) reads padded input
        # (ho*s + kh, wo*s + kw) == phase (kh%s, kw%s) at (ho + kh//s, wo + kw//s)
        # -> unit-stride window read of the VMEM-resident phase image.
        ph = tap_phase[(kh % stride, kw % stride)]
        qh, qw = kh // stride, kw // stride
        t = x_ref[ph * G_eff + g, 0,
                  pl.ds(row0 + qh, rows), pl.ds(qw, Wo_pad), :]   # (rows, Wo_pad, C)
        return t.reshape(rows * Wo_pad, Cin_eff)                  # free: Wo_pad % 8 == 0

    def epilogue(y, b_ref, g):
        y = y + b_ref[g]
        if relu:
            y = jnp.maximum(y, 0.0)
        return y

    if use_concat_k:
        Rm = R // n_chunks
        Mc = Rm * Wo_pad

        def kernel(x_ref, w_ref, b_ref, o_ref, *patch_refs):
            r0 = pl.multiple_of(pl.program_id(1) * R, R)
            for g in range(G_eff):
                for c in range(n_chunks):
                    pr = patch_refs[c]
                    # pack all taps for this M-chunk (pure ld/st slot work) ...
                    for t, (kh, kw) in enumerate(taps):
                        pr[:, t * Cin_eff:(t + 1) * Cin_eff] = load_tap(
                            x_ref, g, r0 + c * Rm, Rm, kh, kw)
                    # ... then one long-K MXU matmul; separate scratch per chunk
                    # lets the scheduler overlap pack(c+1) with dot(c).
                    y = jnp.dot(pr[...], w_ref[g],
                                preferred_element_type=jnp.float32)
                    y = epilogue(y, b_ref, g)
                    o_ref[g, pl.ds(c * Mc, Mc), :] = y.astype(o_ref.dtype)

        scratch = [pltpu.VMEM((Mc, T * Cin_eff), jnp.bfloat16)
                   for _ in range(n_chunks)]
        return kernel, scratch

    if T == 1:
        (kh0, kw0) = taps[0]

        def kernel(x_ref, w_ref, b_ref, o_ref):
            r0 = pl.multiple_of(pl.program_id(1) * R, R)
            for g in range(G_eff):
                y = jnp.dot(load_tap(x_ref, g, r0, R, kh0, kw0), w_ref[g],
                            preferred_element_type=jnp.float32)
                y = epilogue(y, b_ref, g)
                o_ref[g] = y.astype(o_ref.dtype)

        return kernel, []

    # Per-tap fallback: T accumulations into an f32 VMEM scratch (caps vreg
    # pressure / removes spill traffic through the store slot).
    def kernel(x_ref, w_ref, b_ref, o_ref, acc_ref):
        r0 = pl.multiple_of(pl.program_id(1) * R, R)
        for g in range(G_eff):
            for t, (kh, kw) in enumerate(taps):
                part = jnp.dot(load_tap(x_ref, g, r0, R, kh, kw),
                               w_ref[g * T + t],
                               preferred_element_type=jnp.float32)
                if t == 0:
                    acc_ref[...] = part
                else:
                    acc_ref[...] += part
            y = epilogue(acc_ref[...], b_ref, g)
            o_ref[g] = y.astype(o_ref.dtype)

    return kernel, [pltpu.VMEM((M, Cout_g), jnp.float32)]


# ----------------------------------------------------------------------------
# ConvBnActBlock forward (inference)
# ----------------------------------------------------------------------------
def conv_bn_act_forward(x, params, *, stride, padding, groups=1,
                        has_bn=True, has_act=True, eps=1e-5,
                        target_m=1024, out_dtype=jnp.float32,
                        input_layout="NCHW", output_layout="NCHW"):
    """x: (N, Cin, H, W) [NCHW] or (N, H, W, Cin) [NHWC]."""
    w_oihw = params['conv_w']                       # (Cout, Cin//groups, KH, KW)
    Cout, Cin_g, KH, KW = w_oihw.shape
    s = int(stride)
    T = KH * KW

    if input_layout == "NCHW":
        N, Cin, H, W = x.shape
    else:
        N, H, W, Cin = x.shape
    assert Cin == Cin_g * groups and Cout % groups == 0, (Cin, Cin_g, groups, Cout)

    Ho = (H + 2 * padding - KH) // s + 1
    Wo = (W + 2 * padding - KW) // s + 1

    # --- group handling: true per-group matmuls for groups > 2; dense
    #     (block-diagonal) fallback for groups <= 2 (exact for groups == 1).
    dense = groups <= 2
    G_eff = 1 if dense else groups
    Cin_eff = Cin if dense else Cin_g
    Cout_g = Cout if dense else Cout // groups

    # --- generation-aware path selection / VMEM budget
    gen = _tpu_generation()
    use_concat_k = (T > 1) and (Cin_eff % 128 == 0) and (gen != 5)
    if gen == 7:
        vmem_budget, vmem_cap = 40 << 20, 56 << 20     # 64 MiB physical on v7x
    else:
        vmem_budget, vmem_cap = 88 << 20, 100 << 20    # 128 MiB on v5e/v6e

    # --- BN folded into the conv (inference): scale into the f32 weights
    #     BEFORE the bf16 cast; epilogue is only +bias (+ReLU).
    if has_bn:
        scale = params['bn_gamma'] / jnp.sqrt(params['bn_var'] + eps)
        bias = params['bn_beta'] - params['bn_mean'] * scale
    else:
        scale = jnp.ones((Cout,), jnp.float32)
        b = params.get('conv_b')
        bias = jnp.zeros((Cout,), jnp.float32) if b is None else b
    scale = scale.astype(jnp.float32)
    bias = bias.astype(jnp.float32)

    w_f32 = w_oihw.astype(jnp.float32)
    if dense:
        w_hwig = jnp.transpose(w_f32, (2, 3, 1, 0))          # (KH,KW,Cin_g,Cout)
        if groups == 1:
            w_dense = w_hwig
        else:                                                # groups == 2 fallback
            co_pg = Cout // groups
            w_dense = jnp.zeros((KH, KW, Cin, Cout), jnp.float32)
            for g in range(groups):
                w_dense = w_dense.at[:, :, g * Cin_g:(g + 1) * Cin_g,
                                     g * co_pg:(g + 1) * co_pg].set(
                    w_hwig[..., g * co_pg:(g + 1) * co_pg])
        w_scaled = w_dense * scale[None, None, None, :]
        w_tap = w_scaled.reshape(1, T, Cin_eff, Cout_g)
        bias_arg = bias.reshape(1, 1, Cout_g)
    else:
        w_g = w_f32.reshape(G_eff, Cout_g, Cin_eff, KH, KW)
        w_g = jnp.transpose(w_g, (0, 3, 4, 2, 1))            # (G,KH,KW,Cin_g,Cout_g)
        w_g = w_g * scale.reshape(G_eff, 1, 1, 1, Cout_g)
        w_tap = w_g.reshape(G_eff, T, Cin_eff, Cout_g)
        bias_arg = bias.reshape(G_eff, 1, Cout_g)

    w_bf = w_tap.astype(jnp.bfloat16)
    if use_concat_k:
        w_arg = w_bf.reshape(G_eff, T * Cin_eff, Cout_g)
        w_spec = pl.BlockSpec((G_eff, T * Cin_eff, Cout_g), lambda n, rb: (0, 0, 0))
    else:
        w_arg = w_bf.reshape(G_eff * T, Cin_eff, Cout_g)
        w_spec = pl.BlockSpec((G_eff * T, Cin_eff, Cout_g), lambda n, rb: (0, 0, 0))

    # --- input: bf16 BEFORE pad/phase slicing, one fused pad, phase
    #     (space-to-batch) decomposition with only the phases any tap touches.
    xb = x.astype(jnp.bfloat16)
    if input_layout == "NCHW":
        xg = xb.reshape(N, G_eff, Cin_eff, H, W).transpose(1, 0, 3, 4, 2)
    else:
        xg = xb.reshape(N, H, W, G_eff, Cin_eff).transpose(3, 0, 1, 2, 4)
    # xg: (G_eff, N, H, W, Cin_eff)

    Wo_pad = ((Wo + 7) // 8) * 8            # free (R, Wo) collapse in the kernel
    Hp = H + 2 * padding
    Hph = -(-Hp // s)
    Wph = -(-(W + 2 * padding) // s)
    Wph2 = max(Wph, Wo_pad + (KW - 1) // s)
    pad_bot = Hph * s - H - padding
    pad_right = Wph2 * s - W - padding
    xg = jnp.pad(xg, ((0, 0), (0, 0), (padding, pad_bot),
                      (padding, pad_right), (0, 0)))

    needed = sorted({(kh % s, kw % s) for kh in range(KH) for kw in range(KW)})
    tap_phase = {p: i for i, p in enumerate(needed)}
    if s == 1:
        phases = xg[None]
    else:
        phases = jnp.stack([xg[:, :, a::s, b::s, :] for (a, b) in needed], axis=0)
    P = len(needed)
    phases = phases.reshape(P * G_eff, N, Hph, Wph2, Cin_eff)

    # --- row tile under an explicit VMEM budget
    out_bytes = jnp.dtype(out_dtype).itemsize

    def vmem_est(r):
        m = r * Wo_pad
        tot = 2 * (P * G_eff * Hph * Wph2 * Cin_eff * 2        # resident image
                   + G_eff * T * Cin_eff * Cout_g * 2          # weights
                   + G_eff * Cout_g * 4                        # bias
                   + G_eff * m * Cout_g * out_bytes)           # out block
        if use_concat_k:
            tot += m * T * Cin_eff * 2                         # patch scratch
        elif T > 1:
            tot += m * Cout_g * 4                              # f32 accumulator
        return tot

    divs = sorted((r for r in range(1, Ho + 1) if Ho % r == 0), reverse=True)
    R = None
    for r in divs:
        if r * Wo_pad <= target_m and vmem_est(r) <= vmem_budget:
            R = r
            break
    if R is None:
        for r in reversed(divs):
            if vmem_est(r) <= vmem_budget:
                R = r
                break
        R = R if R is not None else 1

    n_chunks = 2 if (use_concat_k and R % 2 == 0 and R * Wo_pad >= 256) else 1
    vmem_limit = int(min(vmem_cap,
                         max(32 << 20, int(1.5 * vmem_est(R)) + (8 << 20))))

    taps = [(kh, kw) for kh in range(KH) for kw in range(KW)]
    kernel, scratch = _make_kernel(
        taps=taps, tap_phase=tap_phase, stride=s, R=R, Wo_pad=Wo_pad,
        Cin_eff=Cin_eff, Cout_g=Cout_g, G_eff=G_eff, relu=has_act,
        use_concat_k=use_concat_k, n_chunks=n_chunks)

    grid = (N, Ho // R)
    out = pl.pallas_call(
        kernel,
        out_shape=jax.ShapeDtypeStruct((N * G_eff, Ho * Wo_pad, Cout_g), out_dtype),
        grid=grid,
        in_specs=[
            # whole phase-decomposed image for sample n; constant over rb so it
            # stays resident across all row blocks of that image.
            pl.BlockSpec((P * G_eff, 1, Hph, Wph2, Cin_eff),
                         lambda n, rb: (0, n, 0, 0, 0)),
            w_spec,                                                  # resident weights
            pl.BlockSpec((G_eff, 1, Cout_g), lambda n, rb: (0, 0, 0)),  # folded bias
        ],
        out_specs=pl.BlockSpec((G_eff, R * Wo_pad, Cout_g),
                               lambda n, rb: (n, rb, 0)),
        scratch_shapes=scratch,
        compiler_params=pltpu.CompilerParams(
            dimension_semantics=("parallel", "parallel"),
            vmem_limit_bytes=vmem_limit),
    )(phases, w_arg, bias_arg)

    out = out.reshape(N, G_eff, Ho, Wo_pad, Cout_g)
    if Wo_pad != Wo:
        out = out[:, :, :, :Wo, :]
    if output_layout == "NCHW":
        out = jnp.transpose(out, (0, 1, 4, 2, 3)).reshape(N, Cout, Ho, Wo)
    else:
        out = jnp.transpose(out, (0, 2, 3, 1, 4)).reshape(N, Ho, Wo, Cout)
    return out


# ----------------------------------------------------------------------------
# Pure-JAX reference (true f32 module semantics) + parameter init
# ----------------------------------------------------------------------------
def conv_bn_act_reference(x_nchw, params, *, stride, padding, groups=1,
                          has_bn=True, has_act=True, eps=1e-5):
    x = jnp.transpose(x_nchw, (0, 2, 3, 1)).astype(jnp.float32)
    w_hwio = jnp.transpose(params['conv_w'], (2, 3, 1, 0))
    y = lax.conv_general_dilated(
        x, w_hwio, window_strides=(stride, stride),
        padding=((padding, padding), (padding, padding)),
        dimension_numbers=('NHWC', 'HWIO', 'NHWC'),
        feature_group_count=groups)
    if has_bn:
        scale = params['bn_gamma'] / jnp.sqrt(params['bn_var'] + eps)
        bias = params['bn_beta'] - params['bn_mean'] * scale
        y = y * scale + bias
    elif params.get('conv_b') is not None:
        y = y + params['conv_b']
    if has_act:
        y = jnp.maximum(y, 0.0)
    return jnp.transpose(y, (0, 3, 1, 2))


def init_params(key, inplanes, planes, kernel_size, groups, has_bn):
    k = jax.random.split(key, 6)
    cin_g = inplanes // groups
    p = {'conv_w': (0.1 * jax.random.normal(
        k[0], (planes, cin_g, kernel_size, kernel_size))).astype(jnp.float32)}
    if has_bn:
        p['bn_gamma'] = 0.5 + jax.random.uniform(k[1], (planes,))
        p['bn_beta'] = 0.1 * jax.random.normal(k[2], (planes,))
        p['bn_mean'] = 0.1 * jax.random.normal(k[3], (planes,))
        p['bn_var'] = 0.5 + jax.random.uniform(k[4], (planes,))
    else:
        p['conv_b'] = 0.1 * jax.random.normal(k[5], (planes,))
    return p


if __name__ == "__main__":
    key = jax.random.PRNGKey(0)
    # (name, inplanes, planes, spatial, k, stride, pad, groups, has_bn, has_act)
    configs = [
        ("3x3_s2_g4_bn_relu",    32,  64, 16, 3, 2, 1, 4, True,  True),   # true grouped path
        ("3x3_s1_g1_bn_relu",    16,  32, 16, 3, 1, 1, 1, True,  True),   # per-tap path
        ("1x1_s1_bn_relu",       32,  64, 16, 1, 1, 0, 1, True,  True),   # T == 1 path
        ("1x1_s2_bias_noact",    32,  64, 16, 1, 2, 0, 1, False, False),  # stride-2 1x1, conv bias
        ("3x3_s1_w14_pad",       16,  32, 14, 3, 1, 1, 1, True,  True),   # Wo % 8 != 0 (Wo_pad)
        ("3x3_s1_c128_concatK", 128, 128,  8, 3, 1, 1, 1, True,  True),   # concat-K long-K path
    ]
    for (name, cin, cout, hw, k, s, p, g, has_bn, has_act) in configs:
        key, kx, kp = jax.random.split(key, 3)
        x = jax.random.normal(kx, (2, cin, hw, hw), dtype=jnp.float32)  # NCHW
        params = init_params(kp, cin, cout, k, g, has_bn)

        out = conv_bn_act_forward(x, params, stride=s, padding=p, groups=g,
                                  has_bn=has_bn, has_act=has_act)
        out = jax.block_until_ready(out)

        ref = conv_bn_act_reference(x, params, stride=s, padding=p, groups=g,
                                    has_bn=has_bn, has_act=has_act)
        assert out.shape == ref.shape, (name, out.shape, ref.shape)
        err = float(jnp.max(jnp.abs(out - ref)))
        ref_scale = float(jnp.max(jnp.abs(ref))) + 1e-6
        # bf16 MXU inputs with f32 accumulation -> bound error relative to the
        # output magnitude.
        assert err <= 2e-2 * ref_scale, (name, err, ref_scale)

    print("KERNEL_OK")
</pallas_src>

<mosaic_0001>
module attributes {stable_mosaic.version = 11 : i64} {
  func.func @kernel(%arg0: i32, %arg1: i32, %arg2: memref<16x1x9x9x8xbf16, #tpu.memory_space<vmem>>, %arg3: memref<36x8x16xbf16, #tpu.memory_space<vmem>>, %arg4: memref<4x1x16xf32, #tpu.memory_space<vmem>>, %arg5: memref<4x64x16xf32, #tpu.memory_space<vmem>>, %arg6: memref<64x16xf32, #tpu.memory_space<vmem>>) attributes {dimension_semantics = [#tpu.dimension_semantics<parallel>, #tpu.dimension_semantics<parallel>], iteration_bounds = array<i64: 2, 1>, scalar_prefetch = 0 : i64, scratch_operands = 1 : i64, tpu.core_type = #tpu.core_type<tc>, window_params = [{transform_indices = @transform_0, window_bounds = array<i64: 16, 1, 9, 9, 8>}, {pipeline_mode = #tpu.pipeline_mode<synchronous>, transform_indices = @transform_1, window_bounds = array<i64: 36, 8, 16>}, {pipeline_mode = #tpu.pipeline_mode<synchronous>, transform_indices = @transform_2, window_bounds = array<i64: 4, 1, 16>}, {transform_indices = @transform_3, window_bounds = array<i64: 4, 64, 16>}]} {
    %c8_i32 = arith.constant 8 : i32
    %0 = arith.muli %arg1, %c8_i32 : i32
    %1 = tpu.assume_multiple %0, 8 : i32
    %c0_i32 = arith.constant 0 : i32
    %2 = arith.addi %1, %c0_i32 : i32
    %c0 = arith.constant 0 : index
    %c0_0 = arith.constant 0 : index
    %3 = arith.index_cast %2 : i32 to index
    %c0_1 = arith.constant 0 : index
    %c0_2 = arith.constant 0 : index
    %4 = vector.load %arg2[%c0, %c0_0, %3, %c0_1, %c0_2] : memref<16x1x9x9x8xbf16, #tpu.memory_space<vmem>>, vector<1x1x8x8x8xbf16>
    %5 = vector.shape_cast %4 : vector<1x1x8x8x8xbf16> to vector<8x8x8xbf16>
    %6 = vector.shape_cast %5 : vector<8x8x8xbf16> to vector<64x8xbf16>
    %c0_3 = arith.constant 0 : index
    %c0_4 = arith.constant 0 : index
    %c0_5 = arith.constant 0 : index
    %7 = vector.load %arg3[%c0_3, %c0_4, %c0_5] : memref<36x8x16xbf16, #tpu.memory_space<vmem>>, vector<1x8x16xbf16>
    %8 = vector.shape_cast %7 : vector<1x8x16xbf16> to vector<8x16xbf16>
    %cst = arith.constant dense<0.000000e+00> : vector<64x16xf32>
    %9 = tpu.matmul %6, %8, %cst {dimension_numbers = #tpu.dot_dimension_numbers<[1], [0], [0], [1], [0, 0, 1, 1], [], []>} : vector<64x8xbf16>, vector<8x16xbf16>, vector<64x16xf32> -> vector<64x16xf32>
    %c0_6 = arith.constant 0 : index
    %c0_7 = arith.constant 0 : index
    %10 = vector.load %arg6[%c0_6, %c0_7] : memref<64x16xf32, #tpu.memory_space<vmem>>, vector<64x16xf32>
    tpu.vector_store %arg6[%c0_6, %c0_7], %9 {strides = array<i32>} : memref<64x16xf32, #tpu.memory_space<vmem>>, vector<64x16xf32>,
    %c0_i32_8 = arith.constant 0 : i32
    %11 = arith.addi %1, %c0_i32_8 : i32
    %c4 = arith.constant 4 : index
    %c0_9 = arith.constant 0 : index
    %12 = arith.index_cast %11 : i32 to index
    %c0_10 = arith.constant 0 : index
    %c0_11 = arith.constant 0 : index
    %13 = vector.load %arg2[%c4, %c0_9, %12, %c0_10, %c0_11] : memref<16x1x9x9x8xbf16, #tpu.memory_space<vmem>>, vector<1x1x8x8x8xbf16>
    %14 = vector.shape_cast %13 : vector<1x1x8x8x8xbf16> to vector<8x8x8xbf16>
    %15 = vector.shape_cast %14 : vector<8x8x8xbf16> to vector<64x8xbf16>
    %c1 = arith.constant 1 : index
    %c0_12 = arith.constant 0 : index
    %c0_13 = arith.constant 0 : index
    %16 = vector.load %arg3[%c1, %c0_12, %c0_13] : memref<36x8x16xbf16, #tpu.memory_space<vmem>>, vector<1x8x16xbf16>
    %17 = vector.shape_cast %16 : vector<1x8x16xbf16> to vector<8x16xbf16>
    %cst_14 = arith.constant dense<0.000000e+00> : vector<64x16xf32>
    %18 = tpu.matmul %15, %17, %cst_14 {dimension_numbers = #tpu.dot_dimension_numbers<[1], [0], [0], [1], [0, 0, 1, 1], [], []>} : vector<64x8xbf16>, vector<8x16xbf16>, vector<64x16xf32> -> vector<64x16xf32>
    %c0_15 = arith.constant 0 : index
    %c0_16 = arith.constant 0 : index
    %19 = vector.load %arg6[%c0_15, %c0_16] : memref<64x16xf32, #tpu.memory_space<vmem>>, vector<64x16xf32>
    %20 = arith.addf %19, %18 : vector<64x16xf32>
    %c0_17 = arith.constant 0 : index
    %c0_18 = arith.constant 0 : index
    %21 = vector.load %arg6[%c0_17, %c0_18] : memref<64x16xf32, #tpu.memory_space<vmem>>, vector<64x16xf32>
    tpu.vector_store %arg6[%c0_17, %c0_18], %20 {strides = array<i32>} : memref<64x16xf32, #tpu.memory_space<vmem>>, vector<64x16xf32>,
    %c0_i32_19 = arith.constant 0 : i32
    %22 = arith.addi %1, %c0_i32_19 : i32
    %c0_20 = arith.constant 0 : index
    %c0_21 = arith.constant 0 : index
    %23 = arith.index_cast %22 : i32 to index
    %c1_22 = arith.constant 1 : index
    %c0_23 = arith.constant 0 : index
    %24 = vector.load %arg2[%c0_20, %c0_21, %23, %c1_22, %c0_23] : memref<16x1x9x9x8xbf16, #tpu.memory_space<vmem>>, vector<1x1x8x8x8xbf16>
    %25 = vector.shape_cast %24 : vector<1x1x8x8x8xbf16> to vector<8x8x8xbf16>
    %26 = vector.shape_cast %25 : vector<8x8x8xbf16> to vector<64x8xbf16>
    %c2 = arith.constant 2 : index
    %c0_24 = arith.constant 0 : index
    %c0_25 = arith.constant 0 : index
    %27 = vector.load %arg3[%c2, %c0_24, %c0_25] : memref<36x8x16xbf16, #tpu.memory_space<vmem>>, vector<1x8x16xbf16>
    %28 = vector.shape_cast %27 : vector<1x8x16xbf16> to vector<8x16xbf16>
    %cst_26 = arith.constant dense<0.000000e+00> : vector<64x16xf32>
    %29 = tpu.matmul %26, %28, %cst_26 {dimension_numbers = #tpu.dot_dimension_numbers<[1], [0], [0], [1], [0, 0, 1, 1], [], []>} : vector<64x8xbf16>, vector<8x16xbf16>, vector<64x16xf32> -> vector<64x16xf32>
    %c0_27 = arith.constant 0 : index
    %c0_28 = arith.constant 0 : index
    %30 = vector.load %arg6[%c0_27, %c0_28] : memref<64x16xf32, #tpu.memory_space<vmem>>, vector<64x16xf32>
    %31 = arith.addf %30, %29 : vector<64x16xf32>
    %c0_29 = arith.constant 0 : index
    %c0_30 = arith.constant 0 : index
    %32 = vector.load %arg6[%c0_29, %c0_30] : memref<64x16xf32, #tpu.memory_space<vmem>>, vector<64x16xf32>
    tpu.vector_store %arg6[%c0_29, %c0_30], %31 {strides = array<i32>} : memref<64x16xf32, #tpu.memory_space<vmem>>, vector<64x16xf32>,
    %c0_i32_31 = arith.constant 0 : i32
    %33 = arith.addi %1, %c0_i32_31 : i32
    %c8 = arith.constant 8 : index
    %c0_32 = arith.constant 0 : index
    %34 = arith.index_cast %33 : i32 to index
    %c0_33 = arith.constant 0 : index
    %c0_34 = arith.constant 0 : index
    %35 = vector.load %arg2[%c8, %c0_32, %34, %c0_33, %c0_34] : memref<16x1x9x9x8xbf16, #tpu.memory_space<vmem>>, vector<1x1x8x8x8xbf16>
    %36 = vector.shape_cast %35 : vector<1x1x8x8x8xbf16> to vector<8x8x8xbf16>
    %37 = vector.shape_cast %36 : vector<8x8x8xbf16> to vector<64x8xbf16>
    %c3 = arith.constant 3 : index
    %c0_35 = arith.constant 0 : index
    %c0_36 = arith.constant 0 : index
    %38 = vector.load %arg3[%c3, %c0_35, %c0_36] : memref<36x8x16xbf16, #tpu.memory_space<vmem>>, vector<1x8x16xbf16>
    %39 = vector.shape_cast %38 : vector<1x8x16xbf16> to vector<8x16xbf16>
    %cst_37 = arith.constant dense<0.000000e+00> : vector<64x16xf32>
    %40 = tpu.matmul %37, %39, %cst_37 {dimension_numbers = #tpu.dot_dimension_numbers<[1], [0], [0], [1], [0, 0, 1, 1], [], []>} : vector<64x8xbf16>, vector<8x16xbf16>, vector<64x16xf32> -> vector<64x16xf32>
    %c0_38 = arith.constant 0 : index
    %c0_39 = arith.constant 0 : index
    %41 = vector.load %arg6[%c0_38, %c0_39] : memref<64x16xf32, #tpu.memory_space<vmem>>, vector<64x16xf32>
    %42 = arith.addf %41, %40 : vector<64x16xf32>
    %c0_40 = arith.constant 0 : index
    %c0_41 = arith.constant 0 : index
    %43 = vector.load %arg6[%c0_40, %c0_41] : memref<64x16xf32, #tpu.memory_space<vmem>>, vector<64x16xf32>
    tpu.vector_store %arg6[%c0_40, %c0_41], %42 {strides = array<i32>} : memref<64x16xf32, #tpu.memory_space<vmem>>, vector<64x16xf32>,
    %c0_i32_42 = arith.constant 0 : i32
    %44 = arith.addi %1, %c0_i32_42 : i32
    %c12 = arith.constant 12 : index
    %c0_43 = arith.constant 0 : index
    %45 = arith.index_cast %44 : i32 to index
    %c0_44 = arith.constant 0 : index
    %c0_45 = arith.constant 0 : index
    %46 = vector.load %arg2[%c12, %c0_43, %45, %c0_44, %c0_45] : memref<16x1x9x9x8xbf16, #tpu.memory_space<vmem>>, vector<1x1x8x8x8xbf16>
    %47 = vector.shape_cast %46 : vector<1x1x8x8x8xbf16> to vector<8x8x8xbf16>
    %48 = vector.shape_cast %47 : vector<8x8x8xbf16> to vector<64x8xbf16>
    %c4_46 = arith.constant 4 : index
    %c0_47 = arith.constant 0 : index
    %c0_48 = arith.constant 0 : index
    %49 = vector.load %arg3[%c4_46, %c0_47, %c0_48] : memref<36x8x16xbf16, #tpu.memory_space<vmem>>, vector<1x8x16xbf16>
    %50 = vector.shape_cast %49 : vector<1x8x16xbf16> to vector<8x16xbf16>
    %cst_49 = arith.constant dense<0.000000e+00> : vector<64x16xf32>
    %51 = tpu.matmul %48, %50, %cst_49 {dimension_numbers = #tpu.dot_dimension_numbers<[1], [0], [0], [1], [0, 0, 1, 1], [], []>} : vector<64x8xbf16>, vector<8x16xbf16>, vector<64x16xf32> -> vector<64x16xf32>
    %c0_50 = arith.constant 0 : index
    %c0_51 = arith.constant 0 : index
    %52 = vector.load %arg6[%c0_50, %c0_51] : memref<64x16xf32, #tpu.memory_space<vmem>>, vector<64x16xf32>
    %53 = arith.addf %52, %51 : vector<64x16xf32>
    %c0_52 = arith.constant 0 : index
    %c0_53 = arith.constant 0 : index
    %54 = vector.load %arg6[%c0_52, %c0_53] : memref<64x16xf32, #tpu.memory_space<vmem>>, vector<64x16xf32>
    tpu.vector_store %arg6[%c0_52, %c0_53], %53 {strides = array<i32>} : memref<64x16xf32, #tpu.memory_space<vmem>>, vector<64x16xf32>,
    %c0_i32_54 = arith.constant 0 : i32
    %55 = arith.addi %1, %c0_i32_54 : i32
    %c8_55 = arith.constant 8 : index
    %c0_56 = arith.constant 0 : index
    %56 = arith.index_cast %55 : i32 to index
    %c1_57 = arith.constant 1 : index
    %c0_58 = arith.constant 0 : index
    %57 = vector.load %arg2[%c8_55, %c0_56, %56, %c1_57, %c0_58] : memref<16x1x9x9x8xbf16, #tpu.memory_space<vmem>>, vector<1x1x8x8x8xbf16>
    %58 = vector.shape_cast %57 : vector<1x1x8x8x8xbf16> to vector<8x8x8xbf16>
    %59 = vector.shape_cast %58 : vector<8x8x8xbf16> to vector<64x8xbf16>
    %c5 = arith.constant 5 : index
    %c0_59 = arith.constant 0 : index
    %c0_60 = arith.constant 0 : index
    %60 = vector.load %arg3[%c5, %c0_59, %c0_60] : memref<36x8x16xbf16, #tpu.memory_space<vmem>>, vector<1x8x16xbf16>
    %61 = vector.shape_cast %60 : vector<1x8x16xbf16> to vector<8x16xbf16>
    %cst_61 = arith.constant dense<0.000000e+00> : vector<64x16xf32>
    %62 = tpu.matmul %59, %61, %cst_61 {dimension_numbers = #tpu.dot_dimension_numbers<[1], [0], [0], [1], [0, 0, 1, 1], [], []>} : vector<64x8xbf16>, vector<8x16xbf16>, vector<64x16xf32> -> vector<64x16xf32>
    %c0_62 = arith.constant 0 : index
    %c0_63 = arith.constant 0 : index
    %63 = vector.load %arg6[%c0_62, %c0_63] : memref<64x16xf32, #tpu.memory_space<vmem>>, vector<64x16xf32>
    %64 = arith.addf %63, %62 : vector<64x16xf32>
    %c0_64 = arith.constant 0 : index
    %c0_65 = arith.constant 0 : index
    %65 = vector.load %arg6[%c0_64, %c0_65] : memref<64x16xf32, #tpu.memory_space<vmem>>, vector<64x16xf32>
    tpu.vector_store %arg6[%c0_64, %c0_65], %64 {strides = array<i32>} : memref<64x16xf32, #tpu.memory_space<vmem>>, vector<64x16xf32>,
    %c1_i32 = arith.constant 1 : i32
    %66 = arith.addi %1, %c1_i32 : i32
    %c0_66 = arith.constant 0 : index
    %c0_67 = arith.constant 0 : index
    %67 = arith.index_cast %66 : i32 to index
    %c0_68 = arith.constant 0 : index
    %c0_69 = arith.constant 0 : index
    %68 = vector.load %arg2[%c0_66, %c0_67, %67, %c0_68, %c0_69] : memref<16x1x9x9x8xbf16, #tpu.memory_space<vmem>>, vector<1x1x8x8x8xbf16>
    %69 = vector.shape_cast %68 : vector<1x1x8x8x8xbf16> to vector<8x8x8xbf16>
    %70 = vector.shape_cast %69 : vector<8x8x8xbf16> to vector<64x8xbf16>
    %c6 = arith.constant 6 : index
    %c0_70 = arith.constant 0 : index
    %c0_71 = arith.constant 0 : index
    %71 = vector.load %arg3[%c6, %c0_70, %c0_71] : memref<36x8x16xbf16, #tpu.memory_space<vmem>>, vector<1x8x16xbf16>
    %72 = vector.shape_cast %71 : vector<1x8x16xbf16> to vector<8x16xbf16>
    %cst_72 = arith.constant dense<0.000000e+00> : vector<64x16xf32>
    %73 = tpu.matmul %70, %72, %cst_72 {dimension_numbers = #tpu.dot_dimension_numbers<[1], [0], [0], [1], [0, 0, 1, 1], [], []>} : vector<64x8xbf16>, vector<8x16xbf16>, vector<64x16xf32> -> vector<64x16xf32>
    %c0_73 = arith.constant 0 : index
    %c0_74 = arith.constant 0 : index
    %74 = vector.load %arg6[%c0_73, %c0_74] : memref<64x16xf32, #tpu.memory_space<vmem>>, vector<64x16xf32>
    %75 = arith.addf %74, %73 : vector<64x16xf32>
    %c0_75 = arith.constant 0 : index
    %c0_76 = arith.constant 0 : index
    %76 = vector.load %arg6[%c0_75, %c0_76] : memref<64x16xf32, #tpu.memory_space<vmem>>, vector<64x16xf32>
    tpu.vector_store %arg6[%c0_75, %c0_76], %75 {strides = array<i32>} : memref<64x16xf32, #tpu.memory_space<vmem>>, vector<64x16xf32>,
    %c1_i32_77 = arith.constant 1 : i32
    %77 = arith.addi %1, %c1_i32_77 : i32
    %c4_78 = arith.constant 4 : index
    %c0_79 = arith.constant 0 : index
    %78 = arith.index_cast %77 : i32 to index
    %c0_80 = arith.constant 0 : index
    %c0_81 = arith.constant 0 : index
    %79 = vector.load %arg2[%c4_78, %c0_79, %78, %c0_80, %c0_81] : memref<16x1x9x9x8xbf16, #tpu.memory_space<vmem>>, vector<1x1x8x8x8xbf16>
    %80 = vector.shape_cast %79 : vector<1x1x8x8x8xbf16> to vector<8x8x8xbf16>
    %81 = vector.shape_cast %80 : vector<8x8x8xbf16> to vector<64x8xbf16>
    %c7 = arith.constant 7 : index
    %c0_82 = arith.constant 0 : index
    %c0_83 = arith.constant 0 : index
    %82 = vector.load %arg3[%c7, %c0_82, %c0_83] : memref<36x8x16xbf16, #tpu.memory_space<vmem>>, vector<1x8x16xbf16>
    %83 = vector.shape_cast %82 : vector<1x8x16xbf16> to vector<8x16xbf16>
    %cst_84 = arith.constant dense<0.000000e+00> : vector<64x16xf32>
    %84 = tpu.matmul %81, %83, %cst_84 {dimension_numbers = #tpu.dot_dimension_numbers<[1], [0], [0], [1], [0, 0, 1, 1], [], []>} : vector<64x8xbf16>, vector<8x16xbf16>, vector<64x16xf32> -> vector<64x16xf32>
    %c0_85 = arith.constant 0 : index
    %c0_86 = arith.constant 0 : index
    %85 = vector.load %arg6[%c0_85, %c0_86] : memref<64x16xf32, #tpu.memory_space<vmem>>, vector<64x16xf32>
    %86 = arith.addf %85, %84 : vector<64x16xf32>
    %c0_87 = arith.constant 0 : index
    %c0_88 = arith.constant 0 : index
    %87 = vector.load %arg6[%c0_87, %c0_88] : memref<64x16xf32, #tpu.memory_space<vmem>>, vector<64x16xf32>
    tpu.vector_store %arg6[%c0_87, %c0_88], %86 {strides = array<i32>} : memref<64x16xf32, #tpu.memory_space<vmem>>, vector<64x16xf32>,
    %c1_i32_89 = arith.constant 1 : i32
    %88 = arith.addi %1, %c1_i32_89 : i32
    %c0_90 = arith.constant 0 : index
    %c0_91 = arith.constant 0 : index
    %89 = arith.index_cast %88 : i32 to index
    %c1_92 = arith.constant 1 : index
    %c0_93 = arith.constant 0 : index
    %90 = vector.load %arg2[%c0_90, %c0_91, %89, %c1_92, %c0_93] : memref<16x1x9x9x8xbf16, #tpu.memory_space<vmem>>, vector<1x1x8x8x8xbf16>
    %91 = vector.shape_cast %90 : vector<1x1x8x8x8xbf16> to vector<8x8x8xbf16>
    %92 = vector.shape_cast %91 : vector<8x8x8xbf16> to vector<64x8xbf16>
    %c8_94 = arith.constant 8 : index
    %c0_95 = arith.constant 0 : index
    %c0_96 = arith.constant 0 : index
    %93 = vector.load %arg3[%c8_94, %c0_95, %c0_96] : memref<36x8x16xbf16, #tpu.memory_space<vmem>>, vector<1x8x16xbf16>
    %94 = vector.shape_cast %93 : vector<1x8x16xbf16> to vector<8x16xbf16>
    %cst_97 = arith.constant dense<0.000000e+00> : vector<64x16xf32>
    %95 = tpu.matmul %92, %94, %cst_97 {dimension_numbers = #tpu.dot_dimension_numbers<[1], [0], [0], [1], [0, 0, 1, 1], [], []>} : vector<64x8xbf16>, vector<8x16xbf16>, vector<64x16xf32> -> vector<64x16xf32>
    %c0_98 = arith.constant 0 : index
    %c0_99 = arith.constant 0 : index
    %96 = vector.load %arg6[%c0_98, %c0_99] : memref<64x16xf32, #tpu.memory_space<vmem>>, vector<64x16xf32>
    %97 = arith.addf %96, %95 : vector<64x16xf32>
    %c0_100 = arith.constant 0 : index
    %c0_101 = arith.constant 0 : index
    %98 = vector.load %arg6[%c0_100, %c0_101] : memref<64x16xf32, #tpu.memory_space<vmem>>, vector<64x16xf32>
    tpu.vector_store %arg6[%c0_100, %c0_101], %97 {strides = array<i32>} : memref<64x16xf32, #tpu.memory_space<vmem>>, vector<64x16xf32>,
    %c0_102 = arith.constant 0 : index
    %c0_103 = arith.constant 0 : index
    %99 = vector.load %arg6[%c0_102, %c0_103] : memref<64x16xf32, #tpu.memory_space<vmem>>, vector<64x16xf32>
    %c0_104 = arith.constant 0 : index
    %c0_105 = arith.constant 0 : index
    %c0_106 = arith.constant 0 : index
    %100 = vector.load %arg4[%c0_104, %c0_105, %c0_106] : memref<4x1x16xf32, #tpu.memory_space<vmem>>, vector<1x1x16xf32>
    %101 = vector.shape_cast %100 : vector<1x1x16xf32> to vector<1x16xf32>
    %102 = vector.broadcast %101 : vector<1x16xf32> to vector<64x16xf32>
    %103 = arith.addf %99, %102 : vector<64x16xf32>
    %cst_107 = arith.constant 0.000000e+00 : f32
    %104 = vector.broadcast %cst_107 : f32 to vector<64x16xf32>
    %105 = arith.maximumf %103, %104 : vector<64x16xf32>
    %c0_108 = arith.constant 0 : index
    %c0_109 = arith.constant 0 : index
    %c0_110 = arith.constant 0 : index
    %106 = vector.load %arg5[%c0_108, %c0_109, %c0_110] : memref<4x64x16xf32, #tpu.memory_space<vmem>>, vector<1x64x16xf32>
    %107 = vector.shape_cast %106 : vector<1x64x16xf32> to vector<64x16xf32>
    %108 = vector.shape_cast %105 : vector<64x16xf32> to vector<1x64x16xf32>
    tpu.vector_store %arg5[%c0_108, %c0_109, %c0_110], %108 {strides = array<i32>} : memref<4x64x16xf32, #tpu.memory_space<vmem>>, vector<1x64x16xf32>,
    %c0_i32_111 = arith.constant 0 : i32
    %109 = arith.addi %1, %c0_i32_111 : i32
    %c1_112 = arith.constant 1 : index
    %c0_113 = arith.constant 0 : index
    %110 = arith.index_cast %109 : i32 to index
    %c0_114 = arith.constant 0 : index
    %c0_115 = arith.constant 0 : index
    %111 = vector.load %arg2[%c1_112, %c0_113, %110, %c0_114, %c0_115] : memref<16x1x9x9x8xbf16, #tpu.memory_space<vmem>>, vector<1x1x8x8x8xbf16>
    %112 = vector.shape_cast %111 : vector<1x1x8x8x8xbf16> to vector<8x8x8xbf16>
    %113 = vector.shape_cast %112 : vector<8x8x8xbf16> to vector<64x8xbf16>
    %c9 = arith.constant 9 : index
    %c0_116 = arith.constant 0 : index
    %c0_117 = arith.constant 0 : index
    %114 = vector.load %arg3[%c9, %c0_116, %c0_117] : memref<36x8x16xbf16, #tpu.memory_space<vmem>>, vector<1x8x16xbf16>
    %115 = vector.shape_cast %114 : vector<1x8x16xbf16> to vector<8x16xbf16>
    %cst_118 = arith.constant dense<0.000000e+00> : vector<64x16xf32>
    %116 = tpu.matmul %113, %115, %cst_118 {dimension_numbers = #tpu.dot_dimension_numbers<[1], [0], [0], [1], [0, 0, 1, 1], [], []>} : vector<64x8xbf16>, vector<8x16xbf16>, vector<64x16xf32> -> vector<64x16xf32>
    %c0_119 = arith.constant 0 : index
    %c0_120 = arith.constant 0 : index
    %117 = vector.load %arg6[%c0_119, %c0_120] : memref<64x16xf32, #tpu.memory_space<vmem>>, vector<64x16xf32>
    tpu.vector_store %arg6[%c0_119, %c0_120], %116 {strides = array<i32>} : memref<64x16xf32, #tpu.memory_space<vmem>>, vector<64x16xf32>,
    %c0_i32_121 = arith.constant 0 : i32
    %118 = arith.addi %1, %c0_i32_121 : i32
    %c5_122 = arith.constant 5 : index
    %c0_123 = arith.constant 0 : index
    %119 = arith.index_cast %118 : i32 to index
    %c0_124 = arith.constant 0 : index
    %c0_125 = arith.constant 0 : index
    %120 = vector.load %arg2[%c5_122, %c0_123, %119, %c0_124, %c0_125] : memref<16x1x9x9x8xbf16, #tpu.memory_space<vmem>>, vector<1x1x8x8x8xbf16>
    %121 = vector.shape_cast %120 : vector<1x1x8x8x8xbf16> to vector<8x8x8xbf16>
    %122 = vector.shape_cast %121 : vector<8x8x8xbf16> to vector<64x8xbf16>
    %c10 = arith.constant 10 : index
    %c0_126 = arith.constant 0 : index
    %c0_127 = arith.constant 0 : index
    %123 = vector.load %arg3[%c10, %c0_126, %c0_127] : memref<36x8x16xbf16, #tpu.memory_space<vmem>>, vector<1x8x16xbf16>
    %124 = vector.shape_cast %123 : vector<1x8x16xbf16> to vector<8x16xbf16>
    %cst_128 = arith.constant dense<0.000000e+00> : vector<64x16xf32>
    %125 = tpu.matmul %122, %124, %cst_128 {dimension_numbers = #tpu.dot_dimension_numbers<[1], [0], [0], [1], [0, 0, 1, 1], [], []>} : vector<64x8xbf16>, vector<8x16xbf16>, vector<64x16xf32> -> vector<64x16xf32>
    %c0_129 = arith.constant 0 : index
    %c0_130 = arith.constant 0 : index
    %126 = vector.load %arg6[%c0_129, %c0_130] : memref<64x16xf32, #tpu.memory_space<vmem>>, vector<64x16xf32>
    %127 = arith.addf %126, %125 : vector<64x16xf32>
    %c0_131 = arith.constant 0 : index
    %c0_132 = arith.constant 0 : index
    %128 = vector.load %arg6[%c0_131, %c0_132] : memref<64x16xf32, #tpu.memory_space<vmem>>, vector<64x16xf32>
    tpu.vector_store %arg6[%c0_131, %c0_132], %127 {strides = array<i32>} : memref<64x16xf32, #tpu.memory_space<vmem>>, vector<64x16xf32>,
    %c0_i32_133 = arith.constant 0 : i32
    %129 = arith.addi %1, %c0_i32_133 : i32
    %c1_134 = arith.constant 1 : index
    %c0_135 = arith.constant 0 : index
    %130 = arith.index_cast %129 : i32 to index
    %c1_136 = arith.constant 1 : index
    %c0_137 = arith.constant 0 : index
    %131 = vector.load %arg2[%c1_134, %c0_135, %130, %c1_136, %c0_137] : memref<16x1x9x9x8xbf16, #tpu.memory_space<vmem>>, vector<1x1x8x8x8xbf16>
    %132 = vector.shape_cast %131 : vector<1x1x8x8x8xbf16> to vector<8x8x8xbf16>
    %133 = vector.shape_cast %132 : vector<8x8x8xbf16> to vector<64x8xbf16>
    %c11 = arith.constant 11 : index
    %c0_138 = arith.constant 0 : index
    %c0_139 = arith.constant 0 : index
    %134 = vector.load %arg3[%c11, %c0_138, %c0_139] : memref<36x8x16xbf16, #tpu.memory_space<vmem>>, vector<1x8x16xbf16>
    %135 = vector.shape_cast %134 : vector<1x8x16xbf16> to vector<8x16xbf16>
    %cst_140 = arith.constant dense<0.000000e+00> : vector<64x16xf32>
    %136 = tpu.matmul %133, %135, %cst_140 {dimension_numbers = #tpu.dot_dimension_numbers<[1], [0], [0], [1], [0, 0, 1, 1], [], []>} : vector<64x8xbf16>, vector<8x16xbf16>, vector<64x16xf32> -> vector<64x16xf32>
    %c0_141 = arith.constant 0 : index
    %c0_142 = arith.constant 0 : index
    %137 = vector.load %arg6[%c0_141, %c0_142] : memref<64x16xf32, #tpu.memory_space<vmem>>, vector<64x16xf32>
    %138 = arith.addf %137, %136 : vector<64x16xf32>
    %c0_143 = arith.constant 0 : index
    %c0_144 = arith.constant 0 : index
    %139 = vector.load %arg6[%c0_143, %c0_144] : memref<64x16xf32, #tpu.memory_space<vmem>>, vector<64x16xf32>
    tpu.vector_store %arg6[%c0_143, %c0_144], %138 {strides = array<i32>} : memref<64x16xf32, #tpu.memory_space<vmem>>, vector<64x16xf32>,
    %c0_i32_145 = arith.constant 0 : i32
    %140 = arith.addi %1, %c0_i32_145 : i32
    %c9_146 = arith.constant 9 : index
    %c0_147 = arith.constant 0 : index
    %141 = arith.index_cast %140 : i32 to index
    %c0_148 = arith.constant 0 : index
    %c0_149 = arith.constant 0 : index
    %142 = vector.load %arg2[%c9_146, %c0_147, %141, %c0_148, %c0_149] : memref<16x1x9x9x8xbf16, #tpu.memory_space<vmem>>, vector<1x1x8x8x8xbf16>
    %143 = vector.shape_cast %142 : vector<1x1x8x8x8xbf16> to vector<8x8x8xbf16>
    %144 = vector.shape_cast %143 : vector<8x8x8xbf16> to vector<64x8xbf16>
    %c12_150 = arith.constant 12 : index
    %c0_151 = arith.constant 0 : index
    %c0_152 = arith.constant 0 : index
    %145 = vector.load %arg3[%c12_150, %c0_151, %c0_152] : memref<36x8x16xbf16, #tpu.memory_space<vmem>>, vector<1x8x16xbf16>
    %146 = vector.shape_cast %145 : vector<1x8x16xbf16> to vector<8x16xbf16>
    %cst_153 = arith.constant dense<0.000000e+00> : vector<64x16xf32>
    %147 = tpu.matmul %144, %146, %cst_153 {dimension_numbers = #tpu.dot_dimension_numbers<[1], [0], [0], [1], [0, 0, 1, 1], [], []>} : vector<64x8xbf16>, vector<8x16xbf16>, vector<64x16xf32> -> vector<64x16xf32>
    %c0_154 = arith.constant 0 : index
    %c0_155 = arith.constant 0 : index
    %148 = vector.load %arg6[%c0_154, %c0_155] : memref<64x16xf32, #tpu.memory_space<vmem>>, vector<64x16xf32>
    %149 = arith.addf %148, %147 : vector<64x16xf32>
    %c0_156 = arith.constant 0 : index
    %c0_157 = arith.constant 0 : index
    %150 = vector.load %arg6[%c0_156, %c0_157] : memref<64x16xf32, #tpu.memory_space<vmem>>, vector<64x16xf32>
    tpu.vector_store %arg6[%c0_156, %c0_157], %149 {strides = array<i32>} : memref<64x16xf32, #tpu.memory_space<vmem>>, vector<64x16xf32>,
    %c0_i32_158 = arith.constant 0 : i32
    %151 = arith.addi %1, %c0_i32_158 : i32
    %c13 = arith.constant 13 : index
    %c0_159 = arith.constant 0 : index
    %152 = arith.index_cast %151 : i32 to index
    %c0_160 = arith.constant 0 : index
    %c0_161 = arith.constant 0 : index
    %153 = vector.load %arg2[%c13, %c0_159, %152, %c0_160, %c0_161] : memref<16x1x9x9x8xbf16, #tpu.memory_space<vmem>>, vector<1x1x8x8x8xbf16>
    %154 = vector.shape_cast %153 : vector<1x1x8x8x8xbf16> to vector<8x8x8xbf16>
    %155 = vector.shape_cast %154 : vector<8x8x8xbf16> to vector<64x8xbf16>
    %c13_162 = arith.constant 13 : index
    %c0_163 = arith.constant 0 : index
    %c0_164 = arith.constant 0 : index
    %156 = vector.load %arg3[%c13_162, %c0_163, %c0_164] : memref<36x8x16xbf16, #tpu.memory_space<vmem>>, vector<1x8x16xbf16>
    %157 = vector.shape_cast %156 : vector<1x8x16xbf16> to vector<8x16xbf16>
    %cst_165 = arith.constant dense<0.000000e+00> : vector<64x16xf32>
    %158 = tpu.matmul %155, %157, %cst_165 {dimension_numbers = #tpu.dot_dimension_numbers<[1], [0], [0], [1], [0, 0, 1, 1], [], []>} : vector<64x8xbf16>, vector<8x16xbf16>, vector<64x16xf32> -> vector<64x16xf32>
    %c0_166 = arith.constant 0 : index
    %c0_167 = arith.constant 0 : index
    %159 = vector.load %arg6[%c0_166, %c0_167] : memref<64x16xf32, #tpu.memory_space<vmem>>, vector<64x16xf32>
    %160 = arith.addf %159, %158 : vector<64x16xf32>
    %c0_168 = arith.constant 0 : index
    %c0_169 = arith.constant 0 : index
    %161 = vector.load %arg6[%c0_168, %c0_169] : memref<64x16xf32, #tpu.memory_space<vmem>>, vector<64x16xf32>
    tpu.vector_store %arg6[%c0_168, %c0_169], %160 {strides = array<i32>} : memref<64x16xf32, #tpu.memory_space<vmem>>, vector<64x16xf32>,
    %c0_i32_170 = arith.constant 0 : i32
    %162 = arith.addi %1, %c0_i32_170 : i32
    %c9_171 = arith.constant 9 : index
    %c0_172 = arith.constant 0 : index
    %163 = arith.index_cast %162 : i32 to index
    %c1_173 = arith.constant 1 : index
    %c0_174 = arith.constant 0 : index
    %164 = vector.load %arg2[%c9_171, %c0_172, %163, %c1_173, %c0_174] : memref<16x1x9x9x8xbf16, #tpu.memory_space<vmem>>, vector<1x1x8x8x8xbf16>
    %165 = vector.shape_cast %164 : vector<1x1x8x8x8xbf16> to vector<8x8x8xbf16>
    %166 = vector.shape_cast %165 : vector<8x8x8xbf16> to vector<64x8xbf16>
    %c14 = arith.constant 14 : index
    %c0_175 = arith.constant 0 : index
    %c0_176 = arith.constant 0 : index
    %167 = vector.load %arg3[%c14, %c0_175, %c0_176] : memref<36x8x16xbf16, #tpu.memory_space<vmem>>, vector<1x8x16xbf16>
    %168 = vector.shape_cast %167 : vector<1x8x16xbf16> to vector<8x16xbf16>
    %cst_177 = arith.constant dense<0.000000e+00> : vector<64x16xf32>
    %169 = tpu.matmul %166, %168, %cst_177 {dimension_numbers = #tpu.dot_dimension_numbers<[1], [0], [0], [1], [0, 0, 1, 1], [], []>} : vector<64x8xbf16>, vector<8x16xbf16>, vector<64x16xf32> -> vector<64x16xf32>
    %c0_178 = arith.constant 0 : index
    %c0_179 = arith.constant 0 : index
    %170 = vector.load %arg6[%c0_178, %c0_179] : memref<64x16xf32, #tpu.memory_space<vmem>>, vector<64x16xf32>
    %171 = arith.addf %170, %169 : vector<64x16xf32>
    %c0_180 = arith.constant 0 : index
    %c0_181 = arith.constant 0 : index
    %172 = vector.load %arg6[%c0_180, %c0_181] : memref<64x16xf32, #tpu.memory_space<vmem>>, vector<64x16xf32>
    tpu.vector_store %arg6[%c0_180, %c0_181], %171 {strides = array<i32>} : memref<64x16xf32, #tpu.memory_space<vmem>>, vector<64x16xf32>,
    %c1_i32_182 = arith.constant 1 : i32
    %173 = arith.addi %1, %c1_i32_182 : i32
    %c1_183 = arith.constant 1 : index
    %c0_184 = arith.constant 0 : index
    %174 = arith.index_cast %173 : i32 to index
    %c0_185 = arith.constant 0 : index
    %c0_186 = arith.constant 0 : index
    %175 = vector.load %arg2[%c1_183, %c0_184, %174, %c0_185, %c0_186] : memref<16x1x9x9x8xbf16, #tpu.memory_space<vmem>>, vector<1x1x8x8x8xbf16>
    %176 = vector.shape_cast %175 : vector<1x1x8x8x8xbf16> to vector<8x8x8xbf16>
    %177 = vector.shape_cast %176 : vector<8x8x8xbf16> to vector<64x8xbf16>
    %c15 = arith.constant 15 : index
    %c0_187 = arith.constant 0 : index
    %c0_188 = arith.constant 0 : index
    %178 = vector.load %arg3[%c15, %c0_187, %c0_188] : memref<36x8x16xbf16, #tpu.memory_space<vmem>>, vector<1x8x16xbf16>
    %179 = vector.shape_cast %178 : vector<1x8x16xbf16> to vector<8x16xbf16>
    %cst_189 = arith.constant dense<0.000000e+00> : vector<64x16xf32>
    %180 = tpu.matmul %177, %179, %cst_189 {dimension_numbers = #tpu.dot_dimension_numbers<[1], [0], [0], [1], [0, 0, 1, 1], [], []>} : vector<64x8xbf16>, vector<8x16xbf16>, vector<64x16xf32> -> vector<64x16xf32>
    %c0_190 = arith.constant 0 : index
    %c0_191 = arith.constant 0 : index
    %181 = vector.load %arg6[%c0_190, %c0_191] : memref<64x16xf32, #tpu.memory_space<vmem>>, vector<64x16xf32>
    %182 = arith.addf %181, %180 : vector<64x16xf32>
    %c0_192 = arith.constant 0 : index
    %c0_193 = arith.constant 0 : index
    %183 = vector.load %arg6[%c0_192, %c0_193] : memref<64x16xf32, #tpu.memory_space<vmem>>, vector<64x16xf32>
    tpu.vector_store %arg6[%c0_192, %c0_193], %182 {strides = array<i32>} : memref<64x16xf32, #tpu.memory_space<vmem>>, vector<64x16xf32>,
    %c1_i32_194 = arith.constant 1 : i32
    %184 = arith.addi %1, %c1_i32_194 : i32
    %c5_195 = arith.constant 5 : index
    %c0_196 = arith.constant 0 : index
    %185 = arith.index_cast %184 : i32 to index
    %c0_197 = arith.constant 0 : index
    %c0_198 = arith.constant 0 : index
    %186 = vector.load %arg2[%c5_195, %c0_196, %185, %c0_197, %c0_198] : memref<16x1x9x9x8xbf16, #tpu.memory_space<vmem>>, vector<1x1x8x8x8xbf16>
    %187 = vector.shape_cast %186 : vector<1x1x8x8x8xbf16> to vector<8x8x8xbf16>
    %188 = vector.shape_cast %187 : vector<8x8x8xbf16> to vector<64x8xbf16>
    %c16 = arith.constant 16 : index
    %c0_199 = arith.constant 0 : index
    %c0_200 = arith.constant 0 : index
    %189 = vector.load %arg3[%c16, %c0_199, %c0_200] : memref<36x8x16xbf16, #tpu.memory_space<vmem>>, vector<1x8x16xbf16>
    %190 = vector.shape_cast %189 : vector<1x8x16xbf16> to vector<8x16xbf16>
    %cst_201 = arith.constant dense<0.000000e+00> : vector<64x16xf32>
    %191 = tpu.matmul %188, %190, %cst_201 {dimension_numbers = #tpu.dot_dimension_numbers<[1], [0], [0], [1], [0, 0, 1, 1], [], []>} : vector<64x8xbf16>, vector<8x16xbf16>, vector<64x16xf32> -> vector<64x16xf32>
    %c0_202 = arith.constant 0 : index
    %c0_203 = arith.constant 0 : index
    %192 = vector.load %arg6[%c0_202, %c0_203] : memref<64x16xf32, #tpu.memory_space<vmem>>, vector<64x16xf32>
    %193 = arith.addf %192, %191 : vector<64x16xf32>
    %c0_204 = arith.constant 0 : index
    %c0_205 = arith.constant 0 : index
    %194 = vector.load %arg6[%c0_204, %c0_205] : memref<64x16xf32, #tpu.memory_space<vmem>>, vector<64x16xf32>
    tpu.vector_store %arg6[%c0_204, %c0_205], %193 {strides = array<i32>} : memref<64x16xf32, #tpu.memory_space<vmem>>, vector<64x16xf32>,
    %c1_i32_206 = arith.constant 1 : i32
    %195 = arith.addi %1, %c1_i32_206 : i32
    %c1_207 = arith.constant 1 : index
    %c0_208 = arith.constant 0 : index
    %196 = arith.index_cast %195 : i32 to index
    %c1_209 = arith.constant 1 : index
    %c0_210 = arith.constant 0 : index
    %197 = vector.load %arg2[%c1_207, %c0_208, %196, %c1_209, %c0_210] : memref<16x1x9x9x8xbf16, #tpu.memory_space<vmem>>, vector<1x1x8x8x8xbf16>
    %198 = vector.shape_cast %197 : vector<1x1x8x8x8xbf16> to vector<8x8x8xbf16>
    %199 = vector.shape_cast %198 : vector<8x8x8xbf16> to vector<64x8xbf16>
    %c17 = arith.constant 17 : index
    %c0_211 = arith.constant 0 : index
    %c0_212 = arith.constant 0 : index
    %200 = vector.load %arg3[%c17, %c0_211, %c0_212] : memref<36x8x16xbf16, #tpu.memory_space<vmem>>, vector<1x8x16xbf16>
    %201 = vector.shape_cast %200 : vector<1x8x16xbf16> to vector<8x16xbf16>
    %cst_213 = arith.constant dense<0.000000e+00> : vector<64x16xf32>
    %202 = tpu.matmul %199, %201, %cst_213 {dimension_numbers = #tpu.dot_dimension_numbers<[1], [0], [0], [1], [0, 0, 1, 1], [], []>} : vector<64x8xbf16>, vector<8x16xbf16>, vector<64x16xf32> -> vector<64x16xf32>
    %c0_214 = arith.constant 0 : index
    %c0_215 = arith.constant 0 : index
    %203 = vector.load %arg6[%c0_214, %c0_215] : memref<64x16xf32, #tpu.memory_space<vmem>>, vector<64x16xf32>
    %204 = arith.addf %203, %202 : vector<64x16xf32>
    %c0_216 = arith.constant 0 : index
    %c0_217 = arith.constant 0 : index
    %205 = vector.load %arg6[%c0_216, %c0_217] : memref<64x16xf32, #tpu.memory_space<vmem>>, vector<64x16xf32>
    tpu.vector_store %arg6[%c0_216, %c0_217], %204 {strides = array<i32>} : memref<64x16xf32, #tpu.memory_space<vmem>>, vector<64x16xf32>,
    %c0_218 = arith.constant 0 : index
    %c0_219 = arith.constant 0 : index
    %206 = vector.load %arg6[%c0_218, %c0_219] : memref<64x16xf32, #tpu.memory_space<vmem>>, vector<64x16xf32>
    %c1_220 = arith.constant 1 : index
    %c0_221 = arith.constant 0 : index
    %c0_222 = arith.constant 0 : index
    %207 = vector.load %arg4[%c1_220, %c0_221, %c0_222] : memref<4x1x16xf32, #tpu.memory_space<vmem>>, vector<1x1x16xf32>
    %208 = vector.shape_cast %207 : vector<1x1x16xf32> to vector<1x16xf32>
    %209 = vector.broadcast %208 : vector<1x16xf32> to vector<64x16xf32>
    %210 = arith.addf %206, %209 : vector<64x16xf32>
    %cst_223 = arith.constant 0.000000e+00 : f32
    %211 = vector.broadcast %cst_223 : f32 to vector<64x16xf32>
    %212 = arith.maximumf %210, %211 : vector<64x16xf32>
    %c1_224 = arith.constant 1 : index
    %c0_225 = arith.constant 0 : index
    %c0_226 = arith.constant 0 : index
    %213 = vector.load %arg5[%c1_224, %c0_225, %c0_226] : memref<4x64x16xf32, #tpu.memory_space<vmem>>, vector<1x64x16xf32>
    %214 = vector.shape_cast %213 : vector<1x64x16xf32> to vector<64x16xf32>
    %215 = vector.shape_cast %212 : vector<64x16xf32> to vector<1x64x16xf32>
    tpu.vector_store %arg5[%c1_224, %c0_225, %c0_226], %215 {strides = array<i32>} : memref<4x64x16xf32, #tpu.memory_space<vmem>>, vector<1x64x16xf32>,
    %c0_i32_227 = arith.constant 0 : i32
    %216 = arith.addi %1, %c0_i32_227 : i32
    %c2_228 = arith.constant 2 : index
    %c0_229 = arith.constant 0 : index
    %217 = arith.index_cast %216 : i32 to index
    %c0_230 = arith.constant 0 : index
    %c0_231 = arith.constant 0 : index
    %218 = vector.load %arg2[%c2_228, %c0_229, %217, %c0_230, %c0_231] : memref<16x1x9x9x8xbf16, #tpu.memory_space<vmem>>, vector<1x1x8x8x8xbf16>
    %219 = vector.shape_cast %218 : vector<1x1x8x8x8xbf16> to vector<8x8x8xbf16>
    %220 = vector.shape_cast %219 : vector<8x8x8xbf16> to vector<64x8xbf16>
    %c18 = arith.constant 18 : index
    %c0_232 = arith.constant 0 : index
    %c0_233 = arith.constant 0 : index
    %221 = vector.load %arg3[%c18, %c0_232, %c0_233] : memref<36x8x16xbf16, #tpu.memory_space<vmem>>, vector<1x8x16xbf16>
    %222 = vector.shape_cast %221 : vector<1x8x16xbf16> to vector<8x16xbf16>
    %cst_234 = arith.constant dense<0.000000e+00> : vector<64x16xf32>
    %223 = tpu.matmul %220, %222, %cst_234 {dimension_numbers = #tpu.dot_dimension_numbers<[1], [0], [0], [1], [0, 0, 1, 1], [], []>} : vector<64x8xbf16>, vector<8x16xbf16>, vector<64x16xf32> -> vector<64x16xf32>
    %c0_235 = arith.constant 0 : index
    %c0_236 = arith.constant 0 : index
    %224 = vector.load %arg6[%c0_235, %c0_236] : memref<64x16xf32, #tpu.memory_space<vmem>>, vector<64x16xf32>
    tpu.vector_store %arg6[%c0_235, %c0_236], %223 {strides = array<i32>} : memref<64x16xf32, #tpu.memory_space<vmem>>, vector<64x16xf32>,
    %c0_i32_237 = arith.constant 0 : i32
    %225 = arith.addi %1, %c0_i32_237 : i32
    %c6_238 = arith.constant 6 : index
    %c0_239 = arith.constant 0 : index
    %226 = arith.index_cast %225 : i32 to index
    %c0_240 = arith.constant 0 : index
    %c0_241 = arith.constant 0 : index
    %227 = vector.load %arg2[%c6_238, %c0_239, %226, %c0_240, %c0_241] : memref<16x1x9x9x8xbf16, #tpu.memory_space<vmem>>, vector<1x1x8x8x8xbf16>
    %228 = vector.shape_cast %227 : vector<1x1x8x8x8xbf16> to vector<8x8x8xbf16>
    %229 = vector.shape_cast %228 : vector<8x8x8xbf16> to vector<64x8xbf16>
    %c19 = arith.constant 19 : index
    %c0_242 = arith.constant 0 : index
    %c0_243 = arith.constant 0 : index
    %230 = vector.load %arg3[%c19, %c0_242, %c0_243] : memref<36x8x16xbf16, #tpu.memory_space<vmem>>, vector<1x8x16xbf16>
    %231 = vector.shape_cast %230 : vector<1x8x16xbf16> to vector<8x16xbf16>
    %cst_244 = arith.constant dense<0.000000e+00> : vector<64x16xf32>
    %232 = tpu.matmul %229, %231, %cst_244 {dimension_numbers = #tpu.dot_dimension_numbers<[1], [0], [0], [1], [0, 0, 1, 1], [], []>} : vector<64x8xbf16>, vector<8x16xbf16>, vector<64x16xf32> -> vector<64x16xf32>
    %c0_245 = arith.constant 0 : index
    %c0_246 = arith.constant 0 : index
    %233 = vector.load %arg6[%c0_245, %c0_246] : memref<64x16xf32, #tpu.memory_space<vmem>>, vector<64x16xf32>
    %234 = arith.addf %233, %232 : vector<64x16xf32>
    %c0_247 = arith.constant 0 : index
    %c0_248 = arith.constant 0 : index
    %235 = vector.load %arg6[%c0_247, %c0_248] : memref<64x16xf32, #tpu.memory_space<vmem>>, vector<64x16xf32>
    tpu.vector_store %arg6[%c0_247, %c0_248], %234 {strides = array<i32>} : memref<64x16xf32, #tpu.memory_space<vmem>>, vector<64x16xf32>,
    %c0_i32_249 = arith.constant 0 : i32
    %236 = arith.addi %1, %c0_i32_249 : i32
    %c2_250 = arith.constant 2 : index
    %c0_251 = arith.constant 0 : index
    %237 = arith.index_cast %236 : i32 to index
    %c1_252 = arith.constant 1 : index
    %c0_253 = arith.constant 0 : index
    %238 = vector.load %arg2[%c2_250, %c0_251, %237, %c1_252, %c0_253] : memref<16x1x9x9x8xbf16, #tpu.memory_space<vmem>>, vector<1x1x8x8x8xbf16>
    %239 = vector.shape_cast %238 : vector<1x1x8x8x8xbf16> to vector<8x8x8xbf16>
    %240 = vector.shape_cast %239 : vector<8x8x8xbf16> to vector<64x8xbf16>
    %c20 = arith.constant 20 : index
    %c0_254 = arith.constant 0 : index
    %c0_255 = arith.constant 0 : index
    %241 = vector.load %arg3[%c20, %c0_254, %c0_255] : memref<36x8x16xbf16, #tpu.memory_space<vmem>>, vector<1x8x16xbf16>
    %242 = vector.shape_cast %241 : vector<1x8x16xbf16> to vector<8x16xbf16>
    %cst_256 = arith.constant dense<0.000000e+00> : vector<64x16xf32>
    %243 = tpu.matmul %240, %242, %cst_256 {dimension_numbers = #tpu.dot_dimension_numbers<[1], [0], [0], [1], [0, 0, 1, 1], [], []>} : vector<64x8xbf16>, vector<8x16xbf16>, vector<64x16xf32> -> vector<64x16xf32>
    %c0_257 = arith.constant 0 : index
    %c0_258 = arith.constant 0 : index
    %244 = vector.load %arg6[%c0_257, %c0_258] : memref<64x16xf32, #tpu.memory_space<vmem>>, vector<64x16xf32>
    %245 = arith.addf %244, %243 : vector<64x16xf32>
    %c0_259 = arith.constant 0 : index
    %c0_260 = arith.constant 0 : index
    %246 = vector.load %arg6[%c0_259, %c0_260] : memref<64x16xf32, #tpu.memory_space<vmem>>, vector<64x16xf32>
    tpu.vector_store %arg6[%c0_259, %c0_260], %245 {strides = array<i32>} : memref<64x16xf32, #tpu.memory_space<vmem>>, vector<64x16xf32>,
    %c0_i32_261 = arith.constant 0 : i32
    %247 = arith.addi %1, %c0_i32_261 : i32
    %c10_262 = arith.constant 10 : index
    %c0_263 = arith.constant 0 : index
    %248 = arith.index_cast %247 : i32 to index
    %c0_264 = arith.constant 0 : index
    %c0_265 = arith.constant 0 : index
    %249 = vector.load %arg2[%c10_262, %c0_263, %248, %c0_264, %c0_265] : memref<16x1x9x9x8xbf16, #tpu.memory_space<vmem>>, vector<1x1x8x8x8xbf16>
    %250 = vector.shape_cast %249 : vector<1x1x8x8x8xbf16> to vector<8x8x8xbf16>
    %251 = vector.shape_cast %250 : vector<8x8x8xbf16> to vector<64x8xbf16>
    %c21 = arith.constant 21 : index
    %c0_266 = arith.constant 0 : index
    %c0_267 = arith.constant 0 : index
    %252 = vector.load %arg3[%c21, %c0_266, %c0_267] : memref<36x8x16xbf16, #tpu.memory_space<vmem>>, vector<1x8x16xbf16>
    %253 = vector.shape_cast %252 : vector<1x8x16xbf16> to vector<8x16xbf16>
    %cst_268 = arith.constant dense<0.000000e+00> : vector<64x16xf32>
    %254 = tpu.matmul %251, %253, %cst_268 {dimension_numbers = #tpu.dot_dimension_numbers<[1], [0], [0], [1], [0, 0, 1, 1], [], []>} : vector<64x8xbf16>, vector<8x16xbf16>, vector<64x16xf32> -> vector<64x16xf32>
    %c0_269 = arith.constant 0 : index
    %c0_270 = arith.constant 0 : index
    %255 = vector.load %arg6[%c0_269, %c0_270] : memref<64x16xf32, #tpu.memory_space<vmem>>, vector<64x16xf32>
    %256 = arith.addf %255, %254 : vector<64x16xf32>
    %c0_271 = arith.constant 0 : index
    %c0_272 = arith.constant 0 : index
    %257 = vector.load %arg6[%c0_271, %c0_272] : memref<64x16xf32, #tpu.memory_space<vmem>>, vector<64x16xf32>
    tpu.vector_store %arg6[%c0_271, %c0_272], %256 {strides = array<i32>} : memref<64x16xf32, #tpu.memory_space<vmem>>, vector<64x16xf32>,
    %c0_i32_273 = arith.constant 0 : i32
    %258 = arith.addi %1, %c0_i32_273 : i32
    %c14_274 = arith.constant 14 : index
    %c0_275 = arith.constant 0 : index
    %259 = arith.index_cast %258 : i32 to index
    %c0_276 = arith.constant 0 : index
    %c0_277 = arith.constant 0 : index
    %260 = vector.load %arg2[%c14_274, %c0_275, %259, %c0_276, %c0_277] : memref<16x1x9x9x8xbf16, #tpu.memory_space<vmem>>, vector<1x1x8x8x8xbf16>
    %261 = vector.shape_cast %260 : vector<1x1x8x8x8xbf16> to vector<8x8x8xbf16>
    %262 = vector.shape_cast %261 : vector<8x8x8xbf16> to vector<64x8xbf16>
    %c22 = arith.constant 22 : index
    %c0_278 = arith.constant 0 : index
    %c0_279 = arith.constant 0 : index
    %263 = vector.load %arg3[%c22, %c0_278, %c0_279] : memref<36x8x16xbf16, #tpu.memory_space<vmem>>, vector<1x8x16xbf16>
    %264 = vector.shape_cast %263 : vector<1x8x16xbf16> to vector<8x16xbf16>
    %cst_280 = arith.constant dense<0.000000e+00> : vector<64x16xf32>
    %265 = tpu.matmul %262, %264, %cst_280 {dimension_numbers = #tpu.dot_dimension_numbers<[1], [0], [0], [1], [0, 0, 1, 1], [], []>} : vector<64x8xbf16>, vector<8x16xbf16>, vector<64x16xf32> -> vector<64x16xf32>
    %c0_281 = arith.constant 0 : index
    %c0_282 = arith.constant 0 : index
    %266 = vector.load %arg6[%c0_281, %c0_282] : memref<64x16xf32, #tpu.memory_space<vmem>>, vector<64x16xf32>
    %267 = arith.addf %266, %265 : vector<64x16xf32>
    %c0_283 = arith.constant 0 : index
    %c0_284 = arith.constant 0 : index
    %268 = vector.load %arg6[%c0_283, %c0_284] : memref<64x16xf32, #tpu.memory_space<vmem>>, vector<64x16xf32>
    tpu.vector_store %arg6[%c0_283, %c0_284], %267 {strides = array<i32>} : memref<64x16xf32, #tpu.memory_space<vmem>>, vector<64x16xf32>,
    %c0_i32_285 = arith.constant 0 : i32
    %269 = arith.addi %1, %c0_i32_285 : i32
    %c10_286 = arith.constant 10 : index
    %c0_287 = arith.constant 0 : index
    %270 = arith.index_cast %269 : i32 to index
    %c1_288 = arith.constant 1 : index
    %c0_289 = arith.constant 0 : index
    %271 = vector.load %arg2[%c10_286, %c0_287, %270, %c1_288, %c0_289] : memref<16x1x9x9x8xbf16, #tpu.memory_space<vmem>>, vector<1x1x8x8x8xbf16>
    %272 = vector.shape_cast %271 : vector<1x1x8x8x8xbf16> to vector<8x8x8xbf16>
    %273 = vector.shape_cast %272 : vector<8x8x8xbf16> to vector<64x8xbf16>
    %c23 = arith.constant 23 : index
    %c0_290 = arith.constant 0 : index
    %c0_291 = arith.constant 0 : index
    %274 = vector.load %arg3[%c23, %c0_290, %c0_291] : memref<36x8x16xbf16, #tpu.memory_space<vmem>>, vector<1x8x16xbf16>
    %275 = vector.shape_cast %274 : vector<1x8x16xbf16> to vector<8x16xbf16>
    %cst_292 = arith.constant dense<0.000000e+00> : vector<64x16xf32>
    %276 = tpu.matmul %273, %275, %cst_292 {dimension_numbers = #tpu.dot_dimension_numbers<[1], [0], [0], [1], [0, 0, 1, 1], [], []>} : vector<64x8xbf16>, vector<8x16xbf16>, vector<64x16xf32> -> vector<64x16xf32>
    %c0_293 = arith.constant 0 : index
    %c0_294 = arith.constant 0 : index
    %277 = vector.load %arg6[%c0_293, %c0_294] : memref<64x16xf32, #tpu.memory_space<vmem>>, vector<64x16xf32>
    %278 = arith.addf %277, %276 : vector<64x16xf32>
    %c0_295 = arith.constant 0 : index
    %c0_296 = arith.constant 0 : index
    %279 = vector.load %arg6[%c0_295, %c0_296] : memref<64x16xf32, #tpu.memory_space<vmem>>, vector<64x16xf32>
    tpu.vector_store %arg6[%c0_295, %c0_296], %278 {strides = array<i32>} : memref<64x16xf32, #tpu.memory_space<vmem>>, vector<64x16xf32>,
    %c1_i32_297 = arith.constant 1 : i32
    %280 = arith.addi %1, %c1_i32_297 : i32
    %c2_298 = arith.constant 2 : index
    %c0_299 = arith.constant 0 : index
    %281 = arith.index_cast %280 : i32 to index
    %c0_300 = arith.constant 0 : index
    %c0_301 = arith.constant 0 : index
    %282 = vector.load %arg2[%c2_298, %c0_299, %281, %c0_300, %c0_301] : memref<16x1x9x9x8xbf16, #tpu.memory_space<vmem>>, vector<1x1x8x8x8xbf16>
    %283 = vector.shape_cast %282 : vector<1x1x8x8x8xbf16> to vector<8x8x8xbf16>
    %284 = vector.shape_cast %283 : vector<8x8x8xbf16> to vector<64x8xbf16>
    %c24 = arith.constant 24 : index
    %c0_302 = arith.constant 0 : index
    %c0_303 = arith.constant 0 : index
    %285 = vector.load %arg3[%c24, %c0_302, %c0_303] : memref<36x8x16xbf16, #tpu.memory_space<vmem>>, vector<1x8x16xbf16>
    %286 = vector.shape_cast %285 : vector<1x8x16xbf16> to vector<8x16xbf16>
    %cst_304 = arith.constant dense<0.000000e+00> : vector<64x16xf32>
    %287 = tpu.matmul %284, %286, %cst_304 {dimension_numbers = #tpu.dot_dimension_numbers<[1], [0], [0], [1], [0, 0, 1, 1], [], []>} : vector<64x8xbf16>, vector<8x16xbf16>, vector<64x16xf32> -> vector<64x16xf32>
    %c0_305 = arith.constant 0 : index
    %c0_306 = arith.constant 0 : index
    %288 = vector.load %arg6[%c0_305, %c0_306] : memref<64x16xf32, #tpu.memory_space<vmem>>, vector<64x16xf32>
    %289 = arith.addf %288, %287 : vector<64x16xf32>
    %c0_307 = arith.constant 0 : index
    %c0_308 = arith.constant 0 : index
    %290 = vector.load %arg6[%c0_307, %c0_308] : memref<64x16xf32, #tpu.memory_space<vmem>>, vector<64x16xf32>
    tpu.vector_store %arg6[%c0_307, %c0_308], %289 {strides = array<i32>} : memref<64x16xf32, #tpu.memory_space<vmem>>, vector<64x16xf32>,
    %c1_i32_309 = arith.constant 1 : i32
    %291 = arith.addi %1, %c1_i32_309 : i32
    %c6_310 = arith.constant 6 : index
    %c0_311 = arith.constant 0 : index
    %292 = arith.index_cast %291 : i32 to index
    %c0_312 = arith.constant 0 : index
    %c0_313 = arith.constant 0 : index
    %293 = vector.load %arg2[%c6_310, %c0_311, %292, %c0_312, %c0_313] : memref<16x1x9x9x8xbf16, #tpu.memory_space<vmem>>, vector<1x1x8x8x8xbf16>
    %294 = vector.shape_cast %293 : vector<1x1x8x8x8xbf16> to vector<8x8x8xbf16>
    %295 = vector.shape_cast %294 : vector<8x8x8xbf16> to vector<64x8xbf16>
    %c25 = arith.constant 25 : index
    %c0_314 = arith.constant 0 : index
    %c0_315 = arith.constant 0 : index
    %296 = vector.load %arg3[%c25, %c0_314, %c0_315] : memref<36x8x16xbf16, #tpu.memory_space<vmem>>, vector<1x8x16xbf16>
    %297 = vector.shape_cast %296 : vector<1x8x16xbf16> to vector<8x16xbf16>
    %cst_316 = arith.constant dense<0.000000e+00> : vector<64x16xf32>
    %298 = tpu.matmul %295, %297, %cst_316 {dimension_numbers = #tpu.dot_dimension_numbers<[1], [0], [0], [1], [0, 0, 1, 1], [], []>} : vector<64x8xbf16>, vector<8x16xbf16>, vector<64x16xf32> -> vector<64x16xf32>
    %c0_317 = arith.constant 0 : index
    %c0_318 = arith.constant 0 : index
    %299 = vector.load %arg6[%c0_317, %c0_318] : memref<64x16xf32, #tpu.memory_space<vmem>>, vector<64x16xf32>
    %300 = arith.addf %299, %298 : vector<64x16xf32>
    %c0_319 = arith.constant 0 : index
    %c0_320 = arith.constant 0 : index
    %301 = vector.load %arg6[%c0_319, %c0_320] : memref<64x16xf32, #tpu.memory_space<vmem>>, vector<64x16xf32>
    tpu.vector_store %arg6[%c0_319, %c0_320], %300 {strides = array<i32>} : memref<64x16xf32, #tpu.memory_space<vmem>>, vector<64x16xf32>,
    %c1_i32_321 = arith.constant 1 : i32
    %302 = arith.addi %1, %c1_i32_321 : i32
    %c2_322 = arith.constant 2 : index
    %c0_323 = arith.constant 0 : index
    %303 = arith.index_cast %302 : i32 to index
    %c1_324 = arith.constant 1 : index
    %c0_325 = arith.constant 0 : index
    %304 = vector.load %arg2[%c2_322, %c0_323, %303, %c1_324, %c0_325] : memref<16x1x9x9x8xbf16, #tpu.memory_space<vmem>>, vector<1x1x8x8x8xbf16>
    %305 = vector.shape_cast %304 : vector<1x1x8x8x8xbf16> to vector<8x8x8xbf16>
    %306 = vector.shape_cast %305 : vector<8x8x8xbf16> to vector<64x8xbf16>
    %c26 = arith.constant 26 : index
    %c0_326 = arith.constant 0 : index
    %c0_327 = arith.constant 0 : index
    %307 = vector.load %arg3[%c26, %c0_326, %c0_327] : memref<36x8x16xbf16, #tpu.memory_space<vmem>>, vector<1x8x16xbf16>
    %308 = vector.shape_cast %307 : vector<1x8x16xbf16> to vector<8x16xbf16>
    %cst_328 = arith.constant dense<0.000000e+00> : vector<64x16xf32>
    %309 = tpu.matmul %306, %308, %cst_328 {dimension_numbers = #tpu.dot_dimension_numbers<[1], [0], [0], [1], [0, 0, 1, 1], [], []>} : vector<64x8xbf16>, vector<8x16xbf16>, vector<64x16xf32> -> vector<64x16xf32>
    %c0_329 = arith.constant 0 : index
    %c0_330 = arith.constant 0 : index
    %310 = vector.load %arg6[%c0_329, %c0_330] : memref<64x16xf32, #tpu.memory_space<vmem>>, vector<64x16xf32>
    %311 = arith.addf %310, %309 : vector<64x16xf32>
    %c0_331 = arith.constant 0 : index
    %c0_332 = arith.constant 0 : index
    %312 = vector.load %arg6[%c0_331, %c0_332] : memref<64x16xf32, #tpu.memory_space<vmem>>, vector<64x16xf32>
    tpu.vector_store %arg6[%c0_331, %c0_332], %311 {strides = array<i32>} : memref<64x16xf32, #tpu.memory_space<vmem>>, vector<64x16xf32>,
    %c0_333 = arith.constant 0 : index
    %c0_334 = arith.constant 0 : index
    %313 = vector.load %arg6[%c0_333, %c0_334] : memref<64x16xf32, #tpu.memory_space<vmem>>, vector<64x16xf32>
    %c2_335 = arith.constant 2 : index
    %c0_336 = arith.constant 0 : index
    %c0_337 = arith.constant 0 : index
    %314 = vector.load %arg4[%c2_335, %c0_336, %c0_337] : memref<4x1x16xf32, #tpu.memory_space<vmem>>, vector<1x1x16xf32>
    %315 = vector.shape_cast %314 : vector<1x1x16xf32> to vector<1x16xf32>
    %316 = vector.broadcast %315 : vector<1x16xf32> to vector<64x16xf32>
    %317 = arith.addf %313, %316 : vector<64x16xf32>
    %cst_338 = arith.constant 0.000000e+00 : f32
    %318 = vector.broadcast %cst_338 : f32 to vector<64x16xf32>
    %319 = arith.maximumf %317, %318 : vector<64x16xf32>
    %c2_339 = arith.constant 2 : index
    %c0_340 = arith.constant 0 : index
    %c0_341 = arith.constant 0 : index
    %320 = vector.load %arg5[%c2_339, %c0_340, %c0_341] : memref<4x64x16xf32, #tpu.memory_space<vmem>>, vector<1x64x16xf32>
    %321 = vector.shape_cast %320 : vector<1x64x16xf32> to vector<64x16xf32>
    %322 = vector.shape_cast %319 : vector<64x16xf32> to vector<1x64x16xf32>
    tpu.vector_store %arg5[%c2_339, %c0_340, %c0_341], %322 {strides = array<i32>} : memref<4x64x16xf32, #tpu.memory_space<vmem>>, vector<1x64x16xf32>,
    %c0_i32_342 = arith.constant 0 : i32
    %323 = arith.addi %1, %c0_i32_342 : i32
    %c3_343 = arith.constant 3 : index
    %c0_344 = arith.constant 0 : index
    %324 = arith.index_cast %323 : i32 to index
    %c0_345 = arith.constant 0 : index
    %c0_346 = arith.constant 0 : index
    %325 = vector.load %arg2[%c3_343, %c0_344, %324, %c0_345, %c0_346] : memref<16x1x9x9x8xbf16, #tpu.memory_space<vmem>>, vector<1x1x8x8x8xbf16>
    %326 = vector.shape_cast %325 : vector<1x1x8x8x8xbf16> to vector<8x8x8xbf16>
    %327 = vector.shape_cast %326 : vector<8x8x8xbf16> to vector<64x8xbf16>
    %c27 = arith.constant 27 : index
    %c0_347 = arith.constant 0 : index
    %c0_348 = arith.constant 0 : index
    %328 = vector.load %arg3[%c27, %c0_347, %c0_348] : memref<36x8x16xbf16, #tpu.memory_space<vmem>>, vector<1x8x16xbf16>
    %329 = vector.shape_cast %328 : vector<1x8x16xbf16> to vector<8x16xbf16>
    %cst_349 = arith.constant dense<0.000000e+00> : vector<64x16xf32>
    %330 = tpu.matmul %327, %329, %cst_349 {dimension_numbers = #tpu.dot_dimension_numbers<[1], [0], [0], [1], [0, 0, 1, 1], [], []>} : vector<64x8xbf16>, vector<8x16xbf16>, vector<64x16xf32> -> vector<64x16xf32>
    %c0_350 = arith.constant 0 : index
    %c0_351 = arith.constant 0 : index
    %331 = vector.load %arg6[%c0_350, %c0_351] : memref<64x16xf32, #tpu.memory_space<vmem>>, vector<64x16xf32>
    tpu.vector_store %arg6[%c0_350, %c0_351], %330 {strides = array<i32>} : memref<64x16xf32, #tpu.memory_space<vmem>>, vector<64x16xf32>,
    %c0_i32_352 = arith.constant 0 : i32
    %332 = arith.addi %1, %c0_i32_352 : i32
    %c7_353 = arith.constant 7 : index
    %c0_354 = arith.constant 0 : index
    %333 = arith.index_cast %332 : i32 to index
    %c0_355 = arith.constant 0 : index
    %c0_356 = arith.constant 0 : index
    %334 = vector.load %arg2[%c7_353, %c0_354, %333, %c0_355, %c0_356] : memref<16x1x9x9x8xbf16, #tpu.memory_space<vmem>>, vector<1x1x8x8x8xbf16>
    %335 = vector.shape_cast %334 : vector<1x1x8x8x8xbf16> to vector<8x8x8xbf16>
    %336 = vector.shape_cast %335 : vector<8x8x8xbf16> to vector<64x8xbf16>
    %c28 = arith.constant 28 : index
    %c0_357 = arith.constant 0 : index
    %c0_358 = arith.constant 0 : index
    %337 = vector.load %arg3[%c28, %c0_357, %c0_358] : memref<36x8x16xbf16, #tpu.memory_space<vmem>>, vector<1x8x16xbf16>
    %338 = vector.shape_cast %337 : vector<1x8x16xbf16> to vector<8x16xbf16>
    %cst_359 = arith.constant dense<0.000000e+00> : vector<64x16xf32>
    %339 = tpu.matmul %336, %338, %cst_359 {dimension_numbers = #tpu.dot_dimension_numbers<[1], [0], [0], [1], [0, 0, 1, 1], [], []>} : vector<64x8xbf16>, vector<8x16xbf16>, vector<64x16xf32> -> vector<64x16xf32>
    %c0_360 = arith.constant 0 : index
    %c0_361 = arith.constant 0 : index
    %340 = vector.load %arg6[%c0_360, %c0_361] : memref<64x16xf32, #tpu.memory_space<vmem>>, vector<64x16xf32>
    %341 = arith.addf %340, %339 : vector<64x16xf32>
    %c0_362 = arith.constant 0 : index
    %c0_363 = arith.constant 0 : index
    %342 = vector.load %arg6[%c0_362, %c0_363] : memref<64x16xf32, #tpu.memory_space<vmem>>, vector<64x16xf32>
    tpu.vector_store %arg6[%c0_362, %c0_363], %341 {strides = array<i32>} : memref<64x16xf32, #tpu.memory_space<vmem>>, vector<64x16xf32>,
    %c0_i32_364 = arith.constant 0 : i32
    %343 = arith.addi %1, %c0_i32_364 : i32
    %c3_365 = arith.constant 3 : index
    %c0_366 = arith.constant 0 : index
    %344 = arith.index_cast %343 : i32 to index
    %c1_367 = arith.constant 1 : index
    %c0_368 = arith.constant 0 : index
    %345 = vector.load %arg2[%c3_365, %c0_366, %344, %c1_367, %c0_368] : memref<16x1x9x9x8xbf16, #tpu.memory_space<vmem>>, vector<1x1x8x8x8xbf16>
    %346 = vector.shape_cast %345 : vector<1x1x8x8x8xbf16> to vector<8x8x8xbf16>
    %347 = vector.shape_cast %346 : vector<8x8x8xbf16> to vector<64x8xbf16>
    %c29 = arith.constant 29 : index
    %c0_369 = arith.constant 0 : index
    %c0_370 = arith.constant 0 : index
    %348 = vector.load %arg3[%c29, %c0_369, %c0_370] : memref<36x8x16xbf16, #tpu.memory_space<vmem>>, vector<1x8x16xbf16>
    %349 = vector.shape_cast %348 : vector<1x8x16xbf16> to vector<8x16xbf16>
    %cst_371 = arith.constant dense<0.000000e+00> : vector<64x16xf32>
    %350 = tpu.matmul %347, %349, %cst_371 {dimension_numbers = #tpu.dot_dimension_numbers<[1], [0], [0], [1], [0, 0, 1, 1], [], []>} : vector<64x8xbf16>, vector<8x16xbf16>, vector<64x16xf32> -> vector<64x16xf32>
    %c0_372 = arith.constant 0 : index
    %c0_373 = arith.constant 0 : index
    %351 = vector.load %arg6[%c0_372, %c0_373] : memref<64x16xf32, #tpu.memory_space<vmem>>, vector<64x16xf32>
    %352 = arith.addf %351, %350 : vector<64x16xf32>
    %c0_374 = arith.constant 0 : index
    %c0_375 = arith.constant 0 : index
    %353 = vector.load %arg6[%c0_374, %c0_375] : memref<64x16xf32, #tpu.memory_space<vmem>>, vector<64x16xf32>
    tpu.vector_store %arg6[%c0_374, %c0_375], %352 {strides = array<i32>} : memref<64x16xf32, #tpu.memory_space<vmem>>, vector<64x16xf32>,
    %c0_i32_376 = arith.constant 0 : i32
    %354 = arith.addi %1, %c0_i32_376 : i32
    %c11_377 = arith.constant 11 : index
    %c0_378 = arith.constant 0 : index
    %355 = arith.index_cast %354 : i32 to index
    %c0_379 = arith.constant 0 : index
    %c0_380 = arith.constant 0 : index
    %356 = vector.load %arg2[%c11_377, %c0_378, %355, %c0_379, %c0_380] : memref<16x1x9x9x8xbf16, #tpu.memory_space<vmem>>, vector<1x1x8x8x8xbf16>
    %357 = vector.shape_cast %356 : vector<1x1x8x8x8xbf16> to vector<8x8x8xbf16>
    %358 = vector.shape_cast %357 : vector<8x8x8xbf16> to vector<64x8xbf16>
    %c30 = arith.constant 30 : index
    %c0_381 = arith.constant 0 : index
    %c0_382 = arith.constant 0 : index
    %359 = vector.load %arg3[%c30, %c0_381, %c0_382] : memref<36x8x16xbf16, #tpu.memory_space<vmem>>, vector<1x8x16xbf16>
    %360 = vector.shape_cast %359 : vector<1x8x16xbf16> to vector<8x16xbf16>
    %cst_383 = arith.constant dense<0.000000e+00> : vector<64x16xf32>
    %361 = tpu.matmul %358, %360, %cst_383 {dimension_numbers = #tpu.dot_dimension_numbers<[1], [0], [0], [1], [0, 0, 1, 1], [], []>} : vector<64x8xbf16>, vector<8x16xbf16>, vector<64x16xf32> -> vector<64x16xf32>
    %c0_384 = arith.constant 0 : index
    %c0_385 = arith.constant 0 : index
    %362 = vector.load %arg6[%c0_384, %c0_385] : memref<64x16xf32, #tpu.memory_space<vmem>>, vector<64x16xf32>
    %363 = arith.addf %362, %361 : vector<64x16xf32>
    %c0_386 = arith.constant 0 : index
    %c0_387 = arith.constant 0 : index
    %364 = vector.load %arg6[%c0_386, %c0_387] : memref<64x16xf32, #tpu.memory_space<vmem>>, vector<64x16xf32>
    tpu.vector_store %arg6[%c0_386, %c0_387], %363 {strides = array<i32>} : memref<64x16xf32, #tpu.memory_space<vmem>>, vector<64x16xf32>,
    %c0_i32_388 = arith.constant 0 : i32
    %365 = arith.addi %1, %c0_i32_388 : i32
    %c15_389 = arith.constant 15 : index
    %c0_390 = arith.constant 0 : index
    %366 = arith.index_cast %365 : i32 to index
    %c0_391 = arith.constant 0 : index
    %c0_392 = arith.constant 0 : index
    %367 = vector.load %arg2[%c15_389, %c0_390, %366, %c0_391, %c0_392] : memref<16x1x9x9x8xbf16, #tpu.memory_space<vmem>>, vector<1x1x8x8x8xbf16>
    %368 = vector.shape_cast %367 : vector<1x1x8x8x8xbf16> to vector<8x8x8xbf16>
    %369 = vector.shape_cast %368 : vector<8x8x8xbf16> to vector<64x8xbf16>
    %c31 = arith.constant 31 : index
    %c0_393 = arith.constant 0 : index
    %c0_394 = arith.constant 0 : index
    %370 = vector.load %arg3[%c31, %c0_393, %c0_394] : memref<36x8x16xbf16, #tpu.memory_space<vmem>>, vector<1x8x16xbf16>
    %371 = vector.shape_cast %370 : vector<1x8x16xbf16> to vector<8x16xbf16>
    %cst_395 = arith.constant dense<0.000000e+00> : vector<64x16xf32>
    %372 = tpu.matmul %369, %371, %cst_395 {dimension_numbers = #tpu.dot_dimension_numbers<[1], [0], [0], [1], [0, 0, 1, 1], [], []>} : vector<64x8xbf16>, vector<8x16xbf16>, vector<64x16xf32> -> vector<64x16xf32>
    %c0_396 = arith.constant 0 : index
    %c0_397 = arith.constant 0 : index
    %373 = vector.load %arg6[%c0_396, %c0_397] : memref<64x16xf32, #tpu.memory_space<vmem>>, vector<64x16xf32>
    %374 = arith.addf %373, %372 : vector<64x16xf32>
    %c0_398 = arith.constant 0 : index
    %c0_399 = arith.constant 0 : index
    %375 = vector.load %arg6[%c0_398, %c0_399] : memref<64x16xf32, #tpu.memory_space<vmem>>, vector<64x16xf32>
    tpu.vector_store %arg6[%c0_398, %c0_399], %374 {strides = array<i32>} : memref<64x16xf32, #tpu.memory_space<vmem>>, vector<64x16xf32>,
    %c0_i32_400 = arith.constant 0 : i32
    %376 = arith.addi %1, %c0_i32_400 : i32
    %c11_401 = arith.constant 11 : index
    %c0_402 = arith.constant 0 : index
    %377 = arith.index_cast %376 : i32 to index
    %c1_403 = arith.constant 1 : index
    %c0_404 = arith.constant 0 : index
    %378 = vector.load %arg2[%c11_401, %c0_402, %377, %c1_403, %c0_404] : memref<16x1x9x9x8xbf16, #tpu.memory_space<vmem>>, vector<1x1x8x8x8xbf16>
    %379 = vector.shape_cast %378 : vector<1x1x8x8x8xbf16> to vector<8x8x8xbf16>
    %380 = vector.shape_cast %379 : vector<8x8x8xbf16> to vector<64x8xbf16>
    %c32 = arith.constant 32 : index
    %c0_405 = arith.constant 0 : index
    %c0_406 = arith.constant 0 : index
    %381 = vector.load %arg3[%c32, %c0_405, %c0_406] : memref<36x8x16xbf16, #tpu.memory_space<vmem>>, vector<1x8x16xbf16>
    %382 = vector.shape_cast %381 : vector<1x8x16xbf16> to vector<8x16xbf16>
    %cst_407 = arith.constant dense<0.000000e+00> : vector<64x16xf32>
    %383 = tpu.matmul %380, %382, %cst_407 {dimension_numbers = #tpu.dot_dimension_numbers<[1], [0], [0], [1], [0, 0, 1, 1], [], []>} : vector<64x8xbf16>, vector<8x16xbf16>, vector<64x16xf32> -> vector<64x16xf32>
    %c0_408 = arith.constant 0 : index
    %c0_409 = arith.constant 0 : index
    %384 = vector.load %arg6[%c0_408, %c0_409] : memref<64x16xf32, #tpu.memory_space<vmem>>, vector<64x16xf32>
    %385 = arith.addf %384, %383 : vector<64x16xf32>
    %c0_410 = arith.constant 0 : index
    %c0_411 = arith.constant 0 : index
    %386 = vector.load %arg6[%c0_410, %c0_411] : memref<64x16xf32, #tpu.memory_space<vmem>>, vector<64x16xf32>
    tpu.vector_store %arg6[%c0_410, %c0_411], %385 {strides = array<i32>} : memref<64x16xf32, #tpu.memory_space<vmem>>, vector<64x16xf32>,
    %c1_i32_412 = arith.constant 1 : i32
    %387 = arith.addi %1, %c1_i32_412 : i32
    %c3_413 = arith.constant 3 : index
    %c0_414 = arith.constant 0 : index
    %388 = arith.index_cast %387 : i32 to index
    %c0_415 = arith.constant 0 : index
    %c0_416 = arith.constant 0 : index
    %389 = vector.load %arg2[%c3_413, %c0_414, %388, %c0_415, %c0_416] : memref<16x1x9x9x8xbf16, #tpu.memory_space<vmem>>, vector<1x1x8x8x8xbf16>
    %390 = vector.shape_cast %389 : vector<1x1x8x8x8xbf16> to vector<8x8x8xbf16>
    %391 = vector.shape_cast %390 : vector<8x8x8xbf16> to vector<64x8xbf16>
    %c33 = arith.constant 33 : index
    %c0_417 = arith.constant 0 : index
    %c0_418 = arith.constant 0 : index
    %392 = vector.load %arg3[%c33, %c0_417, %c0_418] : memref<36x8x16xbf16, #tpu.memory_space<vmem>>, vector<1x8x16xbf16>
    %393 = vector.shape_cast %392 : vector<1x8x16xbf16> to vector<8x16xbf16>
    %cst_419 = arith.constant dense<0.000000e+00> : vector<64x16xf32>
    %394 = tpu.matmul %391, %393, %cst_419 {dimension_numbers = #tpu.dot_dimension_numbers<[1], [0], [0], [1], [0, 0, 1, 1], [], []>} : vector<64x8xbf16>, vector<8x16xbf16>, vector<64x16xf32> -> vector<64x16xf32>
    %c0_420 = arith.constant 0 : index
    %c0_421 = arith.constant 0 : index
    %395 = vector.load %arg6[%c0_420, %c0_421] : memref<64x16xf32, #tpu.memory_space<vmem>>, vector<64x16xf32>
    %396 = arith.addf %395, %394 : vector<64x16xf32>
    %c0_422 = arith.constant 0 : index
    %c0_423 = arith.constant 0 : index
    %397 = vector.load %arg6[%c0_422, %c0_423] : memref<64x16xf32, #tpu.memory_space<vmem>>, vector<64x16xf32>
    tpu.vector_store %arg6[%c0_422, %c0_423], %396 {strides = array<i32>} : memref<64x16xf32, #tpu.memory_space<vmem>>, vector<64x16xf32>,
    %c1_i32_424 = arith.constant 1 : i32
    %398 = arith.addi %1, %c1_i32_424 : i32
    %c7_425 = arith.constant 7 : index
    %c0_426 = arith.constant 0 : index
    %399 = arith.index_cast %398 : i32 to index
    %c0_427 = arith.constant 0 : index
    %c0_428 = arith.constant 0 : index
    %400 = vector.load %arg2[%c7_425, %c0_426, %399, %c0_427, %c0_428] : memref<16x1x9x9x8xbf16, #tpu.memory_space<vmem>>, vector<1x1x8x8x8xbf16>
    %401 = vector.shape_cast %400 : vector<1x1x8x8x8xbf16> to vector<8x8x8xbf16>
    %402 = vector.shape_cast %401 : vector<8x8x8xbf16> to vector<64x8xbf16>
    %c34 = arith.constant 34 : index
    %c0_429 = arith.constant 0 : index
    %c0_430 = arith.constant 0 : index
    %403 = vector.load %arg3[%c34, %c0_429, %c0_430] : memref<36x8x16xbf16, #tpu.memory_space<vmem>>, vector<1x8x16xbf16>
    %404 = vector.shape_cast %403 : vector<1x8x16xbf16> to vector<8x16xbf16>
    %cst_431 = arith.constant dense<0.000000e+00> : vector<64x16xf32>
    %405 = tpu.matmul %402, %404, %cst_431 {dimension_numbers = #tpu.dot_dimension_numbers<[1], [0], [0], [1], [0, 0, 1, 1], [], []>} : vector<64x8xbf16>, vector<8x16xbf16>, vector<64x16xf32> -> vector<64x16xf32>
    %c0_432 = arith.constant 0 : index
    %c0_433 = arith.constant 0 : index
    %406 = vector.load %arg6[%c0_432, %c0_433] : memref<64x16xf32, #tpu.memory_space<vmem>>, vector<64x16xf32>
    %407 = arith.addf %406, %405 : vector<64x16xf32>
    %c0_434 = arith.constant 0 : index
    %c0_435 = arith.constant 0 : index
    %408 = vector.load %arg6[%c0_434, %c0_435] : memref<64x16xf32, #tpu.memory_space<vmem>>, vector<64x16xf32>
    tpu.vector_store %arg6[%c0_434, %c0_435], %407 {strides = array<i32>} : memref<64x16xf32, #tpu.memory_space<vmem>>, vector<64x16xf32>,
    %c1_i32_436 = arith.constant 1 : i32
    %409 = arith.addi %1, %c1_i32_436 : i32
    %c3_437 = arith.constant 3 : index
    %c0_438 = arith.constant 0 : index
    %410 = arith.index_cast %409 : i32 to index
    %c1_439 = arith.constant 1 : index
    %c0_440 = arith.constant 0 : index
    %411 = vector.load %arg2[%c3_437, %c0_438, %410, %c1_439, %c0_440] : memref<16x1x9x9x8xbf16, #tpu.memory_space<vmem>>, vector<1x1x8x8x8xbf16>
    %412 = vector.shape_cast %411 : vector<1x1x8x8x8xbf16> to vector<8x8x8xbf16>
    %413 = vector.shape_cast %412 : vector<8x8x8xbf16> to vector<64x8xbf16>
    %c35 = arith.constant 35 : index
    %c0_441 = arith.constant 0 : index
    %c0_442 = arith.constant 0 : index
    %414 = vector.load %arg3[%c35, %c0_441, %c0_442] : memref<36x8x16xbf16, #tpu.memory_space<vmem>>, vector<1x8x16xbf16>
    %415 = vector.shape_cast %414 : vector<1x8x16xbf16> to vector<8x16xbf16>
    %cst_443 = arith.constant dense<0.000000e+00> : vector<64x16xf32>
    %416 = tpu.matmul %413, %415, %cst_443 {dimension_numbers = #tpu.dot_dimension_numbers<[1], [0], [0], [1], [0, 0, 1, 1], [], []>} : vector<64x8xbf16>, vector<8x16xbf16>, vector<64x16xf32> -> vector<64x16xf32>
    %c0_444 = arith.constant 0 : index
    %c0_445 = arith.constant 0 : index
    %417 = vector.load %arg6[%c0_444, %c0_445] : memref<64x16xf32, #tpu.memory_space<vmem>>, vector<64x16xf32>
    %418 = arith.addf %417, %416 : vector<64x16xf32>
    %c0_446 = arith.constant 0 : index
    %c0_447 = arith.constant 0 : index
    %419 = vector.load %arg6[%c0_446, %c0_447] : memref<64x16xf32, #tpu.memory_space<vmem>>, vector<64x16xf32>
    tpu.vector_store %arg6[%c0_446, %c0_447], %418 {strides = array<i32>} : memref<64x16xf32, #tpu.memory_space<vmem>>, vector<64x16xf32>,
    %c0_448 = arith.constant 0 : index
    %c0_449 = arith.constant 0 : index
    %420 = vector.load %arg6[%c0_448, %c0_449] : memref<64x16xf32, #tpu.memory_space<vmem>>, vector<64x16xf32>
    %c3_450 = arith.constant 3 : index
    %c0_451 = arith.constant 0 : index
    %c0_452 = arith.constant 0 : index
    %421 = vector.load %arg4[%c3_450, %c0_451, %c0_452] : memref<4x1x16xf32, #tpu.memory_space<vmem>>, vector<1x1x16xf32>
    %422 = vector.shape_cast %421 : vector<1x1x16xf32> to vector<1x16xf32>
    %423 = vector.broadcast %422 : vector<1x16xf32> to vector<64x16xf32>
    %424 = arith.addf %420, %423 : vector<64x16xf32>
    %cst_453 = arith.constant 0.000000e+00 : f32
    %425 = vector.broadcast %cst_453 : f32 to vector<64x16xf32>
    %426 = arith.maximumf %424, %425 : vector<64x16xf32>
    %c3_454 = arith.constant 3 : index
    %c0_455 = arith.constant 0 : index
    %c0_456 = arith.constant 0 : index
    %427 = vector.load %arg5[%c3_454, %c0_455, %c0_456] : memref<4x64x16xf32, #tpu.memory_space<vmem>>, vector<1x64x16xf32>
    %428 = vector.shape_cast %427 : vector<1x64x16xf32> to vector<64x16xf32>
    %429 = vector.shape_cast %426 : vector<64x16xf32> to vector<1x64x16xf32>
    tpu.vector_store %arg5[%c3_454, %c0_455, %c0_456], %429 {strides = array<i32>} : memref<4x64x16xf32, #tpu.memory_space<vmem>>, vector<1x64x16xf32>,
    return
  }
  func.func @transform_0(%arg0: i32, %arg1: i32) -> (i32, i32, i32, i32, i32) {
    %c0_i32 = arith.constant 0 : i32
    %c0_i32_0 = arith.constant 0 : i32
    %c0_i32_1 = arith.constant 0 : i32
    %c0_i32_2 = arith.constant 0 : i32
    %c0_i32_3 = arith.constant 0 : i32
    return %c0_i32, %arg0, %c0_i32_0, %c0_i32_1, %c0_i32_2 : i32, i32, i32, i32, i32
  }
  func.func @transform_1(%arg0: i32, %arg1: i32) -> (i32, i32, i32) {
    %c0_i32 = arith.constant 0 : i32
    %c0_i32_0 = arith.constant 0 : i32
    %c0_i32_1 = arith.constant 0 : i32
    %c0_i32_2 = arith.constant 0 : i32
    return %c0_i32, %c0_i32_0, %c0_i32_1 : i32, i32, i32
  }
  func.func @transform_2(%arg0: i32, %arg1: i32) -> (i32, i32, i32) {
    %c0_i32 = arith.constant 0 : i32
    %c0_i32_0 = arith.constant 0 : i32
    %c0_i32_1 = arith.constant 0 : i32
    %c0_i32_2 = arith.constant 0 : i32
    return %c0_i32, %c0_i32_0, %c0_i32_1 : i32, i32, i32
  }
  func.func @transform_3(%arg0: i32, %arg1: i32) -> (i32, i32, i32) {
    %c0_i32 = arith.constant 0 : i32
    %c0_i32_0 = arith.constant 0 : i32
    return %arg0, %arg1, %c0_i32 : i32, i32, i32
  }
}

</mosaic_0001>

<llo_original>
// kernel: tpu_custom_call.1
$region0: #{tpu_custom_call.1}
  #allocation0 [shape = 'u32[]', space=smem, size = 0x4, offset = 0x4, fixed_abs, tag = 'smem constant byte address 0x4 - core index']
  #allocation1 [shape = 'u32[144,128]{1,0:T(1,128)}', space=vmem, size = 0x12000, scoped, tag = 'internal scratch']
  #allocation2 [shape = 'f32[64,16]{1,0:T(8,128)}', space=vmem, size = 0x8000, scoped, tag = 'scratch operand']
  %s0 = inlined_call_operand.vmem [shape: bf16[16,2,9,9,8], index: 0, kind: input, shape index: {}]
  %s1 = inlined_call_operand.vmem [shape: bf16[36,8,16], index: 1, kind: input, shape index: {}]
  %s2 = inlined_call_operand.vmem [shape: f32[4,1,16], index: 2, kind: input, shape index: {}]
  %s3 = inlined_call_operand.vmem [shape: f32[8,64,16], index: 3, kind: output, shape index: {}]
  %s4 = sld [smem:[#allocation0]]
  $region86: #{tpu_custom_call.1} parent=0
    _
  %s6 = ssub.s32 1, %s4
  %s7 = scalar_select 0, %s6, %s4
  $region1: #{tpu_custom_call.1} parent=0
    #allocation3 [shape = 'u8[1179648]{0}', space=vmem, size = 0x120000, scoped, tag = 'input window, operand 0']
    loop: start=0, step=1, limit=4
    $region2: #{tpu_custom_call.1} parent=1 // loop_pre_header
      _
    $region3: #{tpu_custom_call.1} parent=1 // loop_header
      %s9 = sphi 0, %s13
      %p10 = scmp.ge.s32.totalorder %s9, 4
      %s16 = sphi 0, %s28
      %s17 = sphi 0, %s24
      %s18 = sphi 0, %s16
      %s19 = sphi 0, %s17
      %s20 = sphi 0, %s18
      %s21 = sphi 0, %s19
      %s31 = sphi 0, %s33
      %s34 = sphi 0, %s31
      %s35 = sphi 0, %s34
      %s51 = sphi 0, %s35
      %s55 = sphi 0, %s55
      %s57 = sphi 0, %s55
      %s58 = sphi 0, %s57
      %s72 = sphi 0, %s58
      %s76 = sphi 0, %s76
      %s78 = sphi 0, %s76
      %s79 = sphi 0, %s78
      %s93 = sphi 0, %s79
      %s101 = sphi 0, %s103
      %s104 = sphi 0, %s101
      %s105 = sphi 0, %s104
      %s121 = sphi 0, %s105
    $region4: #{tpu_custom_call.1} parent=1 // loop_header_branch
      %12 = sbr.rel (%p10) target = $region8
    $region5: #{tpu_custom_call.1} parent=1 // loop_body
      %s14 = ssub.s32 %s9, 1
      %s15 = ssub.s32 %s9, 2
      %s22 = sadd.s32 1, %s17
      %p23 = scmp.ge.s32.totalorder %s22, 1
      %s24 = scalar_select %p23, 0, %s22
      %s25 = sadd.s32 1, %s16
      %s26 = scalar_select %p23, %s25, %s16
      %p27 = scmp.ge.s32.totalorder %s26, 2
      %s28 = scalar_select %p27, 0, %s26
      %s29 = ssub.s32 %s16, %s28
      %p30 = scmp.eq.s32.totalorder %s29, 0
      %s32 = sadd.s32 %s31, 1
      %s33 = scalar_select %p30, %s31, %s32
      %p36 = pneg %p30
      %p37 = scmp.eq.s32.totalorder %s9, 1
      %p38 = por %p36, %p37
      %p39 = scmp.ne.s32.totalorder %s31, %s34
      %p40 = scmp.eq.s32.totalorder %s9, 0
      %p41 = por %p39, %p40
      %p42 = scmp.ne.s32.totalorder %s31, %s34
      %p43 = scmp.eq.s32.totalorder %s14, 1
      %p44 = por %p42, %p43
      %p45 = scmp.ne.s32.totalorder %s34, %s35
      %p46 = scmp.eq.s32.totalorder %s14, 0
      %p47 = por %p45, %p46
      %p48 = scmp.ne.s32.totalorder %s34, %s35
      %p49 = scmp.eq.s32.totalorder %s15, 1
      %p50 = por %p48, %p49
      %p52 = scmp.ne.s32.totalorder %s35, %s51
      %p53 = scmp.eq.s32.totalorder %s15, 0
      %p54 = por %p52, %p53
      %s56 = sadd.s32 %s55, 1
      %p59 = scmp.eq.s32.totalorder %s9, 1
      %p60 = scmp.ne.s32.totalorder %s55, %s57
      %p61 = scmp.eq.s32.totalorder %s9, 0
      %p62 = por %p60, %p61
      %p63 = scmp.ne.s32.totalorder %s55, %s57
      %p64 = scmp.eq.s32.totalorder %s14, 1
      %p65 = por %p63, %p64
      %p66 = scmp.ne.s32.totalorder %s57, %s58
      %p67 = scmp.eq.s32.totalorder %s14, 0
      %p68 = por %p66, %p67
      %p69 = scmp.ne.s32.totalorder %s57, %s58
      %p70 = scmp.eq.s32.totalorder %s15, 1
      %p71 = por %p69, %p70
      %p73 = scmp.ne.s32.totalorder %s58, %s72
      %p74 = scmp.eq.s32.totalorder %s15, 0
      %p75 = por %p73, %p74
      %s77 = sadd.s32 %s76, 1
      %p80 = scmp.eq.s32.totalorder %s9, 1
      %p81 = scmp.ne.s32.totalorder %s76, %s78
      %p82 = scmp.eq.s32.totalorder %s9, 0
      %p83 = por %p81, %p82
      %p84 = scmp.ne.s32.totalorder %s76, %s78
      %p85 = scmp.eq.s32.totalorder %s14, 1
      %p86 = por %p84, %p85
      %p87 = scmp.ne.s32.totalorder %s78, %s79
      %p88 = scmp.eq.s32.totalorder %s14, 0
      %p89 = por %p87, %p88
      %p90 = scmp.ne.s32.totalorder %s78, %s79
      %p91 = scmp.eq.s32.totalorder %s15, 1
      %p92 = por %p90, %p91
      %p94 = scmp.ne.s32.totalorder %s79, %s93
      %p95 = scmp.eq.s32.totalorder %s15, 0
      %p96 = por %p94, %p95
      %s97 = ssub.s32 %s16, %s28
      %s98 = ssub.s32 %s17, %s24
      %s99 = sor.u32 %s97, %s98
      %p100 = scmp.eq.s32.totalorder %s99, 0
      %s102 = sadd.s32 %s101, 1
      %s103 = scalar_select %p100, %s101, %s102
      %p106 = pneg %p100
      %p107 = scmp.eq.s32.totalorder %s9, 1
      %p108 = por %p106, %p107
      %p109 = scmp.ne.s32.totalorder %s101, %s104
      %p110 = scmp.eq.s32.totalorder %s9, 0
      %p111 = por %p109, %p110
      %p112 = scmp.ne.s32.totalorder %s101, %s104
      %p113 = scmp.eq.s32.totalorder %s14, 1
      %p114 = por %p112, %p113
      %p115 = scmp.ne.s32.totalorder %s104, %s105
      %p116 = scmp.eq.s32.totalorder %s14, 0
      %p117 = por %p115, %p116
      %p118 = scmp.ne.s32.totalorder %s104, %s105
      %p119 = scmp.eq.s32.totalorder %s15, 1
      %p120 = por %p118, %p119
      %p122 = scmp.ne.s32.totalorder %s105, %s121
      %p123 = scmp.eq.s32.totalorder %s15, 0
      %p124 = por %p122, %p123
      %p125 = scmp.le.s32.totalorder 1, %s9
      %p126 = scmp.lt.s32.totalorder %s9, 3
      %p127 = pnand %p125, %p126
      %p128 = pneg %p127
      // Predicated region
      $region9: #{tpu_custom_call.1} parent=5 // pred_check
        _
      $region10: #{tpu_custom_call.1} parent=5 // pred_check_branch
        %130 = sbr.rel (%p127) target = $region12
      $region11: #{tpu_custom_call.1} parent=5 // pred_region
        %s131 = ssub.s32 %s9, 1
        // Predicated region
        $region13: #{tpu_custom_call.1} parent=11 // pred_check
          %p132 = pneg %p68
        $region14: #{tpu_custom_call.1} parent=11 // pred_check_branch
          %134 = sbr.rel (%p132) target = $region16
        $region15: #{tpu_custom_call.1} parent=11 // pred_region
          _
        $region16: #{tpu_custom_call.1} parent=11 // pred_fallthru
          _
        // Predicated region
        $region17: #{tpu_custom_call.1} parent=11 // pred_check
          %p135 = pneg %p89
        $region18: #{tpu_custom_call.1} parent=11 // pred_check_branch
          %137 = sbr.rel (%p135) target = $region20
        $region19: #{tpu_custom_call.1} parent=11 // pred_region
          _
        $region20: #{tpu_custom_call.1} parent=11 // pred_fallthru
          _
      $region12: #{tpu_custom_call.1} parent=5 // pred_fallthru
        _
      %p138 = scmp.lt.s32.totalorder %s9, 2
      // Predicated region
      $region21: #{tpu_custom_call.1} parent=5 // pred_check
        %p139 = pneg %p138
      $region22: #{tpu_custom_call.1} parent=5 // pred_check_branch
        %141 = sbr.rel (%p139) target = $region24
      $region23: #{tpu_custom_call.1} parent=5 // pred_region
        // Predicated region
        $region25: #{tpu_custom_call.1} parent=23 // pred_check
          %p142 = pneg %p41
        $region26: #{tpu_custom_call.1} parent=23 // pred_check_branch
          %144 = sbr.rel (%p142) target = $region28
        $region27: #{tpu_custom_call.1} parent=23 // pred_region
          %s145 = sand.u32 %s31, 1
          %s146 = sand.u32 %s31, 1
          %s147 = smul.addr %s146, 1152
          %s148 = scalar_lea.vmem [#allocation3], %s147
          %s149 = smul.addr %s16, 18
          %s150 = smul.addr %s149, 4
          %s151 = scalar_lea.vmem %s0, %s150
          // Predicated region
          $region29: #{tpu_custom_call.1} parent=27 // pred_check
            _
          $region30: #{tpu_custom_call.1} parent=27 // pred_check_branch
            %153 = sbr.rel (0) target = $region32
          $region31: #{tpu_custom_call.1} parent=27 // pred_region
            // Predicated region
            $region33: #{tpu_custom_call.1} parent=31 // pred_check
              _
            $region34: #{tpu_custom_call.1} parent=31 // pred_check_branch
              %155 = sbr.rel target = $region36
            $region35: #{tpu_custom_call.1} parent=31 // pred_region
              // Predicated region
              $region48: #{tpu_custom_call.1} parent=35 // pred_check
                _
              $region49: #{tpu_custom_call.1} parent=35 // pred_check_branch
                %744 = sbr.rel (0) target = $region51
              $region50: #{tpu_custom_call.1} parent=35 // pred_region
                loop: start=0, step=1, limit=1
                $region52: #{tpu_custom_call.1} parent=50 // loop_pre_header
                  _
                $region53: #{tpu_custom_call.1} parent=50 // loop_header
                  %s746 = sphi 0, %s750
                  %p747 = scmp.ge.s32.totalorder %s746, 1
                  %s751 = sphi %s151, %s151
                  %s752 = sphi %s148, %s148
                $region54: #{tpu_custom_call.1} parent=50 // loop_header_branch
                  %749 = sbr.rel (%p747) target = $region58
                $region55: #{tpu_custom_call.1} parent=50 // loop_body
                  _
                $region56: #{tpu_custom_call.1} parent=50 // loop_footer
                  %s750 = sadd.s32 1, %s746
                $region57: #{tpu_custom_call.1} parent=50 // loop_footer_branch
                  %745 = sbr.rel target = $region53
                $region58: #{tpu_custom_call.1} parent=50 // loop_exit
                  _
                loop: start=0, step=1, limit=1
                $region59: #{tpu_custom_call.1} parent=50 // loop_pre_header
                  _
                $region60: #{tpu_custom_call.1} parent=50 // loop_header
                  %s755 = sphi 0, %s759
                  %p756 = scmp.ge.s32.totalorder %s755, 1
                  %s760 = sphi %s151, %s151
                  %s761 = sphi %s148, %s148
                $region61: #{tpu_custom_call.1} parent=50 // loop_header_branch
                  %758 = sbr.rel (%p756) target = $region65
                $region62: #{tpu_custom_call.1} parent=50 // loop_body
                  %v762 = vld [vmem:[%s760] sm:$0xf]
                  %763 = vst [vmem:[%s761] sm:$0xf] %v762
                  %v764 = vld [vmem:[%s760 + $0x4] sm:$0xf]
                  %765 = vst [vmem:[%s761 + $0x4] sm:$0xf] %v764
                  %v766 = vld [vmem:[%s760 + $0x8] sm:$0xf]
                  %767 = vst [vmem:[%s761 + $0x8] sm:$0xf] %v766
                  %v768 = vld [vmem:[%s760 + $0xc] sm:$0xf]
                  %769 = vst [vmem:[%s761 + $0xc] sm:$0xf] %v768
                  %v770 = vld [vmem:[%s760 + $0x10] sm:$0xf]
                  %771 = vst [vmem:[%s761 + $0x10] sm:$0xf] %v770
                  %v772 = vld [vmem:[%s760 + $0x14] sm:$0xf]
                  %773 = vst [vmem:[%s761 + $0x14] sm:$0xf] %v772
                  %v774 = vld [vmem:[%s760 + $0x18] sm:$0xf]
                  %775 = vst [vmem:[%s761 + $0x18] sm:$0xf] %v774
                  %v776 = vld [vmem:[%s760 + $0x1c] sm:$0xf]
                  %777 = vst [vmem:[%s761 + $0x1c] sm:$0xf] %v776
                  %v778 = vld [vmem:[%s760 + $0x20] sm:$0xf]
                  %779 = vst [vmem:[%s761 + $0x20] sm:$0xf] %v778
                  %v780 = vld [vmem:[%s760 + $0x24] sm:$0xf]
                  %781 = vst [vmem:[%s761 + $0x24] sm:$0xf] %v780
                  %v782 = vld [vmem:[%s760 + $0x28] sm:$0xf]
                  %783 = vst [vmem:[%s761 + $0x28] sm:$0xf] %v782
                  %v784 = vld [vmem:[%s760 + $0x2c] sm:$0xf]
                  %785 = vst [vmem:[%s761 + $0x2c] sm:$0xf] %v784
                  %v786 = vld [vmem:[%s760 + $0x30] sm:$0xf]
                  %787 = vst [vmem:[%s761 + $0x30] sm:$0xf] %v786
                  %v788 = vld [vmem:[%s760 + $0x34] sm:$0xf]
                  %789 = vst [vmem:[%s761 + $0x34] sm:$0xf] %v788
                  %v790 = vld [vmem:[%s760 + $0x38] sm:$0xf]
                  %791 = vst [vmem:[%s761 + $0x38] sm:$0xf] %v790
                  %v792 = vld [vmem:[%s760 + $0x3c] sm:$0xf]
                  %793 = vst [vmem:[%s761 + $0x3c] sm:$0xf] %v792
                  %v794 = vld [vmem:[%s760 + $0x40] sm:$0xf]
                  %795 = vst [vmem:[%s761 + $0x40] sm:$0xf] %v794
                  %v796 = vld [vmem:[%s760 + $0x44] sm:$0xf]
                  %797 = vst [vmem:[%s761 + $0x44] sm:$0xf] %v796
                  %v798 = vld [vmem:[%s760 + $0x90] sm:$0xf]
                  %799 = vst [vmem:[%s761 + $0x48] sm:$0xf] %v798
                  %v800 = vld [vmem:[%s760 + $0x94] sm:$0xf]
                  %801 = vst [vmem:[%s761 + $0x4c] sm:$0xf] %v800
                  %v802 = vld [vmem:[%s760 + $0x98] sm:$0xf]
                  %803 = vst [vmem:[%s761 + $0x50] sm:$0xf] %v802
                  %v804 = vld [vmem:[%s760 + $0x9c] sm:$0xf]
                  %805 = vst [vmem:[%s761 + $0x54] sm:$0xf] %v804
                  %v806 = vld [vmem:[%s760 + $0xa0] sm:$0xf]
                  %807 = vst [vmem:[%s761 + $0x58] sm:$0xf] %v806
                  %v808 = vld [vmem:[%s760 + $0xa4] sm:$0xf]
                  %809 = vst [vmem:[%s761 + $0x5c] sm:$0xf] %v808
                  %v810 = vld [vmem:[%s760 + $0xa8] sm:$0xf]
                  %811 = vst [vmem:[%s761 + $0x60] sm:$0xf] %v810
                  %v812 = vld [vmem:[%s760 + $0xac] sm:$0xf]
                  %813 = vst [vmem:[%s761 + $0x64] sm:$0xf] %v812
                  %v814 = vld [vmem:[%s760 + $0xb0] sm:$0xf]
                  %815 = vst [vmem:[%s761 + $0x68] sm:$0xf] %v814
                  %v816 = vld [vmem:[%s760 + $0xb4] sm:$0xf]
                  %817 = vst [vmem:[%s761 + $0x6c] sm:$0xf] %v816
                  %v818 = vld [vmem:[%s760 + $0xb8] sm:$0xf]
                  %819 = vst [vmem:[%s761 + $0x70] sm:$0xf] %v818
                  %v820 = vld [vmem:[%s760 + $0xbc] sm:$0xf]
                  %821 = vst [vmem:[%s761 + $0x74] sm:$0xf] %v820
                  %v822 = vld [vmem:[%s760 + $0xc0] sm:$0xf]
                  %823 = vst [vmem:[%s761 + $0x78] sm:$0xf] %v822
                  %v824 = vld [vmem:[%s760 + $0xc4] sm:$0xf]
                  %825 = vst [vmem:[%s761 + $0x7c] sm:$0xf] %v824
                  %v826 = vld [vmem:[%s760 + $0xc8] sm:$0xf]
                  %827 = vst [vmem:[%s761 + $0x80] sm:$0xf] %v826
                  %v828 = vld [vmem:[%s760 + $0xcc] sm:$0xf]
                  %829 = vst [vmem:[%s761 + $0x84] sm:$0xf] %v828
                  %v830 = vld [vmem:[%s760 + $0xd0] sm:$0xf]
                  %831 = vst [vmem:[%s761 + $0x88] sm:$0xf] %v830
                  %v832 = vld [vmem:[%s760 + $0xd4] sm:$0xf]
                  %833 = vst [vmem:[%s761 + $0x8c] sm:$0xf] %v832
                  %v834 = vld [vmem:[%s760 + $0x120] sm:$0xf]
                  %835 = vst [vmem:[%s761 + $0x90] sm:$0xf] %v834
                  %v836 = vld [vmem:[%s760 + $0x124] sm:$0xf]
                  %837 = vst [vmem:[%s761 + $0x94] sm:$0xf] %v836
                  %v838 = vld [vmem:[%s760 + $0x128] sm:$0xf]
                  %839 = vst [vmem:[%s761 + $0x98] sm:$0xf] %v838
                  %v840 = vld [vmem:[%s760 + $0x12c] sm:$0xf]
                  %841 = vst [vmem:[%s761 + $0x9c] sm:$0xf] %v840
                  %v842 = vld [vmem:[%s760 + $0x130] sm:$0xf]
                  %843 = vst [vmem:[%s761 + $0xa0] sm:$0xf] %v842
                  %v844 = vld [vmem:[%s760 + $0x134] sm:$0xf]
                  %845 = vst [vmem:[%s761 + $0xa4] sm:$0xf] %v844
                  %v846 = vld [vmem:[%s760 + $0x138] sm:$0xf]
                  %847 = vst [vmem:[%s761 + $0xa8] sm:$0xf] %v846
                  %v848 = vld [vmem:[%s760 + $0x13c] sm:$0xf]
                  %849 = vst [vmem:[%s761 + $0xac] sm:$0xf] %v848
                  %v850 = vld [vmem:[%s760 + $0x140] sm:$0xf]
                  %851 = vst [vmem:[%s761 + $0xb0] sm:$0xf] %v850
                  %v852 = vld [vmem:[%s760 + $0x144] sm:$0xf]
                  %853 = vst [vmem:[%s761 + $0xb4] sm:$0xf] %v852
                  %v854 = vld [vmem:[%s760 + $0x148] sm:$0xf]
                  %855 = vst [vmem:[%s761 + $0xb8] sm:$0xf] %v854
                  %v856 = vld [vmem:[%s760 + $0x14c] sm:$0xf]
                  %857 = vst [vmem:[%s761 + $0xbc] sm:$0xf] %v856
                  %v858 = vld [vmem:[%s760 + $0x150] sm:$0xf]
                  %859 = vst [vmem:[%s761 + $0xc0] sm:$0xf] %v858
                  %v860 = vld [vmem:[%s760 + $0x154] sm:$0xf]
                  %861 = vst [vmem:[%s761 + $0xc4] sm:$0xf] %v860
                  %v862 = vld [vmem:[%s760 + $0x158] sm:$0xf]
                  %863 = vst [vmem:[%s761 + $0xc8] sm:$0xf] %v862
                  %v864 = vld [vmem:[%s760 + $0x15c] sm:$0xf]
                  %865 = vst [vmem:[%s761 + $0xcc] sm:$0xf] %v864
                  %v866 = vld [vmem:[%s760 + $0x160] sm:$0xf]
                  %867 = vst [vmem:[%s761 + $0xd0] sm:$0xf] %v866
                  %v868 = vld [vmem:[%s760 + $0x164] sm:$0xf]
                  %869 = vst [vmem:[%s761 + $0xd4] sm:$0xf] %v868
                  %v870 = vld [vmem:[%s760 + $0x1b0] sm:$0xf]
                  %871 = vst [vmem:[%s761 + $0xd8] sm:$0xf] %v870
                  %v872 = vld [vmem:[%s760 + $0x1b4] sm:$0xf]
                  %873 = vst [vmem:[%s761 + $0xdc] sm:$0xf] %v872
                  %v874 = vld [vmem:[%s760 + $0x1b8] sm:$0xf]
                  %875 = vst [vmem:[%s761 + $0xe0] sm:$0xf] %v874
                  %v876 = vld [vmem:[%s760 + $0x1bc] sm:$0xf]
                  %877 = vst [vmem:[%s761 + $0xe4] sm:$0xf] %v876
                  %v878 = vld [vmem:[%s760 + $0x1c0] sm:$0xf]
                  %879 = vst [vmem:[%s761 + $0xe8] sm:$0xf] %v878
                  %v880 = vld [vmem:[%s760 + $0x1c4] sm:$0xf]
                  %881 = vst [vmem:[%s761 + $0xec] sm:$0xf] %v880
                  %v882 = vld [vmem:[%s760 + $0x1c8] sm:$0xf]
                  %883 = vst [vmem:[%s761 + $0xf0] sm:$0xf] %v882
                  %v884 = vld [vmem:[%s760 + $0x1cc] sm:$0xf]
                  %885 = vst [vmem:[%s761 + $0xf4] sm:$0xf] %v884
                  %v886 = vld [vmem:[%s760 + $0x1d0] sm:$0xf]
                  %887 = vst [vmem:[%s761 + $0xf8] sm:$0xf] %v886
                  %v888 = vld [vmem:[%s760 + $0x1d4] sm:$0xf]
                  %889 = vst [vmem:[%s761 + $0xfc] sm:$0xf] %v888
                  %v890 = vld [vmem:[%s760 + $0x1d8] sm:$0xf]
                  %891 = vst [vmem:[%s761 + $0x100] sm:$0xf] %v890
                  %v892 = vld [vmem:[%s760 + $0x1dc] sm:$0xf]
                  %893 = vst [vmem:[%s761 + $0x104] sm:$0xf] %v892
                  %v894 = vld [vmem:[%s760 + $0x1e0] sm:$0xf]
                  %895 = vst [vmem:[%s761 + $0x108] sm:$0xf] %v894
                  %v896 = vld [vmem:[%s760 + $0x1e4] sm:$0xf]
                  %897 = vst [vmem:[%s761 + $0x10c] sm:$0xf] %v896
                  %v898 = vld [vmem:[%s760 + $0x1e8] sm:$0xf]
                  %899 = vst [vmem:[%s761 + $0x110] sm:$0xf] %v898
                  %v900 = vld [vmem:[%s760 + $0x1ec] sm:$0xf]
                  %901 = vst [vmem:[%s761 + $0x114] sm:$0xf] %v900
                  %v902 = vld [vmem:[%s760 + $0x1f0] sm:$0xf]
                  %903 = vst [vmem:[%s761 + $0x118] sm:$0xf] %v902
                  %v904 = vld [vmem:[%s760 + $0x1f4] sm:$0xf]
                  %905 = vst [vmem:[%s761 + $0x11c] sm:$0xf] %v904
                  %v906 = vld [vmem:[%s760 + $0x240] sm:$0xf]
                  %907 = vst [vmem:[%s761 + $0x120] sm:$0xf] %v906
                  %v908 = vld [vmem:[%s760 + $0x244] sm:$0xf]
                  %909 = vst [vmem:[%s761 + $0x124] sm:$0xf] %v908
                  %v910 = vld [vmem:[%s760 + $0x248] sm:$0xf]
                  %911 = vst [vmem:[%s761 + $0x128] sm:$0xf] %v910
                  %v912 = vld [vmem:[%s760 + $0x24c] sm:$0xf]
                  %913 = vst [vmem:[%s761 + $0x12c] sm:$0xf] %v912
                  %v914 = vld [vmem:[%s760 + $0x250] sm:$0xf]
                  %915 = vst [vmem:[%s761 + $0x130] sm:$0xf] %v914
                  %v916 = vld [vmem:[%s760 + $0x254] sm:$0xf]
                  %917 = vst [vmem:[%s761 + $0x134] sm:$0xf] %v916
                  %v918 = vld [vmem:[%s760 + $0x258] sm:$0xf]
                  %919 = vst [vmem:[%s761 + $0x138] sm:$0xf] %v918
                  %v920 = vld [vmem:[%s760 + $0x25c] sm:$0xf]
                  %921 = vst [vmem:[%s761 + $0x13c] sm:$0xf] %v920
                  %v922 = vld [vmem:[%s760 + $0x260] sm:$0xf]
                  %923 = vst [vmem:[%s761 + $0x140] sm:$0xf] %v922
                  %v924 = vld [vmem:[%s760 + $0x264] sm:$0xf]
                  %925 = vst [vmem:[%s761 + $0x144] sm:$0xf] %v924
                  %v926 = vld [vmem:[%s760 + $0x268] sm:$0xf]
                  %927 = vst [vmem:[%s761 + $0x148] sm:$0xf] %v926
                  %v928 = vld [vmem:[%s760 + $0x26c] sm:$0xf]
                  %929 = vst [vmem:[%s761 + $0x14c] sm:$0xf] %v928
                  %v930 = vld [vmem:[%s760 + $0x270] sm:$0xf]
                  %931 = vst [vmem:[%s761 + $0x150] sm:$0xf] %v930
                  %v932 = vld [vmem:[%s760 + $0x274] sm:$0xf]
                  %933 = vst [vmem:[%s761 + $0x154] sm:$0xf] %v932
                  %v934 = vld [vmem:[%s760 + $0x278] sm:$0xf]
                  %935 = vst [vmem:[%s761 + $0x158] sm:$0xf] %v934
                  %v936 = vld [vmem:[%s760 + $0x27c] sm:$0xf]
                  %937 = vst [vmem:[%s761 + $0x15c] sm:$0xf] %v936
                  %v938 = vld [vmem:[%s760 + $0x280] sm:$0xf]
                  %939 = vst [vmem:[%s761 + $0x160] sm:$0xf] %v938
                  %v940 = vld [vmem:[%s760 + $0x284] sm:$0xf]
                  %941 = vst [vmem:[%s761 + $0x164] sm:$0xf] %v940
                  %v942 = vld [vmem:[%s760 + $0x2d0] sm:$0xf]
                  %943 = vst [vmem:[%s761 + $0x168] sm:$0xf] %v942
                  %v944 = vld [vmem:[%s760 + $0x2d4] sm:$0xf]
                  %945 = vst [vmem:[%s761 + $0x16c] sm:$0xf] %v944
                  %v946 = vld [vmem:[%s760 + $0x2d8] sm:$0xf]
                  %947 = vst [vmem:[%s761 + $0x170] sm:$0xf] %v946
                  %v948 = vld [vmem:[%s760 + $0x2dc] sm:$0xf]
                  %949 = vst [vmem:[%s761 + $0x174] sm:$0xf] %v948
                  %v950 = vld [vmem:[%s760 + $0x2e0] sm:$0xf]
                  %951 = vst [vmem:[%s761 + $0x178] sm:$0xf] %v950
                  %v952 = vld [vmem:[%s760 + $0x2e4] sm:$0xf]
                  %953 = vst [vmem:[%s761 + $0x17c] sm:$0xf] %v952
                  %v954 = vld [vmem:[%s760 + $0x2e8] sm:$0xf]
                  %955 = vst [vmem:[%s761 + $0x180] sm:$0xf] %v954
                  %v956 = vld [vmem:[%s760 + $0x2ec] sm:$0xf]
                  %957 = vst [vmem:[%s761 + $0x184] sm:$0xf] %v956
                  %v958 = vld [vmem:[%s760 + $0x2f0] sm:$0xf]
                  %959 = vst [vmem:[%s761 + $0x188] sm:$0xf] %v958
                  %v960 = vld [vmem:[%s760 + $0x2f4] sm:$0xf]
                  %961 = vst [vmem:[%s761 + $0x18c] sm:$0xf] %v960
                  %v962 = vld [vmem:[%s760 + $0x2f8] sm:$0xf]
                  %963 = vst [vmem:[%s761 + $0x190] sm:$0xf] %v962
                  %v964 = vld [vmem:[%s760 + $0x2fc] sm:$0xf]
                  %965 = vst [vmem:[%s761 + $0x194] sm:$0xf] %v964
                  %v966 = vld [vmem:[%s760 + $0x300] sm:$0xf]
                  %967 = vst [vmem:[%s761 + $0x198] sm:$0xf] %v966
                  %v968 = vld [vmem:[%s760 + $0x304] sm:$0xf]
                  %969 = vst [vmem:[%s761 + $0x19c] sm:$0xf] %v968
                  %v970 = vld [vmem:[%s760 + $0x308] sm:$0xf]
                  %971 = vst [vmem:[%s761 + $0x1a0] sm:$0xf] %v970
                  %v972 = vld [vmem:[%s760 + $0x30c] sm:$0xf]
                  %973 = vst [vmem:[%s761 + $0x1a4] sm:$0xf] %v972
                  %v974 = vld [vmem:[%s760 + $0x310] sm:$0xf]
                  %975 = vst [vmem:[%s761 + $0x1a8] sm:$0xf] %v974
                  %v976 = vld [vmem:[%s760 + $0x314] sm:$0xf]
                  %977 = vst [vmem:[%s761 + $0x1ac] sm:$0xf] %v976
                  %v978 = vld [vmem:[%s760 + $0x360] sm:$0xf]
                  %979 = vst [vmem:[%s761 + $0x1b0] sm:$0xf] %v978
                  %v980 = vld [vmem:[%s760 + $0x364] sm:$0xf]
                  %981 = vst [vmem:[%s761 + $0x1b4] sm:$0xf] %v980
                  %v982 = vld [vmem:[%s760 + $0x368] sm:$0xf]
                  %983 = vst [vmem:[%s761 + $0x1b8] sm:$0xf] %v982
                  %v984 = vld [vmem:[%s760 + $0x36c] sm:$0xf]
                  %985 = vst [vmem:[%s761 + $0x1bc] sm:$0xf] %v984
                  %v986 = vld [vmem:[%s760 + $0x370] sm:$0xf]
                  %987 = vst [vmem:[%s761 + $0x1c0] sm:$0xf] %v986
                  %v988 = vld [vmem:[%s760 + $0x374] sm:$0xf]
                  %989 = vst [vmem:[%s761 + $0x1c4] sm:$0xf] %v988
                  %v990 = vld [vmem:[%s760 + $0x378] sm:$0xf]
                  %991 = vst [vmem:[%s761 + $0x1c8] sm:$0xf] %v990
                  %v992 = vld [vmem:[%s760 + $0x37c] sm:$0xf]
                  %993 = vst [vmem:[%s761 + $0x1cc] sm:$0xf] %v992
                  %v994 = vld [vmem:[%s760 + $0x380] sm:$0xf]
                  %995 = vst [vmem:[%s761 + $0x1d0] sm:$0xf] %v994
                  %v996 = vld [vmem:[%s760 + $0x384] sm:$0xf]
                  %997 = vst [vmem:[%s761 + $0x1d4] sm:$0xf] %v996
                  %v998 = vld [vmem:[%s760 + $0x388] sm:$0xf]
                  %999 = vst [vmem:[%s761 + $0x1d8] sm:$0xf] %v998
                  %v1000 = vld [vmem:[%s760 + $0x38c] sm:$0xf]
                  %1001 = vst [vmem:[%s761 + $0x1dc] sm:$0xf] %v1000
                  %v1002 = vld [vmem:[%s760 + $0x390] sm:$0xf]
                  %1003 = vst [vmem:[%s761 + $0x1e0] sm:$0xf] %v1002
                  %v1004 = vld [vmem:[%s760 + $0x394] sm:$0xf]
                  %1005 = vst [vmem:[%s761 + $0x1e4] sm:$0xf] %v1004
                  %v1006 = vld [vmem:[%s760 + $0x398] sm:$0xf]
                  %1007 = vst [vmem:[%s761 + $0x1e8] sm:$0xf] %v1006
                  %v1008 = vld [vmem:[%s760 + $0x39c] sm:$0xf]
                  %1009 = vst [vmem:[%s761 + $0x1ec] sm:$0xf] %v1008
                  %v1010 = vld [vmem:[%s760 + $0x3a0] sm:$0xf]
                  %1011 = vst [vmem:[%s761 + $0x1f0] sm:$0xf] %v1010
                  %v1012 = vld [vmem:[%s760 + $0x3a4] sm:$0xf]
                  %1013 = vst [vmem:[%s761 + $0x1f4] sm:$0xf] %v1012
                  %v1014 = vld [vmem:[%s760 + $0x3f0] sm:$0xf]
                  %1015 = vst [vmem:[%s761 + $0x1f8] sm:$0xf] %v1014
                  %v1016 = vld [vmem:[%s760 + $0x3f4] sm:$0xf]
                  %1017 = vst [vmem:[%s761 + $0x1fc] sm:$0xf] %v1016
                  %v1018 = vld [vmem:[%s760 + $0x3f8] sm:$0xf]
                  %1019 = vst [vmem:[%s761 + $0x200] sm:$0xf] %v1018
                  %v1020 = vld [vmem:[%s760 + $0x3fc] sm:$0xf]
                  %1021 = vst [vmem:[%s761 + $0x204] sm:$0xf] %v1020
                  %v1022 = vld [vmem:[%s760 + $0x400] sm:$0xf]
                  %1023 = vst [vmem:[%s761 + $0x208] sm:$0xf] %v1022
                  %v1024 = vld [vmem:[%s760 + $0x404] sm:$0xf]
                  %1025 = vst [vmem:[%s761 + $0x20c] sm:$0xf] %v1024
                  %v1026 = vld [vmem:[%s760 + $0x408] sm:$0xf]
                  %1027 = vst [vmem:[%s761 + $0x210] sm:$0xf] %v1026
                  %v1028 = vld [vmem:[%s760 + $0x40c] sm:$0xf]
                  %1029 = vst [vmem:[%s761 + $0x214] sm:$0xf] %v1028
                  %v1030 = vld [vmem:[%s760 + $0x410] sm:$0xf]
                  %1031 = vst [vmem:[%s761 + $0x218] sm:$0xf] %v1030
                  %v1032 = vld [vmem:[%s760 + $0x414] sm:$0xf]
                  %1033 = vst [vmem:[%s761 + $0x21c] sm:$0xf] %v1032
                  %v1034 = vld [vmem:[%s760 + $0x418] sm:$0xf]
                  %1035 = vst [vmem:[%s761 + $0x220] sm:$0xf] %v1034
                  %v1036 = vld [vmem:[%s760 + $0x41c] sm:$0xf]
                  %1037 = vst [vmem:[%s761 + $0x224] sm:$0xf] %v1036
                  %v1038 = vld [vmem:[%s760 + $0x420] sm:$0xf]
                  %1039 = vst [vmem:[%s761 + $0x228] sm:$0xf] %v1038
                  %v1040 = vld [vmem:[%s760 + $0x424] sm:$0xf]
                  %1041 = vst [vmem:[%s761 + $0x22c] sm:$0xf] %v1040
                  %v1042 = vld [vmem:[%s760 + $0x428] sm:$0xf]
                  %1043 = vst [vmem:[%s761 + $0x230] sm:$0xf] %v1042
                  %v1044 = vld [vmem:[%s760 + $0x42c] sm:$0xf]
                  %1045 = vst [vmem:[%s761 + $0x234] sm:$0xf] %v1044
                  %v1046 = vld [vmem:[%s760 + $0x430] sm:$0xf]
                  %1047 = vst [vmem:[%s761 + $0x238] sm:$0xf] %v1046
                  %v1048 = vld [vmem:[%s760 + $0x434] sm:$0xf]
                  %1049 = vst [vmem:[%s761 + $0x23c] sm:$0xf] %v1048
                  %v1050 = vld [vmem:[%s760 + $0x480] sm:$0xf]
                  %1051 = vst [vmem:[%s761 + $0x240] sm:$0xf] %v1050
                  %v1052 = vld [vmem:[%s760 + $0x484] sm:$0xf]
                  %1053 = vst [vmem:[%s761 + $0x244] sm:$0xf] %v1052
                  %v1054 = vld [vmem:[%s760 + $0x488] sm:$0xf]
                  %1055 = vst [vmem:[%s761 + $0x248] sm:$0xf] %v1054
                  %v1056 = vld [vmem:[%s760 + $0x48c] sm:$0xf]
                  %1057 = vst [vmem:[%s761 + $0x24c] sm:$0xf] %v1056
                  %v1058 = vld [vmem:[%s760 + $0x490] sm:$0xf]
                  %1059 = vst [vmem:[%s761 + $0x250] sm:$0xf] %v1058
                  %v1060 = vld [vmem:[%s760 + $0x494] sm:$0xf]
                  %1061 = vst [vmem:[%s761 + $0x254] sm:$0xf] %v1060
                  %v1062 = vld [vmem:[%s760 + $0x498] sm:$0xf]
                  %1063 = vst [vmem:[%s761 + $0x258] sm:$0xf] %v1062
                  %v1064 = vld [vmem:[%s760 + $0x49c] sm:$0xf]
                  %1065 = vst [vmem:[%s761 + $0x25c] sm:$0xf] %v1064
                  %v1066 = vld [vmem:[%s760 + $0x4a0] sm:$0xf]
                  %1067 = vst [vmem:[%s761 + $0x260] sm:$0xf] %v1066
                  %v1068 = vld [vmem:[%s760 + $0x4a4] sm:$0xf]
                  %1069 = vst [vmem:[%s761 + $0x264] sm:$0xf] %v1068
                  %v1070 = vld [vmem:[%s760 + $0x4a8] sm:$0xf]
                  %1071 = vst [vmem:[%s761 + $0x268] sm:$0xf] %v1070
                  %v1072 = vld [vmem:[%s760 + $0x4ac] sm:$0xf]
                  %1073 = vst [vmem:[%s761 + $0x26c] sm:$0xf] %v1072
                  %v1074 = vld [vmem:[%s760 + $0x4b0] sm:$0xf]
                  %1075 = vst [vmem:[%s761 + $0x270] sm:$0xf] %v1074
                  %v1076 = vld [vmem:[%s760 + $0x4b4] sm:$0xf]
                  %1077 = vst [vmem:[%s761 + $0x274] sm:$0xf] %v1076
                  %v1078 = vld [vmem:[%s760 + $0x4b8] sm:$0xf]
                  %1079 = vst [vmem:[%s761 + $0x278] sm:$0xf] %v1078
                  %v1080 = vld [vmem:[%s760 + $0x4bc] sm:$0xf]
                  %1081 = vst [vmem:[%s761 + $0x27c] sm:$0xf] %v1080
                  %v1082 = vld [vmem:[%s760 + $0x4c0] sm:$0xf]
                  %1083 = vst [vmem:[%s761 + $0x280] sm:$0xf] %v1082
                  %v1084 = vld [vmem:[%s760 + $0x4c4] sm:$0xf]
                  %1085 = vst [vmem:[%s761 + $0x284] sm:$0xf] %v1084
                  %v1086 = vld [vmem:[%s760 + $0x510] sm:$0xf]
                  %1087 = vst [vmem:[%s761 + $0x288] sm:$0xf] %v1086
                  %v1088 = vld [vmem:[%s760 + $0x514] sm:$0xf]
                  %1089 = vst [vmem:[%s761 + $0x28c] sm:$0xf] %v1088
                  %v1090 = vld [vmem:[%s760 + $0x518] sm:$0xf]
                  %1091 = vst [vmem:[%s761 + $0x290] sm:$0xf] %v1090
                  %v1092 = vld [vmem:[%s760 + $0x51c] sm:$0xf]
                  %1093 = vst [vmem:[%s761 + $0x294] sm:$0xf] %v1092
                  %v1094 = vld [vmem:[%s760 + $0x520] sm:$0xf]
                  %1095 = vst [vmem:[%s761 + $0x298] sm:$0xf] %v1094
                  %v1096 = vld [vmem:[%s760 + $0x524] sm:$0xf]
                  %1097 = vst [vmem:[%s761 + $0x29c] sm:$0xf] %v1096
                  %v1098 = vld [vmem:[%s760 + $0x528] sm:$0xf]
                  %1099 = vst [vmem:[%s761 + $0x2a0] sm:$0xf] %v1098
                  %v1100 = vld [vmem:[%s760 + $0x52c] sm:$0xf]
                  %1101 = vst [vmem:[%s761 + $0x2a4] sm:$0xf] %v1100
                  %v1102 = vld [vmem:[%s760 + $0x530] sm:$0xf]
                  %1103 = vst [vmem:[%s761 + $0x2a8] sm:$0xf] %v1102
                  %v1104 = vld [vmem:[%s760 + $0x534] sm:$0xf]
                  %1105 = vst [vmem:[%s761 + $0x2ac] sm:$0xf] %v1104
                  %v1106 = vld [vmem:[%s760 + $0x538] sm:$0xf]
                  %1107 = vst [vmem:[%s761 + $0x2b0] sm:$0xf] %v1106
                  %v1108 = vld [vmem:[%s760 + $0x53c] sm:$0xf]
                  %1109 = vst [vmem:[%s761 + $0x2b4] sm:$0xf] %v1108
                  %v1110 = vld [vmem:[%s760 + $0x540] sm:$0xf]
                  %1111 = vst [vmem:[%s761 + $0x2b8] sm:$0xf] %v1110
                  %v1112 = vld [vmem:[%s760 + $0x544] sm:$0xf]
                  %1113 = vst [vmem:[%s761 + $0x2bc] sm:$0xf] %v1112
                  %v1114 = vld [vmem:[%s760 + $0x548] sm:$0xf]
                  %1115 = vst [vmem:[%s761 + $0x2c0] sm:$0xf] %v1114
                  %v1116 = vld [vmem:[%s760 + $0x54c] sm:$0xf]
                  %1117 = vst [vmem:[%s761 + $0x2c4] sm:$0xf] %v1116
                  %v1118 = vld [vmem:[%s760 + $0x550] sm:$0xf]
                  %1119 = vst [vmem:[%s761 + $0x2c8] sm:$0xf] %v1118
                  %v1120 = vld [vmem:[%s760 + $0x554] sm:$0xf]
                  %1121 = vst [vmem:[%s761 + $0x2cc] sm:$0xf] %v1120
                  %v1122 = vld [vmem:[%s760 + $0x5a0] sm:$0xf]
                  %1123 = vst [vmem:[%s761 + $0x2d0] sm:$0xf] %v1122
                  %v1124 = vld [vmem:[%s760 + $0x5a4] sm:$0xf]
                  %1125 = vst [vmem:[%s761 + $0x2d4] sm:$0xf] %v1124
                  %v1126 = vld [vmem:[%s760 + $0x5a8] sm:$0xf]
                  %1127 = vst [vmem:[%s761 + $0x2d8] sm:$0xf] %v1126
                  %v1128 = vld [vmem:[%s760 + $0x5ac] sm:$0xf]
                  %1129 = vst [vmem:[%s761 + $0x2dc] sm:$0xf] %v1128
                  %v1130 = vld [vmem:[%s760 + $0x5b0] sm:$0xf]
                  %1131 = vst [vmem:[%s761 + $0x2e0] sm:$0xf] %v1130
                  %v1132 = vld [vmem:[%s760 + $0x5b4] sm:$0xf]
                  %1133 = vst [vmem:[%s761 + $0x2e4] sm:$0xf] %v1132
                  %v1134 = vld [vmem:[%s760 + $0x5b8] sm:$0xf]
                  %1135 = vst [vmem:[%s761 + $0x2e8] sm:$0xf] %v1134
                  %v1136 = vld [vmem:[%s760 + $0x5bc] sm:$0xf]
                  %1137 = vst [vmem:[%s761 + $0x2ec] sm:$0xf] %v1136
                  %v1138 = vld [vmem:[%s760 + $0x5c0] sm:$0xf]
                  %1139 = vst [vmem:[%s761 + $0x2f0] sm:$0xf] %v1138
                  %v1140 = vld [vmem:[%s760 + $0x5c4] sm:$0xf]
                  %1141 = vst [vmem:[%s761 + $0x2f4] sm:$0xf] %v1140
                  %v1142 = vld [vmem:[%s760 + $0x5c8] sm:$0xf]
                  %1143 = vst [vmem:[%s761 + $0x2f8] sm:$0xf] %v1142
                  %v1144 = vld [vmem:[%s760 + $0x5cc] sm:$0xf]
                  %1145 = vst [vmem:[%s761 + $0x2fc] sm:$0xf] %v1144
                  %v1146 = vld [vmem:[%s760 + $0x5d0] sm:$0xf]
                  %1147 = vst [vmem:[%s761 + $0x300] sm:$0xf] %v1146
                  %v1148 = vld [vmem:[%s760 + $0x5d4] sm:$0xf]
                  %1149 = vst [vmem:[%s761 + $0x304] sm:$0xf] %v1148
                  %v1150 = vld [vmem:[%s760 + $0x5d8] sm:$0xf]
                  %1151 = vst [vmem:[%s761 + $0x308] sm:$0xf] %v1150
                  %v1152 = vld [vmem:[%s760 + $0x5dc] sm:$0xf]
                  %1153 = vst [vmem:[%s761 + $0x30c] sm:$0xf] %v1152
                  %v1154 = vld [vmem:[%s760 + $0x5e0] sm:$0xf]
                  %1155 = vst [vmem:[%s761 + $0x310] sm:$0xf] %v1154
                  %v1156 = vld [vmem:[%s760 + $0x5e4] sm:$0xf]
                  %1157 = vst [vmem:[%s761 + $0x314] sm:$0xf] %v1156
                  %v1158 = vld [vmem:[%s760 + $0x630] sm:$0xf]
                  %1159 = vst [vmem:[%s761 + $0x318] sm:$0xf] %v1158
                  %v1160 = vld [vmem:[%s760 + $0x634] sm:$0xf]
                  %1161 = vst [vmem:[%s761 + $0x31c] sm:$0xf] %v1160
                  %v1162 = vld [vmem:[%s760 + $0x638] sm:$0xf]
                  %1163 = vst [vmem:[%s761 + $0x320] sm:$0xf] %v1162
                  %v1164 = vld [vmem:[%s760 + $0x63c] sm:$0xf]
                  %1165 = vst [vmem:[%s761 + $0x324] sm:$0xf] %v1164
                  %v1166 = vld [vmem:[%s760 + $0x640] sm:$0xf]
                  %1167 = vst [vmem:[%s761 + $0x328] sm:$0xf] %v1166
                  %v1168 = vld [vmem:[%s760 + $0x644] sm:$0xf]
                  %1169 = vst [vmem:[%s761 + $0x32c] sm:$0xf] %v1168
                  %v1170 = vld [vmem:[%s760 + $0x648] sm:$0xf]
                  %1171 = vst [vmem:[%s761 + $0x330] sm:$0xf] %v1170
                  %v1172 = vld [vmem:[%s760 + $0x64c] sm:$0xf]
                  %1173 = vst [vmem:[%s761 + $0x334] sm:$0xf] %v1172
                  %v1174 = vld [vmem:[%s760 + $0x650] sm:$0xf]
                  %1175 = vst [vmem:[%s761 + $0x338] sm:$0xf] %v1174
                  %v1176 = vld [vmem:[%s760 + $0x654] sm:$0xf]
                  %1177 = vst [vmem:[%s761 + $0x33c] sm:$0xf] %v1176
                  %v1178 = vld [vmem:[%s760 + $0x658] sm:$0xf]
                  %1179 = vst [vmem:[%s761 + $0x340] sm:$0xf] %v1178
                  %v1180 = vld [vmem:[%s760 + $0x65c] sm:$0xf]
                  %1181 = vst [vmem:[%s761 + $0x344] sm:$0xf] %v1180
                  %v1182 = vld [vmem:[%s760 + $0x660] sm:$0xf]
                  %1183 = vst [vmem:[%s761 + $0x348] sm:$0xf] %v1182
                  %v1184 = vld [vmem:[%s760 + $0x664] sm:$0xf]
                  %1185 = vst [vmem:[%s761 + $0x34c] sm:$0xf] %v1184
                  %v1186 = vld [vmem:[%s760 + $0x668] sm:$0xf]
                  %1187 = vst [vmem:[%s761 + $0x350] sm:$0xf] %v1186
                  %v1188 = vld [vmem:[%s760 + $0x66c] sm:$0xf]
                  %1189 = vst [vmem:[%s761 + $0x354] sm:$0xf] %v1188
                  %v1190 = vld [vmem:[%s760 + $0x670] sm:$0xf]
                  %1191 = vst [vmem:[%s761 + $0x358] sm:$0xf] %v1190
                  %v1192 = vld [vmem:[%s760 + $0x674] sm:$0xf]
                  %1193 = vst [vmem:[%s761 + $0x35c] sm:$0xf] %v1192
                  %v1194 = vld [vmem:[%s760 + $0x6c0] sm:$0xf]
                  %1195 = vst [vmem:[%s761 + $0x360] sm:$0xf] %v1194
                  %v1196 = vld [vmem:[%s760 + $0x6c4] sm:$0xf]
                  %1197 = vst [vmem:[%s761 + $0x364] sm:$0xf] %v1196
                  %v1198 = vld [vmem:[%s760 + $0x6c8] sm:$0xf]
                  %1199 = vst [vmem:[%s761 + $0x368] sm:$0xf] %v1198
                  %v1200 = vld [vmem:[%s760 + $0x6cc] sm:$0xf]
                  %1201 = vst [vmem:[%s761 + $0x36c] sm:$0xf] %v1200
                  %v1202 = vld [vmem:[%s760 + $0x6d0] sm:$0xf]
                  %1203 = vst [vmem:[%s761 + $0x370] sm:$0xf] %v1202
                  %v1204 = vld [vmem:[%s760 + $0x6d4] sm:$0xf]
                  %1205 = vst [vmem:[%s761 + $0x374] sm:$0xf] %v1204
                  %v1206 = vld [vmem:[%s760 + $0x6d8] sm:$0xf]
                  %1207 = vst [vmem:[%s761 + $0x378] sm:$0xf] %v1206
                  %v1208 = vld [vmem:[%s760 + $0x6dc] sm:$0xf]
                  %1209 = vst [vmem:[%s761 + $0x37c] sm:$0xf] %v1208
                  %v1210 = vld [vmem:[%s760 + $0x6e0] sm:$0xf]
                  %1211 = vst [vmem:[%s761 + $0x380] sm:$0xf] %v1210
                  %v1212 = vld [vmem:[%s760 + $0x6e4] sm:$0xf]
                  %1213 = vst [vmem:[%s761 + $0x384] sm:$0xf] %v1212
                  %v1214 = vld [vmem:[%s760 + $0x6e8] sm:$0xf]
                  %1215 = vst [vmem:[%s761 + $0x388] sm:$0xf] %v1214
                  %v1216 = vld [vmem:[%s760 + $0x6ec] sm:$0xf]
                  %1217 = vst [vmem:[%s761 + $0x38c] sm:$0xf] %v1216
                  %v1218 = vld [vmem:[%s760 + $0x6f0] sm:$0xf]
                  %1219 = vst [vmem:[%s761 + $0x390] sm:$0xf] %v1218
                  %v1220 = vld [vmem:[%s760 + $0x6f4] sm:$0xf]
                  %1221 = vst [vmem:[%s761 + $0x394] sm:$0xf] %v1220
                  %v1222 = vld [vmem:[%s760 + $0x6f8] sm:$0xf]
                  %1223 = vst [vmem:[%s761 + $0x398] sm:$0xf] %v1222
                  %v1224 = vld [vmem:[%s760 + $0x6fc] sm:$0xf]
                  %1225 = vst [vmem:[%s761 + $0x39c] sm:$0xf] %v1224
                  %v1226 = vld [vmem:[%s760 + $0x700] sm:$0xf]
                  %1227 = vst [vmem:[%s761 + $0x3a0] sm:$0xf] %v1226
                  %v1228 = vld [vmem:[%s760 + $0x704] sm:$0xf]
                  %1229 = vst [vmem:[%s761 + $0x3a4] sm:$0xf] %v1228
                  %v1230 = vld [vmem:[%s760 + $0x750] sm:$0xf]
                  %1231 = vst [vmem:[%s761 + $0x3a8] sm:$0xf] %v1230
                  %v1232 = vld [vmem:[%s760 + $0x754] sm:$0xf]
                  %1233 = vst [vmem:[%s761 + $0x3ac] sm:$0xf] %v1232
                  %v1234 = vld [vmem:[%s760 + $0x758] sm:$0xf]
                  %1235 = vst [vmem:[%s761 + $0x3b0] sm:$0xf] %v1234
                  %v1236 = vld [vmem:[%s760 + $0x75c] sm:$0xf]
                  %1237 = vst [vmem:[%s761 + $0x3b4] sm:$0xf] %v1236
                  %v1238 = vld [vmem:[%s760 + $0x760] sm:$0xf]
                  %1239 = vst [vmem:[%s761 + $0x3b8] sm:$0xf] %v1238
                  %v1240 = vld [vmem:[%s760 + $0x764] sm:$0xf]
                  %1241 = vst [vmem:[%s761 + $0x3bc] sm:$0xf] %v1240
                  %v1242 = vld [vmem:[%s760 + $0x768] sm:$0xf]
                  %1243 = vst [vmem:[%s761 + $0x3c0] sm:$0xf] %v1242
                  %v1244 = vld [vmem:[%s760 + $0x76c] sm:$0xf]
                  %1245 = vst [vmem:[%s761 + $0x3c4] sm:$0xf] %v1244
                  %v1246 = vld [vmem:[%s760 + $0x770] sm:$0xf]
                  %1247 = vst [vmem:[%s761 + $0x3c8] sm:$0xf] %v1246
                  %v1248 = vld [vmem:[%s760 + $0x774] sm:$0xf]
                  %1249 = vst [vmem:[%s761 + $0x3cc] sm:$0xf] %v1248
                  %v1250 = vld [vmem:[%s760 + $0x778] sm:$0xf]
                  %1251 = vst [vmem:[%s761 + $0x3d0] sm:$0xf] %v1250
                  %v1252 = vld [vmem:[%s760 + $0x77c] sm:$0xf]
                  %1253 = vst [vmem:[%s761 + $0x3d4] sm:$0xf] %v1252
                  %v1254 = vld [vmem:[%s760 + $0x780] sm:$0xf]
                  %1255 = vst [vmem:[%s761 + $0x3d8] sm:$0xf] %v1254
                  %v1256 = vld [vmem:[%s760 + $0x784] sm:$0xf]
                  %1257 = vst [vmem:[%s761 + $0x3dc] sm:$0xf] %v1256
                  %v1258 = vld [vmem:[%s760 + $0x788] sm:$0xf]
                  %1259 = vst [vmem:[%s761 + $0x3e0] sm:$0xf] %v1258
                  %v1260 = vld [vmem:[%s760 + $0x78c] sm:$0xf]
                  %1261 = vst [vmem:[%s761 + $0x3e4] sm:$0xf] %v1260
                  %v1262 = vld [vmem:[%s760 + $0x790] sm:$0xf]
                  %1263 = vst [vmem:[%s761 + $0x3e8] sm:$0xf] %v1262
                  %v1264 = vld [vmem:[%s760 + $0x794] sm:$0xf]
                  %1265 = vst [vmem:[%s761 + $0x3ec] sm:$0xf] %v1264
                  %v1266 = vld [vmem:[%s760 + $0x7e0] sm:$0xf]
                  %1267 = vst [vmem:[%s761 + $0x3f0] sm:$0xf] %v1266
                  %v1268 = vld [vmem:[%s760 + $0x7e4] sm:$0xf]
                  %1269 = vst [vmem:[%s761 + $0x3f4] sm:$0xf] %v1268
                  %v1270 = vld [vmem:[%s760 + $0x7e8] sm:$0xf]
                  %1271 = vst [vmem:[%s761 + $0x3f8] sm:$0xf] %v1270
                  %v1272 = vld [vmem:[%s760 + $0x7ec] sm:$0xf]
                  %1273 = vst [vmem:[%s761 + $0x3fc] sm:$0xf] %v1272
                  %v1274 = vld [vmem:[%s760 + $0x7f0] sm:$0xf]
                  %1275 = vst [vmem:[%s761 + $0x400] sm:$0xf] %v1274
                  %v1276 = vld [vmem:[%s760 + $0x7f4] sm:$0xf]
                  %1277 = vst [vmem:[%s761 + $0x404] sm:$0xf] %v1276
                  %v1278 = vld [vmem:[%s760 + $0x7f8] sm:$0xf]
                  %1279 = vst [vmem:[%s761 + $0x408] sm:$0xf] %v1278
                  %v1280 = vld [vmem:[%s760 + $0x7fc] sm:$0xf]
                  %1281 = vst [vmem:[%s761 + $0x40c] sm:$0xf] %v1280
                  %v1282 = vld [vmem:[%s760 + $0x800] sm:$0xf]
                  %1283 = vst [vmem:[%s761 + $0x410] sm:$0xf] %v1282
                  %v1284 = vld [vmem:[%s760 + $0x804] sm:$0xf]
                  %1285 = vst [vmem:[%s761 + $0x414] sm:$0xf] %v1284
                  %v1286 = vld [vmem:[%s760 + $0x808] sm:$0xf]
                  %1287 = vst [vmem:[%s761 + $0x418] sm:$0xf] %v1286
                  %v1288 = vld [vmem:[%s760 + $0x80c] sm:$0xf]
                  %1289 = vst [vmem:[%s761 + $0x41c] sm:$0xf] %v1288
                  %v1290 = vld [vmem:[%s760 + $0x810] sm:$0xf]
                  %1291 = vst [vmem:[%s761 + $0x420] sm:$0xf] %v1290
                  %v1292 = vld [vmem:[%s760 + $0x814] sm:$0xf]
                  %1293 = vst [vmem:[%s761 + $0x424] sm:$0xf] %v1292
                  %v1294 = vld [vmem:[%s760 + $0x818] sm:$0xf]
                  %1295 = vst [vmem:[%s761 + $0x428] sm:$0xf] %v1294
                  %v1296 = vld [vmem:[%s760 + $0x81c] sm:$0xf]
                  %1297 = vst [vmem:[%s761 + $0x42c] sm:$0xf] %v1296
                  %v1298 = vld [vmem:[%s760 + $0x820] sm:$0xf]
                  %1299 = vst [vmem:[%s761 + $0x430] sm:$0xf] %v1298
                  %v1300 = vld [vmem:[%s760 + $0x824] sm:$0xf]
                  %1301 = vst [vmem:[%s761 + $0x434] sm:$0xf] %v1300
                  %v1302 = vld [vmem:[%s760 + $0x870] sm:$0xf]
                  %1303 = vst [vmem:[%s761 + $0x438] sm:$0xf] %v1302
                  %v1304 = vld [vmem:[%s760 + $0x874] sm:$0xf]
                  %1305 = vst [vmem:[%s761 + $0x43c] sm:$0xf] %v1304
                  %v1306 = vld [vmem:[%s760 + $0x878] sm:$0xf]
                  %1307 = vst [vmem:[%s761 + $0x440] sm:$0xf] %v1306
                  %v1308 = vld [vmem:[%s760 + $0x87c] sm:$0xf]
                  %1309 = vst [vmem:[%s761 + $0x444] sm:$0xf] %v1308
                  %v1310 = vld [vmem:[%s760 + $0x880] sm:$0xf]
                  %1311 = vst [vmem:[%s761 + $0x448] sm:$0xf] %v1310
                  %v1312 = vld [vmem:[%s760 + $0x884] sm:$0xf]
                  %1313 = vst [vmem:[%s761 + $0x44c] sm:$0xf] %v1312
                  %v1314 = vld [vmem:[%s760 + $0x888] sm:$0xf]
                  %1315 = vst [vmem:[%s761 + $0x450] sm:$0xf] %v1314
                  %v1316 = vld [vmem:[%s760 + $0x88c] sm:$0xf]
                  %1317 = vst [vmem:[%s761 + $0x454] sm:$0xf] %v1316
                  %v1318 = vld [vmem:[%s760 + $0x890] sm:$0xf]
                  %1319 = vst [vmem:[%s761 + $0x458] sm:$0xf] %v1318
                  %v1320 = vld [vmem:[%s760 + $0x894] sm:$0xf]
                  %1321 = vst [vmem:[%s761 + $0x45c] sm:$0xf] %v1320
                  %v1322 = vld [vmem:[%s760 + $0x898] sm:$0xf]
                  %1323 = vst [vmem:[%s761 + $0x460] sm:$0xf] %v1322
                  %v1324 = vld [vmem:[%s760 + $0x89c] sm:$0xf]
                  %1325 = vst [vmem:[%s761 + $0x464] sm:$0xf] %v1324
                  %v1326 = vld [vmem:[%s760 + $0x8a0] sm:$0xf]
                  %1327 = vst [vmem:[%s761 + $0x468] sm:$0xf] %v1326
                  %v1328 = vld [vmem:[%s760 + $0x8a4] sm:$0xf]
                  %1329 = vst [vmem:[%s761 + $0x46c] sm:$0xf] %v1328
                  %v1330 = vld [vmem:[%s760 + $0x8a8] sm:$0xf]
                  %1331 = vst [vmem:[%s761 + $0x470] sm:$0xf] %v1330
                  %v1332 = vld [vmem:[%s760 + $0x8ac] sm:$0xf]
                  %1333 = vst [vmem:[%s761 + $0x474] sm:$0xf] %v1332
                  %v1334 = vld [vmem:[%s760 + $0x8b0] sm:$0xf]
                  %1335 = vst [vmem:[%s761 + $0x478] sm:$0xf] %v1334
                  %v1336 = vld [vmem:[%s760 + $0x8b4] sm:$0xf]
                  %1337 = vst [vmem:[%s761 + $0x47c] sm:$0xf] %v1336
                $region63: #{tpu_custom_call.1} parent=50 // loop_footer
                  %s759 = sadd.s32 1, %s755
                $region64: #{tpu_custom_call.1} parent=50 // loop_footer_branch
                  %754 = sbr.rel target = $region60
                $region65: #{tpu_custom_call.1} parent=50 // loop_exit
                  _
              $region51: #{tpu_custom_call.1} parent=35 // pred_fallthru
                _
            $region36: #{tpu_custom_call.1} parent=31 // pred_fallthru
              _
            // Predicated region
            $region37: #{tpu_custom_call.1} parent=31 // pred_check
              _
            $region38: #{tpu_custom_call.1} parent=31 // pred_check_branch
              %157 = sbr.rel (0) target = $region40
            $region39: #{tpu_custom_call.1} parent=31 // pred_region
              loop: start=0, step=1, limit=1
              $region41: #{tpu_custom_call.1} parent=39 // loop_pre_header
                _
              $region42: #{tpu_custom_call.1} parent=39 // loop_header
                %s160 = sphi 0, %s164
                %p161 = scmp.ge.s32.totalorder %s160, 1
                %s165 = sphi %s151, %s151
                %s166 = sphi %s148, %s148
              $region43: #{tpu_custom_call.1} parent=39 // loop_header_branch
                %163 = sbr.rel (%p161) target = $region47
              $region44: #{tpu_custom_call.1} parent=39 // loop_body
                %v167 = vld [vmem:[%s165] sm:$0xf]
                %168 = vst [vmem:[%s166] sm:$0xf] %v167
                %v169 = vld [vmem:[%s165 + $0x4] sm:$0xf]
                %170 = vst [vmem:[%s166 + $0x4] sm:$0xf] %v169
                %v171 = vld [vmem:[%s165 + $0x8] sm:$0xf]
                %172 = vst [vmem:[%s166 + $0x8] sm:$0xf] %v171
                %v173 = vld [vmem:[%s165 + $0xc] sm:$0xf]
                %174 = vst [vmem:[%s166 + $0xc] sm:$0xf] %v173
                %v175 = vld [vmem:[%s165 + $0x10] sm:$0xf]
                %176 = vst [vmem:[%s166 + $0x10] sm:$0xf] %v175
                %v177 = vld [vmem:[%s165 + $0x14] sm:$0xf]
                %178 = vst [vmem:[%s166 + $0x14] sm:$0xf] %v177
                %v179 = vld [vmem:[%s165 + $0x18] sm:$0xf]
                %180 = vst [vmem:[%s166 + $0x18] sm:$0xf] %v179
                %v181 = vld [vmem:[%s165 + $0x1c] sm:$0xf]
                %182 = vst [vmem:[%s166 + $0x1c] sm:$0xf] %v181
                %v183 = vld [vmem:[%s165 + $0x20] sm:$0xf]
                %184 = vst [vmem:[%s166 + $0x20] sm:$0xf] %v183
                %v185 = vld [vmem:[%s165 + $0x24] sm:$0xf]
                %186 = vst [vmem:[%s166 + $0x24] sm:$0xf] %v185
                %v187 = vld [vmem:[%s165 + $0x28] sm:$0xf]
                %188 = vst [vmem:[%s166 + $0x28] sm:$0xf] %v187
                %v189 = vld [vmem:[%s165 + $0x2c] sm:$0xf]
                %190 = vst [vmem:[%s166 + $0x2c] sm:$0xf] %v189
                %v191 = vld [vmem:[%s165 + $0x30] sm:$0xf]
                %192 = vst [vmem:[%s166 + $0x30] sm:$0xf] %v191
                %v193 = vld [vmem:[%s165 + $0x34] sm:$0xf]
                %194 = vst [vmem:[%s166 + $0x34] sm:$0xf] %v193
                %v195 = vld [vmem:[%s165 + $0x38] sm:$0xf]
                %196 = vst [vmem:[%s166 + $0x38] sm:$0xf] %v195
                %v197 = vld [vmem:[%s165 + $0x3c] sm:$0xf]
                %198 = vst [vmem:[%s166 + $0x3c] sm:$0xf] %v197
                %v199 = vld [vmem:[%s165 + $0x40] sm:$0xf]
                %200 = vst [vmem:[%s166 + $0x40] sm:$0xf] %v199
                %v201 = vld [vmem:[%s165 + $0x44] sm:$0xf]
                %202 = vst [vmem:[%s166 + $0x44] sm:$0xf] %v201
                %v203 = vld [vmem:[%s165 + $0x90] sm:$0xf]
                %204 = vst [vmem:[%s166 + $0x48] sm:$0xf] %v203
                %v205 = vld [vmem:[%s165 + $0x94] sm:$0xf]
                %206 = vst [vmem:[%s166 + $0x4c] sm:$0xf] %v205
                %v207 = vld [vmem:[%s165 + $0x98] sm:$0xf]
                %208 = vst [vmem:[%s166 + $0x50] sm:$0xf] %v207
                %v209 = vld [vmem:[%s165 + $0x9c] sm:$0xf]
                %210 = vst [vmem:[%s166 + $0x54] sm:$0xf] %v209
                %v211 = vld [vmem:[%s165 + $0xa0] sm:$0xf]
                %212 = vst [vmem:[%s166 + $0x58] sm:$0xf] %v211
                %v213 = vld [vmem:[%s165 + $0xa4] sm:$0xf]
                %214 = vst [vmem:[%s166 + $0x5c] sm:$0xf] %v213
                %v215 = vld [vmem:[%s165 + $0xa8] sm:$0xf]
                %216 = vst [vmem:[%s166 + $0x60] sm:$0xf] %v215
                %v217 = vld [vmem:[%s165 + $0xac] sm:$0xf]
                %218 = vst [vmem:[%s166 + $0x64] sm:$0xf] %v217
                %v219 = vld [vmem:[%s165 + $0xb0] sm:$0xf]
                %220 = vst [vmem:[%s166 + $0x68] sm:$0xf] %v219
                %v221 = vld [vmem:[%s165 + $0xb4] sm:$0xf]
                %222 = vst [vmem:[%s166 + $0x6c] sm:$0xf] %v221
                %v223 = vld [vmem:[%s165 + $0xb8] sm:$0xf]
                %224 = vst [vmem:[%s166 + $0x70] sm:$0xf] %v223
                %v225 = vld [vmem:[%s165 + $0xbc] sm:$0xf]
                %226 = vst [vmem:[%s166 + $0x74] sm:$0xf] %v225
                %v227 = vld [vmem:[%s165 + $0xc0] sm:$0xf]
                %228 = vst [vmem:[%s166 + $0x78] sm:$0xf] %v227
                %v229 = vld [vmem:[%s165 + $0xc4] sm:$0xf]
                %230 = vst [vmem:[%s166 + $0x7c] sm:$0xf] %v229
                %v231 = vld [vmem:[%s165 + $0xc8] sm:$0xf]
                %232 = vst [vmem:[%s166 + $0x80] sm:$0xf] %v231
                %v233 = vld [vmem:[%s165 + $0xcc] sm:$0xf]
                %234 = vst [vmem:[%s166 + $0x84] sm:$0xf] %v233
                %v235 = vld [vmem:[%s165 + $0xd0] sm:$0xf]
                %236 = vst [vmem:[%s166 + $0x88] sm:$0xf] %v235
                %v237 = vld [vmem:[%s165 + $0xd4] sm:$0xf]
                %238 = vst [vmem:[%s166 + $0x8c] sm:$0xf] %v237
                %v239 = vld [vmem:[%s165 + $0x120] sm:$0xf]
                %240 = vst [vmem:[%s166 + $0x90] sm:$0xf] %v239
                %v241 = vld [vmem:[%s165 + $0x124] sm:$0xf]
                %242 = vst [vmem:[%s166 + $0x94] sm:$0xf] %v241
                %v243 = vld [vmem:[%s165 + $0x128] sm:$0xf]
                %244 = vst [vmem:[%s166 + $0x98] sm:$0xf] %v243
                %v245 = vld [vmem:[%s165 + $0x12c] sm:$0xf]
                %246 = vst [vmem:[%s166 + $0x9c] sm:$0xf] %v245
                %v247 = vld [vmem:[%s165 + $0x130] sm:$0xf]
                %248 = vst [vmem:[%s166 + $0xa0] sm:$0xf] %v247
                %v249 = vld [vmem:[%s165 + $0x134] sm:$0xf]
                %250 = vst [vmem:[%s166 + $0xa4] sm:$0xf] %v249
                %v251 = vld [vmem:[%s165 + $0x138] sm:$0xf]
                %252 = vst [vmem:[%s166 + $0xa8] sm:$0xf] %v251
                %v253 = vld [vmem:[%s165 + $0x13c] sm:$0xf]
                %254 = vst [vmem:[%s166 + $0xac] sm:$0xf] %v253
                %v255 = vld [vmem:[%s165 + $0x140] sm:$0xf]
                %256 = vst [vmem:[%s166 + $0xb0] sm:$0xf] %v255
                %v257 = vld [vmem:[%s165 + $0x144] sm:$0xf]
                %258 = vst [vmem:[%s166 + $0xb4] sm:$0xf] %v257
                %v259 = vld [vmem:[%s165 + $0x148] sm:$0xf]
                %260 = vst [vmem:[%s166 + $0xb8] sm:$0xf] %v259
                %v261 = vld [vmem:[%s165 + $0x14c] sm:$0xf]
                %262 = vst [vmem:[%s166 + $0xbc] sm:$0xf] %v261
                %v263 = vld [vmem:[%s165 + $0x150] sm:$0xf]
                %264 = vst [vmem:[%s166 + $0xc0] sm:$0xf] %v263
                %v265 = vld [vmem:[%s165 + $0x154] sm:$0xf]
                %266 = vst [vmem:[%s166 + $0xc4] sm:$0xf] %v265
                %v267 = vld [vmem:[%s165 + $0x158] sm:$0xf]
                %268 = vst [vmem:[%s166 + $0xc8] sm:$0xf] %v267
                %v269 = vld [vmem:[%s165 + $0x15c] sm:$0xf]
                %270 = vst [vmem:[%s166 + $0xcc] sm:$0xf] %v269
                %v271 = vld [vmem:[%s165 + $0x160] sm:$0xf]
                %272 = vst [vmem:[%s166 + $0xd0] sm:$0xf] %v271
                %v273 = vld [vmem:[%s165 + $0x164] sm:$0xf]
                %274 = vst [vmem:[%s166 + $0xd4] sm:$0xf] %v273
                %v275 = vld [vmem:[%s165 + $0x1b0] sm:$0xf]
                %276 = vst [vmem:[%s166 + $0xd8] sm:$0xf] %v275
                %v277 = vld [vmem:[%s165 + $0x1b4] sm:$0xf]
                %278 = vst [vmem:[%s166 + $0xdc] sm:$0xf] %v277
                %v279 = vld [vmem:[%s165 + $0x1b8] sm:$0xf]
                %280 = vst [vmem:[%s166 + $0xe0] sm:$0xf] %v279
                %v281 = vld [vmem:[%s165 + $0x1bc] sm:$0xf]
                %282 = vst [vmem:[%s166 + $0xe4] sm:$0xf] %v281
                %v283 = vld [vmem:[%s165 + $0x1c0] sm:$0xf]
                %284 = vst [vmem:[%s166 + $0xe8] sm:$0xf] %v283
                %v285 = vld [vmem:[%s165 + $0x1c4] sm:$0xf]
                %286 = vst [vmem:[%s166 + $0xec] sm:$0xf] %v285
                %v287 = vld [vmem:[%s165 + $0x1c8] sm:$0xf]
                %288 = vst [vmem:[%s166 + $0xf0] sm:$0xf] %v287
                %v289 = vld [vmem:[%s165 + $0x1cc] sm:$0xf]
                %290 = vst [vmem:[%s166 + $0xf4] sm:$0xf] %v289
                %v291 = vld [vmem:[%s165 + $0x1d0] sm:$0xf]
                %292 = vst [vmem:[%s166 + $0xf8] sm:$0xf] %v291
                %v293 = vld [vmem:[%s165 + $0x1d4] sm:$0xf]
                %294 = vst [vmem:[%s166 + $0xfc] sm:$0xf] %v293
                %v295 = vld [vmem:[%s165 + $0x1d8] sm:$0xf]
                %296 = vst [vmem:[%s166 + $0x100] sm:$0xf] %v295
                %v297 = vld [vmem:[%s165 + $0x1dc] sm:$0xf]
                %298 = vst [vmem:[%s166 + $0x104] sm:$0xf] %v297
                %v299 = vld [vmem:[%s165 + $0x1e0] sm:$0xf]
                %300 = vst [vmem:[%s166 + $0x108] sm:$0xf] %v299
                %v301 = vld [vmem:[%s165 + $0x1e4] sm:$0xf]
                %302 = vst [vmem:[%s166 + $0x10c] sm:$0xf] %v301
                %v303 = vld [vmem:[%s165 + $0x1e8] sm:$0xf]
                %304 = vst [vmem:[%s166 + $0x110] sm:$0xf] %v303
                %v305 = vld [vmem:[%s165 + $0x1ec] sm:$0xf]
                %306 = vst [vmem:[%s166 + $0x114] sm:$0xf] %v305
                %v307 = vld [vmem:[%s165 + $0x1f0] sm:$0xf]
                %308 = vst [vmem:[%s166 + $0x118] sm:$0xf] %v307
                %v309 = vld [vmem:[%s165 + $0x1f4] sm:$0xf]
                %310 = vst [vmem:[%s166 + $0x11c] sm:$0xf] %v309
                %v311 = vld [vmem:[%s165 + $0x240] sm:$0xf]
                %312 = vst [vmem:[%s166 + $0x120] sm:$0xf] %v311
                %v313 = vld [vmem:[%s165 + $0x244] sm:$0xf]
                %314 = vst [vmem:[%s166 + $0x124] sm:$0xf] %v313
                %v315 = vld [vmem:[%s165 + $0x248] sm:$0xf]
                %316 = vst [vmem:[%s166 + $0x128] sm:$0xf] %v315
                %v317 = vld [vmem:[%s165 + $0x24c] sm:$0xf]
                %318 = vst [vmem:[%s166 + $0x12c] sm:$0xf] %v317
                %v319 = vld [vmem:[%s165 + $0x250] sm:$0xf]
                %320 = vst [vmem:[%s166 + $0x130] sm:$0xf] %v319
                %v321 = vld [vmem:[%s165 + $0x254] sm:$0xf]
                %322 = vst [vmem:[%s166 + $0x134] sm:$0xf] %v321
                %v323 = vld [vmem:[%s165 + $0x258] sm:$0xf]
                %324 = vst [vmem:[%s166 + $0x138] sm:$0xf] %v323
                %v325 = vld [vmem:[%s165 + $0x25c] sm:$0xf]
                %326 = vst [vmem:[%s166 + $0x13c] sm:$0xf] %v325
                %v327 = vld [vmem:[%s165 + $0x260] sm:$0xf]
                %328 = vst [vmem:[%s166 + $0x140] sm:$0xf] %v327
                %v329 = vld [vmem:[%s165 + $0x264] sm:$0xf]
                %330 = vst [vmem:[%s166 + $0x144] sm:$0xf] %v329
                %v331 = vld [vmem:[%s165 + $0x268] sm:$0xf]
                %332 = vst [vmem:[%s166 + $0x148] sm:$0xf] %v331
                %v333 = vld [vmem:[%s165 + $0x26c] sm:$0xf]
                %334 = vst [vmem:[%s166 + $0x14c] sm:$0xf] %v333
                %v335 = vld [vmem:[%s165 + $0x270] sm:$0xf]
                %336 = vst [vmem:[%s166 + $0x150] sm:$0xf] %v335
                %v337 = vld [vmem:[%s165 + $0x274] sm:$0xf]
                %338 = vst [vmem:[%s166 + $0x154] sm:$0xf] %v337
                %v339 = vld [vmem:[%s165 + $0x278] sm:$0xf]
                %340 = vst [vmem:[%s166 + $0x158] sm:$0xf] %v339
                %v341 = vld [vmem:[%s165 + $0x27c] sm:$0xf]
                %342 = vst [vmem:[%s166 + $0x15c] sm:$0xf] %v341
                %v343 = vld [vmem:[%s165 + $0x280] sm:$0xf]
                %344 = vst [vmem:[%s166 + $0x160] sm:$0xf] %v343
                %v345 = vld [vmem:[%s165 + $0x284] sm:$0xf]
                %346 = vst [vmem:[%s166 + $0x164] sm:$0xf] %v345
                %v347 = vld [vmem:[%s165 + $0x2d0] sm:$0xf]
                %348 = vst [vmem:[%s166 + $0x168] sm:$0xf] %v347
                %v349 = vld [vmem:[%s165 + $0x2d4] sm:$0xf]
                %350 = vst [vmem:[%s166 + $0x16c] sm:$0xf] %v349
                %v351 = vld [vmem:[%s165 + $0x2d8] sm:$0xf]
                %352 = vst [vmem:[%s166 + $0x170] sm:$0xf] %v351
                %v353 = vld [vmem:[%s165 + $0x2dc] sm:$0xf]
                %354 = vst [vmem:[%s166 + $0x174] sm:$0xf] %v353
                %v355 = vld [vmem:[%s165 + $0x2e0] sm:$0xf]
                %356 = vst [vmem:[%s166 + $0x178] sm:$0xf] %v355
                %v357 = vld [vmem:[%s165 + $0x2e4] sm:$0xf]
                %358 = vst [vmem:[%s166 + $0x17c] sm:$0xf] %v357
                %v359 = vld [vmem:[%s165 + $0x2e8] sm:$0xf]
                %360 = vst [vmem:[%s166 + $0x180] sm:$0xf] %v359
                %v361 = vld [vmem:[%s165 + $0x2ec] sm:$0xf]
                %362 = vst [vmem:[%s166 + $0x184] sm:$0xf] %v361
                %v363 = vld [vmem:[%s165 + $0x2f0] sm:$0xf]
                %364 = vst [vmem:[%s166 + $0x188] sm:$0xf] %v363
                %v365 = vld [vmem:[%s165 + $0x2f4] sm:$0xf]
                %366 = vst [vmem:[%s166 + $0x18c] sm:$0xf] %v365
                %v367 = vld [vmem:[%s165 + $0x2f8] sm:$0xf]
                %368 = vst [vmem:[%s166 + $0x190] sm:$0xf] %v367
                %v369 = vld [vmem:[%s165 + $0x2fc] sm:$0xf]
                %370 = vst [vmem:[%s166 + $0x194] sm:$0xf] %v369
                %v371 = vld [vmem:[%s165 + $0x300] sm:$0xf]
                %372 = vst [vmem:[%s166 + $0x198] sm:$0xf] %v371
                %v373 = vld [vmem:[%s165 + $0x304] sm:$0xf]
                %374 = vst [vmem:[%s166 + $0x19c] sm:$0xf] %v373
                %v375 = vld [vmem:[%s165 + $0x308] sm:$0xf]
                %376 = vst [vmem:[%s166 + $0x1a0] sm:$0xf] %v375
                %v377 = vld [vmem:[%s165 + $0x30c] sm:$0xf]
                %378 = vst [vmem:[%s166 + $0x1a4] sm:$0xf] %v377
                %v379 = vld [vmem:[%s165 + $0x310] sm:$0xf]
                %380 = vst [vmem:[%s166 + $0x1a8] sm:$0xf] %v379
                %v381 = vld [vmem:[%s165 + $0x314] sm:$0xf]
                %382 = vst [vmem:[%s166 + $0x1ac] sm:$0xf] %v381
                %v383 = vld [vmem:[%s165 + $0x360] sm:$0xf]
                %384 = vst [vmem:[%s166 + $0x1b0] sm:$0xf] %v383
                %v385 = vld [vmem:[%s165 + $0x364] sm:$0xf]
                %386 = vst [vmem:[%s166 + $0x1b4] sm:$0xf] %v385
                %v387 = vld [vmem:[%s165 + $0x368] sm:$0xf]
                %388 = vst [vmem:[%s166 + $0x1b8] sm:$0xf] %v387
                %v389 = vld [vmem:[%s165 + $0x36c] sm:$0xf]
                %390 = vst [vmem:[%s166 + $0x1bc] sm:$0xf] %v389
                %v391 = vld [vmem:[%s165 + $0x370] sm:$0xf]
                %392 = vst [vmem:[%s166 + $0x1c0] sm:$0xf] %v391
                %v393 = vld [vmem:[%s165 + $0x374] sm:$0xf]
                %394 = vst [vmem:[%s166 + $0x1c4] sm:$0xf] %v393
                %v395 = vld [vmem:[%s165 + $0x378] sm:$0xf]
                %396 = vst [vmem:[%s166 + $0x1c8] sm:$0xf] %v395
                %v397 = vld [vmem:[%s165 + $0x37c] sm:$0xf]
                %398 = vst [vmem:[%s166 + $0x1cc] sm:$0xf] %v397
                %v399 = vld [vmem:[%s165 + $0x380] sm:$0xf]
                %400 = vst [vmem:[%s166 + $0x1d0] sm:$0xf] %v399
                %v401 = vld [vmem:[%s165 + $0x384] sm:$0xf]
                %402 = vst [vmem:[%s166 + $0x1d4] sm:$0xf] %v401
                %v403 = vld [vmem:[%s165 + $0x388] sm:$0xf]
                %404 = vst [vmem:[%s166 + $0x1d8] sm:$0xf] %v403
                %v405 = vld [vmem:[%s165 + $0x38c] sm:$0xf]
                %406 = vst [vmem:[%s166 + $0x1dc] sm:$0xf] %v405
                %v407 = vld [vmem:[%s165 + $0x390] sm:$0xf]
                %408 = vst [vmem:[%s166 + $0x1e0] sm:$0xf] %v407
                %v409 = vld [vmem:[%s165 + $0x394] sm:$0xf]
                %410 = vst [vmem:[%s166 + $0x1e4] sm:$0xf] %v409
                %v411 = vld [vmem:[%s165 + $0x398] sm:$0xf]
                %412 = vst [vmem:[%s166 + $0x1e8] sm:$0xf] %v411
                %v413 = vld [vmem:[%s165 + $0x39c] sm:$0xf]
                %414 = vst [vmem:[%s166 + $0x1ec] sm:$0xf] %v413
                %v415 = vld [vmem:[%s165 + $0x3a0] sm:$0xf]
                %416 = vst [vmem:[%s166 + $0x1f0] sm:$0xf] %v415
                %v417 = vld [vmem:[%s165 + $0x3a4] sm:$0xf]
                %418 = vst [vmem:[%s166 + $0x1f4] sm:$0xf] %v417
                %v419 = vld [vmem:[%s165 + $0x3f0] sm:$0xf]
                %420 = vst [vmem:[%s166 + $0x1f8] sm:$0xf] %v419
                %v421 = vld [vmem:[%s165 + $0x3f4] sm:$0xf]
                %422 = vst [vmem:[%s166 + $0x1fc] sm:$0xf] %v421
                %v423 = vld [vmem:[%s165 + $0x3f8] sm:$0xf]
                %424 = vst [vmem:[%s166 + $0x200] sm:$0xf] %v423
                %v425 = vld [vmem:[%s165 + $0x3fc] sm:$0xf]
                %426 = vst [vmem:[%s166 + $0x204] sm:$0xf] %v425
                %v427 = vld [vmem:[%s165 + $0x400] sm:$0xf]
                %428 = vst [vmem:[%s166 + $0x208] sm:$0xf] %v427
                %v429 = vld [vmem:[%s165 + $0x404] sm:$0xf]
                %430 = vst [vmem:[%s166 + $0x20c] sm:$0xf] %v429
                %v431 = vld [vmem:[%s165 + $0x408] sm:$0xf]
                %432 = vst [vmem:[%s166 + $0x210] sm:$0xf] %v431
                %v433 = vld [vmem:[%s165 + $0x40c] sm:$0xf]
                %434 = vst [vmem:[%s166 + $0x214] sm:$0xf] %v433
                %v435 = vld [vmem:[%s165 + $0x410] sm:$0xf]
                %436 = vst [vmem:[%s166 + $0x218] sm:$0xf] %v435
                %v437 = vld [vmem:[%s165 + $0x414] sm:$0xf]
                %438 = vst [vmem:[%s166 + $0x21c] sm:$0xf] %v437
                %v439 = vld [vmem:[%s165 + $0x418] sm:$0xf]
                %440 = vst [vmem:[%s166 + $0x220] sm:$0xf] %v439
                %v441 = vld [vmem:[%s165 + $0x41c] sm:$0xf]
                %442 = vst [vmem:[%s166 + $0x224] sm:$0xf] %v441
                %v443 = vld [vmem:[%s165 + $0x420] sm:$0xf]
                %444 = vst [vmem:[%s166 + $0x228] sm:$0xf] %v443
                %v445 = vld [vmem:[%s165 + $0x424] sm:$0xf]
                %446 = vst [vmem:[%s166 + $0x22c] sm:$0xf] %v445
                %v447 = vld [vmem:[%s165 + $0x428] sm:$0xf]
                %448 = vst [vmem:[%s166 + $0x230] sm:$0xf] %v447
                %v449 = vld [vmem:[%s165 + $0x42c] sm:$0xf]
                %450 = vst [vmem:[%s166 + $0x234] sm:$0xf] %v449
                %v451 = vld [vmem:[%s165 + $0x430] sm:$0xf]
                %452 = vst [vmem:[%s166 + $0x238] sm:$0xf] %v451
                %v453 = vld [vmem:[%s165 + $0x434] sm:$0xf]
                %454 = vst [vmem:[%s166 + $0x23c] sm:$0xf] %v453
                %v455 = vld [vmem:[%s165 + $0x480] sm:$0xf]
                %456 = vst [vmem:[%s166 + $0x240] sm:$0xf] %v455
                %v457 = vld [vmem:[%s165 + $0x484] sm:$0xf]
                %458 = vst [vmem:[%s166 + $0x244] sm:$0xf] %v457
                %v459 = vld [vmem:[%s165 + $0x488] sm:$0xf]
                %460 = vst [vmem:[%s166 + $0x248] sm:$0xf] %v459
                %v461 = vld [vmem:[%s165 + $0x48c] sm:$0xf]
                %462 = vst [vmem:[%s166 + $0x24c] sm:$0xf] %v461
                %v463 = vld [vmem:[%s165 + $0x490] sm:$0xf]
                %464 = vst [vmem:[%s166 + $0x250] sm:$0xf] %v463
                %v465 = vld [vmem:[%s165 + $0x494] sm:$0xf]
                %466 = vst [vmem:[%s166 + $0x254] sm:$0xf] %v465
                %v467 = vld [vmem:[%s165 + $0x498] sm:$0xf]
                %468 = vst [vmem:[%s166 + $0x258] sm:$0xf] %v467
                %v469 = vld [vmem:[%s165 + $0x49c] sm:$0xf]
                %470 = vst [vmem:[%s166 + $0x25c] sm:$0xf] %v469
                %v471 = vld [vmem:[%s165 + $0x4a0] sm:$0xf]
                %472 = vst [vmem:[%s166 + $0x260] sm:$0xf] %v471
                %v473 = vld [vmem:[%s165 + $0x4a4] sm:$0xf]
                %474 = vst [vmem:[%s166 + $0x264] sm:$0xf] %v473
                %v475 = vld [vmem:[%s165 + $0x4a8] sm:$0xf]
                %476 = vst [vmem:[%s166 + $0x268] sm:$0xf] %v475
                %v477 = vld [vmem:[%s165 + $0x4ac] sm:$0xf]
                %478 = vst [vmem:[%s166 + $0x26c] sm:$0xf] %v477
                %v479 = vld [vmem:[%s165 + $0x4b0] sm:$0xf]
                %480 = vst [vmem:[%s166 + $0x270] sm:$0xf] %v479
                %v481 = vld [vmem:[%s165 + $0x4b4] sm:$0xf]
                %482 = vst [vmem:[%s166 + $0x274] sm:$0xf] %v481
                %v483 = vld [vmem:[%s165 + $0x4b8] sm:$0xf]
                %484 = vst [vmem:[%s166 + $0x278] sm:$0xf] %v483
                %v485 = vld [vmem:[%s165 + $0x4bc] sm:$0xf]
                %486 = vst [vmem:[%s166 + $0x27c] sm:$0xf] %v485
                %v487 = vld [vmem:[%s165 + $0x4c0] sm:$0xf]
                %488 = vst [vmem:[%s166 + $0x280] sm:$0xf] %v487
                %v489 = vld [vmem:[%s165 + $0x4c4] sm:$0xf]
                %490 = vst [vmem:[%s166 + $0x284] sm:$0xf] %v489
                %v491 = vld [vmem:[%s165 + $0x510] sm:$0xf]
                %492 = vst [vmem:[%s166 + $0x288] sm:$0xf] %v491
                %v493 = vld [vmem:[%s165 + $0x514] sm:$0xf]
                %494 = vst [vmem:[%s166 + $0x28c] sm:$0xf] %v493
                %v495 = vld [vmem:[%s165 + $0x518] sm:$0xf]
                %496 = vst [vmem:[%s166 + $0x290] sm:$0xf] %v495
                %v497 = vld [vmem:[%s165 + $0x51c] sm:$0xf]
                %498 = vst [vmem:[%s166 + $0x294] sm:$0xf] %v497
                %v499 = vld [vmem:[%s165 + $0x520] sm:$0xf]
                %500 = vst [vmem:[%s166 + $0x298] sm:$0xf] %v499
                %v501 = vld [vmem:[%s165 + $0x524] sm:$0xf]
                %502 = vst [vmem:[%s166 + $0x29c] sm:$0xf] %v501
                %v503 = vld [vmem:[%s165 + $0x528] sm:$0xf]
                %504 = vst [vmem:[%s166 + $0x2a0] sm:$0xf] %v503
                %v505 = vld [vmem:[%s165 + $0x52c] sm:$0xf]
                %506 = vst [vmem:[%s166 + $0x2a4] sm:$0xf] %v505
                %v507 = vld [vmem:[%s165 + $0x530] sm:$0xf]
                %508 = vst [vmem:[%s166 + $0x2a8] sm:$0xf] %v507
                %v509 = vld [vmem:[%s165 + $0x534] sm:$0xf]
                %510 = vst [vmem:[%s166 + $0x2ac] sm:$0xf] %v509
                %v511 = vld [vmem:[%s165 + $0x538] sm:$0xf]
                %512 = vst [vmem:[%s166 + $0x2b0] sm:$0xf] %v511
                %v513 = vld [vmem:[%s165 + $0x53c] sm:$0xf]
                %514 = vst [vmem:[%s166 + $0x2b4] sm:$0xf] %v513
                %v515 = vld [vmem:[%s165 + $0x540] sm:$0xf]
                %516 = vst [vmem:[%s166 + $0x2b8] sm:$0xf] %v515
                %v517 = vld [vmem:[%s165 + $0x544] sm:$0xf]
                %518 = vst [vmem:[%s166 + $0x2bc] sm:$0xf] %v517
                %v519 = vld [vmem:[%s165 + $0x548] sm:$0xf]
                %520 = vst [vmem:[%s166 + $0x2c0] sm:$0xf] %v519
                %v521 = vld [vmem:[%s165 + $0x54c] sm:$0xf]
                %522 = vst [vmem:[%s166 + $0x2c4] sm:$0xf] %v521
                %v523 = vld [vmem:[%s165 + $0x550] sm:$0xf]
                %524 = vst [vmem:[%s166 + $0x2c8] sm:$0xf] %v523
                %v525 = vld [vmem:[%s165 + $0x554] sm:$0xf]
                %526 = vst [vmem:[%s166 + $0x2cc] sm:$0xf] %v525
                %v527 = vld [vmem:[%s165 + $0x5a0] sm:$0xf]
                %528 = vst [vmem:[%s166 + $0x2d0] sm:$0xf] %v527
                %v529 = vld [vmem:[%s165 + $0x5a4] sm:$0xf]
                %530 = vst [vmem:[%s166 + $0x2d4] sm:$0xf] %v529
                %v531 = vld [vmem:[%s165 + $0x5a8] sm:$0xf]
                %532 = vst [vmem:[%s166 + $0x2d8] sm:$0xf] %v531
                %v533 = vld [vmem:[%s165 + $0x5ac] sm:$0xf]
                %534 = vst [vmem:[%s166 + $0x2dc] sm:$0xf] %v533
                %v535 = vld [vmem:[%s165 + $0x5b0] sm:$0xf]
                %536 = vst [vmem:[%s166 + $0x2e0] sm:$0xf] %v535
                %v537 = vld [vmem:[%s165 + $0x5b4] sm:$0xf]
                %538 = vst [vmem:[%s166 + $0x2e4] sm:$0xf] %v537
                %v539 = vld [vmem:[%s165 + $0x5b8] sm:$0xf]
                %540 = vst [vmem:[%s166 + $0x2e8] sm:$0xf] %v539
                %v541 = vld [vmem:[%s165 + $0x5bc] sm:$0xf]
                %542 = vst [vmem:[%s166 + $0x2ec] sm:$0xf] %v541
                %v543 = vld [vmem:[%s165 + $0x5c0] sm:$0xf]
                %544 = vst [vmem:[%s166 + $0x2f0] sm:$0xf] %v543
                %v545 = vld [vmem:[%s165 + $0x5c4] sm:$0xf]
                %546 = vst [vmem:[%s166 + $0x2f4] sm:$0xf] %v545
                %v547 = vld [vmem:[%s165 + $0x5c8] sm:$0xf]
                %548 = vst [vmem:[%s166 + $0x2f8] sm:$0xf] %v547
                %v549 = vld [vmem:[%s165 + $0x5cc] sm:$0xf]
                %550 = vst [vmem:[%s166 + $0x2fc] sm:$0xf] %v549
                %v551 = vld [vmem:[%s165 + $0x5d0] sm:$0xf]
                %552 = vst [vmem:[%s166 + $0x300] sm:$0xf] %v551
                %v553 = vld [vmem:[%s165 + $0x5d4] sm:$0xf]
                %554 = vst [vmem:[%s166 + $0x304] sm:$0xf] %v553
                %v555 = vld [vmem:[%s165 + $0x5d8] sm:$0xf]
                %556 = vst [vmem:[%s166 + $0x308] sm:$0xf] %v555
                %v557 = vld [vmem:[%s165 + $0x5dc] sm:$0xf]
                %558 = vst [vmem:[%s166 + $0x30c] sm:$0xf] %v557
                %v559 = vld [vmem:[%s165 + $0x5e0] sm:$0xf]
                %560 = vst [vmem:[%s166 + $0x310] sm:$0xf] %v559
                %v561 = vld [vmem:[%s165 + $0x5e4] sm:$0xf]
                %562 = vst [vmem:[%s166 + $0x314] sm:$0xf] %v561
                %v563 = vld [vmem:[%s165 + $0x630] sm:$0xf]
                %564 = vst [vmem:[%s166 + $0x318] sm:$0xf] %v563
                %v565 = vld [vmem:[%s165 + $0x634] sm:$0xf]
                %566 = vst [vmem:[%s166 + $0x31c] sm:$0xf] %v565
                %v567 = vld [vmem:[%s165 + $0x638] sm:$0xf]
                %568 = vst [vmem:[%s166 + $0x320] sm:$0xf] %v567
                %v569 = vld [vmem:[%s165 + $0x63c] sm:$0xf]
                %570 = vst [vmem:[%s166 + $0x324] sm:$0xf] %v569
                %v571 = vld [vmem:[%s165 + $0x640] sm:$0xf]
                %572 = vst [vmem:[%s166 + $0x328] sm:$0xf] %v571
                %v573 = vld [vmem:[%s165 + $0x644] sm:$0xf]
                %574 = vst [vmem:[%s166 + $0x32c] sm:$0xf] %v573
                %v575 = vld [vmem:[%s165 + $0x648] sm:$0xf]
                %576 = vst [vmem:[%s166 + $0x330] sm:$0xf] %v575
                %v577 = vld [vmem:[%s165 + $0x64c] sm:$0xf]
                %578 = vst [vmem:[%s166 + $0x334] sm:$0xf] %v577
                %v579 = vld [vmem:[%s165 + $0x650] sm:$0xf]
                %580 = vst [vmem:[%s166 + $0x338] sm:$0xf] %v579
                %v581 = vld [vmem:[%s165 + $0x654] sm:$0xf]
                %582 = vst [vmem:[%s166 + $0x33c] sm:$0xf] %v581
                %v583 = vld [vmem:[%s165 + $0x658] sm:$0xf]
                %584 = vst [vmem:[%s166 + $0x340] sm:$0xf] %v583
                %v585 = vld [vmem:[%s165 + $0x65c] sm:$0xf]
                %586 = vst [vmem:[%s166 + $0x344] sm:$0xf] %v585
                %v587 = vld [vmem:[%s165 + $0x660] sm:$0xf]
                %588 = vst [vmem:[%s166 + $0x348] sm:$0xf] %v587
                %v589 = vld [vmem:[%s165 + $0x664] sm:$0xf]
                %590 = vst [vmem:[%s166 + $0x34c] sm:$0xf] %v589
                %v591 = vld [vmem:[%s165 + $0x668] sm:$0xf]
                %592 = vst [vmem:[%s166 + $0x350] sm:$0xf] %v591
                %v593 = vld [vmem:[%s165 + $0x66c] sm:$0xf]
                %594 = vst [vmem:[%s166 + $0x354] sm:$0xf] %v593
                %v595 = vld [vmem:[%s165 + $0x670] sm:$0xf]
                %596 = vst [vmem:[%s166 + $0x358] sm:$0xf] %v595
                %v597 = vld [vmem:[%s165 + $0x674] sm:$0xf]
                %598 = vst [vmem:[%s166 + $0x35c] sm:$0xf] %v597
                %v599 = vld [vmem:[%s165 + $0x6c0] sm:$0xf]
                %600 = vst [vmem:[%s166 + $0x360] sm:$0xf] %v599
                %v601 = vld [vmem:[%s165 + $0x6c4] sm:$0xf]
                %602 = vst [vmem:[%s166 + $0x364] sm:$0xf] %v601
                %v603 = vld [vmem:[%s165 + $0x6c8] sm:$0xf]
                %604 = vst [vmem:[%s166 + $0x368] sm:$0xf] %v603
                %v605 = vld [vmem:[%s165 + $0x6cc] sm:$0xf]
                %606 = vst [vmem:[%s166 + $0x36c] sm:$0xf] %v605
                %v607 = vld [vmem:[%s165 + $0x6d0] sm:$0xf]
                %608 = vst [vmem:[%s166 + $0x370] sm:$0xf] %v607
                %v609 = vld [vmem:[%s165 + $0x6d4] sm:$0xf]
                %610 = vst [vmem:[%s166 + $0x374] sm:$0xf] %v609
                %v611 = vld [vmem:[%s165 + $0x6d8] sm:$0xf]
                %612 = vst [vmem:[%s166 + $0x378] sm:$0xf] %v611
                %v613 = vld [vmem:[%s165 + $0x6dc] sm:$0xf]
                %614 = vst [vmem:[%s166 + $0x37c] sm:$0xf] %v613
                %v615 = vld [vmem:[%s165 + $0x6e0] sm:$0xf]
                %616 = vst [vmem:[%s166 + $0x380] sm:$0xf] %v615
                %v617 = vld [vmem:[%s165 + $0x6e4] sm:$0xf]
                %618 = vst [vmem:[%s166 + $0x384] sm:$0xf] %v617
                %v619 = vld [vmem:[%s165 + $0x6e8] sm:$0xf]
                %620 = vst [vmem:[%s166 + $0x388] sm:$0xf] %v619
                %v621 = vld [vmem:[%s165 + $0x6ec] sm:$0xf]
                %622 = vst [vmem:[%s166 + $0x38c] sm:$0xf] %v621
                %v623 = vld [vmem:[%s165 + $0x6f0] sm:$0xf]
                %624 = vst [vmem:[%s166 + $0x390] sm:$0xf] %v623
                %v625 = vld [vmem:[%s165 + $0x6f4] sm:$0xf]
                %626 = vst [vmem:[%s166 + $0x394] sm:$0xf] %v625
                %v627 = vld [vmem:[%s165 + $0x6f8] sm:$0xf]
                %628 = vst [vmem:[%s166 + $0x398] sm:$0xf] %v627
                %v629 = vld [vmem:[%s165 + $0x6fc] sm:$0xf]
                %630 = vst [vmem:[%s166 + $0x39c] sm:$0xf] %v629
                %v631 = vld [vmem:[%s165 + $0x700] sm:$0xf]
                %632 = vst [vmem:[%s166 + $0x3a0] sm:$0xf] %v631
                %v633 = vld [vmem:[%s165 + $0x704] sm:$0xf]
                %634 = vst [vmem:[%s166 + $0x3a4] sm:$0xf] %v633
                %v635 = vld [vmem:[%s165 + $0x750] sm:$0xf]
                %636 = vst [vmem:[%s166 + $0x3a8] sm:$0xf] %v635
                %v637 = vld [vmem:[%s165 + $0x754] sm:$0xf]
                %638 = vst [vmem:[%s166 + $0x3ac] sm:$0xf] %v637
                %v639 = vld [vmem:[%s165 + $0x758] sm:$0xf]
                %640 = vst [vmem:[%s166 + $0x3b0] sm:$0xf] %v639
                %v641 = vld [vmem:[%s165 + $0x75c] sm:$0xf]
                %642 = vst [vmem:[%s166 + $0x3b4] sm:$0xf] %v641
                %v643 = vld [vmem:[%s165 + $0x760] sm:$0xf]
                %644 = vst [vmem:[%s166 + $0x3b8] sm:$0xf] %v643
                %v645 = vld [vmem:[%s165 + $0x764] sm:$0xf]
                %646 = vst [vmem:[%s166 + $0x3bc] sm:$0xf] %v645
                %v647 = vld [vmem:[%s165 + $0x768] sm:$0xf]
                %648 = vst [vmem:[%s166 + $0x3c0] sm:$0xf] %v647
                %v649 = vld [vmem:[%s165 + $0x76c] sm:$0xf]
                %650 = vst [vmem:[%s166 + $0x3c4] sm:$0xf] %v649
                %v651 = vld [vmem:[%s165 + $0x770] sm:$0xf]
                %652 = vst [vmem:[%s166 + $0x3c8] sm:$0xf] %v651
                %v653 = vld [vmem:[%s165 + $0x774] sm:$0xf]
                %654 = vst [vmem:[%s166 + $0x3cc] sm:$0xf] %v653
                %v655 = vld [vmem:[%s165 + $0x778] sm:$0xf]
                %656 = vst [vmem:[%s166 + $0x3d0] sm:$0xf] %v655
                %v657 = vld [vmem:[%s165 + $0x77c] sm:$0xf]
                %658 = vst [vmem:[%s166 + $0x3d4] sm:$0xf] %v657
                %v659 = vld [vmem:[%s165 + $0x780] sm:$0xf]
                %660 = vst [vmem:[%s166 + $0x3d8] sm:$0xf] %v659
                %v661 = vld [vmem:[%s165 + $0x784] sm:$0xf]
                %662 = vst [vmem:[%s166 + $0x3dc] sm:$0xf] %v661
                %v663 = vld [vmem:[%s165 + $0x788] sm:$0xf]
                %664 = vst [vmem:[%s166 + $0x3e0] sm:$0xf] %v663
                %v665 = vld [vmem:[%s165 + $0x78c] sm:$0xf]
                %666 = vst [vmem:[%s166 + $0x3e4] sm:$0xf] %v665
                %v667 = vld [vmem:[%s165 + $0x790] sm:$0xf]
                %668 = vst [vmem:[%s166 + $0x3e8] sm:$0xf] %v667
                %v669 = vld [vmem:[%s165 + $0x794] sm:$0xf]
                %670 = vst [vmem:[%s166 + $0x3ec] sm:$0xf] %v669
                %v671 = vld [vmem:[%s165 + $0x7e0] sm:$0xf]
                %672 = vst [vmem:[%s166 + $0x3f0] sm:$0xf] %v671
                %v673 = vld [vmem:[%s165 + $0x7e4] sm:$0xf]
                %674 = vst [vmem:[%s166 + $0x3f4] sm:$0xf] %v673
                %v675 = vld [vmem:[%s165 + $0x7e8] sm:$0xf]
                %676 = vst [vmem:[%s166 + $0x3f8] sm:$0xf] %v675
                %v677 = vld [vmem:[%s165 + $0x7ec] sm:$0xf]
                %678 = vst [vmem:[%s166 + $0x3fc] sm:$0xf] %v677
                %v679 = vld [vmem:[%s165 + $0x7f0] sm:$0xf]
                %680 = vst [vmem:[%s166 + $0x400] sm:$0xf] %v679
                %v681 = vld [vmem:[%s165 + $0x7f4] sm:$0xf]
                %682 = vst [vmem:[%s166 + $0x404] sm:$0xf] %v681
                %v683 = vld [vmem:[%s165 + $0x7f8] sm:$0xf]
                %684 = vst [vmem:[%s166 + $0x408] sm:$0xf] %v683
                %v685 = vld [vmem:[%s165 + $0x7fc] sm:$0xf]
                %686 = vst [vmem:[%s166 + $0x40c] sm:$0xf] %v685
                %v687 = vld [vmem:[%s165 + $0x800] sm:$0xf]
                %688 = vst [vmem:[%s166 + $0x410] sm:$0xf] %v687
                %v689 = vld [vmem:[%s165 + $0x804] sm:$0xf]
                %690 = vst [vmem:[%s166 + $0x414] sm:$0xf] %v689
                %v691 = vld [vmem:[%s165 + $0x808] sm:$0xf]
                %692 = vst [vmem:[%s166 + $0x418] sm:$0xf] %v691
                %v693 = vld [vmem:[%s165 + $0x80c] sm:$0xf]
                %694 = vst [vmem:[%s166 + $0x41c] sm:$0xf] %v693
                %v695 = vld [vmem:[%s165 + $0x810] sm:$0xf]
                %696 = vst [vmem:[%s166 + $0x420] sm:$0xf] %v695
                %v697 = vld [vmem:[%s165 + $0x814] sm:$0xf]
                %698 = vst [vmem:[%s166 + $0x424] sm:$0xf] %v697
                %v699 = vld [vmem:[%s165 + $0x818] sm:$0xf]
                %700 = vst [vmem:[%s166 + $0x428] sm:$0xf] %v699
                %v701 = vld [vmem:[%s165 + $0x81c] sm:$0xf]
                %702 = vst [vmem:[%s166 + $0x42c] sm:$0xf] %v701
                %v703 = vld [vmem:[%s165 + $0x820] sm:$0xf]
                %704 = vst [vmem:[%s166 + $0x430] sm:$0xf] %v703
                %v705 = vld [vmem:[%s165 + $0x824] sm:$0xf]
                %706 = vst [vmem:[%s166 + $0x434] sm:$0xf] %v705
                %v707 = vld [vmem:[%s165 + $0x870] sm:$0xf]
                %708 = vst [vmem:[%s166 + $0x438] sm:$0xf] %v707
                %v709 = vld [vmem:[%s165 + $0x874] sm:$0xf]
                %710 = vst [vmem:[%s166 + $0x43c] sm:$0xf] %v709
                %v711 = vld [vmem:[%s165 + $0x878] sm:$0xf]
                %712 = vst [vmem:[%s166 + $0x440] sm:$0xf] %v711
                %v713 = vld [vmem:[%s165 + $0x87c] sm:$0xf]
                %714 = vst [vmem:[%s166 + $0x444] sm:$0xf] %v713
                %v715 = vld [vmem:[%s165 + $0x880] sm:$0xf]
                %716 = vst [vmem:[%s166 + $0x448] sm:$0xf] %v715
                %v717 = vld [vmem:[%s165 + $0x884] sm:$0xf]
                %718 = vst [vmem:[%s166 + $0x44c] sm:$0xf] %v717
                %v719 = vld [vmem:[%s165 + $0x888] sm:$0xf]
                %720 = vst [vmem:[%s166 + $0x450] sm:$0xf] %v719
                %v721 = vld [vmem:[%s165 + $0x88c] sm:$0xf]
                %722 = vst [vmem:[%s166 + $0x454] sm:$0xf] %v721
                %v723 = vld [vmem:[%s165 + $0x890] sm:$0xf]
                %724 = vst [vmem:[%s166 + $0x458] sm:$0xf] %v723
                %v725 = vld [vmem:[%s165 + $0x894] sm:$0xf]
                %726 = vst [vmem:[%s166 + $0x45c] sm:$0xf] %v725
                %v727 = vld [vmem:[%s165 + $0x898] sm:$0xf]
                %728 = vst [vmem:[%s166 + $0x460] sm:$0xf] %v727
                %v729 = vld [vmem:[%s165 + $0x89c] sm:$0xf]
                %730 = vst [vmem:[%s166 + $0x464] sm:$0xf] %v729
                %v731 = vld [vmem:[%s165 + $0x8a0] sm:$0xf]
                %732 = vst [vmem:[%s166 + $0x468] sm:$0xf] %v731
                %v733 = vld [vmem:[%s165 + $0x8a4] sm:$0xf]
                %734 = vst [vmem:[%s166 + $0x46c] sm:$0xf] %v733
                %v735 = vld [vmem:[%s165 + $0x8a8] sm:$0xf]
                %736 = vst [vmem:[%s166 + $0x470] sm:$0xf] %v735
                %v737 = vld [vmem:[%s165 + $0x8ac] sm:$0xf]
                %738 = vst [vmem:[%s166 + $0x474] sm:$0xf] %v737
                %v739 = vld [vmem:[%s165 + $0x8b0] sm:$0xf]
                %740 = vst [vmem:[%s166 + $0x478] sm:$0xf] %v739
                %v741 = vld [vmem:[%s165 + $0x8b4] sm:$0xf]
                %742 = vst [vmem:[%s166 + $0x47c] sm:$0xf] %v741
              $region45: #{tpu_custom_call.1} parent=39 // loop_footer
                %s164 = sadd.s32 1, %s160
              $region46: #{tpu_custom_call.1} parent=39 // loop_footer_branch
                %159 = sbr.rel target = $region42
              $region47: #{tpu_custom_call.1} parent=39 // loop_exit
                _
            $region40: #{tpu_custom_call.1} parent=31 // pred_fallthru
              _
          $region32: #{tpu_custom_call.1} parent=27 // pred_fallthru
            _
          %1338 = vnop
        $region28: #{tpu_custom_call.1} parent=23 // pred_fallthru
          _
      $region24: #{tpu_custom_call.1} parent=5 // pred_fallthru
        _
      %p1339 = scmp.le.s32.totalorder 1, %s9
      %p1340 = scmp.lt.s32.totalorder %s9, 3
      %p1341 = pnand %p1339, %p1340
      %p1342 = pneg %p1341
      // Predicated region
      $region66: #{tpu_custom_call.1} parent=5 // pred_check
        _
      $region67: #{tpu_custom_call.1} parent=5 // pred_check_branch
        %1344 = sbr.rel (%p1341) target = $region69
      $region68: #{tpu_custom_call.1} parent=5 // pred_region
        %s1345 = ssub.s32 %s9, 1
        %s1346 = sand.u32 %s34, 1
        %s1347 = sand.u32 %s34, 1
        %s1348 = smul.addr %s1347, 1152
        %s1349 = scalar_lea.vmem [#allocation3], %s1348
        // Predicated region
        $region70: #{tpu_custom_call.1} parent=68 // pred_check
          %p1350 = pneg %p47
        $region71: #{tpu_custom_call.1} parent=68 // pred_check_branch
          %1352 = sbr.rel (%p1350) target = $region73
        $region72: #{tpu_custom_call.1} parent=68 // pred_region
          _
        $region73: #{tpu_custom_call.1} parent=68 // pred_fallthru
          _
        %s1353 = sand.u32 %s34, 1
        %s1354 = sand.u32 %s34, 1
        %s1355 = smul.addr %s1354, 1152
        %s1356 = scalar_lea.vmem [#allocation3], %s1355
        %p1357 = pneg %p47
        %p1358 = pneg %p44
        %p1359 = pneg %p68
        %p1360 = pneg %p65
        %p1361 = pneg %p89
        %p1362 = pneg %p86
        %p1363 = pneg %p117
        %p1364 = pneg %p114
        %s1365 = smul.u32 4, %s18
        %s1366 = smul.u32 8, %s19
        %p1367 = scmp.lt.s32.totalorder %s1365, 7
        %s1368 = scalar_select %p1367, %s1365, 7
        %p1369 = scmp.lt.s32.totalorder %s1366, 7
        %s1370 = scalar_select %p1369, %s1366, 7
        %s1371 = smul.addr %s1368, 8
        %s1372 = sadd.s32 %s1370, %s1371
        %s1373 = smul.addr %s1372, 8
        %s1374 = scalar_lea.vmem %s3, %s1373
        %s1375 = smul.u32 4, %s18
        %s1376 = smul.u32 8, %s19
        %p1377 = scmp.lt.s32.totalorder %s1375, 7
        %s1378 = scalar_select %p1377, %s1375, 7
        %p1379 = scmp.lt.s32.totalorder %s1376, 7
        %s1380 = scalar_select %p1379, %s1376, 7
        %s1381 = smul.addr %s1378, 8
        %s1382 = sadd.s32 %s1380, %s1381
        %s1383 = smul.addr %s1382, 8
        %s1384 = scalar_lea.vmem %s3, %s1383
        %s1385 = smul.u32 4, %s18
        %s1386 = smul.u32 8, %s19
        %s1388 = smul.u32 %s19, 8
        %s1389 = smul.u32 %s1388, 2
        %s1390 = smul.addr %s1389, 4
        %s1391 = scalar_lea.vmem %s1349, %s1390 [#allocation3]
        %v1392 = vld [vmem:[%s1391] sm:$0xf]
        %v1393 = vld [vmem:[%s1391 + $0x8] sm:$0xf]
        %v1394 = vld [vmem:[%s1391 + $0x10] sm:$0xf]
        %v1395 = vld [vmem:[%s1391 + $0x18] sm:$0xf]
        %v1396 = vld [vmem:[%s1391 + $0x20] sm:$0xf]
        %v1397 = vld [vmem:[%s1391 + $0x28] sm:$0xf]
        %v1398 = vld [vmem:[%s1391 + $0x30] sm:$0xf]
        %v1399 = vld [vmem:[%s1391 + $0x38] sm:$0xf]
        %v1400 = vld [vmem:[%s1] sm:$0xf]
        %v1409 = vunpack.c.l.b16 %v1392
        %v1410 = vunpack.c.l.b16 %v1393
        %v1411 = vunpack.c.l.b16 %v1394
        %v1412 = vunpack.c.l.b16 %v1395
        %v1413 = vunpack.c.l.b16 %v1396
        %v1414 = vunpack.c.l.b16 %v1397
        %v1415 = vunpack.c.l.b16 %v1398
        %v1416 = vunpack.c.l.b16 %v1399
        %v1417 = vpack.c.b16 %v1410, %v1409
        %v1418 = vpack.c.b16 %v1412, %v1411
        %v1419 = vpack.c.b16 %v1414, %v1413
        %v1420 = vpack.c.b16 %v1416, %v1415
        %vm1421 = vcmask 64512
        %v1423 = vsel %vm1421, %v1417, 0
        %v1426 = vsel %vm1421, %v1418, 0
        %v1429 = vsel %vm1421, %v1419, 0
        %v1432 = vsel %vm1421, %v1420, 0
        %vm1434 = vcmask 1043456
        %v1436 = vsel %vm1434, %v1400, 0
        %1438 = vmatprep.subr.bf16.mxu0 0
        %1439 = vmatpush1.bf16.msra.mxu0 %v1436
        %1440 = vmatprep.subr.bf16.mxu0 0
        %1441 = vmatpush1.bf16.msra.mxu0 0
        %1442 = vmatprep.subr.bf16.mxu0 0
        %1443 = vmatpush1.bf16.msra.mxu0 0
        %1444 = vmatprep.subr.bf16.mxu0 0
        %1445 = vmatpush1.bf16.msra.mxu0 0
        %1446 = vmatprep.subr.bf16.mxu0 0
        %1447 = vmatpush1.bf16.msra.mxu0 0
        %1448 = vmatprep.subr.bf16.mxu0 0
        %1449 = vmatpush1.bf16.msra.mxu0 0
        %1450 = vmatprep.subr.bf16.mxu0 0
        %1451 = vmatpush1.bf16.msra.mxu0 0
        %1452 = vmatprep.subr.bf16.mxu0 0
        %1453 = vmatpush1.bf16.msra.mxu0 0
        %1454 = vmatprep.subr.bf16.mxu0 0
        %1455 = vmatpush1.bf16.msra.mxu0 0
        %1456 = vmatprep.subr.bf16.mxu0 0
        %1457 = vmatpush1.bf16.msra.mxu0 0
        %1458 = vmatprep.subr.bf16.mxu0 0
        %1459 = vmatpush1.bf16.msra.mxu0 0
        %1460 = vmatprep.subr.bf16.mxu0 0
        %1461 = vmatpush1.bf16.msra.mxu0 0
        %1462 = vmatprep.subr.bf16.mxu0 0
        %1463 = vmatpush1.bf16.msra.mxu0 0
        %1464 = vmatprep.subr.bf16.mxu0 0
        %1465 = vmatpush1.bf16.msra.mxu0 0
        %1466 = vmatprep.subr.bf16.mxu0 0
        %1467 = vmatpush1.bf16.msra.mxu0 0
        %1468 = vmatprep.subr.bf16.mxu0 0
        %1469 = vmatpush1.bf16.msra.mxu0 0
        %1470 = vmatprep.mubr.bf16.mxu0 0
        %1471 = vmatmul.mubr.bf16.gmra.mrb[0].mxu0 %v1423
        %v1472 = vpop.f32.mrb[0].mxu0
        %v1473 = vadd.f32 0.0, %v1472
        %v1474 = vpop.f32.mrb[0].mxu0
        %v1475 = vpop.f32.mrb[0].mxu0
        %v1476 = vadd.f32 0.0, %v1475
        %v1477 = vpop.f32.mrb[0].mxu0
        %1478 = vmatprep.mubr.bf16.mxu0 0
        %1479 = vmatmul.mubr.bf16.gmra.mrb[0].mxu0 %v1426
        %v1480 = vpop.f32.mrb[0].mxu0
        %v1481 = vadd.f32 0.0, %v1480
        %v1482 = vpop.f32.mrb[0].mxu0
        %v1483 = vpop.f32.mrb[0].mxu0
        %v1484 = vadd.f32 0.0, %v1483
        %v1485 = vpop.f32.mrb[0].mxu0
        %1486 = vmatprep.mubr.bf16.mxu0 0
        %1487 = vmatmul.mubr.bf16.gmra.mrb[0].mxu0 %v1429
        %v1488 = vpop.f32.mrb[0].mxu0
        %v1489 = vadd.f32 0.0, %v1488
        %v1490 = vpop.f32.mrb[0].mxu0
        %v1491 = vpop.f32.mrb[0].mxu0
        %v1492 = vadd.f32 0.0, %v1491
        %v1493 = vpop.f32.mrb[0].mxu0
        %1494 = vmatprep.mubr.bf16.mxu0 0
        %1495 = vmatmul.mubr.bf16.gmra.mrb[0].mxu0 %v1432
        %v1496 = vpop.f32.mrb[0].mxu0
        %v1497 = vadd.f32 0.0, %v1496
        %v1498 = vpop.f32.mrb[0].mxu0
        %v1499 = vpop.f32.mrb[0].mxu0
        %v1500 = vadd.f32 0.0, %v1499
        %v1501 = vpop.f32.mrb[0].mxu0
        %1502 = vdwg.mxu0
        %vm1503 = vcmask 130048
        %1504 = vst.msk [vmem:[#allocation2] sm:$0xff] %vm1503, %v1473
        %1505 = vst.msk [vmem:[#allocation2 + $0x8] sm:$0xff] %vm1503, %v1476
        %1506 = vst.msk [vmem:[#allocation2 + $0x10] sm:$0xff] %vm1503, %v1481
        %1507 = vst.msk [vmem:[#allocation2 + $0x18] sm:$0xff] %vm1503, %v1484
        %1508 = vst.msk [vmem:[#allocation2 + $0x20] sm:$0xff] %vm1503, %v1489
        %1509 = vst.msk [vmem:[#allocation2 + $0x28] sm:$0xff] %vm1503, %v1492
        %1510 = vst.msk [vmem:[#allocation2 + $0x30] sm:$0xff] %vm1503, %v1497
        %1511 = vst.msk [vmem:[#allocation2 + $0x38] sm:$0xff] %vm1503, %v1500
        %s1512 = sadd.s32 %s1389, 72
        %s1513 = smul.addr %s1512, 4
        %s1514 = scalar_lea.vmem %s1349, %s1513 [#allocation3]
        %v1515 = vld [vmem:[%s1514] sm:$0xf]
        %v1516 = vld [vmem:[%s1514 + $0x8] sm:$0xf]
        %v1517 = vld [vmem:[%s1514 + $0x10] sm:$0xf]
        %v1518 = vld [vmem:[%s1514 + $0x18] sm:$0xf]
        %v1519 = vld [vmem:[%s1514 + $0x20] sm:$0xf]
        %v1520 = vld [vmem:[%s1514 + $0x28] sm:$0xf]
        %v1521 = vld [vmem:[%s1514 + $0x30] sm:$0xf]
        %v1522 = vld [vmem:[%s1514 + $0x38] sm:$0xf]
        %s1523 = scalar_lea.vmem %s1, 4
        %v1524 = vld [vmem:[%s1523] sm:$0xf]
        %v1533 = vunpack.c.l.b16 %v1515
        %v1534 = vunpack.c.l.b16 %v1516
        %v1535 = vunpack.c.l.b16 %v1517
        %v1536 = vunpack.c.l.b16 %v1518
        %v1537 = vunpack.c.l.b16 %v1519
        %v1538 = vunpack.c.l.b16 %v1520
        %v1539 = vunpack.c.l.b16 %v1521
        %v1540 = vunpack.c.l.b16 %v1522
        %v1541 = vpack.c.b16 %v1534, %v1533
        %v1542 = vpack.c.b16 %v1536, %v1535
        %v1543 = vpack.c.b16 %v1538, %v1537
        %v1544 = vpack.c.b16 %v1540, %v1539
        %v1546 = vsel %vm1421, %v1541, 0
        %v1549 = vsel %vm1421, %v1542, 0
        %v1552 = vsel %vm1421, %v1543, 0
        %v1555 = vsel %vm1421, %v1544, 0
        %v1558 = vsel %vm1434, %v1524, 0
        %1560 = vmatprep.subr.bf16.mxu0 0
        %1561 = vmatpush1.bf16.msra.mxu0 %v1558
        %1562 = vmatprep.subr.bf16.mxu0 0
        %1563 = vmatpush1.bf16.msra.mxu0 0
        %1564 = vmatprep.subr.bf16.mxu0 0
        %1565 = vmatpush1.bf16.msra.mxu0 0
        %1566 = vmatprep.subr.bf16.mxu0 0
        %1567 = vmatpush1.bf16.msra.mxu0 0
        %1568 = vmatprep.subr.bf16.mxu0 0
        %1569 = vmatpush1.bf16.msra.mxu0 0
        %1570 = vmatprep.subr.bf16.mxu0 0
        %1571 = vmatpush1.bf16.msra.mxu0 0
        %1572 = vmatprep.subr.bf16.mxu0 0
        %1573 = vmatpush1.bf16.msra.mxu0 0
        %1574 = vmatprep.subr.bf16.mxu0 0
        %1575 = vmatpush1.bf16.msra.mxu0 0
        %1576 = vmatprep.subr.bf16.mxu0 0
        %1577 = vmatpush1.bf16.msra.mxu0 0
        %1578 = vmatprep.subr.bf16.mxu0 0
        %1579 = vmatpush1.bf16.msra.mxu0 0
        %1580 = vmatprep.subr.bf16.mxu0 0
        %1581 = vmatpush1.bf16.msra.mxu0 0
        %1582 = vmatprep.subr.bf16.mxu0 0
        %1583 = vmatpush1.bf16.msra.mxu0 0
        %1584 = vmatprep.subr.bf16.mxu0 0
        %1585 = vmatpush1.bf16.msra.mxu0 0
        %1586 = vmatprep.subr.bf16.mxu0 0
        %1587 = vmatpush1.bf16.msra.mxu0 0
        %1588 = vmatprep.subr.bf16.mxu0 0
        %1589 = vmatpush1.bf16.msra.mxu0 0
        %1590 = vmatprep.subr.bf16.mxu0 0
        %1591 = vmatpush1.bf16.msra.mxu0 0
        %1592 = vmatprep.mubr.bf16.mxu0 0
        %1593 = vmatmul.mubr.bf16.gmra.mrb[0].mxu0 %v1546
        %v1594 = vpop.f32.mrb[0].mxu0
        %v1595 = vadd.f32 0.0, %v1594
        %v1596 = vpop.f32.mrb[0].mxu0
        %v1597 = vpop.f32.mrb[0].mxu0
        %v1598 = vadd.f32 0.0, %v1597
        %v1599 = vpop.f32.mrb[0].mxu0
        %1600 = vmatprep.mubr.bf16.mxu0 0
        %1601 = vmatmul.mubr.bf16.gmra.mrb[0].mxu0 %v1549
        %v1602 = vpop.f32.mrb[0].mxu0
        %v1603 = vadd.f32 0.0, %v1602
        %v1604 = vpop.f32.mrb[0].mxu0
        %v1605 = vpop.f32.mrb[0].mxu0
        %v1606 = vadd.f32 0.0, %v1605
        %v1607 = vpop.f32.mrb[0].mxu0
        %1608 = vmatprep.mubr.bf16.mxu0 0
        %1609 = vmatmul.mubr.bf16.gmra.mrb[0].mxu0 %v1552
        %v1610 = vpop.f32.mrb[0].mxu0
        %v1611 = vadd.f32 0.0, %v1610
        %v1612 = vpop.f32.mrb[0].mxu0
        %v1613 = vpop.f32.mrb[0].mxu0
        %v1614 = vadd.f32 0.0, %v1613
        %v1615 = vpop.f32.mrb[0].mxu0
        %1616 = vmatprep.mubr.bf16.mxu0 0
        %1617 = vmatmul.mubr.bf16.gmra.mrb[0].mxu0 %v1555
        %v1618 = vpop.f32.mrb[0].mxu0
        %v1619 = vadd.f32 0.0, %v1618
        %v1620 = vpop.f32.mrb[0].mxu0
        %v1621 = vpop.f32.mrb[0].mxu0
        %v1622 = vadd.f32 0.0, %v1621
        %v1623 = vpop.f32.mrb[0].mxu0
        %1624 = vdwg.mxu0
        %v1625 = vld [vmem:[#allocation2] sm:$0xff]
        %v1626 = vld [vmem:[#allocation2 + $0x8] sm:$0xff]
        %v1627 = vld [vmem:[#allocation2 + $0x10] sm:$0xff]
        %v1628 = vld [vmem:[#allocation2 + $0x18] sm:$0xff]
        %v1629 = vld [vmem:[#allocation2 + $0x20] sm:$0xff]
        %v1630 = vld [vmem:[#allocation2 + $0x28] sm:$0xff]
        %v1631 = vld [vmem:[#allocation2 + $0x30] sm:$0xff]
        %v1632 = vld [vmem:[#allocation2 + $0x38] sm:$0xff]
        %v1633 = vadd.f32 %v1625, %v1595
        %v1634 = vadd.f32 %v1626, %v1598
        %v1635 = vadd.f32 %v1627, %v1603
        %v1636 = vadd.f32 %v1628, %v1606
        %v1637 = vadd.f32 %v1629, %v1611
        %v1638 = vadd.f32 %v1630, %v1614
        %v1639 = vadd.f32 %v1631, %v1619
        %v1640 = vadd.f32 %v1632, %v1622
        %1641 = vst.msk [vmem:[#allocation2] sm:$0xff] %vm1503, %v1633
        %1642 = vst.msk [vmem:[#allocation2 + $0x8] sm:$0xff] %vm1503, %v1634
        %1643 = vst.msk [vmem:[#allocation2 + $0x10] sm:$0xff] %vm1503, %v1635
        %1644 = vst.msk [vmem:[#allocation2 + $0x18] sm:$0xff] %vm1503, %v1636
        %1645 = vst.msk [vmem:[#allocation2 + $0x20] sm:$0xff] %vm1503, %v1637
        %1646 = vst.msk [vmem:[#allocation2 + $0x28] sm:$0xff] %vm1503, %v1638
        %1647 = vst.msk [vmem:[#allocation2 + $0x30] sm:$0xff] %vm1503, %v1639
        %1648 = vst.msk [vmem:[#allocation2 + $0x38] sm:$0xff] %vm1503, %v1640
        %v1649 = vld [vmem:[%s1391] sm:$0xf]
        %v1650 = vld [vmem:[%s1391 + $0x4] sm:$0x1]
        %v1651 = vld [vmem:[%s1391 + $0x8] sm:$0xf]
        %v1652 = vld [vmem:[%s1391 + $0xc] sm:$0x1]
        %v1653 = vld [vmem:[%s1391 + $0x10] sm:$0xf]
        %v1654 = vld [vmem:[%s1391 + $0x14] sm:$0x1]
        %v1655 = vld [vmem:[%s1391 + $0x18] sm:$0xf]
        %v1656 = vld [vmem:[%s1391 + $0x1c] sm:$0x1]
        %v1657 = vld [vmem:[%s1391 + $0x20] sm:$0xf]
        %v1658 = vld [vmem:[%s1391 + $0x24] sm:$0x1]
        %v1659 = vld [vmem:[%s1391 + $0x28] sm:$0xf]
        %v1660 = vld [vmem:[%s1391 + $0x2c] sm:$0x1]
        %v1661 = vld [vmem:[%s1391 + $0x30] sm:$0xf]
        %v1662 = vld [vmem:[%s1391 + $0x34] sm:$0x1]
        %v1663 = vld [vmem:[%s1391 + $0x38] sm:$0xf]
        %v1664 = vld [vmem:[%s1391 + $0x3c] sm:$0x1]
        %vm1665 = vsmask.f32 3328
        %vm1666 = vsmask.f32 7440
        %vm1667 = vmor %vm1665, %vm1666
        %v1669 = vshrl.u32 %v1649, 16
        %v1671 = vrot.slane %v1669, 4
        %v1672 = vshll.u32 %v1649, 16
        %v1674 = vrot.slane %v1672, 5
        %v1675 = vor.u32 %v1671, %v1674
        %v1676 = vrot.slane %v1675, 4
        %v1678 = vshll.u32 %v1650, 16
        %v1680 = vrot.slane %v1678, 5
        %v1681 = vsel %vm1667, %v1676, %v1680
        %v1683 = vshrl.u32 %v1651, 16
        %v1685 = vrot.slane %v1683, 4
        %v1686 = vshll.u32 %v1651, 16
        %v1688 = vrot.slane %v1686, 5
        %v1689 = vor.u32 %v1685, %v1688
        %v1690 = vrot.slane %v1689, 4
        %v1692 = vshll.u32 %v1652, 16
        %v1694 = vrot.slane %v1692, 5
        %v1695 = vsel %vm1667, %v1690, %v1694
        %v1697 = vshrl.u32 %v1653, 16
        %v1699 = vrot.slane %v1697, 4
        %v1700 = vshll.u32 %v1653, 16
        %v1702 = vrot.slane %v1700, 5
        %v1703 = vor.u32 %v1699, %v1702
        %v1704 = vrot.slane %v1703, 4
        %v1706 = vshll.u32 %v1654, 16
        %v1708 = vrot.slane %v1706, 5
        %v1709 = vsel %vm1667, %v1704, %v1708
        %v1711 = vshrl.u32 %v1655, 16
        %v1713 = vrot.slane %v1711, 4
        %v1714 = vshll.u32 %v1655, 16
        %v1716 = vrot.slane %v1714, 5
        %v1717 = vor.u32 %v1713, %v1716
        %v1718 = vrot.slane %v1717, 4
        %v1720 = vshll.u32 %v1656, 16
        %v1722 = vrot.slane %v1720, 5
        %v1723 = vsel %vm1667, %v1718, %v1722
        %v1725 = vshrl.u32 %v1657, 16
        %v1727 = vrot.slane %v1725, 4
        %v1728 = vshll.u32 %v1657, 16
        %v1730 = vrot.slane %v1728, 5
        %v1731 = vor.u32 %v1727, %v1730
        %v1732 = vrot.slane %v1731, 4
        %v1734 = vshll.u32 %v1658, 16
        %v1736 = vrot.slane %v1734, 5
        %v1737 = vsel %vm1667, %v1732, %v1736
        %v1739 = vshrl.u32 %v1659, 16
        %v1741 = vrot.slane %v1739, 4
        %v1742 = vshll.u32 %v1659, 16
        %v1744 = vrot.slane %v1742, 5
        %v1745 = vor.u32 %v1741, %v1744
        %v1746 = vrot.slane %v1745, 4
        %v1748 = vshll.u32 %v1660, 16
        %v1750 = vrot.slane %v1748, 5
        %v1751 = vsel %vm1667, %v1746, %v1750
        %v1753 = vshrl.u32 %v1661, 16
        %v1755 = vrot.slane %v1753, 4
        %v1756 = vshll.u32 %v1661, 16
        %v1758 = vrot.slane %v1756, 5
        %v1759 = vor.u32 %v1755, %v1758
        %v1760 = vrot.slane %v1759, 4
        %v1762 = vshll.u32 %v1662, 16
        %v1764 = vrot.slane %v1762, 5
        %v1765 = vsel %vm1667, %v1760, %v1764
        %v1767 = vshrl.u32 %v1663, 16
        %v1769 = vrot.slane %v1767, 4
        %v1770 = vshll.u32 %v1663, 16
        %v1772 = vrot.slane %v1770, 5
        %v1773 = vor.u32 %v1769, %v1772
        %v1774 = vrot.slane %v1773, 4
        %v1776 = vshll.u32 %v1664, 16
        %v1778 = vrot.slane %v1776, 5
        %v1779 = vsel %vm1667, %v1774, %v1778
        %s1780 = scalar_lea.vmem %s1, 8
        %v1781 = vld [vmem:[%s1780] sm:$0xf]
        %v1782 = vunpack.c.l.b16 %v1681
        %v1783 = vunpack.c.l.b16 %v1695
        %v1784 = vunpack.c.l.b16 %v1709
        %v1785 = vunpack.c.l.b16 %v1723
        %v1786 = vunpack.c.l.b16 %v1737
        %v1787 = vunpack.c.l.b16 %v1751
        %v1788 = vunpack.c.l.b16 %v1765
        %v1789 = vunpack.c.l.b16 %v1779
        %v1790 = vpack.c.b16 %v1783, %v1782
        %v1791 = vpack.c.b16 %v1785, %v1784
        %v1792 = vpack.c.b16 %v1787, %v1786
        %v1793 = vpack.c.b16 %v1789, %v1788
        %v1795 = vsel %vm1421, %v1790, 0
        %v1798 = vsel %vm1421, %v1791, 0
        %v1801 = vsel %vm1421, %v1792, 0
        %v1804 = vsel %vm1421, %v1793, 0
        %v1807 = vsel %vm1434, %v1781, 0
        %1809 = vmatprep.subr.bf16.mxu0 0
        %1810 = vmatpush1.bf16.msra.mxu0 %v1807
        %1811 = vmatprep.subr.bf16.mxu0 0
        %1812 = vmatpush1.bf16.msra.mxu0 0
        %1813 = vmatprep.subr.bf16.mxu0 0
        %1814 = vmatpush1.bf16.msra.mxu0 0
        %1815 = vmatprep.subr.bf16.mxu0 0
        %1816 = vmatpush1.bf16.msra.mxu0 0
        %1817 = vmatprep.subr.bf16.mxu0 0
        %1818 = vmatpush1.bf16.msra.mxu0 0
        %1819 = vmatprep.subr.bf16.mxu0 0
        %1820 = vmatpush1.bf16.msra.mxu0 0
        %1821 = vmatprep.subr.bf16.mxu0 0
        %1822 = vmatpush1.bf16.msra.mxu0 0
        %1823 = vmatprep.subr.bf16.mxu0 0
        %1824 = vmatpush1.bf16.msra.mxu0 0
        %1825 = vmatprep.subr.bf16.mxu0 0
        %1826 = vmatpush1.bf16.msra.mxu0 0
        %1827 = vmatprep.subr.bf16.mxu0 0
        %1828 = vmatpush1.bf16.msra.mxu0 0
        %1829 = vmatprep.subr.bf16.mxu0 0
        %1830 = vmatpush1.bf16.msra.mxu0 0
        %1831 = vmatprep.subr.bf16.mxu0 0
        %1832 = vmatpush1.bf16.msra.mxu0 0
        %1833 = vmatprep.subr.bf16.mxu0 0
        %1834 = vmatpush1.bf16.msra.mxu0 0
        %1835 = vmatprep.subr.bf16.mxu0 0
        %1836 = vmatpush1.bf16.msra.mxu0 0
        %1837 = vmatprep.subr.bf16.mxu0 0
        %1838 = vmatpush1.bf16.msra.mxu0 0
        %1839 = vmatprep.subr.bf16.mxu0 0
        %1840 = vmatpush1.bf16.msra.mxu0 0
        %1841 = vmatprep.mubr.bf16.mxu0 0
        %1842 = vmatmul.mubr.bf16.gmra.mrb[0].mxu0 %v1795
        %v1843 = vpop.f32.mrb[0].mxu0
        %v1844 = vadd.f32 0.0, %v1843
        %v1845 = vpop.f32.mrb[0].mxu0
        %v1846 = vpop.f32.mrb[0].mxu0
        %v1847 = vadd.f32 0.0, %v1846
        %v1848 = vpop.f32.mrb[0].mxu0
        %1849 = vmatprep.mubr.bf16.mxu0 0
        %1850 = vmatmul.mubr.bf16.gmra.mrb[0].mxu0 %v1798
        %v1851 = vpop.f32.mrb[0].mxu0
        %v1852 = vadd.f32 0.0, %v1851
        %v1853 = vpop.f32.mrb[0].mxu0
        %v1854 = vpop.f32.mrb[0].mxu0
        %v1855 = vadd.f32 0.0, %v1854
        %v1856 = vpop.f32.mrb[0].mxu0
        %1857 = vmatprep.mubr.bf16.mxu0 0
        %1858 = vmatmul.mubr.bf16.gmra.mrb[0].mxu0 %v1801
        %v1859 = vpop.f32.mrb[0].mxu0
        %v1860 = vadd.f32 0.0, %v1859
        %v1861 = vpop.f32.mrb[0].mxu0
        %v1862 = vpop.f32.mrb[0].mxu0
        %v1863 = vadd.f32 0.0, %v1862
        %v1864 = vpop.f32.mrb[0].mxu0
        %1865 = vmatprep.mubr.bf16.mxu0 0
        %1866 = vmatmul.mubr.bf16.gmra.mrb[0].mxu0 %v1804
        %v1867 = vpop.f32.mrb[0].mxu0
        %v1868 = vadd.f32 0.0, %v1867
        %v1869 = vpop.f32.mrb[0].mxu0
        %v1870 = vpop.f32.mrb[0].mxu0
        %v1871 = vadd.f32 0.0, %v1870
        %v1872 = vpop.f32.mrb[0].mxu0
        %1873 = vdwg.mxu0
        %v1874 = vld [vmem:[#allocation2] sm:$0xff]
        %v1875 = vld [vmem:[#allocation2 + $0x8] sm:$0xff]
        %v1876 = vld [vmem:[#allocation2 + $0x10] sm:$0xff]
        %v1877 = vld [vmem:[#allocation2 + $0x18] sm:$0xff]
        %v1878 = vld [vmem:[#allocation2 + $0x20] sm:$0xff]
        %v1879 = vld [vmem:[#allocation2 + $0x28] sm:$0xff]
        %v1880 = vld [vmem:[#allocation2 + $0x30] sm:$0xff]
        %v1881 = vld [vmem:[#allocation2 + $0x38] sm:$0xff]
        %v1882 = vadd.f32 %v1874, %v1844
        %v1883 = vadd.f32 %v1875, %v1847
        %v1884 = vadd.f32 %v1876, %v1852
        %v1885 = vadd.f32 %v1877, %v1855
        %v1886 = vadd.f32 %v1878, %v1860
        %v1887 = vadd.f32 %v1879, %v1863
        %v1888 = vadd.f32 %v1880, %v1868
        %v1889 = vadd.f32 %v1881, %v1871
        %1890 = vst.msk [vmem:[#allocation2] sm:$0xff] %vm1503, %v1882
        %1891 = vst.msk [vmem:[#allocation2 + $0x8] sm:$0xff] %vm1503, %v1883
        %1892 = vst.msk [vmem:[#allocation2 + $0x10] sm:$0xff] %vm1503, %v1884
        %1893 = vst.msk [vmem:[#allocation2 + $0x18] sm:$0xff] %vm1503, %v1885
        %1894 = vst.msk [vmem:[#allocation2 + $0x20] sm:$0xff] %vm1503, %v1886
        %1895 = vst.msk [vmem:[#allocation2 + $0x28] sm:$0xff] %vm1503, %v1887
        %1896 = vst.msk [vmem:[#allocation2 + $0x30] sm:$0xff] %vm1503, %v1888
        %1897 = vst.msk [vmem:[#allocation2 + $0x38] sm:$0xff] %vm1503, %v1889
        %s1898 = sadd.s32 %s1389, 144
        %s1899 = smul.addr %s1898, 4
        %s1900 = scalar_lea.vmem %s1349, %s1899 [#allocation3]
        %v1901 = vld [vmem:[%s1900] sm:$0xf]
        %v1902 = vld [vmem:[%s1900 + $0x8] sm:$0xf]
        %v1903 = vld [vmem:[%s1900 + $0x10] sm:$0xf]
        %v1904 = vld [vmem:[%s1900 + $0x18] sm:$0xf]
        %v1905 = vld [vmem:[%s1900 + $0x20] sm:$0xf]
        %v1906 = vld [vmem:[%s1900 + $0x28] sm:$0xf]
        %v1907 = vld [vmem:[%s1900 + $0x30] sm:$0xf]
        %v1908 = vld [vmem:[%s1900 + $0x38] sm:$0xf]
        %s1909 = scalar_lea.vmem %s1, 12
        %v1910 = vld [vmem:[%s1909] sm:$0xf]
        %v1919 = vunpack.c.l.b16 %v1901
        %v1920 = vunpack.c.l.b16 %v1902
        %v1921 = vunpack.c.l.b16 %v1903
        %v1922 = vunpack.c.l.b16 %v1904
        %v1923 = vunpack.c.l.b16 %v1905
        %v1924 = vunpack.c.l.b16 %v1906
        %v1925 = vunpack.c.l.b16 %v1907
        %v1926 = vunpack.c.l.b16 %v1908
        %v1927 = vpack.c.b16 %v1920, %v1919
        %v1928 = vpack.c.b16 %v1922, %v1921
        %v1929 = vpack.c.b16 %v1924, %v1923
        %v1930 = vpack.c.b16 %v1926, %v1925
        %v1932 = vsel %vm1421, %v1927, 0
        %v1935 = vsel %vm1421, %v1928, 0
        %v1938 = vsel %vm1421, %v1929, 0
        %v1941 = vsel %vm1421, %v1930, 0
        %v1944 = vsel %vm1434, %v1910, 0
        %1946 = vmatprep.subr.bf16.mxu0 0
        %1947 = vmatpush1.bf16.msra.mxu0 %v1944
        %1948 = vmatprep.subr.bf16.mxu0 0
        %1949 = vmatpush1.bf16.msra.mxu0 0
        %1950 = vmatprep.subr.bf16.mxu0 0
        %1951 = vmatpush1.bf16.msra.mxu0 0
        %1952 = vmatprep.subr.bf16.mxu0 0
        %1953 = vmatpush1.bf16.msra.mxu0 0
        %1954 = vmatprep.subr.bf16.mxu0 0
        %1955 = vmatpush1.bf16.msra.mxu0 0
        %1956 = vmatprep.subr.bf16.mxu0 0
        %1957 = vmatpush1.bf16.msra.mxu0 0
        %1958 = vmatprep.subr.bf16.mxu0 0
        %1959 = vmatpush1.bf16.msra.mxu0 0
        %1960 = vmatprep.subr.bf16.mxu0 0
        %1961 = vmatpush1.bf16.msra.mxu0 0
        %1962 = vmatprep.subr.bf16.mxu0 0
        %1963 = vmatpush1.bf16.msra.mxu0 0
        %1964 = vmatprep.subr.bf16.mxu0 0
        %1965 = vmatpush1.bf16.msra.mxu0 0
        %1966 = vmatprep.subr.bf16.mxu0 0
        %1967 = vmatpush1.bf16.msra.mxu0 0
        %1968 = vmatprep.subr.bf16.mxu0 0
        %1969 = vmatpush1.bf16.msra.mxu0 0
        %1970 = vmatprep.subr.bf16.mxu0 0
        %1971 = vmatpush1.bf16.msra.mxu0 0
        %1972 = vmatprep.subr.bf16.mxu0 0
        %1973 = vmatpush1.bf16.msra.mxu0 0
        %1974 = vmatprep.subr.bf16.mxu0 0
        %1975 = vmatpush1.bf16.msra.mxu0 0
        %1976 = vmatprep.subr.bf16.mxu0 0
        %1977 = vmatpush1.bf16.msra.mxu0 0
        %1978 = vmatprep.mubr.bf16.mxu0 0
        %1979 = vmatmul.mubr.bf16.gmra.mrb[0].mxu0 %v1932
        %v1980 = vpop.f32.mrb[0].mxu0
        %v1981 = vadd.f32 0.0, %v1980
        %v1982 = vpop.f32.mrb[0].mxu0
        %v1983 = vpop.f32.mrb[0].mxu0
        %v1984 = vadd.f32 0.0, %v1983
        %v1985 = vpop.f32.mrb[0].mxu0
        %1986 = vmatprep.mubr.bf16.mxu0 0
        %1987 = vmatmul.mubr.bf16.gmra.mrb[0].mxu0 %v1935
        %v1988 = vpop.f32.mrb[0].mxu0
        %v1989 = vadd.f32 0.0, %v1988
        %v1990 = vpop.f32.mrb[0].mxu0
        %v1991 = vpop.f32.mrb[0].mxu0
        %v1992 = vadd.f32 0.0, %v1991
        %v1993 = vpop.f32.mrb[0].mxu0
        %1994 = vmatprep.mubr.bf16.mxu0 0
        %1995 = vmatmul.mubr.bf16.gmra.mrb[0].mxu0 %v1938
        %v1996 = vpop.f32.mrb[0].mxu0
        %v1997 = vadd.f32 0.0, %v1996
        %v1998 = vpop.f32.mrb[0].mxu0
        %v1999 = vpop.f32.mrb[0].mxu0
        %v2000 = vadd.f32 0.0, %v1999
        %v2001 = vpop.f32.mrb[0].mxu0
        %2002 = vmatprep.mubr.bf16.mxu0 0
        %2003 = vmatmul.mubr.bf16.gmra.mrb[0].mxu0 %v1941
        %v2004 = vpop.f32.mrb[0].mxu0
        %v2005 = vadd.f32 0.0, %v2004
        %v2006 = vpop.f32.mrb[0].mxu0
        %v2007 = vpop.f32.mrb[0].mxu0
        %v2008 = vadd.f32 0.0, %v2007
        %v2009 = vpop.f32.mrb[0].mxu0
        %2010 = vdwg.mxu0
        %v2011 = vld [vmem:[#allocation2] sm:$0xff]
        %v2012 = vld [vmem:[#allocation2 + $0x8] sm:$0xff]
        %v2013 = vld [vmem:[#allocation2 + $0x10] sm:$0xff]
        %v2014 = vld [vmem:[#allocation2 + $0x18] sm:$0xff]
        %v2015 = vld [vmem:[#allocation2 + $0x20] sm:$0xff]
        %v2016 = vld [vmem:[#allocation2 + $0x28] sm:$0xff]
        %v2017 = vld [vmem:[#allocation2 + $0x30] sm:$0xff]
        %v2018 = vld [vmem:[#allocation2 + $0x38] sm:$0xff]
        %v2019 = vadd.f32 %v2011, %v1981
        %v2020 = vadd.f32 %v2012, %v1984
        %v2021 = vadd.f32 %v2013, %v1989
        %v2022 = vadd.f32 %v2014, %v1992
        %v2023 = vadd.f32 %v2015, %v1997
        %v2024 = vadd.f32 %v2016, %v2000
        %v2025 = vadd.f32 %v2017, %v2005
        %v2026 = vadd.f32 %v2018, %v2008
        %2027 = vst.msk [vmem:[#allocation2] sm:$0xff] %vm1503, %v2019
        %2028 = vst.msk [vmem:[#allocation2 + $0x8] sm:$0xff] %vm1503, %v2020
        %2029 = vst.msk [vmem:[#allocation2 + $0x10] sm:$0xff] %vm1503, %v2021
        %2030 = vst.msk [vmem:[#allocation2 + $0x18] sm:$0xff] %vm1503, %v2022
        %2031 = vst.msk [vmem:[#allocation2 + $0x20] sm:$0xff] %vm1503, %v2023
        %2032 = vst.msk [vmem:[#allocation2 + $0x28] sm:$0xff] %vm1503, %v2024
        %2033 = vst.msk [vmem:[#allocation2 + $0x30] sm:$0xff] %vm1503, %v2025
        %2034 = vst.msk [vmem:[#allocation2 + $0x38] sm:$0xff] %vm1503, %v2026
        %s2035 = sadd.s32 %s1389, 216
        %s2036 = smul.addr %s2035, 4
        %s2037 = scalar_lea.vmem %s1349, %s2036 [#allocation3]
        %v2038 = vld [vmem:[%s2037] sm:$0xf]
        %v2039 = vld [vmem:[%s2037 + $0x8] sm:$0xf]
        %v2040 = vld [vmem:[%s2037 + $0x10] sm:$0xf]
        %v2041 = vld [vmem:[%s2037 + $0x18] sm:$0xf]
        %v2042 = vld [vmem:[%s2037 + $0x20] sm:$0xf]
        %v2043 = vld [vmem:[%s2037 + $0x28] sm:$0xf]
        %v2044 = vld [vmem:[%s2037 + $0x30] sm:$0xf]
        %v2045 = vld [vmem:[%s2037 + $0x38] sm:$0xf]
        %s2046 = scalar_lea.vmem %s1, 16
        %v2047 = vld [vmem:[%s2046] sm:$0xf]
        %v2056 = vunpack.c.l.b16 %v2038
        %v2057 = vunpack.c.l.b16 %v2039
        %v2058 = vunpack.c.l.b16 %v2040
        %v2059 = vunpack.c.l.b16 %v2041
        %v2060 = vunpack.c.l.b16 %v2042
        %v2061 = vunpack.c.l.b16 %v2043
        %v2062 = vunpack.c.l.b16 %v2044
        %v2063 = vunpack.c.l.b16 %v2045
        %v2064 = vpack.c.b16 %v2057, %v2056
        %v2065 = vpack.c.b16 %v2059, %v2058
        %v2066 = vpack.c.b16 %v2061, %v2060
        %v2067 = vpack.c.b16 %v2063, %v2062
        %v2069 = vsel %vm1421, %v2064, 0
        %v2072 = vsel %vm1421, %v2065, 0
        %v2075 = vsel %vm1421, %v2066, 0
        %v2078 = vsel %vm1421, %v2067, 0
        %v2081 = vsel %vm1434, %v2047, 0
        %2083 = vmatprep.subr.bf16.mxu0 0
        %2084 = vmatpush1.bf16.msra.mxu0 %v2081
        %2085 = vmatprep.subr.bf16.mxu0 0
        %2086 = vmatpush1.bf16.msra.mxu0 0
        %2087 = vmatprep.subr.bf16.mxu0 0
        %2088 = vmatpush1.bf16.msra.mxu0 0
        %2089 = vmatprep.subr.bf16.mxu0 0
        %2090 = vmatpush1.bf16.msra.mxu0 0
        %2091 = vmatprep.subr.bf16.mxu0 0
        %2092 = vmatpush1.bf16.msra.mxu0 0
        %2093 = vmatprep.subr.bf16.mxu0 0
        %2094 = vmatpush1.bf16.msra.mxu0 0
        %2095 = vmatprep.subr.bf16.mxu0 0
        %2096 = vmatpush1.bf16.msra.mxu0 0
        %2097 = vmatprep.subr.bf16.mxu0 0
        %2098 = vmatpush1.bf16.msra.mxu0 0
        %2099 = vmatprep.subr.bf16.mxu0 0
        %2100 = vmatpush1.bf16.msra.mxu0 0
        %2101 = vmatprep.subr.bf16.mxu0 0
        %2102 = vmatpush1.bf16.msra.mxu0 0
        %2103 = vmatprep.subr.bf16.mxu0 0
        %2104 = vmatpush1.bf16.msra.mxu0 0
        %2105 = vmatprep.subr.bf16.mxu0 0
        %2106 = vmatpush1.bf16.msra.mxu0 0
        %2107 = vmatprep.subr.bf16.mxu0 0
        %2108 = vmatpush1.bf16.msra.mxu0 0
        %2109 = vmatprep.subr.bf16.mxu0 0
        %2110 = vmatpush1.bf16.msra.mxu0 0
        %2111 = vmatprep.subr.bf16.mxu0 0
        %2112 = vmatpush1.bf16.msra.mxu0 0
        %2113 = vmatprep.subr.bf16.mxu0 0
        %2114 = vmatpush1.bf16.msra.mxu0 0
        %2115 = vmatprep.mubr.bf16.mxu0 0
        %2116 = vmatmul.mubr.bf16.gmra.mrb[0].mxu0 %v2069
        %v2117 = vpop.f32.mrb[0].mxu0
        %v2118 = vadd.f32 0.0, %v2117
        %v2119 = vpop.f32.mrb[0].mxu0
        %v2120 = vpop.f32.mrb[0].mxu0
        %v2121 = vadd.f32 0.0, %v2120
        %v2122 = vpop.f32.mrb[0].mxu0
        %2123 = vmatprep.mubr.bf16.mxu0 0
        %2124 = vmatmul.mubr.bf16.gmra.mrb[0].mxu0 %v2072
        %v2125 = vpop.f32.mrb[0].mxu0
        %v2126 = vadd.f32 0.0, %v2125
        %v2127 = vpop.f32.mrb[0].mxu0
        %v2128 = vpop.f32.mrb[0].mxu0
        %v2129 = vadd.f32 0.0, %v2128
        %v2130 = vpop.f32.mrb[0].mxu0
        %2131 = vmatprep.mubr.bf16.mxu0 0
        %2132 = vmatmul.mubr.bf16.gmra.mrb[0].mxu0 %v2075
        %v2133 = vpop.f32.mrb[0].mxu0
        %v2134 = vadd.f32 0.0, %v2133
        %v2135 = vpop.f32.mrb[0].mxu0
        %v2136 = vpop.f32.mrb[0].mxu0
        %v2137 = vadd.f32 0.0, %v2136
        %v2138 = vpop.f32.mrb[0].mxu0
        %2139 = vmatprep.mubr.bf16.mxu0 0
        %2140 = vmatmul.mubr.bf16.gmra.mrb[0].mxu0 %v2078
        %v2141 = vpop.f32.mrb[0].mxu0
        %v2142 = vadd.f32 0.0, %v2141
        %v2143 = vpop.f32.mrb[0].mxu0
        %v2144 = vpop.f32.mrb[0].mxu0
        %v2145 = vadd.f32 0.0, %v2144
        %v2146 = vpop.f32.mrb[0].mxu0
        %2147 = vdwg.mxu0
        %v2148 = vld [vmem:[#allocation2] sm:$0xff]
        %v2149 = vld [vmem:[#allocation2 + $0x8] sm:$0xff]
        %v2150 = vld [vmem:[#allocation2 + $0x10] sm:$0xff]
        %v2151 = vld [vmem:[#allocation2 + $0x18] sm:$0xff]
        %v2152 = vld [vmem:[#allocation2 + $0x20] sm:$0xff]
        %v2153 = vld [vmem:[#allocation2 + $0x28] sm:$0xff]
        %v2154 = vld [vmem:[#allocation2 + $0x30] sm:$0xff]
        %v2155 = vld [vmem:[#allocation2 + $0x38] sm:$0xff]
        %v2156 = vadd.f32 %v2148, %v2118
        %v2157 = vadd.f32 %v2149, %v2121
        %v2158 = vadd.f32 %v2150, %v2126
        %v2159 = vadd.f32 %v2151, %v2129
        %v2160 = vadd.f32 %v2152, %v2134
        %v2161 = vadd.f32 %v2153, %v2137
        %v2162 = vadd.f32 %v2154, %v2142
        %v2163 = vadd.f32 %v2155, %v2145
        %2164 = vst.msk [vmem:[#allocation2] sm:$0xff] %vm1503, %v2156
        %2165 = vst.msk [vmem:[#allocation2 + $0x8] sm:$0xff] %vm1503, %v2157
        %2166 = vst.msk [vmem:[#allocation2 + $0x10] sm:$0xff] %vm1503, %v2158
        %2167 = vst.msk [vmem:[#allocation2 + $0x18] sm:$0xff] %vm1503, %v2159
        %2168 = vst.msk [vmem:[#allocation2 + $0x20] sm:$0xff] %vm1503, %v2160
        %2169 = vst.msk [vmem:[#allocation2 + $0x28] sm:$0xff] %vm1503, %v2161
        %2170 = vst.msk [vmem:[#allocation2 + $0x30] sm:$0xff] %vm1503, %v2162
        %2171 = vst.msk [vmem:[#allocation2 + $0x38] sm:$0xff] %vm1503, %v2163
        %v2172 = vld [vmem:[%s1900] sm:$0xf]
        %v2173 = vld [vmem:[%s1900 + $0x4] sm:$0x1]
        %v2174 = vld [vmem:[%s1900 + $0x8] sm:$0xf]
        %v2175 = vld [vmem:[%s1900 + $0xc] sm:$0x1]
        %v2176 = vld [vmem:[%s1900 + $0x10] sm:$0xf]
        %v2177 = vld [vmem:[%s1900 + $0x14] sm:$0x1]
        %v2178 = vld [vmem:[%s1900 + $0x18] sm:$0xf]
        %v2179 = vld [vmem:[%s1900 + $0x1c] sm:$0x1]
        %v2180 = vld [vmem:[%s1900 + $0x20] sm:$0xf]
        %v2181 = vld [vmem:[%s1900 + $0x24] sm:$0x1]
        %v2182 = vld [vmem:[%s1900 + $0x28] sm:$0xf]
        %v2183 = vld [vmem:[%s1900 + $0x2c] sm:$0x1]
        %v2184 = vld [vmem:[%s1900 + $0x30] sm:$0xf]
        %v2185 = vld [vmem:[%s1900 + $0x34] sm:$0x1]
        %v2186 = vld [vmem:[%s1900 + $0x38] sm:$0xf]
        %v2187 = vld [vmem:[%s1900 + $0x3c] sm:$0x1]
        %v2189 = vshrl.u32 %v2172, 16
        %v2191 = vrot.slane %v2189, 4
        %v2192 = vshll.u32 %v2172, 16
        %v2194 = vrot.slane %v2192, 5
        %v2195 = vor.u32 %v2191, %v2194
        %v2196 = vrot.slane %v2195, 4
        %v2198 = vshll.u32 %v2173, 16
        %v2200 = vrot.slane %v2198, 5
        %v2201 = vsel %vm1667, %v2196, %v2200
        %v2203 = vshrl.u32 %v2174, 16
        %v2205 = vrot.slane %v2203, 4
        %v2206 = vshll.u32 %v2174, 16
        %v2208 = vrot.slane %v2206, 5
        %v2209 = vor.u32 %v2205, %v2208
        %v2210 = vrot.slane %v2209, 4
        %v2212 = vshll.u32 %v2175, 16
        %v2214 = vrot.slane %v2212, 5
        %v2215 = vsel %vm1667, %v2210, %v2214
        %v2217 = vshrl.u32 %v2176, 16
        %v2219 = vrot.slane %v2217, 4
        %v2220 = vshll.u32 %v2176, 16
        %v2222 = vrot.slane %v2220, 5
        %v2223 = vor.u32 %v2219, %v2222
        %v2224 = vrot.slane %v2223, 4
        %v2226 = vshll.u32 %v2177, 16
        %v2228 = vrot.slane %v2226, 5
        %v2229 = vsel %vm1667, %v2224, %v2228
        %v2231 = vshrl.u32 %v2178, 16
        %v2233 = vrot.slane %v2231, 4
        %v2234 = vshll.u32 %v2178, 16
        %v2236 = vrot.slane %v2234, 5
        %v2237 = vor.u32 %v2233, %v2236
        %v2238 = vrot.slane %v2237, 4
        %v2240 = vshll.u32 %v2179, 16
        %v2242 = vrot.slane %v2240, 5
        %v2243 = vsel %vm1667, %v2238, %v2242
        %v2245 = vshrl.u32 %v2180, 16
        %v2247 = vrot.slane %v2245, 4
        %v2248 = vshll.u32 %v2180, 16
        %v2250 = vrot.slane %v2248, 5
        %v2251 = vor.u32 %v2247, %v2250
        %v2252 = vrot.slane %v2251, 4
        %v2254 = vshll.u32 %v2181, 16
        %v2256 = vrot.slane %v2254, 5
        %v2257 = vsel %vm1667, %v2252, %v2256
        %v2259 = vshrl.u32 %v2182, 16
        %v2261 = vrot.slane %v2259, 4
        %v2262 = vshll.u32 %v2182, 16
        %v2264 = vrot.slane %v2262, 5
        %v2265 = vor.u32 %v2261, %v2264
        %v2266 = vrot.slane %v2265, 4
        %v2268 = vshll.u32 %v2183, 16
        %v2270 = vrot.slane %v2268, 5
        %v2271 = vsel %vm1667, %v2266, %v2270
        %v2273 = vshrl.u32 %v2184, 16
        %v2275 = vrot.slane %v2273, 4
        %v2276 = vshll.u32 %v2184, 16
        %v2278 = vrot.slane %v2276, 5
        %v2279 = vor.u32 %v2275, %v2278
        %v2280 = vrot.slane %v2279, 4
        %v2282 = vshll.u32 %v2185, 16
        %v2284 = vrot.slane %v2282, 5
        %v2285 = vsel %vm1667, %v2280, %v2284
        %v2287 = vshrl.u32 %v2186, 16
        %v2289 = vrot.slane %v2287, 4
        %v2290 = vshll.u32 %v2186, 16
        %v2292 = vrot.slane %v2290, 5
        %v2293 = vor.u32 %v2289, %v2292
        %v2294 = vrot.slane %v2293, 4
        %v2296 = vshll.u32 %v2187, 16
        %v2298 = vrot.slane %v2296, 5
        %v2299 = vsel %vm1667, %v2294, %v2298
        %s2300 = scalar_lea.vmem %s1, 20
        %v2301 = vld [vmem:[%s2300] sm:$0xf]
        %v2302 = vunpack.c.l.b16 %v2201
        %v2303 = vunpack.c.l.b16 %v2215
        %v2304 = vunpack.c.l.b16 %v2229
        %v2305 = vunpack.c.l.b16 %v2243
        %v2306 = vunpack.c.l.b16 %v2257
        %v2307 = vunpack.c.l.b16 %v2271
        %v2308 = vunpack.c.l.b16 %v2285
        %v2309 = vunpack.c.l.b16 %v2299
        %v2310 = vpack.c.b16 %v2303, %v2302
        %v2311 = vpack.c.b16 %v2305, %v2304
        %v2312 = vpack.c.b16 %v2307, %v2306
        %v2313 = vpack.c.b16 %v2309, %v2308
        %v2315 = vsel %vm1421, %v2310, 0
        %v2318 = vsel %vm1421, %v2311, 0
        %v2321 = vsel %vm1421, %v2312, 0
        %v2324 = vsel %vm1421, %v2313, 0
        %v2327 = vsel %vm1434, %v2301, 0
        %2329 = vmatprep.subr.bf16.mxu0 0
        %2330 = vmatpush1.bf16.msra.mxu0 %v2327
        %2331 = vmatprep.subr.bf16.mxu0 0
        %2332 = vmatpush1.bf16.msra.mxu0 0
        %2333 = vmatprep.subr.bf16.mxu0 0
        %2334 = vmatpush1.bf16.msra.mxu0 0
        %2335 = vmatprep.subr.bf16.mxu0 0
        %2336 = vmatpush1.bf16.msra.mxu0 0
        %2337 = vmatprep.subr.bf16.mxu0 0
        %2338 = vmatpush1.bf16.msra.mxu0 0
        %2339 = vmatprep.subr.bf16.mxu0 0
        %2340 = vmatpush1.bf16.msra.mxu0 0
        %2341 = vmatprep.subr.bf16.mxu0 0
        %2342 = vmatpush1.bf16.msra.mxu0 0
        %2343 = vmatprep.subr.bf16.mxu0 0
        %2344 = vmatpush1.bf16.msra.mxu0 0
        %2345 = vmatprep.subr.bf16.mxu0 0
        %2346 = vmatpush1.bf16.msra.mxu0 0
        %2347 = vmatprep.subr.bf16.mxu0 0
        %2348 = vmatpush1.bf16.msra.mxu0 0
        %2349 = vmatprep.subr.bf16.mxu0 0
        %2350 = vmatpush1.bf16.msra.mxu0 0
        %2351 = vmatprep.subr.bf16.mxu0 0
        %2352 = vmatpush1.bf16.msra.mxu0 0
        %2353 = vmatprep.subr.bf16.mxu0 0
        %2354 = vmatpush1.bf16.msra.mxu0 0
        %2355 = vmatprep.subr.bf16.mxu0 0
        %2356 = vmatpush1.bf16.msra.mxu0 0
        %2357 = vmatprep.subr.bf16.mxu0 0
        %2358 = vmatpush1.bf16.msra.mxu0 0
        %2359 = vmatprep.subr.bf16.mxu0 0
        %2360 = vmatpush1.bf16.msra.mxu0 0
        %2361 = vmatprep.mubr.bf16.mxu0 0
        %2362 = vmatmul.mubr.bf16.gmra.mrb[0].mxu0 %v2315
        %v2363 = vpop.f32.mrb[0].mxu0
        %v2364 = vadd.f32 0.0, %v2363
        %v2365 = vpop.f32.mrb[0].mxu0
        %v2366 = vpop.f32.mrb[0].mxu0
        %v2367 = vadd.f32 0.0, %v2366
        %v2368 = vpop.f32.mrb[0].mxu0
        %2369 = vmatprep.mubr.bf16.mxu0 0
        %2370 = vmatmul.mubr.bf16.gmra.mrb[0].mxu0 %v2318
        %v2371 = vpop.f32.mrb[0].mxu0
        %v2372 = vadd.f32 0.0, %v2371
        %v2373 = vpop.f32.mrb[0].mxu0
        %v2374 = vpop.f32.mrb[0].mxu0
        %v2375 = vadd.f32 0.0, %v2374
        %v2376 = vpop.f32.mrb[0].mxu0
        %2377 = vmatprep.mubr.bf16.mxu0 0
        %2378 = vmatmul.mubr.bf16.gmra.mrb[0].mxu0 %v2321
        %v2379 = vpop.f32.mrb[0].mxu0
        %v2380 = vadd.f32 0.0, %v2379
        %v2381 = vpop.f32.mrb[0].mxu0
        %v2382 = vpop.f32.mrb[0].mxu0
        %v2383 = vadd.f32 0.0, %v2382
        %v2384 = vpop.f32.mrb[0].mxu0
        %2385 = vmatprep.mubr.bf16.mxu0 0
        %2386 = vmatmul.mubr.bf16.gmra.mrb[0].mxu0 %v2324
        %v2387 = vpop.f32.mrb[0].mxu0
        %v2388 = vadd.f32 0.0, %v2387
        %v2389 = vpop.f32.mrb[0].mxu0
        %v2390 = vpop.f32.mrb[0].mxu0
        %v2391 = vadd.f32 0.0, %v2390
        %v2392 = vpop.f32.mrb[0].mxu0
        %2393 = vdwg.mxu0
        %v2394 = vld [vmem:[#allocation2] sm:$0xff]
        %v2395 = vld [vmem:[#allocation2 + $0x8] sm:$0xff]
        %v2396 = vld [vmem:[#allocation2 + $0x10] sm:$0xff]
        %v2397 = vld [vmem:[#allocation2 + $0x18] sm:$0xff]
        %v2398 = vld [vmem:[#allocation2 + $0x20] sm:$0xff]
        %v2399 = vld [vmem:[#allocation2 + $0x28] sm:$0xff]
        %v2400 = vld [vmem:[#allocation2 + $0x30] sm:$0xff]
        %v2401 = vld [vmem:[#allocation2 + $0x38] sm:$0xff]
        %v2402 = vadd.f32 %v2394, %v2364
        %v2403 = vadd.f32 %v2395, %v2367
        %v2404 = vadd.f32 %v2396, %v2372
        %v2405 = vadd.f32 %v2397, %v2375
        %v2406 = vadd.f32 %v2398, %v2380
        %v2407 = vadd.f32 %v2399, %v2383
        %v2408 = vadd.f32 %v2400, %v2388
        %v2409 = vadd.f32 %v2401, %v2391
        %2410 = vst.msk [vmem:[#allocation2] sm:$0xff] %vm1503, %v2402
        %2411 = vst.msk [vmem:[#allocation2 + $0x8] sm:$0xff] %vm1503, %v2403
        %2412 = vst.msk [vmem:[#allocation2 + $0x10] sm:$0xff] %vm1503, %v2404
        %2413 = vst.msk [vmem:[#allocation2 + $0x18] sm:$0xff] %vm1503, %v2405
        %2414 = vst.msk [vmem:[#allocation2 + $0x20] sm:$0xff] %vm1503, %v2406
        %2415 = vst.msk [vmem:[#allocation2 + $0x28] sm:$0xff] %vm1503, %v2407
        %2416 = vst.msk [vmem:[#allocation2 + $0x30] sm:$0xff] %vm1503, %v2408
        %2417 = vst.msk [vmem:[#allocation2 + $0x38] sm:$0xff] %vm1503, %v2409
        %s2418 = sadd.s32 %s1388, 1
        %s2419 = smul.u32 %s2418, 2
        %s2420 = smul.addr %s2419, 4
        %s2421 = scalar_lea.vmem %s1349, %s2420 [#allocation3]
        %v2422 = vld [vmem:[%s2421] sm:$0xf]
        %v2423 = vld [vmem:[%s2421 + $0x8] sm:$0xf]
        %v2424 = vld [vmem:[%s2421 + $0x10] sm:$0xf]
        %v2425 = vld [vmem:[%s2421 + $0x18] sm:$0xf]
        %v2426 = vld [vmem:[%s2421 + $0x20] sm:$0xf]
        %v2427 = vld [vmem:[%s2421 + $0x28] sm:$0xf]
        %v2428 = vld [vmem:[%s2421 + $0x30] sm:$0xf]
        %v2429 = vld [vmem:[%s2421 + $0x38] sm:$0xf]
        %s2430 = scalar_lea.vmem %s1, 24
        %v2431 = vld [vmem:[%s2430] sm:$0xf]
        %v2440 = vunpack.c.l.b16 %v2422
        %v2441 = vunpack.c.l.b16 %v2423
        %v2442 = vunpack.c.l.b16 %v2424
        %v2443 = vunpack.c.l.b16 %v2425
        %v2444 = vunpack.c.l.b16 %v2426
        %v2445 = vunpack.c.l.b16 %v2427
        %v2446 = vunpack.c.l.b16 %v2428
        %v2447 = vunpack.c.l.b16 %v2429
        %v2448 = vpack.c.b16 %v2441, %v2440
        %v2449 = vpack.c.b16 %v2443, %v2442
        %v2450 = vpack.c.b16 %v2445, %v2444
        %v2451 = vpack.c.b16 %v2447, %v2446
        %v2453 = vsel %vm1421, %v2448, 0
        %v2456 = vsel %vm1421, %v2449, 0
        %v2459 = vsel %vm1421, %v2450, 0
        %v2462 = vsel %vm1421, %v2451, 0
        %v2465 = vsel %vm1434, %v2431, 0
        %2467 = vmatprep.subr.bf16.mxu0 0
        %2468 = vmatpush1.bf16.msra.mxu0 %v2465
        %2469 = vmatprep.subr.bf16.mxu0 0
        %2470 = vmatpush1.bf16.msra.mxu0 0
        %2471 = vmatprep.subr.bf16.mxu0 0
        %2472 = vmatpush1.bf16.msra.mxu0 0
        %2473 = vmatprep.subr.bf16.mxu0 0
        %2474 = vmatpush1.bf16.msra.mxu0 0
        %2475 = vmatprep.subr.bf16.mxu0 0
        %2476 = vmatpush1.bf16.msra.mxu0 0
        %2477 = vmatprep.subr.bf16.mxu0 0
        %2478 = vmatpush1.bf16.msra.mxu0 0
        %2479 = vmatprep.subr.bf16.mxu0 0
        %2480 = vmatpush1.bf16.msra.mxu0 0
        %2481 = vmatprep.subr.bf16.mxu0 0
        %2482 = vmatpush1.bf16.msra.mxu0 0
        %2483 = vmatprep.subr.bf16.mxu0 0
        %2484 = vmatpush1.bf16.msra.mxu0 0
        %2485 = vmatprep.subr.bf16.mxu0 0
        %2486 = vmatpush1.bf16.msra.mxu0 0
        %2487 = vmatprep.subr.bf16.mxu0 0
        %2488 = vmatpush1.bf16.msra.mxu0 0
        %2489 = vmatprep.subr.bf16.mxu0 0
        %2490 = vmatpush1.bf16.msra.mxu0 0
        %2491 = vmatprep.subr.bf16.mxu0 0
        %2492 = vmatpush1.bf16.msra.mxu0 0
        %2493 = vmatprep.subr.bf16.mxu0 0
        %2494 = vmatpush1.bf16.msra.mxu0 0
        %2495 = vmatprep.subr.bf16.mxu0 0
        %2496 = vmatpush1.bf16.msra.mxu0 0
        %2497 = vmatprep.subr.bf16.mxu0 0
        %2498 = vmatpush1.bf16.msra.mxu0 0
        %2499 = vmatprep.mubr.bf16.mxu0 0
        %2500 = vmatmul.mubr.bf16.gmra.mrb[0].mxu0 %v2453
        %v2501 = vpop.f32.mrb[0].mxu0
        %v2502 = vadd.f32 0.0, %v2501
        %v2503 = vpop.f32.mrb[0].mxu0
        %v2504 = vpop.f32.mrb[0].mxu0
        %v2505 = vadd.f32 0.0, %v2504
        %v2506 = vpop.f32.mrb[0].mxu0
        %2507 = vmatprep.mubr.bf16.mxu0 0
        %2508 = vmatmul.mubr.bf16.gmra.mrb[0].mxu0 %v2456
        %v2509 = vpop.f32.mrb[0].mxu0
        %v2510 = vadd.f32 0.0, %v2509
        %v2511 = vpop.f32.mrb[0].mxu0
        %v2512 = vpop.f32.mrb[0].mxu0
        %v2513 = vadd.f32 0.0, %v2512
        %v2514 = vpop.f32.mrb[0].mxu0
        %2515 = vmatprep.mubr.bf16.mxu0 0
        %2516 = vmatmul.mubr.bf16.gmra.mrb[0].mxu0 %v2459
        %v2517 = vpop.f32.mrb[0].mxu0
        %v2518 = vadd.f32 0.0, %v2517
        %v2519 = vpop.f32.mrb[0].mxu0
        %v2520 = vpop.f32.mrb[0].mxu0
        %v2521 = vadd.f32 0.0, %v2520
        %v2522 = vpop.f32.mrb[0].mxu0
        %2523 = vmatprep.mubr.bf16.mxu0 0
        %2524 = vmatmul.mubr.bf16.gmra.mrb[0].mxu0 %v2462
        %v2525 = vpop.f32.mrb[0].mxu0
        %v2526 = vadd.f32 0.0, %v2525
        %v2527 = vpop.f32.mrb[0].mxu0
        %v2528 = vpop.f32.mrb[0].mxu0
        %v2529 = vadd.f32 0.0, %v2528
        %v2530 = vpop.f32.mrb[0].mxu0
        %2531 = vdwg.mxu0
        %v2532 = vld [vmem:[#allocation2] sm:$0xff]
        %v2533 = vld [vmem:[#allocation2 + $0x8] sm:$0xff]
        %v2534 = vld [vmem:[#allocation2 + $0x10] sm:$0xff]
        %v2535 = vld [vmem:[#allocation2 + $0x18] sm:$0xff]
        %v2536 = vld [vmem:[#allocation2 + $0x20] sm:$0xff]
        %v2537 = vld [vmem:[#allocation2 + $0x28] sm:$0xff]
        %v2538 = vld [vmem:[#allocation2 + $0x30] sm:$0xff]
        %v2539 = vld [vmem:[#allocation2 + $0x38] sm:$0xff]
        %v2540 = vadd.f32 %v2532, %v2502
        %v2541 = vadd.f32 %v2533, %v2505
        %v2542 = vadd.f32 %v2534, %v2510
        %v2543 = vadd.f32 %v2535, %v2513
        %v2544 = vadd.f32 %v2536, %v2518
        %v2545 = vadd.f32 %v2537, %v2521
        %v2546 = vadd.f32 %v2538, %v2526
        %v2547 = vadd.f32 %v2539, %v2529
        %2548 = vst.msk [vmem:[#allocation2] sm:$0xff] %vm1503, %v2540
        %2549 = vst.msk [vmem:[#allocation2 + $0x8] sm:$0xff] %vm1503, %v2541
        %2550 = vst.msk [vmem:[#allocation2 + $0x10] sm:$0xff] %vm1503, %v2542
        %2551 = vst.msk [vmem:[#allocation2 + $0x18] sm:$0xff] %vm1503, %v2543
        %2552 = vst.msk [vmem:[#allocation2 + $0x20] sm:$0xff] %vm1503, %v2544
        %2553 = vst.msk [vmem:[#allocation2 + $0x28] sm:$0xff] %vm1503, %v2545
        %2554 = vst.msk [vmem:[#allocation2 + $0x30] sm:$0xff] %vm1503, %v2546
        %2555 = vst.msk [vmem:[#allocation2 + $0x38] sm:$0xff] %vm1503, %v2547
        %s2556 = sadd.s32 %s2419, 72
        %s2557 = smul.addr %s2556, 4
        %s2558 = scalar_lea.vmem %s1349, %s2557 [#allocation3]
        %v2559 = vld [vmem:[%s2558] sm:$0xf]
        %v2560 = vld [vmem:[%s2558 + $0x8] sm:$0xf]
        %v2561 = vld [vmem:[%s2558 + $0x10] sm:$0xf]
        %v2562 = vld [vmem:[%s2558 + $0x18] sm:$0xf]
        %v2563 = vld [vmem:[%s2558 + $0x20] sm:$0xf]
        %v2564 = vld [vmem:[%s2558 + $0x28] sm:$0xf]
        %v2565 = vld [vmem:[%s2558 + $0x30] sm:$0xf]
        %v2566 = vld [vmem:[%s2558 + $0x38] sm:$0xf]
        %s2567 = scalar_lea.vmem %s1, 28
        %v2568 = vld [vmem:[%s2567] sm:$0xf]
        %v2577 = vunpack.c.l.b16 %v2559
        %v2578 = vunpack.c.l.b16 %v2560
        %v2579 = vunpack.c.l.b16 %v2561
        %v2580 = vunpack.c.l.b16 %v2562
        %v2581 = vunpack.c.l.b16 %v2563
        %v2582 = vunpack.c.l.b16 %v2564
        %v2583 = vunpack.c.l.b16 %v2565
        %v2584 = vunpack.c.l.b16 %v2566
        %v2585 = vpack.c.b16 %v2578, %v2577
        %v2586 = vpack.c.b16 %v2580, %v2579
        %v2587 = vpack.c.b16 %v2582, %v2581
        %v2588 = vpack.c.b16 %v2584, %v2583
        %v2590 = vsel %vm1421, %v2585, 0
        %v2593 = vsel %vm1421, %v2586, 0
        %v2596 = vsel %vm1421, %v2587, 0
        %v2599 = vsel %vm1421, %v2588, 0
        %v2602 = vsel %vm1434, %v2568, 0
        %2604 = vmatprep.subr.bf16.mxu0 0
        %2605 = vmatpush1.bf16.msra.mxu0 %v2602
        %2606 = vmatprep.subr.bf16.mxu0 0
        %2607 = vmatpush1.bf16.msra.mxu0 0
        %2608 = vmatprep.subr.bf16.mxu0 0
        %2609 = vmatpush1.bf16.msra.mxu0 0
        %2610 = vmatprep.subr.bf16.mxu0 0
        %2611 = vmatpush1.bf16.msra.mxu0 0
        %2612 = vmatprep.subr.bf16.mxu0 0
        %2613 = vmatpush1.bf16.msra.mxu0 0
        %2614 = vmatprep.subr.bf16.mxu0 0
        %2615 = vmatpush1.bf16.msra.mxu0 0
        %2616 = vmatprep.subr.bf16.mxu0 0
        %2617 = vmatpush1.bf16.msra.mxu0 0
        %2618 = vmatprep.subr.bf16.mxu0 0
        %2619 = vmatpush1.bf16.msra.mxu0 0
        %2620 = vmatprep.subr.bf16.mxu0 0
        %2621 = vmatpush1.bf16.msra.mxu0 0
        %2622 = vmatprep.subr.bf16.mxu0 0
        %2623 = vmatpush1.bf16.msra.mxu0 0
        %2624 = vmatprep.subr.bf16.mxu0 0
        %2625 = vmatpush1.bf16.msra.mxu0 0
        %2626 = vmatprep.subr.bf16.mxu0 0
        %2627 = vmatpush1.bf16.msra.mxu0 0
        %2628 = vmatprep.subr.bf16.mxu0 0
        %2629 = vmatpush1.bf16.msra.mxu0 0
        %2630 = vmatprep.subr.bf16.mxu0 0
        %2631 = vmatpush1.bf16.msra.mxu0 0
        %2632 = vmatprep.subr.bf16.mxu0 0
        %2633 = vmatpush1.bf16.msra.mxu0 0
        %2634 = vmatprep.subr.bf16.mxu0 0
        %2635 = vmatpush1.bf16.msra.mxu0 0
        %2636 = vmatprep.mubr.bf16.mxu0 0
        %2637 = vmatmul.mubr.bf16.gmra.mrb[0].mxu0 %v2590
        %v2638 = vpop.f32.mrb[0].mxu0
        %v2639 = vadd.f32 0.0, %v2638
        %v2640 = vpop.f32.mrb[0].mxu0
        %v2641 = vpop.f32.mrb[0].mxu0
        %v2642 = vadd.f32 0.0, %v2641
        %v2643 = vpop.f32.mrb[0].mxu0
        %2644 = vmatprep.mubr.bf16.mxu0 0
        %2645 = vmatmul.mubr.bf16.gmra.mrb[0].mxu0 %v2593
        %v2646 = vpop.f32.mrb[0].mxu0
        %v2647 = vadd.f32 0.0, %v2646
        %v2648 = vpop.f32.mrb[0].mxu0
        %v2649 = vpop.f32.mrb[0].mxu0
        %v2650 = vadd.f32 0.0, %v2649
        %v2651 = vpop.f32.mrb[0].mxu0
        %2652 = vmatprep.mubr.bf16.mxu0 0
        %2653 = vmatmul.mubr.bf16.gmra.mrb[0].mxu0 %v2596
        %v2654 = vpop.f32.mrb[0].mxu0
        %v2655 = vadd.f32 0.0, %v2654
        %v2656 = vpop.f32.mrb[0].mxu0
        %v2657 = vpop.f32.mrb[0].mxu0
        %v2658 = vadd.f32 0.0, %v2657
        %v2659 = vpop.f32.mrb[0].mxu0
        %2660 = vmatprep.mubr.bf16.mxu0 0
        %2661 = vmatmul.mubr.bf16.gmra.mrb[0].mxu0 %v2599
        %v2662 = vpop.f32.mrb[0].mxu0
        %v2663 = vadd.f32 0.0, %v2662
        %v2664 = vpop.f32.mrb[0].mxu0
        %v2665 = vpop.f32.mrb[0].mxu0
        %v2666 = vadd.f32 0.0, %v2665
        %v2667 = vpop.f32.mrb[0].mxu0
        %2668 = vdwg.mxu0
        %v2669 = vld [vmem:[#allocation2] sm:$0xff]
        %v2670 = vld [vmem:[#allocation2 + $0x8] sm:$0xff]
        %v2671 = vld [vmem:[#allocation2 + $0x10] sm:$0xff]
        %v2672 = vld [vmem:[#allocation2 + $0x18] sm:$0xff]
        %v2673 = vld [vmem:[#allocation2 + $0x20] sm:$0xff]
        %v2674 = vld [vmem:[#allocation2 + $0x28] sm:$0xff]
        %v2675 = vld [vmem:[#allocation2 + $0x30] sm:$0xff]
        %v2676 = vld [vmem:[#allocation2 + $0x38] sm:$0xff]
        %v2677 = vadd.f32 %v2669, %v2639
        %v2678 = vadd.f32 %v2670, %v2642
        %v2679 = vadd.f32 %v2671, %v2647
        %v2680 = vadd.f32 %v2672, %v2650
        %v2681 = vadd.f32 %v2673, %v2655
        %v2682 = vadd.f32 %v2674, %v2658
        %v2683 = vadd.f32 %v2675, %v2663
        %v2684 = vadd.f32 %v2676, %v2666
        %2685 = vst.msk [vmem:[#allocation2] sm:$0xff] %vm1503, %v2677
        %2686 = vst.msk [vmem:[#allocation2 + $0x8] sm:$0xff] %vm1503, %v2678
        %2687 = vst.msk [vmem:[#allocation2 + $0x10] sm:$0xff] %vm1503, %v2679
        %2688 = vst.msk [vmem:[#allocation2 + $0x18] sm:$0xff] %vm1503, %v2680
        %2689 = vst.msk [vmem:[#allocation2 + $0x20] sm:$0xff] %vm1503, %v2681
        %2690 = vst.msk [vmem:[#allocation2 + $0x28] sm:$0xff] %vm1503, %v2682
        %2691 = vst.msk [vmem:[#allocation2 + $0x30] sm:$0xff] %vm1503, %v2683
        %2692 = vst.msk [vmem:[#allocation2 + $0x38] sm:$0xff] %vm1503, %v2684
        %v2693 = vld [vmem:[%s2421] sm:$0xf]
        %v2694 = vld [vmem:[%s2421 + $0x4] sm:$0x1]
        %v2695 = vld [vmem:[%s2421 + $0x8] sm:$0xf]
        %v2696 = vld [vmem:[%s2421 + $0xc] sm:$0x1]
        %v2697 = vld [vmem:[%s2421 + $0x10] sm:$0xf]
        %v2698 = vld [vmem:[%s2421 + $0x14] sm:$0x1]
        %v2699 = vld [vmem:[%s2421 + $0x18] sm:$0xf]
        %v2700 = vld [vmem:[%s2421 + $0x1c] sm:$0x1]
        %v2701 = vld [vmem:[%s2421 + $0x20] sm:$0xf]
        %v2702 = vld [vmem:[%s2421 + $0x24] sm:$0x1]
        %v2703 = vld [vmem:[%s2421 + $0x28] sm:$0xf]
        %v2704 = vld [vmem:[%s2421 + $0x2c] sm:$0x1]
        %v2705 = vld [vmem:[%s2421 + $0x30] sm:$0xf]
        %v2706 = vld [vmem:[%s2421 + $0x34] sm:$0x1]
        %v2707 = vld [vmem:[%s2421 + $0x38] sm:$0xf]
        %v2708 = vld [vmem:[%s2421 + $0x3c] sm:$0x1]
        %v2710 = vshrl.u32 %v2693, 16
        %v2712 = vrot.slane %v2710, 4
        %v2713 = vshll.u32 %v2693, 16
        %v2715 = vrot.slane %v2713, 5
        %v2716 = vor.u32 %v2712, %v2715
        %v2717 = vrot.slane %v2716, 4
        %v2719 = vshll.u32 %v2694, 16
        %v2721 = vrot.slane %v2719, 5
        %v2722 = vsel %vm1667, %v2717, %v2721
        %v2724 = vshrl.u32 %v2695, 16
        %v2726 = vrot.slane %v2724, 4
        %v2727 = vshll.u32 %v2695, 16
        %v2729 = vrot.slane %v2727, 5
        %v2730 = vor.u32 %v2726, %v2729
        %v2731 = vrot.slane %v2730, 4
        %v2733 = vshll.u32 %v2696, 16
        %v2735 = vrot.slane %v2733, 5
        %v2736 = vsel %vm1667, %v2731, %v2735
        %v2738 = vshrl.u32 %v2697, 16
        %v2740 = vrot.slane %v2738, 4
        %v2741 = vshll.u32 %v2697, 16
        %v2743 = vrot.slane %v2741, 5
        %v2744 = vor.u32 %v2740, %v2743
        %v2745 = vrot.slane %v2744, 4
        %v2747 = vshll.u32 %v2698, 16
        %v2749 = vrot.slane %v2747, 5
        %v2750 = vsel %vm1667, %v2745, %v2749
        %v2752 = vshrl.u32 %v2699, 16
        %v2754 = vrot.slane %v2752, 4
        %v2755 = vshll.u32 %v2699, 16
        %v2757 = vrot.slane %v2755, 5
        %v2758 = vor.u32 %v2754, %v2757
        %v2759 = vrot.slane %v2758, 4
        %v2761 = vshll.u32 %v2700, 16
        %v2763 = vrot.slane %v2761, 5
        %v2764 = vsel %vm1667, %v2759, %v2763
        %v2766 = vshrl.u32 %v2701, 16
        %v2768 = vrot.slane %v2766, 4
        %v2769 = vshll.u32 %v2701, 16
        %v2771 = vrot.slane %v2769, 5
        %v2772 = vor.u32 %v2768, %v2771
        %v2773 = vrot.slane %v2772, 4
        %v2775 = vshll.u32 %v2702, 16
        %v2777 = vrot.slane %v2775, 5
        %v2778 = vsel %vm1667, %v2773, %v2777
        %v2780 = vshrl.u32 %v2703, 16
        %v2782 = vrot.slane %v2780, 4
        %v2783 = vshll.u32 %v2703, 16
        %v2785 = vrot.slane %v2783, 5
        %v2786 = vor.u32 %v2782, %v2785
        %v2787 = vrot.slane %v2786, 4
        %v2789 = vshll.u32 %v2704, 16
        %v2791 = vrot.slane %v2789, 5
        %v2792 = vsel %vm1667, %v2787, %v2791
        %v2794 = vshrl.u32 %v2705, 16
        %v2796 = vrot.slane %v2794, 4
        %v2797 = vshll.u32 %v2705, 16
        %v2799 = vrot.slane %v2797, 5
        %v2800 = vor.u32 %v2796, %v2799
        %v2801 = vrot.slane %v2800, 4
        %v2803 = vshll.u32 %v2706, 16
        %v2805 = vrot.slane %v2803, 5
        %v2806 = vsel %vm1667, %v2801, %v2805
        %v2808 = vshrl.u32 %v2707, 16
        %v2810 = vrot.slane %v2808, 4
        %v2811 = vshll.u32 %v2707, 16
        %v2813 = vrot.slane %v2811, 5
        %v2814 = vor.u32 %v2810, %v2813
        %v2815 = vrot.slane %v2814, 4
        %v2817 = vshll.u32 %v2708, 16
        %v2819 = vrot.slane %v2817, 5
        %v2820 = vsel %vm1667, %v2815, %v2819
        %s2821 = scalar_lea.vmem %s1, 32
        %v2822 = vld [vmem:[%s2821] sm:$0xf]
        %v2823 = vunpack.c.l.b16 %v2722
        %v2824 = vunpack.c.l.b16 %v2736
        %v2825 = vunpack.c.l.b16 %v2750
        %v2826 = vunpack.c.l.b16 %v2764
        %v2827 = vunpack.c.l.b16 %v2778
        %v2828 = vunpack.c.l.b16 %v2792
        %v2829 = vunpack.c.l.b16 %v2806
        %v2830 = vunpack.c.l.b16 %v2820
        %v2831 = vpack.c.b16 %v2824, %v2823
        %v2832 = vpack.c.b16 %v2826, %v2825
        %v2833 = vpack.c.b16 %v2828, %v2827
        %v2834 = vpack.c.b16 %v2830, %v2829
        %v2836 = vsel %vm1421, %v2831, 0
        %v2839 = vsel %vm1421, %v2832, 0
        %v2842 = vsel %vm1421, %v2833, 0
        %v2845 = vsel %vm1421, %v2834, 0
        %v2848 = vsel %vm1434, %v2822, 0
        %2850 = vmatprep.subr.bf16.mxu0 0
        %2851 = vmatpush1.bf16.msra.mxu0 %v2848
        %2852 = vmatprep.subr.bf16.mxu0 0
        %2853 = vmatpush1.bf16.msra.mxu0 0
        %2854 = vmatprep.subr.bf16.mxu0 0
        %2855 = vmatpush1.bf16.msra.mxu0 0
        %2856 = vmatprep.subr.bf16.mxu0 0
        %2857 = vmatpush1.bf16.msra.mxu0 0
        %2858 = vmatprep.subr.bf16.mxu0 0
        %2859 = vmatpush1.bf16.msra.mxu0 0
        %2860 = vmatprep.subr.bf16.mxu0 0
        %2861 = vmatpush1.bf16.msra.mxu0 0
        %2862 = vmatprep.subr.bf16.mxu0 0
        %2863 = vmatpush1.bf16.msra.mxu0 0
        %2864 = vmatprep.subr.bf16.mxu0 0
        %2865 = vmatpush1.bf16.msra.mxu0 0
        %2866 = vmatprep.subr.bf16.mxu0 0
        %2867 = vmatpush1.bf16.msra.mxu0 0
        %2868 = vmatprep.subr.bf16.mxu0 0
        %2869 = vmatpush1.bf16.msra.mxu0 0
        %2870 = vmatprep.subr.bf16.mxu0 0
        %2871 = vmatpush1.bf16.msra.mxu0 0
        %2872 = vmatprep.subr.bf16.mxu0 0
        %2873 = vmatpush1.bf16.msra.mxu0 0
        %2874 = vmatprep.subr.bf16.mxu0 0
        %2875 = vmatpush1.bf16.msra.mxu0 0
        %2876 = vmatprep.subr.bf16.mxu0 0
        %2877 = vmatpush1.bf16.msra.mxu0 0
        %2878 = vmatprep.subr.bf16.mxu0 0
        %2879 = vmatpush1.bf16.msra.mxu0 0
        %2880 = vmatprep.subr.bf16.mxu0 0
        %2881 = vmatpush1.bf16.msra.mxu0 0
        %2882 = vmatprep.mubr.bf16.mxu0 0
        %2883 = vmatmul.mubr.bf16.gmra.mrb[0].mxu0 %v2836
        %v2884 = vpop.f32.mrb[0].mxu0
        %v2885 = vadd.f32 0.0, %v2884
        %v2886 = vpop.f32.mrb[0].mxu0
        %v2887 = vpop.f32.mrb[0].mxu0
        %v2888 = vadd.f32 0.0, %v2887
        %v2889 = vpop.f32.mrb[0].mxu0
        %2890 = vmatprep.mubr.bf16.mxu0 0
        %2891 = vmatmul.mubr.bf16.gmra.mrb[0].mxu0 %v2839
        %v2892 = vpop.f32.mrb[0].mxu0
        %v2893 = vadd.f32 0.0, %v2892
        %v2894 = vpop.f32.mrb[0].mxu0
        %v2895 = vpop.f32.mrb[0].mxu0
        %v2896 = vadd.f32 0.0, %v2895
        %v2897 = vpop.f32.mrb[0].mxu0
        %2898 = vmatprep.mubr.bf16.mxu0 0
        %2899 = vmatmul.mubr.bf16.gmra.mrb[0].mxu0 %v2842
        %v2900 = vpop.f32.mrb[0].mxu0
        %v2901 = vadd.f32 0.0, %v2900
        %v2902 = vpop.f32.mrb[0].mxu0
        %v2903 = vpop.f32.mrb[0].mxu0
        %v2904 = vadd.f32 0.0, %v2903
        %v2905 = vpop.f32.mrb[0].mxu0
        %2906 = vmatprep.mubr.bf16.mxu0 0
        %2907 = vmatmul.mubr.bf16.gmra.mrb[0].mxu0 %v2845
        %v2908 = vpop.f32.mrb[0].mxu0
        %v2909 = vadd.f32 0.0, %v2908
        %v2910 = vpop.f32.mrb[0].mxu0
        %v2911 = vpop.f32.mrb[0].mxu0
        %v2912 = vadd.f32 0.0, %v2911
        %v2913 = vpop.f32.mrb[0].mxu0
        %2914 = vdwg.mxu0
        %v2915 = vld [vmem:[#allocation2] sm:$0xff]
        %v2916 = vld [vmem:[#allocation2 + $0x8] sm:$0xff]
        %v2917 = vld [vmem:[#allocation2 + $0x10] sm:$0xff]
        %v2918 = vld [vmem:[#allocation2 + $0x18] sm:$0xff]
        %v2919 = vld [vmem:[#allocation2 + $0x20] sm:$0xff]
        %v2920 = vld [vmem:[#allocation2 + $0x28] sm:$0xff]
        %v2921 = vld [vmem:[#allocation2 + $0x30] sm:$0xff]
        %v2922 = vld [vmem:[#allocation2 + $0x38] sm:$0xff]
        %v2923 = vadd.f32 %v2915, %v2885
        %v2924 = vadd.f32 %v2916, %v2888
        %v2925 = vadd.f32 %v2917, %v2893
        %v2926 = vadd.f32 %v2918, %v2896
        %v2927 = vadd.f32 %v2919, %v2901
        %v2928 = vadd.f32 %v2920, %v2904
        %v2929 = vadd.f32 %v2921, %v2909
        %v2930 = vadd.f32 %v2922, %v2912
        %2931 = vst.msk [vmem:[#allocation2] sm:$0xff] %vm1503, %v2923
        %2932 = vst.msk [vmem:[#allocation2 + $0x8] sm:$0xff] %vm1503, %v2924
        %2933 = vst.msk [vmem:[#allocation2 + $0x10] sm:$0xff] %vm1503, %v2925
        %2934 = vst.msk [vmem:[#allocation2 + $0x18] sm:$0xff] %vm1503, %v2926
        %2935 = vst.msk [vmem:[#allocation2 + $0x20] sm:$0xff] %vm1503, %v2927
        %2936 = vst.msk [vmem:[#allocation2 + $0x28] sm:$0xff] %vm1503, %v2928
        %2937 = vst.msk [vmem:[#allocation2 + $0x30] sm:$0xff] %vm1503, %v2929
        %2938 = vst.msk [vmem:[#allocation2 + $0x38] sm:$0xff] %vm1503, %v2930
        %v2939 = vld [vmem:[#allocation2] sm:$0xff]
        %v2940 = vld [vmem:[#allocation2 + $0x8] sm:$0xff]
        %v2941 = vld [vmem:[#allocation2 + $0x10] sm:$0xff]
        %v2942 = vld [vmem:[#allocation2 + $0x18] sm:$0xff]
        %v2943 = vld [vmem:[#allocation2 + $0x20] sm:$0xff]
        %v2944 = vld [vmem:[#allocation2 + $0x28] sm:$0xff]
        %v2945 = vld [vmem:[#allocation2 + $0x30] sm:$0xff]
        %v2946 = vld [vmem:[#allocation2 + $0x38] sm:$0xff]
        %v2947 = vld [vmem:[%s2] sm:$0x1]
        %v2949 = vlaneseq
        %v2950 = vshrl.u32 %v2949, 7
        %v2951 = vsub.s32 0, %v2950
        %v2952 = vrot.slane %v2947, %v2951
        %v2954 = vadd.f32 %v2939, %v2952
        %v2955 = vadd.f32 %v2940, %v2952
        %v2956 = vadd.f32 %v2941, %v2952
        %v2957 = vadd.f32 %v2942, %v2952
        %v2958 = vadd.f32 %v2943, %v2952
        %v2959 = vadd.f32 %v2944, %v2952
        %v2960 = vadd.f32 %v2945, %v2952
        %v2961 = vadd.f32 %v2946, %v2952
        %v2962 = vmax.f32 %v2954, 0.0
        %v2963 = vmax.f32 %v2955, 0.0
        %v2964 = vmax.f32 %v2956, 0.0
        %v2965 = vmax.f32 %v2957, 0.0
        %v2966 = vmax.f32 %v2958, 0.0
        %v2967 = vmax.f32 %v2959, 0.0
        %v2968 = vmax.f32 %v2960, 0.0
        %v2969 = vmax.f32 %v2961, 0.0
        %2970 = vst.msk [vmem:[%s1384] sm:$0xff] %vm1503, %v2962
        %2971 = vst.msk [vmem:[%s1384 + $0x8] sm:$0xff] %vm1503, %v2963
        %2972 = vst.msk [vmem:[%s1384 + $0x10] sm:$0xff] %vm1503, %v2964
        %2973 = vst.msk [vmem:[%s1384 + $0x18] sm:$0xff] %vm1503, %v2965
        %2974 = vst.msk [vmem:[%s1384 + $0x20] sm:$0xff] %vm1503, %v2966
        %2975 = vst.msk [vmem:[%s1384 + $0x28] sm:$0xff] %vm1503, %v2967
        %2976 = vst.msk [vmem:[%s1384 + $0x30] sm:$0xff] %vm1503, %v2968
        %2977 = vst.msk [vmem:[%s1384 + $0x38] sm:$0xff] %vm1503, %v2969
        %s2978 = sadd.s32 %s1389, 18
        %s2979 = smul.addr %s2978, 4
        %s2980 = scalar_lea.vmem %s1349, %s2979 [#allocation3]
        %v2981 = vld [vmem:[%s2980] sm:$0xf]
        %v2982 = vld [vmem:[%s2980 + $0x8] sm:$0xf]
        %v2983 = vld [vmem:[%s2980 + $0x10] sm:$0xf]
        %v2984 = vld [vmem:[%s2980 + $0x18] sm:$0xf]
        %v2985 = vld [vmem:[%s2980 + $0x20] sm:$0xf]
        %v2986 = vld [vmem:[%s2980 + $0x28] sm:$0xf]
        %v2987 = vld [vmem:[%s2980 + $0x30] sm:$0xf]
        %v2988 = vld [vmem:[%s2980 + $0x38] sm:$0xf]
        %s2989 = scalar_lea.vmem %s1, 36
        %v2990 = vld [vmem:[%s2989] sm:$0xf]
        %v2999 = vunpack.c.l.b16 %v2981
        %v3000 = vunpack.c.l.b16 %v2982
        %v3001 = vunpack.c.l.b16 %v2983
        %v3002 = vunpack.c.l.b16 %v2984
        %v3003 = vunpack.c.l.b16 %v2985
        %v3004 = vunpack.c.l.b16 %v2986
        %v3005 = vunpack.c.l.b16 %v2987
        %v3006 = vunpack.c.l.b16 %v2988
        %v3007 = vpack.c.b16 %v3000, %v2999
        %v3008 = vpack.c.b16 %v3002, %v3001
        %v3009 = vpack.c.b16 %v3004, %v3003
        %v3010 = vpack.c.b16 %v3006, %v3005
        %v3012 = vsel %vm1421, %v3007, 0
        %v3015 = vsel %vm1421, %v3008, 0
        %v3018 = vsel %vm1421, %v3009, 0
        %v3021 = vsel %vm1421, %v3010, 0
        %v3024 = vsel %vm1434, %v2990, 0
        %3026 = vmatprep.subr.bf16.mxu0 0
        %3027 = vmatpush1.bf16.msra.mxu0 %v3024
        %3028 = vmatprep.subr.bf16.mxu0 0
        %3029 = vmatpush1.bf16.msra.mxu0 0
        %3030 = vmatprep.subr.bf16.mxu0 0
        %3031 = vmatpush1.bf16.msra.mxu0 0
        %3032 = vmatprep.subr.bf16.mxu0 0
        %3033 = vmatpush1.bf16.msra.mxu0 0
        %3034 = vmatprep.subr.bf16.mxu0 0
        %3035 = vmatpush1.bf16.msra.mxu0 0
        %3036 = vmatprep.subr.bf16.mxu0 0
        %3037 = vmatpush1.bf16.msra.mxu0 0
        %3038 = vmatprep.subr.bf16.mxu0 0
        %3039 = vmatpush1.bf16.msra.mxu0 0
        %3040 = vmatprep.subr.bf16.mxu0 0
        %3041 = vmatpush1.bf16.msra.mxu0 0
        %3042 = vmatprep.subr.bf16.mxu0 0
        %3043 = vmatpush1.bf16.msra.mxu0 0
        %3044 = vmatprep.subr.bf16.mxu0 0
        %3045 = vmatpush1.bf16.msra.mxu0 0
        %3046 = vmatprep.subr.bf16.mxu0 0
        %3047 = vmatpush1.bf16.msra.mxu0 0
        %3048 = vmatprep.subr.bf16.mxu0 0
        %3049 = vmatpush1.bf16.msra.mxu0 0
        %3050 = vmatprep.subr.bf16.mxu0 0
        %3051 = vmatpush1.bf16.msra.mxu0 0
        %3052 = vmatprep.subr.bf16.mxu0 0
        %3053 = vmatpush1.bf16.msra.mxu0 0
        %3054 = vmatprep.subr.bf16.mxu0 0
        %3055 = vmatpush1.bf16.msra.mxu0 0
        %3056 = vmatprep.subr.bf16.mxu0 0
        %3057 = vmatpush1.bf16.msra.mxu0 0
        %3058 = vmatprep.mubr.bf16.mxu0 0
        %3059 = vmatmul.mubr.bf16.gmra.mrb[0].mxu0 %v3012
        %v3060 = vpop.f32.mrb[0].mxu0
        %v3061 = vadd.f32 0.0, %v3060
        %v3062 = vpop.f32.mrb[0].mxu0
        %v3063 = vpop.f32.mrb[0].mxu0
        %v3064 = vadd.f32 0.0, %v3063
        %v3065 = vpop.f32.mrb[0].mxu0
        %3066 = vmatprep.mubr.bf16.mxu0 0
        %3067 = vmatmul.mubr.bf16.gmra.mrb[0].mxu0 %v3015
        %v3068 = vpop.f32.mrb[0].mxu0
        %v3069 = vadd.f32 0.0, %v3068
        %v3070 = vpop.f32.mrb[0].mxu0
        %v3071 = vpop.f32.mrb[0].mxu0
        %v3072 = vadd.f32 0.0, %v3071
        %v3073 = vpop.f32.mrb[0].mxu0
        %3074 = vmatprep.mubr.bf16.mxu0 0
        %3075 = vmatmul.mubr.bf16.gmra.mrb[0].mxu0 %v3018
        %v3076 = vpop.f32.mrb[0].mxu0
        %v3077 = vadd.f32 0.0, %v3076
        %v3078 = vpop.f32.mrb[0].mxu0
        %v3079 = vpop.f32.mrb[0].mxu0
        %v3080 = vadd.f32 0.0, %v3079
        %v3081 = vpop.f32.mrb[0].mxu0
        %3082 = vmatprep.mubr.bf16.mxu0 0
        %3083 = vmatmul.mubr.bf16.gmra.mrb[0].mxu0 %v3021
        %v3084 = vpop.f32.mrb[0].mxu0
        %v3085 = vadd.f32 0.0, %v3084
        %v3086 = vpop.f32.mrb[0].mxu0
        %v3087 = vpop.f32.mrb[0].mxu0
        %v3088 = vadd.f32 0.0, %v3087
        %v3089 = vpop.f32.mrb[0].mxu0
        %3090 = vdwg.mxu0
        %3091 = vst.msk [vmem:[#allocation2] sm:$0xff] %vm1503, %v3061
        %3092 = vst.msk [vmem:[#allocation2 + $0x8] sm:$0xff] %vm1503, %v3064
        %3093 = vst.msk [vmem:[#allocation2 + $0x10] sm:$0xff] %vm1503, %v3069
        %3094 = vst.msk [vmem:[#allocation2 + $0x18] sm:$0xff] %vm1503, %v3072
        %3095 = vst.msk [vmem:[#allocation2 + $0x20] sm:$0xff] %vm1503, %v3077
        %3096 = vst.msk [vmem:[#allocation2 + $0x28] sm:$0xff] %vm1503, %v3080
        %3097 = vst.msk [vmem:[#allocation2 + $0x30] sm:$0xff] %vm1503, %v3085
        %3098 = vst.msk [vmem:[#allocation2 + $0x38] sm:$0xff] %vm1503, %v3088
        %s3099 = sadd.s32 %s1389, 90
        %s3100 = smul.addr %s3099, 4
        %s3101 = scalar_lea.vmem %s1349, %s3100 [#allocation3]
        %v3102 = vld [vmem:[%s3101] sm:$0xf]
        %v3103 = vld [vmem:[%s3101 + $0x8] sm:$0xf]
        %v3104 = vld [vmem:[%s3101 + $0x10] sm:$0xf]
        %v3105 = vld [vmem:[%s3101 + $0x18] sm:$0xf]
        %v3106 = vld [vmem:[%s3101 + $0x20] sm:$0xf]
        %v3107 = vld [vmem:[%s3101 + $0x28] sm:$0xf]
        %v3108 = vld [vmem:[%s3101 + $0x30] sm:$0xf]
        %v3109 = vld [vmem:[%s3101 + $0x38] sm:$0xf]
        %s3110 = scalar_lea.vmem %s1, 40
        %v3111 = vld [vmem:[%s3110] sm:$0xf]
        %v3120 = vunpack.c.l.b16 %v3102
        %v3121 = vunpack.c.l.b16 %v3103
        %v3122 = vunpack.c.l.b16 %v3104
        %v3123 = vunpack.c.l.b16 %v3105
        %v3124 = vunpack.c.l.b16 %v3106
        %v3125 = vunpack.c.l.b16 %v3107
        %v3126 = vunpack.c.l.b16 %v3108
        %v3127 = vunpack.c.l.b16 %v3109
        %v3128 = vpack.c.b16 %v3121, %v3120
        %v3129 = vpack.c.b16 %v3123, %v3122
        %v3130 = vpack.c.b16 %v3125, %v3124
        %v3131 = vpack.c.b16 %v3127, %v3126
        %v3133 = vsel %vm1421, %v3128, 0
        %v3136 = vsel %vm1421, %v3129, 0
        %v3139 = vsel %vm1421, %v3130, 0
        %v3142 = vsel %vm1421, %v3131, 0
        %v3145 = vsel %vm1434, %v3111, 0
        %3147 = vmatprep.subr.bf16.mxu0 0
        %3148 = vmatpush1.bf16.msra.mxu0 %v3145
        %3149 = vmatprep.subr.bf16.mxu0 0
        %3150 = vmatpush1.bf16.msra.mxu0 0
        %3151 = vmatprep.subr.bf16.mxu0 0
        %3152 = vmatpush1.bf16.msra.mxu0 0
        %3153 = vmatprep.subr.bf16.mxu0 0
        %3154 = vmatpush1.bf16.msra.mxu0 0
        %3155 = vmatprep.subr.bf16.mxu0 0
        %3156 = vmatpush1.bf16.msra.mxu0 0
        %3157 = vmatprep.subr.bf16.mxu0 0
        %3158 = vmatpush1.bf16.msra.mxu0 0
        %3159 = vmatprep.subr.bf16.mxu0 0
        %3160 = vmatpush1.bf16.msra.mxu0 0
        %3161 = vmatprep.subr.bf16.mxu0 0
        %3162 = vmatpush1.bf16.msra.mxu0 0
        %3163 = vmatprep.subr.bf16.mxu0 0
        %3164 = vmatpush1.bf16.msra.mxu0 0
        %3165 = vmatprep.subr.bf16.mxu0 0
        %3166 = vmatpush1.bf16.msra.mxu0 0
        %3167 = vmatprep.subr.bf16.mxu0 0
        %3168 = vmatpush1.bf16.msra.mxu0 0
        %3169 = vmatprep.subr.bf16.mxu0 0
        %3170 = vmatpush1.bf16.msra.mxu0 0
        %3171 = vmatprep.subr.bf16.mxu0 0
        %3172 = vmatpush1.bf16.msra.mxu0 0
        %3173 = vmatprep.subr.bf16.mxu0 0
        %3174 = vmatpush1.bf16.msra.mxu0 0
        %3175 = vmatprep.subr.bf16.mxu0 0
        %3176 = vmatpush1.bf16.msra.mxu0 0
        %3177 = vmatprep.subr.bf16.mxu0 0
        %3178 = vmatpush1.bf16.msra.mxu0 0
        %3179 = vmatprep.mubr.bf16.mxu0 0
        %3180 = vmatmul.mubr.bf16.gmra.mrb[0].mxu0 %v3133
        %v3181 = vpop.f32.mrb[0].mxu0
        %v3182 = vadd.f32 0.0, %v3181
        %v3183 = vpop.f32.mrb[0].mxu0
        %v3184 = vpop.f32.mrb[0].mxu0
        %v3185 = vadd.f32 0.0, %v3184
        %v3186 = vpop.f32.mrb[0].mxu0
        %3187 = vmatprep.mubr.bf16.mxu0 0
        %3188 = vmatmul.mubr.bf16.gmra.mrb[0].mxu0 %v3136
        %v3189 = vpop.f32.mrb[0].mxu0
        %v3190 = vadd.f32 0.0, %v3189
        %v3191 = vpop.f32.mrb[0].mxu0
        %v3192 = vpop.f32.mrb[0].mxu0
        %v3193 = vadd.f32 0.0, %v3192
        %v3194 = vpop.f32.mrb[0].mxu0
        %3195 = vmatprep.mubr.bf16.mxu0 0
        %3196 = vmatmul.mubr.bf16.gmra.mrb[0].mxu0 %v3139
        %v3197 = vpop.f32.mrb[0].mxu0
        %v3198 = vadd.f32 0.0, %v3197
        %v3199 = vpop.f32.mrb[0].mxu0
        %v3200 = vpop.f32.mrb[0].mxu0
        %v3201 = vadd.f32 0.0, %v3200
        %v3202 = vpop.f32.mrb[0].mxu0
        %3203 = vmatprep.mubr.bf16.mxu0 0
        %3204 = vmatmul.mubr.bf16.gmra.mrb[0].mxu0 %v3142
        %v3205 = vpop.f32.mrb[0].mxu0
        %v3206 = vadd.f32 0.0, %v3205
        %v3207 = vpop.f32.mrb[0].mxu0
        %v3208 = vpop.f32.mrb[0].mxu0
        %v3209 = vadd.f32 0.0, %v3208
        %v3210 = vpop.f32.mrb[0].mxu0
        %3211 = vdwg.mxu0
        %v3212 = vld [vmem:[#allocation2] sm:$0xff]
        %v3213 = vld [vmem:[#allocation2 + $0x8] sm:$0xff]
        %v3214 = vld [vmem:[#allocation2 + $0x10] sm:$0xff]
        %v3215 = vld [vmem:[#allocation2 + $0x18] sm:$0xff]
        %v3216 = vld [vmem:[#allocation2 + $0x20] sm:$0xff]
        %v3217 = vld [vmem:[#allocation2 + $0x28] sm:$0xff]
        %v3218 = vld [vmem:[#allocation2 + $0x30] sm:$0xff]
        %v3219 = vld [vmem:[#allocation2 + $0x38] sm:$0xff]
        %v3220 = vadd.f32 %v3212, %v3182
        %v3221 = vadd.f32 %v3213, %v3185
        %v3222 = vadd.f32 %v3214, %v3190
        %v3223 = vadd.f32 %v3215, %v3193
        %v3224 = vadd.f32 %v3216, %v3198
        %v3225 = vadd.f32 %v3217, %v3201
        %v3226 = vadd.f32 %v3218, %v3206
        %v3227 = vadd.f32 %v3219, %v3209
        %3228 = vst.msk [vmem:[#allocation2] sm:$0xff] %vm1503, %v3220
        %3229 = vst.msk [vmem:[#allocation2 + $0x8] sm:$0xff] %vm1503, %v3221
        %3230 = vst.msk [vmem:[#allocation2 + $0x10] sm:$0xff] %vm1503, %v3222
        %3231 = vst.msk [vmem:[#allocation2 + $0x18] sm:$0xff] %vm1503, %v3223
        %3232 = vst.msk [vmem:[#allocation2 + $0x20] sm:$0xff] %vm1503, %v3224
        %3233 = vst.msk [vmem:[#allocation2 + $0x28] sm:$0xff] %vm1503, %v3225
        %3234 = vst.msk [vmem:[#allocation2 + $0x30] sm:$0xff] %vm1503, %v3226
        %3235 = vst.msk [vmem:[#allocation2 + $0x38] sm:$0xff] %vm1503, %v3227
        %v3236 = vld [vmem:[%s2980] sm:$0xf]
        %v3237 = vld [vmem:[%s2980 + $0x4] sm:$0x1]
        %v3238 = vld [vmem:[%s2980 + $0x8] sm:$0xf]
        %v3239 = vld [vmem:[%s2980 + $0xc] sm:$0x1]
        %v3240 = vld [vmem:[%s2980 + $0x10] sm:$0xf]
        %v3241 = vld [vmem:[%s2980 + $0x14] sm:$0x1]
        %v3242 = vld [vmem:[%s2980 + $0x18] sm:$0xf]
        %v3243 = vld [vmem:[%s2980 + $0x1c] sm:$0x1]
        %v3244 = vld [vmem:[%s2980 + $0x20] sm:$0xf]
        %v3245 = vld [vmem:[%s2980 + $0x24] sm:$0x1]
        %v3246 = vld [vmem:[%s2980 + $0x28] sm:$0xf]
        %v3247 = vld [vmem:[%s2980 + $0x2c] sm:$0x1]
        %v3248 = vld [vmem:[%s2980 + $0x30] sm:$0xf]
        %v3249 = vld [vmem:[%s2980 + $0x34] sm:$0x1]
        %v3250 = vld [vmem:[%s2980 + $0x38] sm:$0xf]
        %v3251 = vld [vmem:[%s2980 + $0x3c] sm:$0x1]
        %v3253 = vshrl.u32 %v3236, 16
        %v3255 = vrot.slane %v3253, 4
        %v3256 = vshll.u32 %v3236, 16
        %v3258 = vrot.slane %v3256, 5
        %v3259 = vor.u32 %v3255, %v3258
        %v3260 = vrot.slane %v3259, 4
        %v3262 = vshll.u32 %v3237, 16
        %v3264 = vrot.slane %v3262, 5
        %v3265 = vsel %vm1667, %v3260, %v3264
        %v3267 = vshrl.u32 %v3238, 16
        %v3269 = vrot.slane %v3267, 4
        %v3270 = vshll.u32 %v3238, 16
        %v3272 = vrot.slane %v3270, 5
        %v3273 = vor.u32 %v3269, %v3272
        %v3274 = vrot.slane %v3273, 4
        %v3276 = vshll.u32 %v3239, 16
        %v3278 = vrot.slane %v3276, 5
        %v3279 = vsel %vm1667, %v3274, %v3278
        %v3281 = vshrl.u32 %v3240, 16
        %v3283 = vrot.slane %v3281, 4
        %v3284 = vshll.u32 %v3240, 16
        %v3286 = vrot.slane %v3284, 5
        %v3287 = vor.u32 %v3283, %v3286
        %v3288 = vrot.slane %v3287, 4
        %v3290 = vshll.u32 %v3241, 16
        %v3292 = vrot.slane %v3290, 5
        %v3293 = vsel %vm1667, %v3288, %v3292
        %v3295 = vshrl.u32 %v3242, 16
        %v3297 = vrot.slane %v3295, 4
        %v3298 = vshll.u32 %v3242, 16
        %v3300 = vrot.slane %v3298, 5
        %v3301 = vor.u32 %v3297, %v3300
        %v3302 = vrot.slane %v3301, 4
        %v3304 = vshll.u32 %v3243, 16
        %v3306 = vrot.slane %v3304, 5
        %v3307 = vsel %vm1667, %v3302, %v3306
        %v3309 = vshrl.u32 %v3244, 16
        %v3311 = vrot.slane %v3309, 4
        %v3312 = vshll.u32 %v3244, 16
        %v3314 = vrot.slane %v3312, 5
        %v3315 = vor.u32 %v3311, %v3314
        %v3316 = vrot.slane %v3315, 4
        %v3318 = vshll.u32 %v3245, 16
        %v3320 = vrot.slane %v3318, 5
        %v3321 = vsel %vm1667, %v3316, %v3320
        %v3323 = vshrl.u32 %v3246, 16
        %v3325 = vrot.slane %v3323, 4
        %v3326 = vshll.u32 %v3246, 16
        %v3328 = vrot.slane %v3326, 5
        %v3329 = vor.u32 %v3325, %v3328
        %v3330 = vrot.slane %v3329, 4
        %v3332 = vshll.u32 %v3247, 16
        %v3334 = vrot.slane %v3332, 5
        %v3335 = vsel %vm1667, %v3330, %v3334
        %v3337 = vshrl.u32 %v3248, 16
        %v3339 = vrot.slane %v3337, 4
        %v3340 = vshll.u32 %v3248, 16
        %v3342 = vrot.slane %v3340, 5
        %v3343 = vor.u32 %v3339, %v3342
        %v3344 = vrot.slane %v3343, 4
        %v3346 = vshll.u32 %v3249, 16
        %v3348 = vrot.slane %v3346, 5
        %v3349 = vsel %vm1667, %v3344, %v3348
        %v3351 = vshrl.u32 %v3250, 16
        %v3353 = vrot.slane %v3351, 4
        %v3354 = vshll.u32 %v3250, 16
        %v3356 = vrot.slane %v3354, 5
        %v3357 = vor.u32 %v3353, %v3356
        %v3358 = vrot.slane %v3357, 4
        %v3360 = vshll.u32 %v3251, 16
        %v3362 = vrot.slane %v3360, 5
        %v3363 = vsel %vm1667, %v3358, %v3362
        %s3364 = scalar_lea.vmem %s1, 44
        %v3365 = vld [vmem:[%s3364] sm:$0xf]
        %v3366 = vunpack.c.l.b16 %v3265
        %v3367 = vunpack.c.l.b16 %v3279
        %v3368 = vunpack.c.l.b16 %v3293
        %v3369 = vunpack.c.l.b16 %v3307
        %v3370 = vunpack.c.l.b16 %v3321
        %v3371 = vunpack.c.l.b16 %v3335
        %v3372 = vunpack.c.l.b16 %v3349
        %v3373 = vunpack.c.l.b16 %v3363
        %v3374 = vpack.c.b16 %v3367, %v3366
        %v3375 = vpack.c.b16 %v3369, %v3368
        %v3376 = vpack.c.b16 %v3371, %v3370
        %v3377 = vpack.c.b16 %v3373, %v3372
        %v3379 = vsel %vm1421, %v3374, 0
        %v3382 = vsel %vm1421, %v3375, 0
        %v3385 = vsel %vm1421, %v3376, 0
        %v3388 = vsel %vm1421, %v3377, 0
        %v3391 = vsel %vm1434, %v3365, 0
        %3393 = vmatprep.subr.bf16.mxu0 0
        %3394 = vmatpush1.bf16.msra.mxu0 %v3391
        %3395 = vmatprep.subr.bf16.mxu0 0
        %3396 = vmatpush1.bf16.msra.mxu0 0
        %3397 = vmatprep.subr.bf16.mxu0 0
        %3398 = vmatpush1.bf16.msra.mxu0 0
        %3399 = vmatprep.subr.bf16.mxu0 0
        %3400 = vmatpush1.bf16.msra.mxu0 0
        %3401 = vmatprep.subr.bf16.mxu0 0
        %3402 = vmatpush1.bf16.msra.mxu0 0
        %3403 = vmatprep.subr.bf16.mxu0 0
        %3404 = vmatpush1.bf16.msra.mxu0 0
        %3405 = vmatprep.subr.bf16.mxu0 0
        %3406 = vmatpush1.bf16.msra.mxu0 0
        %3407 = vmatprep.subr.bf16.mxu0 0
        %3408 = vmatpush1.bf16.msra.mxu0 0
        %3409 = vmatprep.subr.bf16.mxu0 0
        %3410 = vmatpush1.bf16.msra.mxu0 0
        %3411 = vmatprep.subr.bf16.mxu0 0
        %3412 = vmatpush1.bf16.msra.mxu0 0
        %3413 = vmatprep.subr.bf16.mxu0 0
        %3414 = vmatpush1.bf16.msra.mxu0 0
        %3415 = vmatprep.subr.bf16.mxu0 0
        %3416 = vmatpush1.bf16.msra.mxu0 0
        %3417 = vmatprep.subr.bf16.mxu0 0
        %3418 = vmatpush1.bf16.msra.mxu0 0
        %3419 = vmatprep.subr.bf16.mxu0 0
        %3420 = vmatpush1.bf16.msra.mxu0 0
        %3421 = vmatprep.subr.bf16.mxu0 0
        %3422 = vmatpush1.bf16.msra.mxu0 0
        %3423 = vmatprep.subr.bf16.mxu0 0
        %3424 = vmatpush1.bf16.msra.mxu0 0
        %3425 = vmatprep.mubr.bf16.mxu0 0
        %3426 = vmatmul.mubr.bf16.gmra.mrb[0].mxu0 %v3379
        %v3427 = vpop.f32.mrb[0].mxu0
        %v3428 = vadd.f32 0.0, %v3427
        %v3429 = vpop.f32.mrb[0].mxu0
        %v3430 = vpop.f32.mrb[0].mxu0
        %v3431 = vadd.f32 0.0, %v3430
        %v3432 = vpop.f32.mrb[0].mxu0
        %3433 = vmatprep.mubr.bf16.mxu0 0
        %3434 = vmatmul.mubr.bf16.gmra.mrb[0].mxu0 %v3382
        %v3435 = vpop.f32.mrb[0].mxu0
        %v3436 = vadd.f32 0.0, %v3435
        %v3437 = vpop.f32.mrb[0].mxu0
        %v3438 = vpop.f32.mrb[0].mxu0
        %v3439 = vadd.f32 0.0, %v3438
        %v3440 = vpop.f32.mrb[0].mxu0
        %3441 = vmatprep.mubr.bf16.mxu0 0
        %3442 = vmatmul.mubr.bf16.gmra.mrb[0].mxu0 %v3385
        %v3443 = vpop.f32.mrb[0].mxu0
        %v3444 = vadd.f32 0.0, %v3443
        %v3445 = vpop.f32.mrb[0].mxu0
        %v3446 = vpop.f32.mrb[0].mxu0
        %v3447 = vadd.f32 0.0, %v3446
        %v3448 = vpop.f32.mrb[0].mxu0
        %3449 = vmatprep.mubr.bf16.mxu0 0
        %3450 = vmatmul.mubr.bf16.gmra.mrb[0].mxu0 %v3388
        %v3451 = vpop.f32.mrb[0].mxu0
        %v3452 = vadd.f32 0.0, %v3451
        %v3453 = vpop.f32.mrb[0].mxu0
        %v3454 = vpop.f32.mrb[0].mxu0
        %v3455 = vadd.f32 0.0, %v3454
        %v3456 = vpop.f32.mrb[0].mxu0
        %3457 = vdwg.mxu0
        %v3458 = vld [vmem:[#allocation2] sm:$0xff]
        %v3459 = vld [vmem:[#allocation2 + $0x8] sm:$0xff]
        %v3460 = vld [vmem:[#allocation2 + $0x10] sm:$0xff]
        %v3461 = vld [vmem:[#allocation2 + $0x18] sm:$0xff]
        %v3462 = vld [vmem:[#allocation2 + $0x20] sm:$0xff]
        %v3463 = vld [vmem:[#allocation2 + $0x28] sm:$0xff]
        %v3464 = vld [vmem:[#allocation2 + $0x30] sm:$0xff]
        %v3465 = vld [vmem:[#allocation2 + $0x38] sm:$0xff]
        %v3466 = vadd.f32 %v3458, %v3428
        %v3467 = vadd.f32 %v3459, %v3431
        %v3468 = vadd.f32 %v3460, %v3436
        %v3469 = vadd.f32 %v3461, %v3439
        %v3470 = vadd.f32 %v3462, %v3444
        %v3471 = vadd.f32 %v3463, %v3447
        %v3472 = vadd.f32 %v3464, %v3452
        %v3473 = vadd.f32 %v3465, %v3455
        %3474 = vst.msk [vmem:[#allocation2] sm:$0xff] %vm1503, %v3466
        %3475 = vst.msk [vmem:[#allocation2 + $0x8] sm:$0xff] %vm1503, %v3467
        %3476 = vst.msk [vmem:[#allocation2 + $0x10] sm:$0xff] %vm1503, %v3468
        %3477 = vst.msk [vmem:[#allocation2 + $0x18] sm:$0xff] %vm1503, %v3469
        %3478 = vst.msk [vmem:[#allocation2 + $0x20] sm:$0xff] %vm1503, %v3470
        %3479 = vst.msk [vmem:[#allocation2 + $0x28] sm:$0xff] %vm1503, %v3471
        %3480 = vst.msk [vmem:[#allocation2 + $0x30] sm:$0xff] %vm1503, %v3472
        %3481 = vst.msk [vmem:[#allocation2 + $0x38] sm:$0xff] %vm1503, %v3473
        %s3482 = sadd.s32 %s1389, 162
        %s3483 = smul.addr %s3482, 4
        %s3484 = scalar_lea.vmem %s1349, %s3483 [#allocation3]
        %v3485 = vld [vmem:[%s3484] sm:$0xf]
        %v3486 = vld [vmem:[%s3484 + $0x8] sm:$0xf]
        %v3487 = vld [vmem:[%s3484 + $0x10] sm:$0xf]
        %v3488 = vld [vmem:[%s3484 + $0x18] sm:$0xf]
        %v3489 = vld [vmem:[%s3484 + $0x20] sm:$0xf]
        %v3490 = vld [vmem:[%s3484 + $0x28] sm:$0xf]
        %v3491 = vld [vmem:[%s3484 + $0x30] sm:$0xf]
        %v3492 = vld [vmem:[%s3484 + $0x38] sm:$0xf]
        %s3493 = scalar_lea.vmem %s1, 48
        %v3494 = vld [vmem:[%s3493] sm:$0xf]
        %v3503 = vunpack.c.l.b16 %v3485
        %v3504 = vunpack.c.l.b16 %v3486
        %v3505 = vunpack.c.l.b16 %v3487
        %v3506 = vunpack.c.l.b16 %v3488
        %v3507 = vunpack.c.l.b16 %v3489
        %v3508 = vunpack.c.l.b16 %v3490
        %v3509 = vunpack.c.l.b16 %v3491
        %v3510 = vunpack.c.l.b16 %v3492
        %v3511 = vpack.c.b16 %v3504, %v3503
        %v3512 = vpack.c.b16 %v3506, %v3505
        %v3513 = vpack.c.b16 %v3508, %v3507
        %v3514 = vpack.c.b16 %v3510, %v3509
        %v3516 = vsel %vm1421, %v3511, 0
        %v3519 = vsel %vm1421, %v3512, 0
        %v3522 = vsel %vm1421, %v3513, 0
        %v3525 = vsel %vm1421, %v3514, 0
        %v3528 = vsel %vm1434, %v3494, 0
        %3530 = vmatprep.subr.bf16.mxu0 0
        %3531 = vmatpush1.bf16.msra.mxu0 %v3528
        %3532 = vmatprep.subr.bf16.mxu0 0
        %3533 = vmatpush1.bf16.msra.mxu0 0
        %3534 = vmatprep.subr.bf16.mxu0 0
        %3535 = vmatpush1.bf16.msra.mxu0 0
        %3536 = vmatprep.subr.bf16.mxu0 0
        %3537 = vmatpush1.bf16.msra.mxu0 0
        %3538 = vmatprep.subr.bf16.mxu0 0
        %3539 = vmatpush1.bf16.msra.mxu0 0
        %3540 = vmatprep.subr.bf16.mxu0 0
        %3541 = vmatpush1.bf16.msra.mxu0 0
        %3542 = vmatprep.subr.bf16.mxu0 0
        %3543 = vmatpush1.bf16.msra.mxu0 0
        %3544 = vmatprep.subr.bf16.mxu0 0
        %3545 = vmatpush1.bf16.msra.mxu0 0
        %3546 = vmatprep.subr.bf16.mxu0 0
        %3547 = vmatpush1.bf16.msra.mxu0 0
        %3548 = vmatprep.subr.bf16.mxu0 0
        %3549 = vmatpush1.bf16.msra.mxu0 0
        %3550 = vmatprep.subr.bf16.mxu0 0
        %3551 = vmatpush1.bf16.msra.mxu0 0
        %3552 = vmatprep.subr.bf16.mxu0 0
        %3553 = vmatpush1.bf16.msra.mxu0 0
        %3554 = vmatprep.subr.bf16.mxu0 0
        %3555 = vmatpush1.bf16.msra.mxu0 0
        %3556 = vmatprep.subr.bf16.mxu0 0
        %3557 = vmatpush1.bf16.msra.mxu0 0
        %3558 = vmatprep.subr.bf16.mxu0 0
        %3559 = vmatpush1.bf16.msra.mxu0 0
        %3560 = vmatprep.subr.bf16.mxu0 0
        %3561 = vmatpush1.bf16.msra.mxu0 0
        %3562 = vmatprep.mubr.bf16.mxu0 0
        %3563 = vmatmul.mubr.bf16.gmra.mrb[0].mxu0 %v3516
        %v3564 = vpop.f32.mrb[0].mxu0
        %v3565 = vadd.f32 0.0, %v3564
        %v3566 = vpop.f32.mrb[0].mxu0
        %v3567 = vpop.f32.mrb[0].mxu0
        %v3568 = vadd.f32 0.0, %v3567
        %v3569 = vpop.f32.mrb[0].mxu0
        %3570 = vmatprep.mubr.bf16.mxu0 0
        %3571 = vmatmul.mubr.bf16.gmra.mrb[0].mxu0 %v3519
        %v3572 = vpop.f32.mrb[0].mxu0
        %v3573 = vadd.f32 0.0, %v3572
        %v3574 = vpop.f32.mrb[0].mxu0
        %v3575 = vpop.f32.mrb[0].mxu0
        %v3576 = vadd.f32 0.0, %v3575
        %v3577 = vpop.f32.mrb[0].mxu0
        %3578 = vmatprep.mubr.bf16.mxu0 0
        %3579 = vmatmul.mubr.bf16.gmra.mrb[0].mxu0 %v3522
        %v3580 = vpop.f32.mrb[0].mxu0
        %v3581 = vadd.f32 0.0, %v3580
        %v3582 = vpop.f32.mrb[0].mxu0
        %v3583 = vpop.f32.mrb[0].mxu0
        %v3584 = vadd.f32 0.0, %v3583
        %v3585 = vpop.f32.mrb[0].mxu0
        %3586 = vmatprep.mubr.bf16.mxu0 0
        %3587 = vmatmul.mubr.bf16.gmra.mrb[0].mxu0 %v3525
        %v3588 = vpop.f32.mrb[0].mxu0
        %v3589 = vadd.f32 0.0, %v3588
        %v3590 = vpop.f32.mrb[0].mxu0
        %v3591 = vpop.f32.mrb[0].mxu0
        %v3592 = vadd.f32 0.0, %v3591
        %v3593 = vpop.f32.mrb[0].mxu0
        %3594 = vdwg.mxu0
        %v3595 = vld [vmem:[#allocation2] sm:$0xff]
        %v3596 = vld [vmem:[#allocation2 + $0x8] sm:$0xff]
        %v3597 = vld [vmem:[#allocation2 + $0x10] sm:$0xff]
        %v3598 = vld [vmem:[#allocation2 + $0x18] sm:$0xff]
        %v3599 = vld [vmem:[#allocation2 + $0x20] sm:$0xff]
        %v3600 = vld [vmem:[#allocation2 + $0x28] sm:$0xff]
        %v3601 = vld [vmem:[#allocation2 + $0x30] sm:$0xff]
        %v3602 = vld [vmem:[#allocation2 + $0x38] sm:$0xff]
        %v3603 = vadd.f32 %v3595, %v3565
        %v3604 = vadd.f32 %v3596, %v3568
        %v3605 = vadd.f32 %v3597, %v3573
        %v3606 = vadd.f32 %v3598, %v3576
        %v3607 = vadd.f32 %v3599, %v3581
        %v3608 = vadd.f32 %v3600, %v3584
        %v3609 = vadd.f32 %v3601, %v3589
        %v3610 = vadd.f32 %v3602, %v3592
        %3611 = vst.msk [vmem:[#allocation2] sm:$0xff] %vm1503, %v3603
        %3612 = vst.msk [vmem:[#allocation2 + $0x8] sm:$0xff] %vm1503, %v3604
        %3613 = vst.msk [vmem:[#allocation2 + $0x10] sm:$0xff] %vm1503, %v3605
        %3614 = vst.msk [vmem:[#allocation2 + $0x18] sm:$0xff] %vm1503, %v3606
        %3615 = vst.msk [vmem:[#allocation2 + $0x20] sm:$0xff] %vm1503, %v3607
        %3616 = vst.msk [vmem:[#allocation2 + $0x28] sm:$0xff] %vm1503, %v3608
        %3617 = vst.msk [vmem:[#allocation2 + $0x30] sm:$0xff] %vm1503, %v3609
        %3618 = vst.msk [vmem:[#allocation2 + $0x38] sm:$0xff] %vm1503, %v3610
        %s3619 = sadd.s32 %s1389, 234
        %s3620 = smul.addr %s3619, 4
        %s3621 = scalar_lea.vmem %s1349, %s3620 [#allocation3]
        %v3622 = vld [vmem:[%s3621] sm:$0xf]
        %v3623 = vld [vmem:[%s3621 + $0x8] sm:$0xf]
        %v3624 = vld [vmem:[%s3621 + $0x10] sm:$0xf]
        %v3625 = vld [vmem:[%s3621 + $0x18] sm:$0xf]
        %v3626 = vld [vmem:[%s3621 + $0x20] sm:$0xf]
        %v3627 = vld [vmem:[%s3621 + $0x28] sm:$0xf]
        %v3628 = vld [vmem:[%s3621 + $0x30] sm:$0xf]
        %v3629 = vld [vmem:[%s3621 + $0x38] sm:$0xf]
        %s3630 = scalar_lea.vmem %s1, 52
        %v3631 = vld [vmem:[%s3630] sm:$0xf]
        %v3640 = vunpack.c.l.b16 %v3622
        %v3641 = vunpack.c.l.b16 %v3623
        %v3642 = vunpack.c.l.b16 %v3624
        %v3643 = vunpack.c.l.b16 %v3625
        %v3644 = vunpack.c.l.b16 %v3626
        %v3645 = vunpack.c.l.b16 %v3627
        %v3646 = vunpack.c.l.b16 %v3628
        %v3647 = vunpack.c.l.b16 %v3629
        %v3648 = vpack.c.b16 %v3641, %v3640
        %v3649 = vpack.c.b16 %v3643, %v3642
        %v3650 = vpack.c.b16 %v3645, %v3644
        %v3651 = vpack.c.b16 %v3647, %v3646
        %v3653 = vsel %vm1421, %v3648, 0
        %v3656 = vsel %vm1421, %v3649, 0
        %v3659 = vsel %vm1421, %v3650, 0
        %v3662 = vsel %vm1421, %v3651, 0
        %v3665 = vsel %vm1434, %v3631, 0
        %3667 = vmatprep.subr.bf16.mxu0 0
        %3668 = vmatpush1.bf16.msra.mxu0 %v3665
        %3669 = vmatprep.subr.bf16.mxu0 0
        %3670 = vmatpush1.bf16.msra.mxu0 0
        %3671 = vmatprep.subr.bf16.mxu0 0
        %3672 = vmatpush1.bf16.msra.mxu0 0
        %3673 = vmatprep.subr.bf16.mxu0 0
        %3674 = vmatpush1.bf16.msra.mxu0 0
        %3675 = vmatprep.subr.bf16.mxu0 0
        %3676 = vmatpush1.bf16.msra.mxu0 0
        %3677 = vmatprep.subr.bf16.mxu0 0
        %3678 = vmatpush1.bf16.msra.mxu0 0
        %3679 = vmatprep.subr.bf16.mxu0 0
        %3680 = vmatpush1.bf16.msra.mxu0 0
        %3681 = vmatprep.subr.bf16.mxu0 0
        %3682 = vmatpush1.bf16.msra.mxu0 0
        %3683 = vmatprep.subr.bf16.mxu0 0
        %3684 = vmatpush1.bf16.msra.mxu0 0
        %3685 = vmatprep.subr.bf16.mxu0 0
        %3686 = vmatpush1.bf16.msra.mxu0 0
        %3687 = vmatprep.subr.bf16.mxu0 0
        %3688 = vmatpush1.bf16.msra.mxu0 0
        %3689 = vmatprep.subr.bf16.mxu0 0
        %3690 = vmatpush1.bf16.msra.mxu0 0
        %3691 = vmatprep.subr.bf16.mxu0 0
        %3692 = vmatpush1.bf16.msra.mxu0 0
        %3693 = vmatprep.subr.bf16.mxu0 0
        %3694 = vmatpush1.bf16.msra.mxu0 0
        %3695 = vmatprep.subr.bf16.mxu0 0
        %3696 = vmatpush1.bf16.msra.mxu0 0
        %3697 = vmatprep.subr.bf16.mxu0 0
        %3698 = vmatpush1.bf16.msra.mxu0 0
        %3699 = vmatprep.mubr.bf16.mxu0 0
        %3700 = vmatmul.mubr.bf16.gmra.mrb[0].mxu0 %v3653
        %v3701 = vpop.f32.mrb[0].mxu0
        %v3702 = vadd.f32 0.0, %v3701
        %v3703 = vpop.f32.mrb[0].mxu0
        %v3704 = vpop.f32.mrb[0].mxu0
        %v3705 = vadd.f32 0.0, %v3704
        %v3706 = vpop.f32.mrb[0].mxu0
        %3707 = vmatprep.mubr.bf16.mxu0 0
        %3708 = vmatmul.mubr.bf16.gmra.mrb[0].mxu0 %v3656
        %v3709 = vpop.f32.mrb[0].mxu0
        %v3710 = vadd.f32 0.0, %v3709
        %v3711 = vpop.f32.mrb[0].mxu0
        %v3712 = vpop.f32.mrb[0].mxu0
        %v3713 = vadd.f32 0.0, %v3712
        %v3714 = vpop.f32.mrb[0].mxu0
        %3715 = vmatprep.mubr.bf16.mxu0 0
        %3716 = vmatmul.mubr.bf16.gmra.mrb[0].mxu0 %v3659
        %v3717 = vpop.f32.mrb[0].mxu0
        %v3718 = vadd.f32 0.0, %v3717
        %v3719 = vpop.f32.mrb[0].mxu0
        %v3720 = vpop.f32.mrb[0].mxu0
        %v3721 = vadd.f32 0.0, %v3720
        %v3722 = vpop.f32.mrb[0].mxu0
        %3723 = vmatprep.mubr.bf16.mxu0 0
        %3724 = vmatmul.mubr.bf16.gmra.mrb[0].mxu0 %v3662
        %v3725 = vpop.f32.mrb[0].mxu0
        %v3726 = vadd.f32 0.0, %v3725
        %v3727 = vpop.f32.mrb[0].mxu0
        %v3728 = vpop.f32.mrb[0].mxu0
        %v3729 = vadd.f32 0.0, %v3728
        %v3730 = vpop.f32.mrb[0].mxu0
        %3731 = vdwg.mxu0
        %v3732 = vld [vmem:[#allocation2] sm:$0xff]
        %v3733 = vld [vmem:[#allocation2 + $0x8] sm:$0xff]
        %v3734 = vld [vmem:[#allocation2 + $0x10] sm:$0xff]
        %v3735 = vld [vmem:[#allocation2 + $0x18] sm:$0xff]
        %v3736 = vld [vmem:[#allocation2 + $0x20] sm:$0xff]
        %v3737 = vld [vmem:[#allocation2 + $0x28] sm:$0xff]
        %v3738 = vld [vmem:[#allocation2 + $0x30] sm:$0xff]
        %v3739 = vld [vmem:[#allocation2 + $0x38] sm:$0xff]
        %v3740 = vadd.f32 %v3732, %v3702
        %v3741 = vadd.f32 %v3733, %v3705
        %v3742 = vadd.f32 %v3734, %v3710
        %v3743 = vadd.f32 %v3735, %v3713
        %v3744 = vadd.f32 %v3736, %v3718
        %v3745 = vadd.f32 %v3737, %v3721
        %v3746 = vadd.f32 %v3738, %v3726
        %v3747 = vadd.f32 %v3739, %v3729
        %3748 = vst.msk [vmem:[#allocation2] sm:$0xff] %vm1503, %v3740
        %3749 = vst.msk [vmem:[#allocation2 + $0x8] sm:$0xff] %vm1503, %v3741
        %3750 = vst.msk [vmem:[#allocation2 + $0x10] sm:$0xff] %vm1503, %v3742
        %3751 = vst.msk [vmem:[#allocation2 + $0x18] sm:$0xff] %vm1503, %v3743
        %3752 = vst.msk [vmem:[#allocation2 + $0x20] sm:$0xff] %vm1503, %v3744
        %3753 = vst.msk [vmem:[#allocation2 + $0x28] sm:$0xff] %vm1503, %v3745
        %3754 = vst.msk [vmem:[#allocation2 + $0x30] sm:$0xff] %vm1503, %v3746
        %3755 = vst.msk [vmem:[#allocation2 + $0x38] sm:$0xff] %vm1503, %v3747
        %v3756 = vld [vmem:[%s3484] sm:$0xf]
        %v3757 = vld [vmem:[%s3484 + $0x4] sm:$0x1]
        %v3758 = vld [vmem:[%s3484 + $0x8] sm:$0xf]
        %v3759 = vld [vmem:[%s3484 + $0xc] sm:$0x1]
        %v3760 = vld [vmem:[%s3484 + $0x10] sm:$0xf]
        %v3761 = vld [vmem:[%s3484 + $0x14] sm:$0x1]
        %v3762 = vld [vmem:[%s3484 + $0x18] sm:$0xf]
        %v3763 = vld [vmem:[%s3484 + $0x1c] sm:$0x1]
        %v3764 = vld [vmem:[%s3484 + $0x20] sm:$0xf]
        %v3765 = vld [vmem:[%s3484 + $0x24] sm:$0x1]
        %v3766 = vld [vmem:[%s3484 + $0x28] sm:$0xf]
        %v3767 = vld [vmem:[%s3484 + $0x2c] sm:$0x1]
        %v3768 = vld [vmem:[%s3484 + $0x30] sm:$0xf]
        %v3769 = vld [vmem:[%s3484 + $0x34] sm:$0x1]
        %v3770 = vld [vmem:[%s3484 + $0x38] sm:$0xf]
        %v3771 = vld [vmem:[%s3484 + $0x3c] sm:$0x1]
        %v3773 = vshrl.u32 %v3756, 16
        %v3775 = vrot.slane %v3773, 4
        %v3776 = vshll.u32 %v3756, 16
        %v3778 = vrot.slane %v3776, 5
        %v3779 = vor.u32 %v3775, %v3778
        %v3780 = vrot.slane %v3779, 4
        %v3782 = vshll.u32 %v3757, 16
        %v3784 = vrot.slane %v3782, 5
        %v3785 = vsel %vm1667, %v3780, %v3784
        %v3787 = vshrl.u32 %v3758, 16
        %v3789 = vrot.slane %v3787, 4
        %v3790 = vshll.u32 %v3758, 16
        %v3792 = vrot.slane %v3790, 5
        %v3793 = vor.u32 %v3789, %v3792
        %v3794 = vrot.slane %v3793, 4
        %v3796 = vshll.u32 %v3759, 16
        %v3798 = vrot.slane %v3796, 5
        %v3799 = vsel %vm1667, %v3794, %v3798
        %v3801 = vshrl.u32 %v3760, 16
        %v3803 = vrot.slane %v3801, 4
        %v3804 = vshll.u32 %v3760, 16
        %v3806 = vrot.slane %v3804, 5
        %v3807 = vor.u32 %v3803, %v3806
        %v3808 = vrot.slane %v3807, 4
        %v3810 = vshll.u32 %v3761, 16
        %v3812 = vrot.slane %v3810, 5
        %v3813 = vsel %vm1667, %v3808, %v3812
        %v3815 = vshrl.u32 %v3762, 16
        %v3817 = vrot.slane %v3815, 4
        %v3818 = vshll.u32 %v3762, 16
        %v3820 = vrot.slane %v3818, 5
        %v3821 = vor.u32 %v3817, %v3820
        %v3822 = vrot.slane %v3821, 4
        %v3824 = vshll.u32 %v3763, 16
        %v3826 = vrot.slane %v3824, 5
        %v3827 = vsel %vm1667, %v3822, %v3826
        %v3829 = vshrl.u32 %v3764, 16
        %v3831 = vrot.slane %v3829, 4
        %v3832 = vshll.u32 %v3764, 16
        %v3834 = vrot.slane %v3832, 5
        %v3835 = vor.u32 %v3831, %v3834
        %v3836 = vrot.slane %v3835, 4
        %v3838 = vshll.u32 %v3765, 16
        %v3840 = vrot.slane %v3838, 5
        %v3841 = vsel %vm1667, %v3836, %v3840
        %v3843 = vshrl.u32 %v3766, 16
        %v3845 = vrot.slane %v3843, 4
        %v3846 = vshll.u32 %v3766, 16
        %v3848 = vrot.slane %v3846, 5
        %v3849 = vor.u32 %v3845, %v3848
        %v3850 = vrot.slane %v3849, 4
        %v3852 = vshll.u32 %v3767, 16
        %v3854 = vrot.slane %v3852, 5
        %v3855 = vsel %vm1667, %v3850, %v3854
        %v3857 = vshrl.u32 %v3768, 16
        %v3859 = vrot.slane %v3857, 4
        %v3860 = vshll.u32 %v3768, 16
        %v3862 = vrot.slane %v3860, 5
        %v3863 = vor.u32 %v3859, %v3862
        %v3864 = vrot.slane %v3863, 4
        %v3866 = vshll.u32 %v3769, 16
        %v3868 = vrot.slane %v3866, 5
        %v3869 = vsel %vm1667, %v3864, %v3868
        %v3871 = vshrl.u32 %v3770, 16
        %v3873 = vrot.slane %v3871, 4
        %v3874 = vshll.u32 %v3770, 16
        %v3876 = vrot.slane %v3874, 5
        %v3877 = vor.u32 %v3873, %v3876
        %v3878 = vrot.slane %v3877, 4
        %v3880 = vshll.u32 %v3771, 16
        %v3882 = vrot.slane %v3880, 5
        %v3883 = vsel %vm1667, %v3878, %v3882
        %s3884 = scalar_lea.vmem %s1, 56
        %v3885 = vld [vmem:[%s3884] sm:$0xf]
        %v3886 = vunpack.c.l.b16 %v3785
        %v3887 = vunpack.c.l.b16 %v3799
        %v3888 = vunpack.c.l.b16 %v3813
        %v3889 = vunpack.c.l.b16 %v3827
        %v3890 = vunpack.c.l.b16 %v3841
        %v3891 = vunpack.c.l.b16 %v3855
        %v3892 = vunpack.c.l.b16 %v3869
        %v3893 = vunpack.c.l.b16 %v3883
        %v3894 = vpack.c.b16 %v3887, %v3886
        %v3895 = vpack.c.b16 %v3889, %v3888
        %v3896 = vpack.c.b16 %v3891, %v3890
        %v3897 = vpack.c.b16 %v3893, %v3892
        %v3899 = vsel %vm1421, %v3894, 0
        %v3902 = vsel %vm1421, %v3895, 0
        %v3905 = vsel %vm1421, %v3896, 0
        %v3908 = vsel %vm1421, %v3897, 0
        %v3911 = vsel %vm1434, %v3885, 0
        %3913 = vmatprep.subr.bf16.mxu0 0
        %3914 = vmatpush1.bf16.msra.mxu0 %v3911
        %3915 = vmatprep.subr.bf16.mxu0 0
        %3916 = vmatpush1.bf16.msra.mxu0 0
        %3917 = vmatprep.subr.bf16.mxu0 0
        %3918 = vmatpush1.bf16.msra.mxu0 0
        %3919 = vmatprep.subr.bf16.mxu0 0
        %3920 = vmatpush1.bf16.msra.mxu0 0
        %3921 = vmatprep.subr.bf16.mxu0 0
        %3922 = vmatpush1.bf16.msra.mxu0 0
        %3923 = vmatprep.subr.bf16.mxu0 0
        %3924 = vmatpush1.bf16.msra.mxu0 0
        %3925 = vmatprep.subr.bf16.mxu0 0
        %3926 = vmatpush1.bf16.msra.mxu0 0
        %3927 = vmatprep.subr.bf16.mxu0 0
        %3928 = vmatpush1.bf16.msra.mxu0 0
        %3929 = vmatprep.subr.bf16.mxu0 0
        %3930 = vmatpush1.bf16.msra.mxu0 0
        %3931 = vmatprep.subr.bf16.mxu0 0
        %3932 = vmatpush1.bf16.msra.mxu0 0
        %3933 = vmatprep.subr.bf16.mxu0 0
        %3934 = vmatpush1.bf16.msra.mxu0 0
        %3935 = vmatprep.subr.bf16.mxu0 0
        %3936 = vmatpush1.bf16.msra.mxu0 0
        %3937 = vmatprep.subr.bf16.mxu0 0
        %3938 = vmatpush1.bf16.msra.mxu0 0
        %3939 = vmatprep.subr.bf16.mxu0 0
        %3940 = vmatpush1.bf16.msra.mxu0 0
        %3941 = vmatprep.subr.bf16.mxu0 0
        %3942 = vmatpush1.bf16.msra.mxu0 0
        %3943 = vmatprep.subr.bf16.mxu0 0
        %3944 = vmatpush1.bf16.msra.mxu0 0
        %3945 = vmatprep.mubr.bf16.mxu0 0
        %3946 = vmatmul.mubr.bf16.gmra.mrb[0].mxu0 %v3899
        %v3947 = vpop.f32.mrb[0].mxu0
        %v3948 = vadd.f32 0.0, %v3947
        %v3949 = vpop.f32.mrb[0].mxu0
        %v3950 = vpop.f32.mrb[0].mxu0
        %v3951 = vadd.f32 0.0, %v3950
        %v3952 = vpop.f32.mrb[0].mxu0
        %3953 = vmatprep.mubr.bf16.mxu0 0
        %3954 = vmatmul.mubr.bf16.gmra.mrb[0].mxu0 %v3902
        %v3955 = vpop.f32.mrb[0].mxu0
        %v3956 = vadd.f32 0.0, %v3955
        %v3957 = vpop.f32.mrb[0].mxu0
        %v3958 = vpop.f32.mrb[0].mxu0
        %v3959 = vadd.f32 0.0, %v3958
        %v3960 = vpop.f32.mrb[0].mxu0
        %3961 = vmatprep.mubr.bf16.mxu0 0
        %3962 = vmatmul.mubr.bf16.gmra.mrb[0].mxu0 %v3905
        %v3963 = vpop.f32.mrb[0].mxu0
        %v3964 = vadd.f32 0.0, %v3963
        %v3965 = vpop.f32.mrb[0].mxu0
        %v3966 = vpop.f32.mrb[0].mxu0
        %v3967 = vadd.f32 0.0, %v3966
        %v3968 = vpop.f32.mrb[0].mxu0
        %3969 = vmatprep.mubr.bf16.mxu0 0
        %3970 = vmatmul.mubr.bf16.gmra.mrb[0].mxu0 %v3908
        %v3971 = vpop.f32.mrb[0].mxu0
        %v3972 = vadd.f32 0.0, %v3971
        %v3973 = vpop.f32.mrb[0].mxu0
        %v3974 = vpop.f32.mrb[0].mxu0
        %v3975 = vadd.f32 0.0, %v3974
        %v3976 = vpop.f32.mrb[0].mxu0
        %3977 = vdwg.mxu0
        %v3978 = vld [vmem:[#allocation2] sm:$0xff]
        %v3979 = vld [vmem:[#allocation2 + $0x8] sm:$0xff]
        %v3980 = vld [vmem:[#allocation2 + $0x10] sm:$0xff]
        %v3981 = vld [vmem:[#allocation2 + $0x18] sm:$0xff]
        %v3982 = vld [vmem:[#allocation2 + $0x20] sm:$0xff]
        %v3983 = vld [vmem:[#allocation2 + $0x28] sm:$0xff]
        %v3984 = vld [vmem:[#allocation2 + $0x30] sm:$0xff]
        %v3985 = vld [vmem:[#allocation2 + $0x38] sm:$0xff]
        %v3986 = vadd.f32 %v3978, %v3948
        %v3987 = vadd.f32 %v3979, %v3951
        %v3988 = vadd.f32 %v3980, %v3956
        %v3989 = vadd.f32 %v3981, %v3959
        %v3990 = vadd.f32 %v3982, %v3964
        %v3991 = vadd.f32 %v3983, %v3967
        %v3992 = vadd.f32 %v3984, %v3972
        %v3993 = vadd.f32 %v3985, %v3975
        %3994 = vst.msk [vmem:[#allocation2] sm:$0xff] %vm1503, %v3986
        %3995 = vst.msk [vmem:[#allocation2 + $0x8] sm:$0xff] %vm1503, %v3987
        %3996 = vst.msk [vmem:[#allocation2 + $0x10] sm:$0xff] %vm1503, %v3988
        %3997 = vst.msk [vmem:[#allocation2 + $0x18] sm:$0xff] %vm1503, %v3989
        %3998 = vst.msk [vmem:[#allocation2 + $0x20] sm:$0xff] %vm1503, %v3990
        %3999 = vst.msk [vmem:[#allocation2 + $0x28] sm:$0xff] %vm1503, %v3991
        %4000 = vst.msk [vmem:[#allocation2 + $0x30] sm:$0xff] %vm1503, %v3992
        %4001 = vst.msk [vmem:[#allocation2 + $0x38] sm:$0xff] %vm1503, %v3993
        %s4002 = sadd.s32 %s2419, 18
        %s4003 = smul.addr %s4002, 4
        %s4004 = scalar_lea.vmem %s1349, %s4003 [#allocation3]
        %v4005 = vld [vmem:[%s4004] sm:$0xf]
        %v4006 = vld [vmem:[%s4004 + $0x8] sm:$0xf]
        %v4007 = vld [vmem:[%s4004 + $0x10] sm:$0xf]
        %v4008 = vld [vmem:[%s4004 + $0x18] sm:$0xf]
        %v4009 = vld [vmem:[%s4004 + $0x20] sm:$0xf]
        %v4010 = vld [vmem:[%s4004 + $0x28] sm:$0xf]
        %v4011 = vld [vmem:[%s4004 + $0x30] sm:$0xf]
        %v4012 = vld [vmem:[%s4004 + $0x38] sm:$0xf]
        %s4013 = scalar_lea.vmem %s1, 60
        %v4014 = vld [vmem:[%s4013] sm:$0xf]
        %v4023 = vunpack.c.l.b16 %v4005
        %v4024 = vunpack.c.l.b16 %v4006
        %v4025 = vunpack.c.l.b16 %v4007
        %v4026 = vunpack.c.l.b16 %v4008
        %v4027 = vunpack.c.l.b16 %v4009
        %v4028 = vunpack.c.l.b16 %v4010
        %v4029 = vunpack.c.l.b16 %v4011
        %v4030 = vunpack.c.l.b16 %v4012
        %v4031 = vpack.c.b16 %v4024, %v4023
        %v4032 = vpack.c.b16 %v4026, %v4025
        %v4033 = vpack.c.b16 %v4028, %v4027
        %v4034 = vpack.c.b16 %v4030, %v4029
        %v4036 = vsel %vm1421, %v4031, 0
        %v4039 = vsel %vm1421, %v4032, 0
        %v4042 = vsel %vm1421, %v4033, 0
        %v4045 = vsel %vm1421, %v4034, 0
        %v4048 = vsel %vm1434, %v4014, 0
        %4050 = vmatprep.subr.bf16.mxu0 0
        %4051 = vmatpush1.bf16.msra.mxu0 %v4048
        %4052 = vmatprep.subr.bf16.mxu0 0
        %4053 = vmatpush1.bf16.msra.mxu0 0
        %4054 = vmatprep.subr.bf16.mxu0 0
        %4055 = vmatpush1.bf16.msra.mxu0 0
        %4056 = vmatprep.subr.bf16.mxu0 0
        %4057 = vmatpush1.bf16.msra.mxu0 0
        %4058 = vmatprep.subr.bf16.mxu0 0
        %4059 = vmatpush1.bf16.msra.mxu0 0
        %4060 = vmatprep.subr.bf16.mxu0 0
        %4061 = vmatpush1.bf16.msra.mxu0 0
        %4062 = vmatprep.subr.bf16.mxu0 0
        %4063 = vmatpush1.bf16.msra.mxu0 0
        %4064 = vmatprep.subr.bf16.mxu0 0
        %4065 = vmatpush1.bf16.msra.mxu0 0
        %4066 = vmatprep.subr.bf16.mxu0 0
        %4067 = vmatpush1.bf16.msra.mxu0 0
        %4068 = vmatprep.subr.bf16.mxu0 0
        %4069 = vmatpush1.bf16.msra.mxu0 0
        %4070 = vmatprep.subr.bf16.mxu0 0
        %4071 = vmatpush1.bf16.msra.mxu0 0
        %4072 = vmatprep.subr.bf16.mxu0 0
        %4073 = vmatpush1.bf16.msra.mxu0 0
        %4074 = vmatprep.subr.bf16.mxu0 0
        %4075 = vmatpush1.bf16.msra.mxu0 0
        %4076 = vmatprep.subr.bf16.mxu0 0
        %4077 = vmatpush1.bf16.msra.mxu0 0
        %4078 = vmatprep.subr.bf16.mxu0 0
        %4079 = vmatpush1.bf16.msra.mxu0 0
        %4080 = vmatprep.subr.bf16.mxu0 0
        %4081 = vmatpush1.bf16.msra.mxu0 0
        %4082 = vmatprep.mubr.bf16.mxu0 0
        %4083 = vmatmul.mubr.bf16.gmra.mrb[0].mxu0 %v4036
        %v4084 = vpop.f32.mrb[0].mxu0
        %v4085 = vadd.f32 0.0, %v4084
        %v4086 = vpop.f32.mrb[0].mxu0
        %v4087 = vpop.f32.mrb[0].mxu0
        %v4088 = vadd.f32 0.0, %v4087
        %v4089 = vpop.f32.mrb[0].mxu0
        %4090 = vmatprep.mubr.bf16.mxu0 0
        %4091 = vmatmul.mubr.bf16.gmra.mrb[0].mxu0 %v4039
        %v4092 = vpop.f32.mrb[0].mxu0
        %v4093 = vadd.f32 0.0, %v4092
        %v4094 = vpop.f32.mrb[0].mxu0
        %v4095 = vpop.f32.mrb[0].mxu0
        %v4096 = vadd.f32 0.0, %v4095
        %v4097 = vpop.f32.mrb[0].mxu0
        %4098 = vmatprep.mubr.bf16.mxu0 0
        %4099 = vmatmul.mubr.bf16.gmra.mrb[0].mxu0 %v4042
        %v4100 = vpop.f32.mrb[0].mxu0
        %v4101 = vadd.f32 0.0, %v4100
        %v4102 = vpop.f32.mrb[0].mxu0
        %v4103 = vpop.f32.mrb[0].mxu0
        %v4104 = vadd.f32 0.0, %v4103
        %v4105 = vpop.f32.mrb[0].mxu0
        %4106 = vmatprep.mubr.bf16.mxu0 0
        %4107 = vmatmul.mubr.bf16.gmra.mrb[0].mxu0 %v4045
        %v4108 = vpop.f32.mrb[0].mxu0
        %v4109 = vadd.f32 0.0, %v4108
        %v4110 = vpop.f32.mrb[0].mxu0
        %v4111 = vpop.f32.mrb[0].mxu0
        %v4112 = vadd.f32 0.0, %v4111
        %v4113 = vpop.f32.mrb[0].mxu0
        %4114 = vdwg.mxu0
        %v4115 = vld [vmem:[#allocation2] sm:$0xff]
        %v4116 = vld [vmem:[#allocation2 + $0x8] sm:$0xff]
        %v4117 = vld [vmem:[#allocation2 + $0x10] sm:$0xff]
        %v4118 = vld [vmem:[#allocation2 + $0x18] sm:$0xff]
        %v4119 = vld [vmem:[#allocation2 + $0x20] sm:$0xff]
        %v4120 = vld [vmem:[#allocation2 + $0x28] sm:$0xff]
        %v4121 = vld [vmem:[#allocation2 + $0x30] sm:$0xff]
        %v4122 = vld [vmem:[#allocation2 + $0x38] sm:$0xff]
        %v4123 = vadd.f32 %v4115, %v4085
        %v4124 = vadd.f32 %v4116, %v4088
        %v4125 = vadd.f32 %v4117, %v4093
        %v4126 = vadd.f32 %v4118, %v4096
        %v4127 = vadd.f32 %v4119, %v4101
        %v4128 = vadd.f32 %v4120, %v4104
        %v4129 = vadd.f32 %v4121, %v4109
        %v4130 = vadd.f32 %v4122, %v4112
        %4131 = vst.msk [vmem:[#allocation2] sm:$0xff] %vm1503, %v4123
        %4132 = vst.msk [vmem:[#allocation2 + $0x8] sm:$0xff] %vm1503, %v4124
        %4133 = vst.msk [vmem:[#allocation2 + $0x10] sm:$0xff] %vm1503, %v4125
        %4134 = vst.msk [vmem:[#allocation2 + $0x18] sm:$0xff] %vm1503, %v4126
        %4135 = vst.msk [vmem:[#allocation2 + $0x20] sm:$0xff] %vm1503, %v4127
        %4136 = vst.msk [vmem:[#allocation2 + $0x28] sm:$0xff] %vm1503, %v4128
        %4137 = vst.msk [vmem:[#allocation2 + $0x30] sm:$0xff] %vm1503, %v4129
        %4138 = vst.msk [vmem:[#allocation2 + $0x38] sm:$0xff] %vm1503, %v4130
        %s4139 = sadd.s32 %s2419, 90
        %s4140 = smul.addr %s4139, 4
        %s4141 = scalar_lea.vmem %s1349, %s4140 [#allocation3]
        %v4142 = vld [vmem:[%s4141] sm:$0xf]
        %v4143 = vld [vmem:[%s4141 + $0x8] sm:$0xf]
        %v4144 = vld [vmem:[%s4141 + $0x10] sm:$0xf]
        %v4145 = vld [vmem:[%s4141 + $0x18] sm:$0xf]
        %v4146 = vld [vmem:[%s4141 + $0x20] sm:$0xf]
        %v4147 = vld [vmem:[%s4141 + $0x28] sm:$0xf]
        %v4148 = vld [vmem:[%s4141 + $0x30] sm:$0xf]
        %v4149 = vld [vmem:[%s4141 + $0x38] sm:$0xf]
        %s4150 = scalar_lea.vmem %s1, 64
        %v4151 = vld [vmem:[%s4150] sm:$0xf]
        %v4160 = vunpack.c.l.b16 %v4142
        %v4161 = vunpack.c.l.b16 %v4143
        %v4162 = vunpack.c.l.b16 %v4144
        %v4163 = vunpack.c.l.b16 %v4145
        %v4164 = vunpack.c.l.b16 %v4146
        %v4165 = vunpack.c.l.b16 %v4147
        %v4166 = vunpack.c.l.b16 %v4148
        %v4167 = vunpack.c.l.b16 %v4149
        %v4168 = vpack.c.b16 %v4161, %v4160
        %v4169 = vpack.c.b16 %v4163, %v4162
        %v4170 = vpack.c.b16 %v4165, %v4164
        %v4171 = vpack.c.b16 %v4167, %v4166
        %v4173 = vsel %vm1421, %v4168, 0
        %v4176 = vsel %vm1421, %v4169, 0
        %v4179 = vsel %vm1421, %v4170, 0
        %v4182 = vsel %vm1421, %v4171, 0
        %v4185 = vsel %vm1434, %v4151, 0
        %4187 = vmatprep.subr.bf16.mxu0 0
        %4188 = vmatpush1.bf16.msra.mxu0 %v4185
        %4189 = vmatprep.subr.bf16.mxu0 0
        %4190 = vmatpush1.bf16.msra.mxu0 0
        %4191 = vmatprep.subr.bf16.mxu0 0
        %4192 = vmatpush1.bf16.msra.mxu0 0
        %4193 = vmatprep.subr.bf16.mxu0 0
        %4194 = vmatpush1.bf16.msra.mxu0 0
        %4195 = vmatprep.subr.bf16.mxu0 0
        %4196 = vmatpush1.bf16.msra.mxu0 0
        %4197 = vmatprep.subr.bf16.mxu0 0
        %4198 = vmatpush1.bf16.msra.mxu0 0
        %4199 = vmatprep.subr.bf16.mxu0 0
        %4200 = vmatpush1.bf16.msra.mxu0 0
        %4201 = vmatprep.subr.bf16.mxu0 0
        %4202 = vmatpush1.bf16.msra.mxu0 0
        %4203 = vmatprep.subr.bf16.mxu0 0
        %4204 = vmatpush1.bf16.msra.mxu0 0
        %4205 = vmatprep.subr.bf16.mxu0 0
        %4206 = vmatpush1.bf16.msra.mxu0 0
        %4207 = vmatprep.subr.bf16.mxu0 0
        %4208 = vmatpush1.bf16.msra.mxu0 0
        %4209 = vmatprep.subr.bf16.mxu0 0
        %4210 = vmatpush1.bf16.msra.mxu0 0
        %4211 = vmatprep.subr.bf16.mxu0 0
        %4212 = vmatpush1.bf16.msra.mxu0 0
        %4213 = vmatprep.subr.bf16.mxu0 0
        %4214 = vmatpush1.bf16.msra.mxu0 0
        %4215 = vmatprep.subr.bf16.mxu0 0
        %4216 = vmatpush1.bf16.msra.mxu0 0
        %4217 = vmatprep.subr.bf16.mxu0 0
        %4218 = vmatpush1.bf16.msra.mxu0 0
        %4219 = vmatprep.mubr.bf16.mxu0 0
        %4220 = vmatmul.mubr.bf16.gmra.mrb[0].mxu0 %v4173
        %v4221 = vpop.f32.mrb[0].mxu0
        %v4222 = vadd.f32 0.0, %v4221
        %v4223 = vpop.f32.mrb[0].mxu0
        %v4224 = vpop.f32.mrb[0].mxu0
        %v4225 = vadd.f32 0.0, %v4224
        %v4226 = vpop.f32.mrb[0].mxu0
        %4227 = vmatprep.mubr.bf16.mxu0 0
        %4228 = vmatmul.mubr.bf16.gmra.mrb[0].mxu0 %v4176
        %v4229 = vpop.f32.mrb[0].mxu0
        %v4230 = vadd.f32 0.0, %v4229
        %v4231 = vpop.f32.mrb[0].mxu0
        %v4232 = vpop.f32.mrb[0].mxu0
        %v4233 = vadd.f32 0.0, %v4232
        %v4234 = vpop.f32.mrb[0].mxu0
        %4235 = vmatprep.mubr.bf16.mxu0 0
        %4236 = vmatmul.mubr.bf16.gmra.mrb[0].mxu0 %v4179
        %v4237 = vpop.f32.mrb[0].mxu0
        %v4238 = vadd.f32 0.0, %v4237
        %v4239 = vpop.f32.mrb[0].mxu0
        %v4240 = vpop.f32.mrb[0].mxu0
        %v4241 = vadd.f32 0.0, %v4240
        %v4242 = vpop.f32.mrb[0].mxu0
        %4243 = vmatprep.mubr.bf16.mxu0 0
        %4244 = vmatmul.mubr.bf16.gmra.mrb[0].mxu0 %v4182
        %v4245 = vpop.f32.mrb[0].mxu0
        %v4246 = vadd.f32 0.0, %v4245
        %v4247 = vpop.f32.mrb[0].mxu0
        %v4248 = vpop.f32.mrb[0].mxu0
        %v4249 = vadd.f32 0.0, %v4248
        %v4250 = vpop.f32.mrb[0].mxu0
        %4251 = vdwg.mxu0
        %v4252 = vld [vmem:[#allocation2] sm:$0xff]
        %v4253 = vld [vmem:[#allocation2 + $0x8] sm:$0xff]
        %v4254 = vld [vmem:[#allocation2 + $0x10] sm:$0xff]
        %v4255 = vld [vmem:[#allocation2 + $0x18] sm:$0xff]
        %v4256 = vld [vmem:[#allocation2 + $0x20] sm:$0xff]
        %v4257 = vld [vmem:[#allocation2 + $0x28] sm:$0xff]
        %v4258 = vld [vmem:[#allocation2 + $0x30] sm:$0xff]
        %v4259 = vld [vmem:[#allocation2 + $0x38] sm:$0xff]
        %v4260 = vadd.f32 %v4252, %v4222
        %v4261 = vadd.f32 %v4253, %v4225
        %v4262 = vadd.f32 %v4254, %v4230
        %v4263 = vadd.f32 %v4255, %v4233
        %v4264 = vadd.f32 %v4256, %v4238
        %v4265 = vadd.f32 %v4257, %v4241
        %v4266 = vadd.f32 %v4258, %v4246
        %v4267 = vadd.f32 %v4259, %v4249
        %4268 = vst.msk [vmem:[#allocation2] sm:$0xff] %vm1503, %v4260
        %4269 = vst.msk [vmem:[#allocation2 + $0x8] sm:$0xff] %vm1503, %v4261
        %4270 = vst.msk [vmem:[#allocation2 + $0x10] sm:$0xff] %vm1503, %v4262
        %4271 = vst.msk [vmem:[#allocation2 + $0x18] sm:$0xff] %vm1503, %v4263
        %4272 = vst.msk [vmem:[#allocation2 + $0x20] sm:$0xff] %vm1503, %v4264
        %4273 = vst.msk [vmem:[#allocation2 + $0x28] sm:$0xff] %vm1503, %v4265
        %4274 = vst.msk [vmem:[#allocation2 + $0x30] sm:$0xff] %vm1503, %v4266
        %4275 = vst.msk [vmem:[#allocation2 + $0x38] sm:$0xff] %vm1503, %v4267
        %v4276 = vld [vmem:[%s4004] sm:$0xf]
        %v4277 = vld [vmem:[%s4004 + $0x4] sm:$0x1]
        %v4278 = vld [vmem:[%s4004 + $0x8] sm:$0xf]
        %v4279 = vld [vmem:[%s4004 + $0xc] sm:$0x1]
        %v4280 = vld [vmem:[%s4004 + $0x10] sm:$0xf]
        %v4281 = vld [vmem:[%s4004 + $0x14] sm:$0x1]
        %v4282 = vld [vmem:[%s4004 + $0x18] sm:$0xf]
        %v4283 = vld [vmem:[%s4004 + $0x1c] sm:$0x1]
        %v4284 = vld [vmem:[%s4004 + $0x20] sm:$0xf]
        %v4285 = vld [vmem:[%s4004 + $0x24] sm:$0x1]
        %v4286 = vld [vmem:[%s4004 + $0x28] sm:$0xf]
        %v4287 = vld [vmem:[%s4004 + $0x2c] sm:$0x1]
        %v4288 = vld [vmem:[%s4004 + $0x30] sm:$0xf]
        %v4289 = vld [vmem:[%s4004 + $0x34] sm:$0x1]
        %v4290 = vld [vmem:[%s4004 + $0x38] sm:$0xf]
        %v4291 = vld [vmem:[%s4004 + $0x3c] sm:$0x1]
        %v4293 = vshrl.u32 %v4276, 16
        %v4295 = vrot.slane %v4293, 4
        %v4296 = vshll.u32 %v4276, 16
        %v4298 = vrot.slane %v4296, 5
        %v4299 = vor.u32 %v4295, %v4298
        %v4300 = vrot.slane %v4299, 4
        %v4302 = vshll.u32 %v4277, 16
        %v4304 = vrot.slane %v4302, 5
        %v4305 = vsel %vm1667, %v4300, %v4304
        %v4307 = vshrl.u32 %v4278, 16
        %v4309 = vrot.slane %v4307, 4
        %v4310 = vshll.u32 %v4278, 16
        %v4312 = vrot.slane %v4310, 5
        %v4313 = vor.u32 %v4309, %v4312
        %v4314 = vrot.slane %v4313, 4
        %v4316 = vshll.u32 %v4279, 16
        %v4318 = vrot.slane %v4316, 5
        %v4319 = vsel %vm1667, %v4314, %v4318
        %v4321 = vshrl.u32 %v4280, 16
        %v4323 = vrot.slane %v4321, 4
        %v4324 = vshll.u32 %v4280, 16
        %v4326 = vrot.slane %v4324, 5
        %v4327 = vor.u32 %v4323, %v4326
        %v4328 = vrot.slane %v4327, 4
        %v4330 = vshll.u32 %v4281, 16
        %v4332 = vrot.slane %v4330, 5
        %v4333 = vsel %vm1667, %v4328, %v4332
        %v4335 = vshrl.u32 %v4282, 16
        %v4337 = vrot.slane %v4335, 4
        %v4338 = vshll.u32 %v4282, 16
        %v4340 = vrot.slane %v4338, 5
        %v4341 = vor.u32 %v4337, %v4340
        %v4342 = vrot.slane %v4341, 4
        %v4344 = vshll.u32 %v4283, 16
        %v4346 = vrot.slane %v4344, 5
        %v4347 = vsel %vm1667, %v4342, %v4346
        %v4349 = vshrl.u32 %v4284, 16
        %v4351 = vrot.slane %v4349, 4
        %v4352 = vshll.u32 %v4284, 16
        %v4354 = vrot.slane %v4352, 5
        %v4355 = vor.u32 %v4351, %v4354
        %v4356 = vrot.slane %v4355, 4
        %v4358 = vshll.u32 %v4285, 16
        %v4360 = vrot.slane %v4358, 5
        %v4361 = vsel %vm1667, %v4356, %v4360
        %v4363 = vshrl.u32 %v4286, 16
        %v4365 = vrot.slane %v4363, 4
        %v4366 = vshll.u32 %v4286, 16
        %v4368 = vrot.slane %v4366, 5
        %v4369 = vor.u32 %v4365, %v4368
        %v4370 = vrot.slane %v4369, 4
        %v4372 = vshll.u32 %v4287, 16
        %v4374 = vrot.slane %v4372, 5
        %v4375 = vsel %vm1667, %v4370, %v4374
        %v4377 = vshrl.u32 %v4288, 16
        %v4379 = vrot.slane %v4377, 4
        %v4380 = vshll.u32 %v4288, 16
        %v4382 = vrot.slane %v4380, 5
        %v4383 = vor.u32 %v4379, %v4382
        %v4384 = vrot.slane %v4383, 4
        %v4386 = vshll.u32 %v4289, 16
        %v4388 = vrot.slane %v4386, 5
        %v4389 = vsel %vm1667, %v4384, %v4388
        %v4391 = vshrl.u32 %v4290, 16
        %v4393 = vrot.slane %v4391, 4
        %v4394 = vshll.u32 %v4290, 16
        %v4396 = vrot.slane %v4394, 5
        %v4397 = vor.u32 %v4393, %v4396
        %v4398 = vrot.slane %v4397, 4
        %v4400 = vshll.u32 %v4291, 16
        %v4402 = vrot.slane %v4400, 5
        %v4403 = vsel %vm1667, %v4398, %v4402
        %s4404 = scalar_lea.vmem %s1, 68
        %v4405 = vld [vmem:[%s4404] sm:$0xf]
        %v4406 = vunpack.c.l.b16 %v4305
        %v4407 = vunpack.c.l.b16 %v4319
        %v4408 = vunpack.c.l.b16 %v4333
        %v4409 = vunpack.c.l.b16 %v4347
        %v4410 = vunpack.c.l.b16 %v4361
        %v4411 = vunpack.c.l.b16 %v4375
        %v4412 = vunpack.c.l.b16 %v4389
        %v4413 = vunpack.c.l.b16 %v4403
        %v4414 = vpack.c.b16 %v4407, %v4406
        %v4415 = vpack.c.b16 %v4409, %v4408
        %v4416 = vpack.c.b16 %v4411, %v4410
        %v4417 = vpack.c.b16 %v4413, %v4412
        %v4419 = vsel %vm1421, %v4414, 0
        %v4422 = vsel %vm1421, %v4415, 0
        %v4425 = vsel %vm1421, %v4416, 0
        %v4428 = vsel %vm1421, %v4417, 0
        %v4431 = vsel %vm1434, %v4405, 0
        %4433 = vmatprep.subr.bf16.mxu0 0
        %4434 = vmatpush1.bf16.msra.mxu0 %v4431
        %4435 = vmatprep.subr.bf16.mxu0 0
        %4436 = vmatpush1.bf16.msra.mxu0 0
        %4437 = vmatprep.subr.bf16.mxu0 0
        %4438 = vmatpush1.bf16.msra.mxu0 0
        %4439 = vmatprep.subr.bf16.mxu0 0
        %4440 = vmatpush1.bf16.msra.mxu0 0
        %4441 = vmatprep.subr.bf16.mxu0 0
        %4442 = vmatpush1.bf16.msra.mxu0 0
        %4443 = vmatprep.subr.bf16.mxu0 0
        %4444 = vmatpush1.bf16.msra.mxu0 0
        %4445 = vmatprep.subr.bf16.mxu0 0
        %4446 = vmatpush1.bf16.msra.mxu0 0
        %4447 = vmatprep.subr.bf16.mxu0 0
        %4448 = vmatpush1.bf16.msra.mxu0 0
        %4449 = vmatprep.subr.bf16.mxu0 0
        %4450 = vmatpush1.bf16.msra.mxu0 0
        %4451 = vmatprep.subr.bf16.mxu0 0
        %4452 = vmatpush1.bf16.msra.mxu0 0
        %4453 = vmatprep.subr.bf16.mxu0 0
        %4454 = vmatpush1.bf16.msra.mxu0 0
        %4455 = vmatprep.subr.bf16.mxu0 0
        %4456 = vmatpush1.bf16.msra.mxu0 0
        %4457 = vmatprep.subr.bf16.mxu0 0
        %4458 = vmatpush1.bf16.msra.mxu0 0
        %4459 = vmatprep.subr.bf16.mxu0 0
        %4460 = vmatpush1.bf16.msra.mxu0 0
        %4461 = vmatprep.subr.bf16.mxu0 0
        %4462 = vmatpush1.bf16.msra.mxu0 0
        %4463 = vmatprep.subr.bf16.mxu0 0
        %4464 = vmatpush1.bf16.msra.mxu0 0
        %4465 = vmatprep.mubr.bf16.mxu0 0
        %4466 = vmatmul.mubr.bf16.gmra.mrb[0].mxu0 %v4419
        %v4467 = vpop.f32.mrb[0].mxu0
        %v4468 = vadd.f32 0.0, %v4467
        %v4469 = vpop.f32.mrb[0].mxu0
        %v4470 = vpop.f32.mrb[0].mxu0
        %v4471 = vadd.f32 0.0, %v4470
        %v4472 = vpop.f32.mrb[0].mxu0
        %4473 = vmatprep.mubr.bf16.mxu0 0
        %4474 = vmatmul.mubr.bf16.gmra.mrb[0].mxu0 %v4422
        %v4475 = vpop.f32.mrb[0].mxu0
        %v4476 = vadd.f32 0.0, %v4475
        %v4477 = vpop.f32.mrb[0].mxu0
        %v4478 = vpop.f32.mrb[0].mxu0
        %v4479 = vadd.f32 0.0, %v4478
        %v4480 = vpop.f32.mrb[0].mxu0
        %4481 = vmatprep.mubr.bf16.mxu0 0
        %4482 = vmatmul.mubr.bf16.gmra.mrb[0].mxu0 %v4425
        %v4483 = vpop.f32.mrb[0].mxu0
        %v4484 = vadd.f32 0.0, %v4483
        %v4485 = vpop.f32.mrb[0].mxu0
        %v4486 = vpop.f32.mrb[0].mxu0
        %v4487 = vadd.f32 0.0, %v4486
        %v4488 = vpop.f32.mrb[0].mxu0
        %4489 = vmatprep.mubr.bf16.mxu0 0
        %4490 = vmatmul.mubr.bf16.gmra.mrb[0].mxu0 %v4428
        %v4491 = vpop.f32.mrb[0].mxu0
        %v4492 = vadd.f32 0.0, %v4491
        %v4493 = vpop.f32.mrb[0].mxu0
        %v4494 = vpop.f32.mrb[0].mxu0
        %v4495 = vadd.f32 0.0, %v4494
        %v4496 = vpop.f32.mrb[0].mxu0
        %4497 = vdwg.mxu0
        %v4498 = vld [vmem:[#allocation2] sm:$0xff]
        %v4499 = vld [vmem:[#allocation2 + $0x8] sm:$0xff]
        %v4500 = vld [vmem:[#allocation2 + $0x10] sm:$0xff]
        %v4501 = vld [vmem:[#allocation2 + $0x18] sm:$0xff]
        %v4502 = vld [vmem:[#allocation2 + $0x20] sm:$0xff]
        %v4503 = vld [vmem:[#allocation2 + $0x28] sm:$0xff]
        %v4504 = vld [vmem:[#allocation2 + $0x30] sm:$0xff]
        %v4505 = vld [vmem:[#allocation2 + $0x38] sm:$0xff]
        %v4506 = vadd.f32 %v4498, %v4468
        %v4507 = vadd.f32 %v4499, %v4471
        %v4508 = vadd.f32 %v4500, %v4476
        %v4509 = vadd.f32 %v4501, %v4479
        %v4510 = vadd.f32 %v4502, %v4484
        %v4511 = vadd.f32 %v4503, %v4487
        %v4512 = vadd.f32 %v4504, %v4492
        %v4513 = vadd.f32 %v4505, %v4495
        %4514 = vst.msk [vmem:[#allocation2] sm:$0xff] %vm1503, %v4506
        %4515 = vst.msk [vmem:[#allocation2 + $0x8] sm:$0xff] %vm1503, %v4507
        %4516 = vst.msk [vmem:[#allocation2 + $0x10] sm:$0xff] %vm1503, %v4508
        %4517 = vst.msk [vmem:[#allocation2 + $0x18] sm:$0xff] %vm1503, %v4509
        %4518 = vst.msk [vmem:[#allocation2 + $0x20] sm:$0xff] %vm1503, %v4510
        %4519 = vst.msk [vmem:[#allocation2 + $0x28] sm:$0xff] %vm1503, %v4511
        %4520 = vst.msk [vmem:[#allocation2 + $0x30] sm:$0xff] %vm1503, %v4512
        %4521 = vst.msk [vmem:[#allocation2 + $0x38] sm:$0xff] %vm1503, %v4513
        %v4522 = vld [vmem:[#allocation2] sm:$0xff]
        %v4523 = vld [vmem:[#allocation2 + $0x8] sm:$0xff]
        %v4524 = vld [vmem:[#allocation2 + $0x10] sm:$0xff]
        %v4525 = vld [vmem:[#allocation2 + $0x18] sm:$0xff]
        %v4526 = vld [vmem:[#allocation2 + $0x20] sm:$0xff]
        %v4527 = vld [vmem:[#allocation2 + $0x28] sm:$0xff]
        %v4528 = vld [vmem:[#allocation2 + $0x30] sm:$0xff]
        %v4529 = vld [vmem:[#allocation2 + $0x38] sm:$0xff]
        %s4530 = scalar_lea.vmem %s2, 1
        %v4531 = vld [vmem:[%s4530] sm:$0x1]
        %v4533 = vlaneseq
        %v4534 = vshrl.u32 %v4533, 7
        %v4535 = vsub.s32 0, %v4534
        %v4536 = vrot.slane %v4531, %v4535
        %v4538 = vadd.f32 %v4522, %v4536
        %v4539 = vadd.f32 %v4523, %v4536
        %v4540 = vadd.f32 %v4524, %v4536
        %v4541 = vadd.f32 %v4525, %v4536
        %v4542 = vadd.f32 %v4526, %v4536
        %v4543 = vadd.f32 %v4527, %v4536
        %v4544 = vadd.f32 %v4528, %v4536
        %v4545 = vadd.f32 %v4529, %v4536
        %v4546 = vmax.f32 %v4538, 0.0
        %v4547 = vmax.f32 %v4539, 0.0
        %v4548 = vmax.f32 %v4540, 0.0
        %v4549 = vmax.f32 %v4541, 0.0
        %v4550 = vmax.f32 %v4542, 0.0
        %v4551 = vmax.f32 %v4543, 0.0
        %v4552 = vmax.f32 %v4544, 0.0
        %v4553 = vmax.f32 %v4545, 0.0
        %s4554 = scalar_lea.vmem %s1384, 64
        %4555 = vst.msk [vmem:[%s4554] sm:$0xff] %vm1503, %v4546
        %4556 = vst.msk [vmem:[%s4554 + $0x8] sm:$0xff] %vm1503, %v4547
        %4557 = vst.msk [vmem:[%s4554 + $0x10] sm:$0xff] %vm1503, %v4548
        %4558 = vst.msk [vmem:[%s4554 + $0x18] sm:$0xff] %vm1503, %v4549
        %4559 = vst.msk [vmem:[%s4554 + $0x20] sm:$0xff] %vm1503, %v4550
        %4560 = vst.msk [vmem:[%s4554 + $0x28] sm:$0xff] %vm1503, %v4551
        %4561 = vst.msk [vmem:[%s4554 + $0x30] sm:$0xff] %vm1503, %v4552
        %4562 = vst.msk [vmem:[%s4554 + $0x38] sm:$0xff] %vm1503, %v4553
        %s4563 = sadd.s32 %s1389, 36
        %s4564 = smul.addr %s4563, 4
        %s4565 = scalar_lea.vmem %s1349, %s4564 [#allocation3]
        %v4566 = vld [vmem:[%s4565] sm:$0xf]
        %v4567 = vld [vmem:[%s4565 + $0x8] sm:$0xf]
        %v4568 = vld [vmem:[%s4565 + $0x10] sm:$0xf]
        %v4569 = vld [vmem:[%s4565 + $0x18] sm:$0xf]
        %v4570 = vld [vmem:[%s4565 + $0x20] sm:$0xf]
        %v4571 = vld [vmem:[%s4565 + $0x28] sm:$0xf]
        %v4572 = vld [vmem:[%s4565 + $0x30] sm:$0xf]
        %v4573 = vld [vmem:[%s4565 + $0x38] sm:$0xf]
        %s4574 = scalar_lea.vmem %s1, 72
        %v4575 = vld [vmem:[%s4574] sm:$0xf]
        %v4584 = vunpack.c.l.b16 %v4566
        %v4585 = vunpack.c.l.b16 %v4567
        %v4586 = vunpack.c.l.b16 %v4568
        %v4587 = vunpack.c.l.b16 %v4569
        %v4588 = vunpack.c.l.b16 %v4570
        %v4589 = vunpack.c.l.b16 %v4571
        %v4590 = vunpack.c.l.b16 %v4572
        %v4591 = vunpack.c.l.b16 %v4573
        %v4592 = vpack.c.b16 %v4585, %v4584
        %v4593 = vpack.c.b16 %v4587, %v4586
        %v4594 = vpack.c.b16 %v4589, %v4588
        %v4595 = vpack.c.b16 %v4591, %v4590
        %v4597 = vsel %vm1421, %v4592, 0
        %v4600 = vsel %vm1421, %v4593, 0
        %v4603 = vsel %vm1421, %v4594, 0
        %v4606 = vsel %vm1421, %v4595, 0
        %v4609 = vsel %vm1434, %v4575, 0
        %4611 = vmatprep.subr.bf16.mxu0 0
        %4612 = vmatpush1.bf16.msra.mxu0 %v4609
        %4613 = vmatprep.subr.bf16.mxu0 0
        %4614 = vmatpush1.bf16.msra.mxu0 0
        %4615 = vmatprep.subr.bf16.mxu0 0
        %4616 = vmatpush1.bf16.msra.mxu0 0
        %4617 = vmatprep.subr.bf16.mxu0 0
        %4618 = vmatpush1.bf16.msra.mxu0 0
        %4619 = vmatprep.subr.bf16.mxu0 0
        %4620 = vmatpush1.bf16.msra.mxu0 0
        %4621 = vmatprep.subr.bf16.mxu0 0
        %4622 = vmatpush1.bf16.msra.mxu0 0
        %4623 = vmatprep.subr.bf16.mxu0 0
        %4624 = vmatpush1.bf16.msra.mxu0 0
        %4625 = vmatprep.subr.bf16.mxu0 0
        %4626 = vmatpush1.bf16.msra.mxu0 0
        %4627 = vmatprep.subr.bf16.mxu0 0
        %4628 = vmatpush1.bf16.msra.mxu0 0
        %4629 = vmatprep.subr.bf16.mxu0 0
        %4630 = vmatpush1.bf16.msra.mxu0 0
        %4631 = vmatprep.subr.bf16.mxu0 0
        %4632 = vmatpush1.bf16.msra.mxu0 0
        %4633 = vmatprep.subr.bf16.mxu0 0
        %4634 = vmatpush1.bf16.msra.mxu0 0
        %4635 = vmatprep.subr.bf16.mxu0 0
        %4636 = vmatpush1.bf16.msra.mxu0 0
        %4637 = vmatprep.subr.bf16.mxu0 0
        %4638 = vmatpush1.bf16.msra.mxu0 0
        %4639 = vmatprep.subr.bf16.mxu0 0
        %4640 = vmatpush1.bf16.msra.mxu0 0
        %4641 = vmatprep.subr.bf16.mxu0 0
        %4642 = vmatpush1.bf16.msra.mxu0 0
        %4643 = vmatprep.mubr.bf16.mxu0 0
        %4644 = vmatmul.mubr.bf16.gmra.mrb[0].mxu0 %v4597
        %v4645 = vpop.f32.mrb[0].mxu0
        %v4646 = vadd.f32 0.0, %v4645
        %v4647 = vpop.f32.mrb[0].mxu0
        %v4648 = vpop.f32.mrb[0].mxu0
        %v4649 = vadd.f32 0.0, %v4648
        %v4650 = vpop.f32.mrb[0].mxu0
        %4651 = vmatprep.mubr.bf16.mxu0 0
        %4652 = vmatmul.mubr.bf16.gmra.mrb[0].mxu0 %v4600
        %v4653 = vpop.f32.mrb[0].mxu0
        %v4654 = vadd.f32 0.0, %v4653
        %v4655 = vpop.f32.mrb[0].mxu0
        %v4656 = vpop.f32.mrb[0].mxu0
        %v4657 = vadd.f32 0.0, %v4656
        %v4658 = vpop.f32.mrb[0].mxu0
        %4659 = vmatprep.mubr.bf16.mxu0 0
        %4660 = vmatmul.mubr.bf16.gmra.mrb[0].mxu0 %v4603
        %v4661 = vpop.f32.mrb[0].mxu0
        %v4662 = vadd.f32 0.0, %v4661
        %v4663 = vpop.f32.mrb[0].mxu0
        %v4664 = vpop.f32.mrb[0].mxu0
        %v4665 = vadd.f32 0.0, %v4664
        %v4666 = vpop.f32.mrb[0].mxu0
        %4667 = vmatprep.mubr.bf16.mxu0 0
        %4668 = vmatmul.mubr.bf16.gmra.mrb[0].mxu0 %v4606
        %v4669 = vpop.f32.mrb[0].mxu0
        %v4670 = vadd.f32 0.0, %v4669
        %v4671 = vpop.f32.mrb[0].mxu0
        %v4672 = vpop.f32.mrb[0].mxu0
        %v4673 = vadd.f32 0.0, %v4672
        %v4674 = vpop.f32.mrb[0].mxu0
        %4675 = vdwg.mxu0
        %4676 = vst.msk [vmem:[#allocation2] sm:$0xff] %vm1503, %v4646
        %4677 = vst.msk [vmem:[#allocation2 + $0x8] sm:$0xff] %vm1503, %v4649
        %4678 = vst.msk [vmem:[#allocation2 + $0x10] sm:$0xff] %vm1503, %v4654
        %4679 = vst.msk [vmem:[#allocation2 + $0x18] sm:$0xff] %vm1503, %v4657
        %4680 = vst.msk [vmem:[#allocation2 + $0x20] sm:$0xff] %vm1503, %v4662
        %4681 = vst.msk [vmem:[#allocation2 + $0x28] sm:$0xff] %vm1503, %v4665
        %4682 = vst.msk [vmem:[#allocation2 + $0x30] sm:$0xff] %vm1503, %v4670
        %4683 = vst.msk [vmem:[#allocation2 + $0x38] sm:$0xff] %vm1503, %v4673
        %s4684 = sadd.s32 %s1389, 108
        %s4685 = smul.addr %s4684, 4
        %s4686 = scalar_lea.vmem %s1349, %s4685 [#allocation3]
        %v4687 = vld [vmem:[%s4686] sm:$0xf]
        %v4688 = vld [vmem:[%s4686 + $0x8] sm:$0xf]
        %v4689 = vld [vmem:[%s4686 + $0x10] sm:$0xf]
        %v4690 = vld [vmem:[%s4686 + $0x18] sm:$0xf]
        %v4691 = vld [vmem:[%s4686 + $0x20] sm:$0xf]
        %v4692 = vld [vmem:[%s4686 + $0x28] sm:$0xf]
        %v4693 = vld [vmem:[%s4686 + $0x30] sm:$0xf]
        %v4694 = vld [vmem:[%s4686 + $0x38] sm:$0xf]
        %s4695 = scalar_lea.vmem %s1, 76
        %v4696 = vld [vmem:[%s4695] sm:$0xf]
        %v4705 = vunpack.c.l.b16 %v4687
        %v4706 = vunpack.c.l.b16 %v4688
        %v4707 = vunpack.c.l.b16 %v4689
        %v4708 = vunpack.c.l.b16 %v4690
        %v4709 = vunpack.c.l.b16 %v4691
        %v4710 = vunpack.c.l.b16 %v4692
        %v4711 = vunpack.c.l.b16 %v4693
        %v4712 = vunpack.c.l.b16 %v4694
        %v4713 = vpack.c.b16 %v4706, %v4705
        %v4714 = vpack.c.b16 %v4708, %v4707
        %v4715 = vpack.c.b16 %v4710, %v4709
        %v4716 = vpack.c.b16 %v4712, %v4711
        %v4718 = vsel %vm1421, %v4713, 0
        %v4721 = vsel %vm1421, %v4714, 0
        %v4724 = vsel %vm1421, %v4715, 0
        %v4727 = vsel %vm1421, %v4716, 0
        %v4730 = vsel %vm1434, %v4696, 0
        %4732 = vmatprep.subr.bf16.mxu0 0
        %4733 = vmatpush1.bf16.msra.mxu0 %v4730
        %4734 = vmatprep.subr.bf16.mxu0 0
        %4735 = vmatpush1.bf16.msra.mxu0 0
        %4736 = vmatprep.subr.bf16.mxu0 0
        %4737 = vmatpush1.bf16.msra.mxu0 0
        %4738 = vmatprep.subr.bf16.mxu0 0
        %4739 = vmatpush1.bf16.msra.mxu0 0
        %4740 = vmatprep.subr.bf16.mxu0 0
        %4741 = vmatpush1.bf16.msra.mxu0 0
        %4742 = vmatprep.subr.bf16.mxu0 0
        %4743 = vmatpush1.bf16.msra.mxu0 0
        %4744 = vmatprep.subr.bf16.mxu0 0
        %4745 = vmatpush1.bf16.msra.mxu0 0
        %4746 = vmatprep.subr.bf16.mxu0 0
        %4747 = vmatpush1.bf16.msra.mxu0 0
        %4748 = vmatprep.subr.bf16.mxu0 0
        %4749 = vmatpush1.bf16.msra.mxu0 0
        %4750 = vmatprep.subr.bf16.mxu0 0
        %4751 = vmatpush1.bf16.msra.mxu0 0
        %4752 = vmatprep.subr.bf16.mxu0 0
        %4753 = vmatpush1.bf16.msra.mxu0 0
        %4754 = vmatprep.subr.bf16.mxu0 0
        %4755 = vmatpush1.bf16.msra.mxu0 0
        %4756 = vmatprep.subr.bf16.mxu0 0
        %4757 = vmatpush1.bf16.msra.mxu0 0
        %4758 = vmatprep.subr.bf16.mxu0 0
        %4759 = vmatpush1.bf16.msra.mxu0 0
        %4760 = vmatprep.subr.bf16.mxu0 0
        %4761 = vmatpush1.bf16.msra.mxu0 0
        %4762 = vmatprep.subr.bf16.mxu0 0
        %4763 = vmatpush1.bf16.msra.mxu0 0
        %4764 = vmatprep.mubr.bf16.mxu0 0
        %4765 = vmatmul.mubr.bf16.gmra.mrb[0].mxu0 %v4718
        %v4766 = vpop.f32.mrb[0].mxu0
        %v4767 = vadd.f32 0.0, %v4766
        %v4768 = vpop.f32.mrb[0].mxu0
        %v4769 = vpop.f32.mrb[0].mxu0
        %v4770 = vadd.f32 0.0, %v4769
        %v4771 = vpop.f32.mrb[0].mxu0
        %4772 = vmatprep.mubr.bf16.mxu0 0
        %4773 = vmatmul.mubr.bf16.gmra.mrb[0].mxu0 %v4721
        %v4774 = vpop.f32.mrb[0].mxu0
        %v4775 = vadd.f32 0.0, %v4774
        %v4776 = vpop.f32.mrb[0].mxu0
        %v4777 = vpop.f32.mrb[0].mxu0
        %v4778 = vadd.f32 0.0, %v4777
        %v4779 = vpop.f32.mrb[0].mxu0
        %4780 = vmatprep.mubr.bf16.mxu0 0
        %4781 = vmatmul.mubr.bf16.gmra.mrb[0].mxu0 %v4724
        %v4782 = vpop.f32.mrb[0].mxu0
        %v4783 = vadd.f32 0.0, %v4782
        %v4784 = vpop.f32.mrb[0].mxu0
        %v4785 = vpop.f32.mrb[0].mxu0
        %v4786 = vadd.f32 0.0, %v4785
        %v4787 = vpop.f32.mrb[0].mxu0
        %4788 = vmatprep.mubr.bf16.mxu0 0
        %4789 = vmatmul.mubr.bf16.gmra.mrb[0].mxu0 %v4727
        %v4790 = vpop.f32.mrb[0].mxu0
        %v4791 = vadd.f32 0.0, %v4790
        %v4792 = vpop.f32.mrb[0].mxu0
        %v4793 = vpop.f32.mrb[0].mxu0
        %v4794 = vadd.f32 0.0, %v4793
        %v4795 = vpop.f32.mrb[0].mxu0
        %4796 = vdwg.mxu0
        %v4797 = vld [vmem:[#allocation2] sm:$0xff]
        %v4798 = vld [vmem:[#allocation2 + $0x8] sm:$0xff]
        %v4799 = vld [vmem:[#allocation2 + $0x10] sm:$0xff]
        %v4800 = vld [vmem:[#allocation2 + $0x18] sm:$0xff]
        %v4801 = vld [vmem:[#allocation2 + $0x20] sm:$0xff]
        %v4802 = vld [vmem:[#allocation2 + $0x28] sm:$0xff]
        %v4803 = vld [vmem:[#allocation2 + $0x30] sm:$0xff]
        %v4804 = vld [vmem:[#allocation2 + $0x38] sm:$0xff]
        %v4805 = vadd.f32 %v4797, %v4767
        %v4806 = vadd.f32 %v4798, %v4770
        %v4807 = vadd.f32 %v4799, %v4775
        %v4808 = vadd.f32 %v4800, %v4778
        %v4809 = vadd.f32 %v4801, %v4783
        %v4810 = vadd.f32 %v4802, %v4786
        %v4811 = vadd.f32 %v4803, %v4791
        %v4812 = vadd.f32 %v4804, %v4794
        %4813 = vst.msk [vmem:[#allocation2] sm:$0xff] %vm1503, %v4805
        %4814 = vst.msk [vmem:[#allocation2 + $0x8] sm:$0xff] %vm1503, %v4806
        %4815 = vst.msk [vmem:[#allocation2 + $0x10] sm:$0xff] %vm1503, %v4807
        %4816 = vst.msk [vmem:[#allocation2 + $0x18] sm:$0xff] %vm1503, %v4808
        %4817 = vst.msk [vmem:[#allocation2 + $0x20] sm:$0xff] %vm1503, %v4809
        %4818 = vst.msk [vmem:[#allocation2 + $0x28] sm:$0xff] %vm1503, %v4810
        %4819 = vst.msk [vmem:[#allocation2 + $0x30] sm:$0xff] %vm1503, %v4811
        %4820 = vst.msk [vmem:[#allocation2 + $0x38] sm:$0xff] %vm1503, %v4812
        %v4821 = vld [vmem:[%s4565] sm:$0xf]
        %v4822 = vld [vmem:[%s4565 + $0x4] sm:$0x1]
        %v4823 = vld [vmem:[%s4565 + $0x8] sm:$0xf]
        %v4824 = vld [vmem:[%s4565 + $0xc] sm:$0x1]
        %v4825 = vld [vmem:[%s4565 + $0x10] sm:$0xf]
        %v4826 = vld [vmem:[%s4565 + $0x14] sm:$0x1]
        %v4827 = vld [vmem:[%s4565 + $0x18] sm:$0xf]
        %v4828 = vld [vmem:[%s4565 + $0x1c] sm:$0x1]
        %v4829 = vld [vmem:[%s4565 + $0x20] sm:$0xf]
        %v4830 = vld [vmem:[%s4565 + $0x24] sm:$0x1]
        %v4831 = vld [vmem:[%s4565 + $0x28] sm:$0xf]
        %v4832 = vld [vmem:[%s4565 + $0x2c] sm:$0x1]
        %v4833 = vld [vmem:[%s4565 + $0x30] sm:$0xf]
        %v4834 = vld [vmem:[%s4565 + $0x34] sm:$0x1]
        %v4835 = vld [vmem:[%s4565 + $0x38] sm:$0xf]
        %v4836 = vld [vmem:[%s4565 + $0x3c] sm:$0x1]
        %v4838 = vshrl.u32 %v4821, 16
        %v4840 = vrot.slane %v4838, 4
        %v4841 = vshll.u32 %v4821, 16
        %v4843 = vrot.slane %v4841, 5
        %v4844 = vor.u32 %v4840, %v4843
        %v4845 = vrot.slane %v4844, 4
        %v4847 = vshll.u32 %v4822, 16
        %v4849 = vrot.slane %v4847, 5
        %v4850 = vsel %vm1667, %v4845, %v4849
        %v4852 = vshrl.u32 %v4823, 16
        %v4854 = vrot.slane %v4852, 4
        %v4855 = vshll.u32 %v4823, 16
        %v4857 = vrot.slane %v4855, 5
        %v4858 = vor.u32 %v4854, %v4857
        %v4859 = vrot.slane %v4858, 4
        %v4861 = vshll.u32 %v4824, 16
        %v4863 = vrot.slane %v4861, 5
        %v4864 = vsel %vm1667, %v4859, %v4863
        %v4866 = vshrl.u32 %v4825, 16
        %v4868 = vrot.slane %v4866, 4
        %v4869 = vshll.u32 %v4825, 16
        %v4871 = vrot.slane %v4869, 5
        %v4872 = vor.u32 %v4868, %v4871
        %v4873 = vrot.slane %v4872, 4
        %v4875 = vshll.u32 %v4826, 16
        %v4877 = vrot.slane %v4875, 5
        %v4878 = vsel %vm1667, %v4873, %v4877
        %v4880 = vshrl.u32 %v4827, 16
        %v4882 = vrot.slane %v4880, 4
        %v4883 = vshll.u32 %v4827, 16
        %v4885 = vrot.slane %v4883, 5
        %v4886 = vor.u32 %v4882, %v4885
        %v4887 = vrot.slane %v4886, 4
        %v4889 = vshll.u32 %v4828, 16
        %v4891 = vrot.slane %v4889, 5
        %v4892 = vsel %vm1667, %v4887, %v4891
        %v4894 = vshrl.u32 %v4829, 16
        %v4896 = vrot.slane %v4894, 4
        %v4897 = vshll.u32 %v4829, 16
        %v4899 = vrot.slane %v4897, 5
        %v4900 = vor.u32 %v4896, %v4899
        %v4901 = vrot.slane %v4900, 4
        %v4903 = vshll.u32 %v4830, 16
        %v4905 = vrot.slane %v4903, 5
        %v4906 = vsel %vm1667, %v4901, %v4905
        %v4908 = vshrl.u32 %v4831, 16
        %v4910 = vrot.slane %v4908, 4
        %v4911 = vshll.u32 %v4831, 16
        %v4913 = vrot.slane %v4911, 5
        %v4914 = vor.u32 %v4910, %v4913
        %v4915 = vrot.slane %v4914, 4
        %v4917 = vshll.u32 %v4832, 16
        %v4919 = vrot.slane %v4917, 5
        %v4920 = vsel %vm1667, %v4915, %v4919
        %v4922 = vshrl.u32 %v4833, 16
        %v4924 = vrot.slane %v4922, 4
        %v4925 = vshll.u32 %v4833, 16
        %v4927 = vrot.slane %v4925, 5
        %v4928 = vor.u32 %v4924, %v4927
        %v4929 = vrot.slane %v4928, 4
        %v4931 = vshll.u32 %v4834, 16
        %v4933 = vrot.slane %v4931, 5
        %v4934 = vsel %vm1667, %v4929, %v4933
        %v4936 = vshrl.u32 %v4835, 16
        %v4938 = vrot.slane %v4936, 4
        %v4939 = vshll.u32 %v4835, 16
        %v4941 = vrot.slane %v4939, 5
        %v4942 = vor.u32 %v4938, %v4941
        %v4943 = vrot.slane %v4942, 4
        %v4945 = vshll.u32 %v4836, 16
        %v4947 = vrot.slane %v4945, 5
        %v4948 = vsel %vm1667, %v4943, %v4947
        %s4949 = scalar_lea.vmem %s1, 80
        %v4950 = vld [vmem:[%s4949] sm:$0xf]
        %v4951 = vunpack.c.l.b16 %v4850
        %v4952 = vunpack.c.l.b16 %v4864
        %v4953 = vunpack.c.l.b16 %v4878
        %v4954 = vunpack.c.l.b16 %v4892
        %v4955 = vunpack.c.l.b16 %v4906
        %v4956 = vunpack.c.l.b16 %v4920
        %v4957 = vunpack.c.l.b16 %v4934
        %v4958 = vunpack.c.l.b16 %v4948
        %v4959 = vpack.c.b16 %v4952, %v4951
        %v4960 = vpack.c.b16 %v4954, %v4953
        %v4961 = vpack.c.b16 %v4956, %v4955
        %v4962 = vpack.c.b16 %v4958, %v4957
        %v4964 = vsel %vm1421, %v4959, 0
        %v4967 = vsel %vm1421, %v4960, 0
        %v4970 = vsel %vm1421, %v4961, 0
        %v4973 = vsel %vm1421, %v4962, 0
        %v4976 = vsel %vm1434, %v4950, 0
        %4978 = vmatprep.subr.bf16.mxu0 0
        %4979 = vmatpush1.bf16.msra.mxu0 %v4976
        %4980 = vmatprep.subr.bf16.mxu0 0
        %4981 = vmatpush1.bf16.msra.mxu0 0
        %4982 = vmatprep.subr.bf16.mxu0 0
        %4983 = vmatpush1.bf16.msra.mxu0 0
        %4984 = vmatprep.subr.bf16.mxu0 0
        %4985 = vmatpush1.bf16.msra.mxu0 0
        %4986 = vmatprep.subr.bf16.mxu0 0
        %4987 = vmatpush1.bf16.msra.mxu0 0
        %4988 = vmatprep.subr.bf16.mxu0 0
        %4989 = vmatpush1.bf16.msra.mxu0 0
        %4990 = vmatprep.subr.bf16.mxu0 0
        %4991 = vmatpush1.bf16.msra.mxu0 0
        %4992 = vmatprep.subr.bf16.mxu0 0
        %4993 = vmatpush1.bf16.msra.mxu0 0
        %4994 = vmatprep.subr.bf16.mxu0 0
        %4995 = vmatpush1.bf16.msra.mxu0 0
        %4996 = vmatprep.subr.bf16.mxu0 0
        %4997 = vmatpush1.bf16.msra.mxu0 0
        %4998 = vmatprep.subr.bf16.mxu0 0
        %4999 = vmatpush1.bf16.msra.mxu0 0
        %5000 = vmatprep.subr.bf16.mxu0 0
        %5001 = vmatpush1.bf16.msra.mxu0 0
        %5002 = vmatprep.subr.bf16.mxu0 0
        %5003 = vmatpush1.bf16.msra.mxu0 0
        %5004 = vmatprep.subr.bf16.mxu0 0
        %5005 = vmatpush1.bf16.msra.mxu0 0
        %5006 = vmatprep.subr.bf16.mxu0 0
        %5007 = vmatpush1.bf16.msra.mxu0 0
        %5008 = vmatprep.subr.bf16.mxu0 0
        %5009 = vmatpush1.bf16.msra.mxu0 0
        %5010 = vmatprep.mubr.bf16.mxu0 0
        %5011 = vmatmul.mubr.bf16.gmra.mrb[0].mxu0 %v4964
        %v5012 = vpop.f32.mrb[0].mxu0
        %v5013 = vadd.f32 0.0, %v5012
        %v5014 = vpop.f32.mrb[0].mxu0
        %v5015 = vpop.f32.mrb[0].mxu0
        %v5016 = vadd.f32 0.0, %v5015
        %v5017 = vpop.f32.mrb[0].mxu0
        %5018 = vmatprep.mubr.bf16.mxu0 0
        %5019 = vmatmul.mubr.bf16.gmra.mrb[0].mxu0 %v4967
        %v5020 = vpop.f32.mrb[0].mxu0
        %v5021 = vadd.f32 0.0, %v5020
        %v5022 = vpop.f32.mrb[0].mxu0
        %v5023 = vpop.f32.mrb[0].mxu0
        %v5024 = vadd.f32 0.0, %v5023
        %v5025 = vpop.f32.mrb[0].mxu0
        %5026 = vmatprep.mubr.bf16.mxu0 0
        %5027 = vmatmul.mubr.bf16.gmra.mrb[0].mxu0 %v4970
        %v5028 = vpop.f32.mrb[0].mxu0
        %v5029 = vadd.f32 0.0, %v5028
        %v5030 = vpop.f32.mrb[0].mxu0
        %v5031 = vpop.f32.mrb[0].mxu0
        %v5032 = vadd.f32 0.0, %v5031
        %v5033 = vpop.f32.mrb[0].mxu0
        %5034 = vmatprep.mubr.bf16.mxu0 0
        %5035 = vmatmul.mubr.bf16.gmra.mrb[0].mxu0 %v4973
        %v5036 = vpop.f32.mrb[0].mxu0
        %v5037 = vadd.f32 0.0, %v5036
        %v5038 = vpop.f32.mrb[0].mxu0
        %v5039 = vpop.f32.mrb[0].mxu0
        %v5040 = vadd.f32 0.0, %v5039
        %v5041 = vpop.f32.mrb[0].mxu0
        %5042 = vdwg.mxu0
        %v5043 = vld [vmem:[#allocation2] sm:$0xff]
        %v5044 = vld [vmem:[#allocation2 + $0x8] sm:$0xff]
        %v5045 = vld [vmem:[#allocation2 + $0x10] sm:$0xff]
        %v5046 = vld [vmem:[#allocation2 + $0x18] sm:$0xff]
        %v5047 = vld [vmem:[#allocation2 + $0x20] sm:$0xff]
        %v5048 = vld [vmem:[#allocation2 + $0x28] sm:$0xff]
        %v5049 = vld [vmem:[#allocation2 + $0x30] sm:$0xff]
        %v5050 = vld [vmem:[#allocation2 + $0x38] sm:$0xff]
        %v5051 = vadd.f32 %v5043, %v5013
        %v5052 = vadd.f32 %v5044, %v5016
        %v5053 = vadd.f32 %v5045, %v5021
        %v5054 = vadd.f32 %v5046, %v5024
        %v5055 = vadd.f32 %v5047, %v5029
        %v5056 = vadd.f32 %v5048, %v5032
        %v5057 = vadd.f32 %v5049, %v5037
        %v5058 = vadd.f32 %v5050, %v5040
        %5059 = vst.msk [vmem:[#allocation2] sm:$0xff] %vm1503, %v5051
        %5060 = vst.msk [vmem:[#allocation2 + $0x8] sm:$0xff] %vm1503, %v5052
        %5061 = vst.msk [vmem:[#allocation2 + $0x10] sm:$0xff] %vm1503, %v5053
        %5062 = vst.msk [vmem:[#allocation2 + $0x18] sm:$0xff] %vm1503, %v5054
        %5063 = vst.msk [vmem:[#allocation2 + $0x20] sm:$0xff] %vm1503, %v5055
        %5064 = vst.msk [vmem:[#allocation2 + $0x28] sm:$0xff] %vm1503, %v5056
        %5065 = vst.msk [vmem:[#allocation2 + $0x30] sm:$0xff] %vm1503, %v5057
        %5066 = vst.msk [vmem:[#allocation2 + $0x38] sm:$0xff] %vm1503, %v5058
        %s5067 = sadd.s32 %s1389, 180
        %s5068 = smul.addr %s5067, 4
        %s5069 = scalar_lea.vmem %s1349, %s5068 [#allocation3]
        %v5070 = vld [vmem:[%s5069] sm:$0xf]
        %v5071 = vld [vmem:[%s5069 + $0x8] sm:$0xf]
        %v5072 = vld [vmem:[%s5069 + $0x10] sm:$0xf]
        %v5073 = vld [vmem:[%s5069 + $0x18] sm:$0xf]
        %v5074 = vld [vmem:[%s5069 + $0x20] sm:$0xf]
        %v5075 = vld [vmem:[%s5069 + $0x28] sm:$0xf]
        %v5076 = vld [vmem:[%s5069 + $0x30] sm:$0xf]
        %v5077 = vld [vmem:[%s5069 + $0x38] sm:$0xf]
        %s5078 = scalar_lea.vmem %s1, 84
        %v5079 = vld [vmem:[%s5078] sm:$0xf]
        %v5088 = vunpack.c.l.b16 %v5070
        %v5089 = vunpack.c.l.b16 %v5071
        %v5090 = vunpack.c.l.b16 %v5072
        %v5091 = vunpack.c.l.b16 %v5073
        %v5092 = vunpack.c.l.b16 %v5074
        %v5093 = vunpack.c.l.b16 %v5075
        %v5094 = vunpack.c.l.b16 %v5076
        %v5095 = vunpack.c.l.b16 %v5077
        %v5096 = vpack.c.b16 %v5089, %v5088
        %v5097 = vpack.c.b16 %v5091, %v5090
        %v5098 = vpack.c.b16 %v5093, %v5092
        %v5099 = vpack.c.b16 %v5095, %v5094
        %v5101 = vsel %vm1421, %v5096, 0
        %v5104 = vsel %vm1421, %v5097, 0
        %v5107 = vsel %vm1421, %v5098, 0
        %v5110 = vsel %vm1421, %v5099, 0
        %v5113 = vsel %vm1434, %v5079, 0
        %5115 = vmatprep.subr.bf16.mxu0 0
        %5116 = vmatpush1.bf16.msra.mxu0 %v5113
        %5117 = vmatprep.subr.bf16.mxu0 0
        %5118 = vmatpush1.bf16.msra.mxu0 0
        %5119 = vmatprep.subr.bf16.mxu0 0
        %5120 = vmatpush1.bf16.msra.mxu0 0
        %5121 = vmatprep.subr.bf16.mxu0 0
        %5122 = vmatpush1.bf16.msra.mxu0 0
        %5123 = vmatprep.subr.bf16.mxu0 0
        %5124 = vmatpush1.bf16.msra.mxu0 0
        %5125 = vmatprep.subr.bf16.mxu0 0
        %5126 = vmatpush1.bf16.msra.mxu0 0
        %5127 = vmatprep.subr.bf16.mxu0 0
        %5128 = vmatpush1.bf16.msra.mxu0 0
        %5129 = vmatprep.subr.bf16.mxu0 0
        %5130 = vmatpush1.bf16.msra.mxu0 0
        %5131 = vmatprep.subr.bf16.mxu0 0
        %5132 = vmatpush1.bf16.msra.mxu0 0
        %5133 = vmatprep.subr.bf16.mxu0 0
        %5134 = vmatpush1.bf16.msra.mxu0 0
        %5135 = vmatprep.subr.bf16.mxu0 0
        %5136 = vmatpush1.bf16.msra.mxu0 0
        %5137 = vmatprep.subr.bf16.mxu0 0
        %5138 = vmatpush1.bf16.msra.mxu0 0
        %5139 = vmatprep.subr.bf16.mxu0 0
        %5140 = vmatpush1.bf16.msra.mxu0 0
        %5141 = vmatprep.subr.bf16.mxu0 0
        %5142 = vmatpush1.bf16.msra.mxu0 0
        %5143 = vmatprep.subr.bf16.mxu0 0
        %5144 = vmatpush1.bf16.msra.mxu0 0
        %5145 = vmatprep.subr.bf16.mxu0 0
        %5146 = vmatpush1.bf16.msra.mxu0 0
        %5147 = vmatprep.mubr.bf16.mxu0 0
        %5148 = vmatmul.mubr.bf16.gmra.mrb[0].mxu0 %v5101
        %v5149 = vpop.f32.mrb[0].mxu0
        %v5150 = vadd.f32 0.0, %v5149
        %v5151 = vpop.f32.mrb[0].mxu0
        %v5152 = vpop.f32.mrb[0].mxu0
        %v5153 = vadd.f32 0.0, %v5152
        %v5154 = vpop.f32.mrb[0].mxu0
        %5155 = vmatprep.mubr.bf16.mxu0 0
        %5156 = vmatmul.mubr.bf16.gmra.mrb[0].mxu0 %v5104
        %v5157 = vpop.f32.mrb[0].mxu0
        %v5158 = vadd.f32 0.0, %v5157
        %v5159 = vpop.f32.mrb[0].mxu0
        %v5160 = vpop.f32.mrb[0].mxu0
        %v5161 = vadd.f32 0.0, %v5160
        %v5162 = vpop.f32.mrb[0].mxu0
        %5163 = vmatprep.mubr.bf16.mxu0 0
        %5164 = vmatmul.mubr.bf16.gmra.mrb[0].mxu0 %v5107
        %v5165 = vpop.f32.mrb[0].mxu0
        %v5166 = vadd.f32 0.0, %v5165
        %v5167 = vpop.f32.mrb[0].mxu0
        %v5168 = vpop.f32.mrb[0].mxu0
        %v5169 = vadd.f32 0.0, %v5168
        %v5170 = vpop.f32.mrb[0].mxu0
        %5171 = vmatprep.mubr.bf16.mxu0 0
        %5172 = vmatmul.mubr.bf16.gmra.mrb[0].mxu0 %v5110
        %v5173 = vpop.f32.mrb[0].mxu0
        %v5174 = vadd.f32 0.0, %v5173
        %v5175 = vpop.f32.mrb[0].mxu0
        %v5176 = vpop.f32.mrb[0].mxu0
        %v5177 = vadd.f32 0.0, %v5176
        %v5178 = vpop.f32.mrb[0].mxu0
        %5179 = vdwg.mxu0
        %v5180 = vld [vmem:[#allocation2] sm:$0xff]
        %v5181 = vld [vmem:[#allocation2 + $0x8] sm:$0xff]
        %v5182 = vld [vmem:[#allocation2 + $0x10] sm:$0xff]
        %v5183 = vld [vmem:[#allocation2 + $0x18] sm:$0xff]
        %v5184 = vld [vmem:[#allocation2 + $0x20] sm:$0xff]
        %v5185 = vld [vmem:[#allocation2 + $0x28] sm:$0xff]
        %v5186 = vld [vmem:[#allocation2 + $0x30] sm:$0xff]
        %v5187 = vld [vmem:[#allocation2 + $0x38] sm:$0xff]
        %v5188 = vadd.f32 %v5180, %v5150
        %v5189 = vadd.f32 %v5181, %v5153
        %v5190 = vadd.f32 %v5182, %v5158
        %v5191 = vadd.f32 %v5183, %v5161
        %v5192 = vadd.f32 %v5184, %v5166
        %v5193 = vadd.f32 %v5185, %v5169
        %v5194 = vadd.f32 %v5186, %v5174
        %v5195 = vadd.f32 %v5187, %v5177
        %5196 = vst.msk [vmem:[#allocation2] sm:$0xff] %vm1503, %v5188
        %5197 = vst.msk [vmem:[#allocation2 + $0x8] sm:$0xff] %vm1503, %v5189
        %5198 = vst.msk [vmem:[#allocation2 + $0x10] sm:$0xff] %vm1503, %v5190
        %5199 = vst.msk [vmem:[#allocation2 + $0x18] sm:$0xff] %vm1503, %v5191
        %5200 = vst.msk [vmem:[#allocation2 + $0x20] sm:$0xff] %vm1503, %v5192
        %5201 = vst.msk [vmem:[#allocation2 + $0x28] sm:$0xff] %vm1503, %v5193
        %5202 = vst.msk [vmem:[#allocation2 + $0x30] sm:$0xff] %vm1503, %v5194
        %5203 = vst.msk [vmem:[#allocation2 + $0x38] sm:$0xff] %vm1503, %v5195
        %s5204 = sadd.s32 %s1389, 252
        %s5205 = smul.addr %s5204, 4
        %s5206 = scalar_lea.vmem %s1349, %s5205 [#allocation3]
        %v5207 = vld [vmem:[%s5206] sm:$0xf]
        %v5208 = vld [vmem:[%s5206 + $0x8] sm:$0xf]
        %v5209 = vld [vmem:[%s5206 + $0x10] sm:$0xf]
        %v5210 = vld [vmem:[%s5206 + $0x18] sm:$0xf]
        %v5211 = vld [vmem:[%s5206 + $0x20] sm:$0xf]
        %v5212 = vld [vmem:[%s5206 + $0x28] sm:$0xf]
        %v5213 = vld [vmem:[%s5206 + $0x30] sm:$0xf]
        %v5214 = vld [vmem:[%s5206 + $0x38] sm:$0xf]
        %s5215 = scalar_lea.vmem %s1, 88
        %v5216 = vld [vmem:[%s5215] sm:$0xf]
        %v5225 = vunpack.c.l.b16 %v5207
        %v5226 = vunpack.c.l.b16 %v5208
        %v5227 = vunpack.c.l.b16 %v5209
        %v5228 = vunpack.c.l.b16 %v5210
        %v5229 = vunpack.c.l.b16 %v5211
        %v5230 = vunpack.c.l.b16 %v5212
        %v5231 = vunpack.c.l.b16 %v5213
        %v5232 = vunpack.c.l.b16 %v5214
        %v5233 = vpack.c.b16 %v5226, %v5225
        %v5234 = vpack.c.b16 %v5228, %v5227
        %v5235 = vpack.c.b16 %v5230, %v5229
        %v5236 = vpack.c.b16 %v5232, %v5231
        %v5238 = vsel %vm1421, %v5233, 0
        %v5241 = vsel %vm1421, %v5234, 0
        %v5244 = vsel %vm1421, %v5235, 0
        %v5247 = vsel %vm1421, %v5236, 0
        %v5250 = vsel %vm1434, %v5216, 0
        %5252 = vmatprep.subr.bf16.mxu0 0
        %5253 = vmatpush1.bf16.msra.mxu0 %v5250
        %5254 = vmatprep.subr.bf16.mxu0 0
        %5255 = vmatpush1.bf16.msra.mxu0 0
        %5256 = vmatprep.subr.bf16.mxu0 0
        %5257 = vmatpush1.bf16.msra.mxu0 0
        %5258 = vmatprep.subr.bf16.mxu0 0
        %5259 = vmatpush1.bf16.msra.mxu0 0
        %5260 = vmatprep.subr.bf16.mxu0 0
        %5261 = vmatpush1.bf16.msra.mxu0 0
        %5262 = vmatprep.subr.bf16.mxu0 0
        %5263 = vmatpush1.bf16.msra.mxu0 0
        %5264 = vmatprep.subr.bf16.mxu0 0
        %5265 = vmatpush1.bf16.msra.mxu0 0
        %5266 = vmatprep.subr.bf16.mxu0 0
        %5267 = vmatpush1.bf16.msra.mxu0 0
        %5268 = vmatprep.subr.bf16.mxu0 0
        %5269 = vmatpush1.bf16.msra.mxu0 0
        %5270 = vmatprep.subr.bf16.mxu0 0
        %5271 = vmatpush1.bf16.msra.mxu0 0
        %5272 = vmatprep.subr.bf16.mxu0 0
        %5273 = vmatpush1.bf16.msra.mxu0 0
        %5274 = vmatprep.subr.bf16.mxu0 0
        %5275 = vmatpush1.bf16.msra.mxu0 0
        %5276 = vmatprep.subr.bf16.mxu0 0
        %5277 = vmatpush1.bf16.msra.mxu0 0
        %5278 = vmatprep.subr.bf16.mxu0 0
        %5279 = vmatpush1.bf16.msra.mxu0 0
        %5280 = vmatprep.subr.bf16.mxu0 0
        %5281 = vmatpush1.bf16.msra.mxu0 0
        %5282 = vmatprep.subr.bf16.mxu0 0
        %5283 = vmatpush1.bf16.msra.mxu0 0
        %5284 = vmatprep.mubr.bf16.mxu0 0
        %5285 = vmatmul.mubr.bf16.gmra.mrb[0].mxu0 %v5238
        %v5286 = vpop.f32.mrb[0].mxu0
        %v5287 = vadd.f32 0.0, %v5286
        %v5288 = vpop.f32.mrb[0].mxu0
        %v5289 = vpop.f32.mrb[0].mxu0
        %v5290 = vadd.f32 0.0, %v5289
        %v5291 = vpop.f32.mrb[0].mxu0
        %5292 = vmatprep.mubr.bf16.mxu0 0
        %5293 = vmatmul.mubr.bf16.gmra.mrb[0].mxu0 %v5241
        %v5294 = vpop.f32.mrb[0].mxu0
        %v5295 = vadd.f32 0.0, %v5294
        %v5296 = vpop.f32.mrb[0].mxu0
        %v5297 = vpop.f32.mrb[0].mxu0
        %v5298 = vadd.f32 0.0, %v5297
        %v5299 = vpop.f32.mrb[0].mxu0
        %5300 = vmatprep.mubr.bf16.mxu0 0
        %5301 = vmatmul.mubr.bf16.gmra.mrb[0].mxu0 %v5244
        %v5302 = vpop.f32.mrb[0].mxu0
        %v5303 = vadd.f32 0.0, %v5302
        %v5304 = vpop.f32.mrb[0].mxu0
        %v5305 = vpop.f32.mrb[0].mxu0
        %v5306 = vadd.f32 0.0, %v5305
        %v5307 = vpop.f32.mrb[0].mxu0
        %5308 = vmatprep.mubr.bf16.mxu0 0
        %5309 = vmatmul.mubr.bf16.gmra.mrb[0].mxu0 %v5247
        %v5310 = vpop.f32.mrb[0].mxu0
        %v5311 = vadd.f32 0.0, %v5310
        %v5312 = vpop.f32.mrb[0].mxu0
        %v5313 = vpop.f32.mrb[0].mxu0
        %v5314 = vadd.f32 0.0, %v5313
        %v5315 = vpop.f32.mrb[0].mxu0
        %5316 = vdwg.mxu0
        %v5317 = vld [vmem:[#allocation2] sm:$0xff]
        %v5318 = vld [vmem:[#allocation2 + $0x8] sm:$0xff]
        %v5319 = vld [vmem:[#allocation2 + $0x10] sm:$0xff]
        %v5320 = vld [vmem:[#allocation2 + $0x18] sm:$0xff]
        %v5321 = vld [vmem:[#allocation2 + $0x20] sm:$0xff]
        %v5322 = vld [vmem:[#allocation2 + $0x28] sm:$0xff]
        %v5323 = vld [vmem:[#allocation2 + $0x30] sm:$0xff]
        %v5324 = vld [vmem:[#allocation2 + $0x38] sm:$0xff]
        %v5325 = vadd.f32 %v5317, %v5287
        %v5326 = vadd.f32 %v5318, %v5290
        %v5327 = vadd.f32 %v5319, %v5295
        %v5328 = vadd.f32 %v5320, %v5298
        %v5329 = vadd.f32 %v5321, %v5303
        %v5330 = vadd.f32 %v5322, %v5306
        %v5331 = vadd.f32 %v5323, %v5311
        %v5332 = vadd.f32 %v5324, %v5314
        %5333 = vst.msk [vmem:[#allocation2] sm:$0xff] %vm1503, %v5325
        %5334 = vst.msk [vmem:[#allocation2 + $0x8] sm:$0xff] %vm1503, %v5326
        %5335 = vst.msk [vmem:[#allocation2 + $0x10] sm:$0xff] %vm1503, %v5327
        %5336 = vst.msk [vmem:[#allocation2 + $0x18] sm:$0xff] %vm1503, %v5328
        %5337 = vst.msk [vmem:[#allocation2 + $0x20] sm:$0xff] %vm1503, %v5329
        %5338 = vst.msk [vmem:[#allocation2 + $0x28] sm:$0xff] %vm1503, %v5330
        %5339 = vst.msk [vmem:[#allocation2 + $0x30] sm:$0xff] %vm1503, %v5331
        %5340 = vst.msk [vmem:[#allocation2 + $0x38] sm:$0xff] %vm1503, %v5332
        %v5341 = vld [vmem:[%s5069] sm:$0xf]
        %v5342 = vld [vmem:[%s5069 + $0x4] sm:$0x1]
        %v5343 = vld [vmem:[%s5069 + $0x8] sm:$0xf]
        %v5344 = vld [vmem:[%s5069 + $0xc] sm:$0x1]
        %v5345 = vld [vmem:[%s5069 + $0x10] sm:$0xf]
        %v5346 = vld [vmem:[%s5069 + $0x14] sm:$0x1]
        %v5347 = vld [vmem:[%s5069 + $0x18] sm:$0xf]
        %v5348 = vld [vmem:[%s5069 + $0x1c] sm:$0x1]
        %v5349 = vld [vmem:[%s5069 + $0x20] sm:$0xf]
        %v5350 = vld [vmem:[%s5069 + $0x24] sm:$0x1]
        %v5351 = vld [vmem:[%s5069 + $0x28] sm:$0xf]
        %v5352 = vld [vmem:[%s5069 + $0x2c] sm:$0x1]
        %v5353 = vld [vmem:[%s5069 + $0x30] sm:$0xf]
        %v5354 = vld [vmem:[%s5069 + $0x34] sm:$0x1]
        %v5355 = vld [vmem:[%s5069 + $0x38] sm:$0xf]
        %v5356 = vld [vmem:[%s5069 + $0x3c] sm:$0x1]
        %v5358 = vshrl.u32 %v5341, 16
        %v5360 = vrot.slane %v5358, 4
        %v5361 = vshll.u32 %v5341, 16
        %v5363 = vrot.slane %v5361, 5
        %v5364 = vor.u32 %v5360, %v5363
        %v5365 = vrot.slane %v5364, 4
        %v5367 = vshll.u32 %v5342, 16
        %v5369 = vrot.slane %v5367, 5
        %v5370 = vsel %vm1667, %v5365, %v5369
        %v5372 = vshrl.u32 %v5343, 16
        %v5374 = vrot.slane %v5372, 4
        %v5375 = vshll.u32 %v5343, 16
        %v5377 = vrot.slane %v5375, 5
        %v5378 = vor.u32 %v5374, %v5377
        %v5379 = vrot.slane %v5378, 4
        %v5381 = vshll.u32 %v5344, 16
        %v5383 = vrot.slane %v5381, 5
        %v5384 = vsel %vm1667, %v5379, %v5383
        %v5386 = vshrl.u32 %v5345, 16
        %v5388 = vrot.slane %v5386, 4
        %v5389 = vshll.u32 %v5345, 16
        %v5391 = vrot.slane %v5389, 5
        %v5392 = vor.u32 %v5388, %v5391
        %v5393 = vrot.slane %v5392, 4
        %v5395 = vshll.u32 %v5346, 16
        %v5397 = vrot.slane %v5395, 5
        %v5398 = vsel %vm1667, %v5393, %v5397
        %v5400 = vshrl.u32 %v5347, 16
        %v5402 = vrot.slane %v5400, 4
        %v5403 = vshll.u32 %v5347, 16
        %v5405 = vrot.slane %v5403, 5
        %v5406 = vor.u32 %v5402, %v5405
        %v5407 = vrot.slane %v5406, 4
        %v5409 = vshll.u32 %v5348, 16
        %v5411 = vrot.slane %v5409, 5
        %v5412 = vsel %vm1667, %v5407, %v5411
        %v5414 = vshrl.u32 %v5349, 16
        %v5416 = vrot.slane %v5414, 4
        %v5417 = vshll.u32 %v5349, 16
        %v5419 = vrot.slane %v5417, 5
        %v5420 = vor.u32 %v5416, %v5419
        %v5421 = vrot.slane %v5420, 4
        %v5423 = vshll.u32 %v5350, 16
        %v5425 = vrot.slane %v5423, 5
        %v5426 = vsel %vm1667, %v5421, %v5425
        %v5428 = vshrl.u32 %v5351, 16
        %v5430 = vrot.slane %v5428, 4
        %v5431 = vshll.u32 %v5351, 16
        %v5433 = vrot.slane %v5431, 5
        %v5434 = vor.u32 %v5430, %v5433
        %v5435 = vrot.slane %v5434, 4
        %v5437 = vshll.u32 %v5352, 16
        %v5439 = vrot.slane %v5437, 5
        %v5440 = vsel %vm1667, %v5435, %v5439
        %v5442 = vshrl.u32 %v5353, 16
        %v5444 = vrot.slane %v5442, 4
        %v5445 = vshll.u32 %v5353, 16
        %v5447 = vrot.slane %v5445, 5
        %v5448 = vor.u32 %v5444, %v5447
        %v5449 = vrot.slane %v5448, 4
        %v5451 = vshll.u32 %v5354, 16
        %v5453 = vrot.slane %v5451, 5
        %v5454 = vsel %vm1667, %v5449, %v5453
        %v5456 = vshrl.u32 %v5355, 16
        %v5458 = vrot.slane %v5456, 4
        %v5459 = vshll.u32 %v5355, 16
        %v5461 = vrot.slane %v5459, 5
        %v5462 = vor.u32 %v5458, %v5461
        %v5463 = vrot.slane %v5462, 4
        %v5465 = vshll.u32 %v5356, 16
        %v5467 = vrot.slane %v5465, 5
        %v5468 = vsel %vm1667, %v5463, %v5467
        %s5469 = scalar_lea.vmem %s1, 92
        %v5470 = vld [vmem:[%s5469] sm:$0xf]
        %v5471 = vunpack.c.l.b16 %v5370
        %v5472 = vunpack.c.l.b16 %v5384
        %v5473 = vunpack.c.l.b16 %v5398
        %v5474 = vunpack.c.l.b16 %v5412
        %v5475 = vunpack.c.l.b16 %v5426
        %v5476 = vunpack.c.l.b16 %v5440
        %v5477 = vunpack.c.l.b16 %v5454
        %v5478 = vunpack.c.l.b16 %v5468
        %v5479 = vpack.c.b16 %v5472, %v5471
        %v5480 = vpack.c.b16 %v5474, %v5473
        %v5481 = vpack.c.b16 %v5476, %v5475
        %v5482 = vpack.c.b16 %v5478, %v5477
        %v5484 = vsel %vm1421, %v5479, 0
        %v5487 = vsel %vm1421, %v5480, 0
        %v5490 = vsel %vm1421, %v5481, 0
        %v5493 = vsel %vm1421, %v5482, 0
        %v5496 = vsel %vm1434, %v5470, 0
        %5498 = vmatprep.subr.bf16.mxu0 0
        %5499 = vmatpush1.bf16.msra.mxu0 %v5496
        %5500 = vmatprep.subr.bf16.mxu0 0
        %5501 = vmatpush1.bf16.msra.mxu0 0
        %5502 = vmatprep.subr.bf16.mxu0 0
        %5503 = vmatpush1.bf16.msra.mxu0 0
        %5504 = vmatprep.subr.bf16.mxu0 0
        %5505 = vmatpush1.bf16.msra.mxu0 0
        %5506 = vmatprep.subr.bf16.mxu0 0
        %5507 = vmatpush1.bf16.msra.mxu0 0
        %5508 = vmatprep.subr.bf16.mxu0 0
        %5509 = vmatpush1.bf16.msra.mxu0 0
        %5510 = vmatprep.subr.bf16.mxu0 0
        %5511 = vmatpush1.bf16.msra.mxu0 0
        %5512 = vmatprep.subr.bf16.mxu0 0
        %5513 = vmatpush1.bf16.msra.mxu0 0
        %5514 = vmatprep.subr.bf16.mxu0 0
        %5515 = vmatpush1.bf16.msra.mxu0 0
        %5516 = vmatprep.subr.bf16.mxu0 0
        %5517 = vmatpush1.bf16.msra.mxu0 0
        %5518 = vmatprep.subr.bf16.mxu0 0
        %5519 = vmatpush1.bf16.msra.mxu0 0
        %5520 = vmatprep.subr.bf16.mxu0 0
        %5521 = vmatpush1.bf16.msra.mxu0 0
        %5522 = vmatprep.subr.bf16.mxu0 0
        %5523 = vmatpush1.bf16.msra.mxu0 0
        %5524 = vmatprep.subr.bf16.mxu0 0
        %5525 = vmatpush1.bf16.msra.mxu0 0
        %5526 = vmatprep.subr.bf16.mxu0 0
        %5527 = vmatpush1.bf16.msra.mxu0 0
        %5528 = vmatprep.subr.bf16.mxu0 0
        %5529 = vmatpush1.bf16.msra.mxu0 0
        %5530 = vmatprep.mubr.bf16.mxu0 0
        %5531 = vmatmul.mubr.bf16.gmra.mrb[0].mxu0 %v5484
        %v5532 = vpop.f32.mrb[0].mxu0
        %v5533 = vadd.f32 0.0, %v5532
        %v5534 = vpop.f32.mrb[0].mxu0
        %v5535 = vpop.f32.mrb[0].mxu0
        %v5536 = vadd.f32 0.0, %v5535
        %v5537 = vpop.f32.mrb[0].mxu0
        %5538 = vmatprep.mubr.bf16.mxu0 0
        %5539 = vmatmul.mubr.bf16.gmra.mrb[0].mxu0 %v5487
        %v5540 = vpop.f32.mrb[0].mxu0
        %v5541 = vadd.f32 0.0, %v5540
        %v5542 = vpop.f32.mrb[0].mxu0
        %v5543 = vpop.f32.mrb[0].mxu0
        %v5544 = vadd.f32 0.0, %v5543
        %v5545 = vpop.f32.mrb[0].mxu0
        %5546 = vmatprep.mubr.bf16.mxu0 0
        %5547 = vmatmul.mubr.bf16.gmra.mrb[0].mxu0 %v5490
        %v5548 = vpop.f32.mrb[0].mxu0
        %v5549 = vadd.f32 0.0, %v5548
        %v5550 = vpop.f32.mrb[0].mxu0
        %v5551 = vpop.f32.mrb[0].mxu0
        %v5552 = vadd.f32 0.0, %v5551
        %v5553 = vpop.f32.mrb[0].mxu0
        %5554 = vmatprep.mubr.bf16.mxu0 0
        %5555 = vmatmul.mubr.bf16.gmra.mrb[0].mxu0 %v5493
        %v5556 = vpop.f32.mrb[0].mxu0
        %v5557 = vadd.f32 0.0, %v5556
        %v5558 = vpop.f32.mrb[0].mxu0
        %v5559 = vpop.f32.mrb[0].mxu0
        %v5560 = vadd.f32 0.0, %v5559
        %v5561 = vpop.f32.mrb[0].mxu0
        %5562 = vdwg.mxu0
        %v5563 = vld [vmem:[#allocation2] sm:$0xff]
        %v5564 = vld [vmem:[#allocation2 + $0x8] sm:$0xff]
        %v5565 = vld [vmem:[#allocation2 + $0x10] sm:$0xff]
        %v5566 = vld [vmem:[#allocation2 + $0x18] sm:$0xff]
        %v5567 = vld [vmem:[#allocation2 + $0x20] sm:$0xff]
        %v5568 = vld [vmem:[#allocation2 + $0x28] sm:$0xff]
        %v5569 = vld [vmem:[#allocation2 + $0x30] sm:$0xff]
        %v5570 = vld [vmem:[#allocation2 + $0x38] sm:$0xff]
        %v5571 = vadd.f32 %v5563, %v5533
        %v5572 = vadd.f32 %v5564, %v5536
        %v5573 = vadd.f32 %v5565, %v5541
        %v5574 = vadd.f32 %v5566, %v5544
        %v5575 = vadd.f32 %v5567, %v5549
        %v5576 = vadd.f32 %v5568, %v5552
        %v5577 = vadd.f32 %v5569, %v5557
        %v5578 = vadd.f32 %v5570, %v5560
        %5579 = vst.msk [vmem:[#allocation2] sm:$0xff] %vm1503, %v5571
        %5580 = vst.msk [vmem:[#allocation2 + $0x8] sm:$0xff] %vm1503, %v5572
        %5581 = vst.msk [vmem:[#allocation2 + $0x10] sm:$0xff] %vm1503, %v5573
        %5582 = vst.msk [vmem:[#allocation2 + $0x18] sm:$0xff] %vm1503, %v5574
        %5583 = vst.msk [vmem:[#allocation2 + $0x20] sm:$0xff] %vm1503, %v5575
        %5584 = vst.msk [vmem:[#allocation2 + $0x28] sm:$0xff] %vm1503, %v5576
        %5585 = vst.msk [vmem:[#allocation2 + $0x30] sm:$0xff] %vm1503, %v5577
        %5586 = vst.msk [vmem:[#allocation2 + $0x38] sm:$0xff] %vm1503, %v5578
        %s5587 = sadd.s32 %s2419, 36
        %s5588 = smul.addr %s5587, 4
        %s5589 = scalar_lea.vmem %s1349, %s5588 [#allocation3]
        %v5590 = vld [vmem:[%s5589] sm:$0xf]
        %v5591 = vld [vmem:[%s5589 + $0x8] sm:$0xf]
        %v5592 = vld [vmem:[%s5589 + $0x10] sm:$0xf]
        %v5593 = vld [vmem:[%s5589 + $0x18] sm:$0xf]
        %v5594 = vld [vmem:[%s5589 + $0x20] sm:$0xf]
        %v5595 = vld [vmem:[%s5589 + $0x28] sm:$0xf]
        %v5596 = vld [vmem:[%s5589 + $0x30] sm:$0xf]
        %v5597 = vld [vmem:[%s5589 + $0x38] sm:$0xf]
        %s5598 = scalar_lea.vmem %s1, 96
        %v5599 = vld [vmem:[%s5598] sm:$0xf]
        %v5608 = vunpack.c.l.b16 %v5590
        %v5609 = vunpack.c.l.b16 %v5591
        %v5610 = vunpack.c.l.b16 %v5592
        %v5611 = vunpack.c.l.b16 %v5593
        %v5612 = vunpack.c.l.b16 %v5594
        %v5613 = vunpack.c.l.b16 %v5595
        %v5614 = vunpack.c.l.b16 %v5596
        %v5615 = vunpack.c.l.b16 %v5597
        %v5616 = vpack.c.b16 %v5609, %v5608
        %v5617 = vpack.c.b16 %v5611, %v5610
        %v5618 = vpack.c.b16 %v5613, %v5612
        %v5619 = vpack.c.b16 %v5615, %v5614
        %v5621 = vsel %vm1421, %v5616, 0
        %v5624 = vsel %vm1421, %v5617, 0
        %v5627 = vsel %vm1421, %v5618, 0
        %v5630 = vsel %vm1421, %v5619, 0
        %v5633 = vsel %vm1434, %v5599, 0
        %5635 = vmatprep.subr.bf16.mxu0 0
        %5636 = vmatpush1.bf16.msra.mxu0 %v5633
        %5637 = vmatprep.subr.bf16.mxu0 0
        %5638 = vmatpush1.bf16.msra.mxu0 0
        %5639 = vmatprep.subr.bf16.mxu0 0
        %5640 = vmatpush1.bf16.msra.mxu0 0
        %5641 = vmatprep.subr.bf16.mxu0 0
        %5642 = vmatpush1.bf16.msra.mxu0 0
        %5643 = vmatprep.subr.bf16.mxu0 0
        %5644 = vmatpush1.bf16.msra.mxu0 0
        %5645 = vmatprep.subr.bf16.mxu0 0
        %5646 = vmatpush1.bf16.msra.mxu0 0
        %5647 = vmatprep.subr.bf16.mxu0 0
        %5648 = vmatpush1.bf16.msra.mxu0 0
        %5649 = vmatprep.subr.bf16.mxu0 0
        %5650 = vmatpush1.bf16.msra.mxu0 0
        %5651 = vmatprep.subr.bf16.mxu0 0
        %5652 = vmatpush1.bf16.msra.mxu0 0
        %5653 = vmatprep.subr.bf16.mxu0 0
        %5654 = vmatpush1.bf16.msra.mxu0 0
        %5655 = vmatprep.subr.bf16.mxu0 0
        %5656 = vmatpush1.bf16.msra.mxu0 0
        %5657 = vmatprep.subr.bf16.mxu0 0
        %5658 = vmatpush1.bf16.msra.mxu0 0
        %5659 = vmatprep.subr.bf16.mxu0 0
        %5660 = vmatpush1.bf16.msra.mxu0 0
        %5661 = vmatprep.subr.bf16.mxu0 0
        %5662 = vmatpush1.bf16.msra.mxu0 0
        %5663 = vmatprep.subr.bf16.mxu0 0
        %5664 = vmatpush1.bf16.msra.mxu0 0
        %5665 = vmatprep.subr.bf16.mxu0 0
        %5666 = vmatpush1.bf16.msra.mxu0 0
        %5667 = vmatprep.mubr.bf16.mxu0 0
        %5668 = vmatmul.mubr.bf16.gmra.mrb[0].mxu0 %v5621
        %v5669 = vpop.f32.mrb[0].mxu0
        %v5670 = vadd.f32 0.0, %v5669
        %v5671 = vpop.f32.mrb[0].mxu0
        %v5672 = vpop.f32.mrb[0].mxu0
        %v5673 = vadd.f32 0.0, %v5672
        %v5674 = vpop.f32.mrb[0].mxu0
        %5675 = vmatprep.mubr.bf16.mxu0 0
        %5676 = vmatmul.mubr.bf16.gmra.mrb[0].mxu0 %v5624
        %v5677 = vpop.f32.mrb[0].mxu0
        %v5678 = vadd.f32 0.0, %v5677
        %v5679 = vpop.f32.mrb[0].mxu0
        %v5680 = vpop.f32.mrb[0].mxu0
        %v5681 = vadd.f32 0.0, %v5680
        %v5682 = vpop.f32.mrb[0].mxu0
        %5683 = vmatprep.mubr.bf16.mxu0 0
        %5684 = vmatmul.mubr.bf16.gmra.mrb[0].mxu0 %v5627
        %v5685 = vpop.f32.mrb[0].mxu0
        %v5686 = vadd.f32 0.0, %v5685
        %v5687 = vpop.f32.mrb[0].mxu0
        %v5688 = vpop.f32.mrb[0].mxu0
        %v5689 = vadd.f32 0.0, %v5688
        %v5690 = vpop.f32.mrb[0].mxu0
        %5691 = vmatprep.mubr.bf16.mxu0 0
        %5692 = vmatmul.mubr.bf16.gmra.mrb[0].mxu0 %v5630
        %v5693 = vpop.f32.mrb[0].mxu0
        %v5694 = vadd.f32 0.0, %v5693
        %v5695 = vpop.f32.mrb[0].mxu0
        %v5696 = vpop.f32.mrb[0].mxu0
        %v5697 = vadd.f32 0.0, %v5696
        %v5698 = vpop.f32.mrb[0].mxu0
        %5699 = vdwg.mxu0
        %v5700 = vld [vmem:[#allocation2] sm:$0xff]
        %v5701 = vld [vmem:[#allocation2 + $0x8] sm:$0xff]
        %v5702 = vld [vmem:[#allocation2 + $0x10] sm:$0xff]
        %v5703 = vld [vmem:[#allocation2 + $0x18] sm:$0xff]
        %v5704 = vld [vmem:[#allocation2 + $0x20] sm:$0xff]
        %v5705 = vld [vmem:[#allocation2 + $0x28] sm:$0xff]
        %v5706 = vld [vmem:[#allocation2 + $0x30] sm:$0xff]
        %v5707 = vld [vmem:[#allocation2 + $0x38] sm:$0xff]
        %v5708 = vadd.f32 %v5700, %v5670
        %v5709 = vadd.f32 %v5701, %v5673
        %v5710 = vadd.f32 %v5702, %v5678
        %v5711 = vadd.f32 %v5703, %v5681
        %v5712 = vadd.f32 %v5704, %v5686
        %v5713 = vadd.f32 %v5705, %v5689
        %v5714 = vadd.f32 %v5706, %v5694
        %v5715 = vadd.f32 %v5707, %v5697
        %5716 = vst.msk [vmem:[#allocation2] sm:$0xff] %vm1503, %v5708
        %5717 = vst.msk [vmem:[#allocation2 + $0x8] sm:$0xff] %vm1503, %v5709
        %5718 = vst.msk [vmem:[#allocation2 + $0x10] sm:$0xff] %vm1503, %v5710
        %5719 = vst.msk [vmem:[#allocation2 + $0x18] sm:$0xff] %vm1503, %v5711
        %5720 = vst.msk [vmem:[#allocation2 + $0x20] sm:$0xff] %vm1503, %v5712
        %5721 = vst.msk [vmem:[#allocation2 + $0x28] sm:$0xff] %vm1503, %v5713
        %5722 = vst.msk [vmem:[#allocation2 + $0x30] sm:$0xff] %vm1503, %v5714
        %5723 = vst.msk [vmem:[#allocation2 + $0x38] sm:$0xff] %vm1503, %v5715
        %s5724 = sadd.s32 %s2419, 108
        %s5725 = smul.addr %s5724, 4
        %s5726 = scalar_lea.vmem %s1349, %s5725 [#allocation3]
        %v5727 = vld [vmem:[%s5726] sm:$0xf]
        %v5728 = vld [vmem:[%s5726 + $0x8] sm:$0xf]
        %v5729 = vld [vmem:[%s5726 + $0x10] sm:$0xf]
        %v5730 = vld [vmem:[%s5726 + $0x18] sm:$0xf]
        %v5731 = vld [vmem:[%s5726 + $0x20] sm:$0xf]
        %v5732 = vld [vmem:[%s5726 + $0x28] sm:$0xf]
        %v5733 = vld [vmem:[%s5726 + $0x30] sm:$0xf]
        %v5734 = vld [vmem:[%s5726 + $0x38] sm:$0xf]
        %s5735 = scalar_lea.vmem %s1, 100
        %v5736 = vld [vmem:[%s5735] sm:$0xf]
        %v5745 = vunpack.c.l.b16 %v5727
        %v5746 = vunpack.c.l.b16 %v5728
        %v5747 = vunpack.c.l.b16 %v5729
        %v5748 = vunpack.c.l.b16 %v5730
        %v5749 = vunpack.c.l.b16 %v5731
        %v5750 = vunpack.c.l.b16 %v5732
        %v5751 = vunpack.c.l.b16 %v5733
        %v5752 = vunpack.c.l.b16 %v5734
        %v5753 = vpack.c.b16 %v5746, %v5745
        %v5754 = vpack.c.b16 %v5748, %v5747
        %v5755 = vpack.c.b16 %v5750, %v5749
        %v5756 = vpack.c.b16 %v5752, %v5751
        %v5758 = vsel %vm1421, %v5753, 0
        %v5761 = vsel %vm1421, %v5754, 0
        %v5764 = vsel %vm1421, %v5755, 0
        %v5767 = vsel %vm1421, %v5756, 0
        %v5770 = vsel %vm1434, %v5736, 0
        %5772 = vmatprep.subr.bf16.mxu0 0
        %5773 = vmatpush1.bf16.msra.mxu0 %v5770
        %5774 = vmatprep.subr.bf16.mxu0 0
        %5775 = vmatpush1.bf16.msra.mxu0 0
        %5776 = vmatprep.subr.bf16.mxu0 0
        %5777 = vmatpush1.bf16.msra.mxu0 0
        %5778 = vmatprep.subr.bf16.mxu0 0
        %5779 = vmatpush1.bf16.msra.mxu0 0
        %5780 = vmatprep.subr.bf16.mxu0 0
        %5781 = vmatpush1.bf16.msra.mxu0 0
        %5782 = vmatprep.subr.bf16.mxu0 0
        %5783 = vmatpush1.bf16.msra.mxu0 0
        %5784 = vmatprep.subr.bf16.mxu0 0
        %5785 = vmatpush1.bf16.msra.mxu0 0
        %5786 = vmatprep.subr.bf16.mxu0 0
        %5787 = vmatpush1.bf16.msra.mxu0 0
        %5788 = vmatprep.subr.bf16.mxu0 0
        %5789 = vmatpush1.bf16.msra.mxu0 0
        %5790 = vmatprep.subr.bf16.mxu0 0
        %5791 = vmatpush1.bf16.msra.mxu0 0
        %5792 = vmatprep.subr.bf16.mxu0 0
        %5793 = vmatpush1.bf16.msra.mxu0 0
        %5794 = vmatprep.subr.bf16.mxu0 0
        %5795 = vmatpush1.bf16.msra.mxu0 0
        %5796 = vmatprep.subr.bf16.mxu0 0
        %5797 = vmatpush1.bf16.msra.mxu0 0
        %5798 = vmatprep.subr.bf16.mxu0 0
        %5799 = vmatpush1.bf16.msra.mxu0 0
        %5800 = vmatprep.subr.bf16.mxu0 0
        %5801 = vmatpush1.bf16.msra.mxu0 0
        %5802 = vmatprep.subr.bf16.mxu0 0
        %5803 = vmatpush1.bf16.msra.mxu0 0
        %5804 = vmatprep.mubr.bf16.mxu0 0
        %5805 = vmatmul.mubr.bf16.gmra.mrb[0].mxu0 %v5758
        %v5806 = vpop.f32.mrb[0].mxu0
        %v5807 = vadd.f32 0.0, %v5806
        %v5808 = vpop.f32.mrb[0].mxu0
        %v5809 = vpop.f32.mrb[0].mxu0
        %v5810 = vadd.f32 0.0, %v5809
        %v5811 = vpop.f32.mrb[0].mxu0
        %5812 = vmatprep.mubr.bf16.mxu0 0
        %5813 = vmatmul.mubr.bf16.gmra.mrb[0].mxu0 %v5761
        %v5814 = vpop.f32.mrb[0].mxu0
        %v5815 = vadd.f32 0.0, %v5814
        %v5816 = vpop.f32.mrb[0].mxu0
        %v5817 = vpop.f32.mrb[0].mxu0
        %v5818 = vadd.f32 0.0, %v5817
        %v5819 = vpop.f32.mrb[0].mxu0
        %5820 = vmatprep.mubr.bf16.mxu0 0
        %5821 = vmatmul.mubr.bf16.gmra.mrb[0].mxu0 %v5764
        %v5822 = vpop.f32.mrb[0].mxu0
        %v5823 = vadd.f32 0.0, %v5822
        %v5824 = vpop.f32.mrb[0].mxu0
        %v5825 = vpop.f32.mrb[0].mxu0
        %v5826 = vadd.f32 0.0, %v5825
        %v5827 = vpop.f32.mrb[0].mxu0
        %5828 = vmatprep.mubr.bf16.mxu0 0
        %5829 = vmatmul.mubr.bf16.gmra.mrb[0].mxu0 %v5767
        %v5830 = vpop.f32.mrb[0].mxu0
        %v5831 = vadd.f32 0.0, %v5830
        %v5832 = vpop.f32.mrb[0].mxu0
        %v5833 = vpop.f32.mrb[0].mxu0
        %v5834 = vadd.f32 0.0, %v5833
        %v5835 = vpop.f32.mrb[0].mxu0
        %5836 = vdwg.mxu0
        %v5837 = vld [vmem:[#allocation2] sm:$0xff]
        %v5838 = vld [vmem:[#allocation2 + $0x8] sm:$0xff]
        %v5839 = vld [vmem:[#allocation2 + $0x10] sm:$0xff]
        %v5840 = vld [vmem:[#allocation2 + $0x18] sm:$0xff]
        %v5841 = vld [vmem:[#allocation2 + $0x20] sm:$0xff]
        %v5842 = vld [vmem:[#allocation2 + $0x28] sm:$0xff]
        %v5843 = vld [vmem:[#allocation2 + $0x30] sm:$0xff]
        %v5844 = vld [vmem:[#allocation2 + $0x38] sm:$0xff]
        %v5845 = vadd.f32 %v5837, %v5807
        %v5846 = vadd.f32 %v5838, %v5810
        %v5847 = vadd.f32 %v5839, %v5815
        %v5848 = vadd.f32 %v5840, %v5818
        %v5849 = vadd.f32 %v5841, %v5823
        %v5850 = vadd.f32 %v5842, %v5826
        %v5851 = vadd.f32 %v5843, %v5831
        %v5852 = vadd.f32 %v5844, %v5834
        %5853 = vst.msk [vmem:[#allocation2] sm:$0xff] %vm1503, %v5845
        %5854 = vst.msk [vmem:[#allocation2 + $0x8] sm:$0xff] %vm1503, %v5846
        %5855 = vst.msk [vmem:[#allocation2 + $0x10] sm:$0xff] %vm1503, %v5847
        %5856 = vst.msk [vmem:[#allocation2 + $0x18] sm:$0xff] %vm1503, %v5848
        %5857 = vst.msk [vmem:[#allocation2 + $0x20] sm:$0xff] %vm1503, %v5849
        %5858 = vst.msk [vmem:[#allocation2 + $0x28] sm:$0xff] %vm1503, %v5850
        %5859 = vst.msk [vmem:[#allocation2 + $0x30] sm:$0xff] %vm1503, %v5851
        %5860 = vst.msk [vmem:[#allocation2 + $0x38] sm:$0xff] %vm1503, %v5852
        %v5861 = vld [vmem:[%s5589] sm:$0xf]
        %v5862 = vld [vmem:[%s5589 + $0x4] sm:$0x1]
        %v5863 = vld [vmem:[%s5589 + $0x8] sm:$0xf]
        %v5864 = vld [vmem:[%s5589 + $0xc] sm:$0x1]
        %v5865 = vld [vmem:[%s5589 + $0x10] sm:$0xf]
        %v5866 = vld [vmem:[%s5589 + $0x14] sm:$0x1]
        %v5867 = vld [vmem:[%s5589 + $0x18] sm:$0xf]
        %v5868 = vld [vmem:[%s5589 + $0x1c] sm:$0x1]
        %v5869 = vld [vmem:[%s5589 + $0x20] sm:$0xf]
        %v5870 = vld [vmem:[%s5589 + $0x24] sm:$0x1]
        %v5871 = vld [vmem:[%s5589 + $0x28] sm:$0xf]
        %v5872 = vld [vmem:[%s5589 + $0x2c] sm:$0x1]
        %v5873 = vld [vmem:[%s5589 + $0x30] sm:$0xf]
        %v5874 = vld [vmem:[%s5589 + $0x34] sm:$0x1]
        %v5875 = vld [vmem:[%s5589 + $0x38] sm:$0xf]
        %v5876 = vld [vmem:[%s5589 + $0x3c] sm:$0x1]
        %v5878 = vshrl.u32 %v5861, 16
        %v5880 = vrot.slane %v5878, 4
        %v5881 = vshll.u32 %v5861, 16
        %v5883 = vrot.slane %v5881, 5
        %v5884 = vor.u32 %v5880, %v5883
        %v5885 = vrot.slane %v5884, 4
        %v5887 = vshll.u32 %v5862, 16
        %v5889 = vrot.slane %v5887, 5
        %v5890 = vsel %vm1667, %v5885, %v5889
        %v5892 = vshrl.u32 %v5863, 16
        %v5894 = vrot.slane %v5892, 4
        %v5895 = vshll.u32 %v5863, 16
        %v5897 = vrot.slane %v5895, 5
        %v5898 = vor.u32 %v5894, %v5897
        %v5899 = vrot.slane %v5898, 4
        %v5901 = vshll.u32 %v5864, 16
        %v5903 = vrot.slane %v5901, 5
        %v5904 = vsel %vm1667, %v5899, %v5903
        %v5906 = vshrl.u32 %v5865, 16
        %v5908 = vrot.slane %v5906, 4
        %v5909 = vshll.u32 %v5865, 16
        %v5911 = vrot.slane %v5909, 5
        %v5912 = vor.u32 %v5908, %v5911
        %v5913 = vrot.slane %v5912, 4
        %v5915 = vshll.u32 %v5866, 16
        %v5917 = vrot.slane %v5915, 5
        %v5918 = vsel %vm1667, %v5913, %v5917
        %v5920 = vshrl.u32 %v5867, 16
        %v5922 = vrot.slane %v5920, 4
        %v5923 = vshll.u32 %v5867, 16
        %v5925 = vrot.slane %v5923, 5
        %v5926 = vor.u32 %v5922, %v5925
        %v5927 = vrot.slane %v5926, 4
        %v5929 = vshll.u32 %v5868, 16
        %v5931 = vrot.slane %v5929, 5
        %v5932 = vsel %vm1667, %v5927, %v5931
        %v5934 = vshrl.u32 %v5869, 16
        %v5936 = vrot.slane %v5934, 4
        %v5937 = vshll.u32 %v5869, 16
        %v5939 = vrot.slane %v5937, 5
        %v5940 = vor.u32 %v5936, %v5939
        %v5941 = vrot.slane %v5940, 4
        %v5943 = vshll.u32 %v5870, 16
        %v5945 = vrot.slane %v5943, 5
        %v5946 = vsel %vm1667, %v5941, %v5945
        %v5948 = vshrl.u32 %v5871, 16
        %v5950 = vrot.slane %v5948, 4
        %v5951 = vshll.u32 %v5871, 16
        %v5953 = vrot.slane %v5951, 5
        %v5954 = vor.u32 %v5950, %v5953
        %v5955 = vrot.slane %v5954, 4
        %v5957 = vshll.u32 %v5872, 16
        %v5959 = vrot.slane %v5957, 5
        %v5960 = vsel %vm1667, %v5955, %v5959
        %v5962 = vshrl.u32 %v5873, 16
        %v5964 = vrot.slane %v5962, 4
        %v5965 = vshll.u32 %v5873, 16
        %v5967 = vrot.slane %v5965, 5
        %v5968 = vor.u32 %v5964, %v5967
        %v5969 = vrot.slane %v5968, 4
        %v5971 = vshll.u32 %v5874, 16
        %v5973 = vrot.slane %v5971, 5
        %v5974 = vsel %vm1667, %v5969, %v5973
        %v5976 = vshrl.u32 %v5875, 16
        %v5978 = vrot.slane %v5976, 4
        %v5979 = vshll.u32 %v5875, 16
        %v5981 = vrot.slane %v5979, 5
        %v5982 = vor.u32 %v5978, %v5981
        %v5983 = vrot.slane %v5982, 4
        %v5985 = vshll.u32 %v5876, 16
        %v5987 = vrot.slane %v5985, 5
        %v5988 = vsel %vm1667, %v5983, %v5987
        %s5989 = scalar_lea.vmem %s1, 104
        %v5990 = vld [vmem:[%s5989] sm:$0xf]
        %v5991 = vunpack.c.l.b16 %v5890
        %v5992 = vunpack.c.l.b16 %v5904
        %v5993 = vunpack.c.l.b16 %v5918
        %v5994 = vunpack.c.l.b16 %v5932
        %v5995 = vunpack.c.l.b16 %v5946
        %v5996 = vunpack.c.l.b16 %v5960
        %v5997 = vunpack.c.l.b16 %v5974
        %v5998 = vunpack.c.l.b16 %v5988
        %v5999 = vpack.c.b16 %v5992, %v5991
        %v6000 = vpack.c.b16 %v5994, %v5993
        %v6001 = vpack.c.b16 %v5996, %v5995
        %v6002 = vpack.c.b16 %v5998, %v5997
        %v6004 = vsel %vm1421, %v5999, 0
        %v6007 = vsel %vm1421, %v6000, 0
        %v6010 = vsel %vm1421, %v6001, 0
        %v6013 = vsel %vm1421, %v6002, 0
        %v6016 = vsel %vm1434, %v5990, 0
        %6018 = vmatprep.subr.bf16.mxu0 0
        %6019 = vmatpush1.bf16.msra.mxu0 %v6016
        %6020 = vmatprep.subr.bf16.mxu0 0
        %6021 = vmatpush1.bf16.msra.mxu0 0
        %6022 = vmatprep.subr.bf16.mxu0 0
        %6023 = vmatpush1.bf16.msra.mxu0 0
        %6024 = vmatprep.subr.bf16.mxu0 0
        %6025 = vmatpush1.bf16.msra.mxu0 0
        %6026 = vmatprep.subr.bf16.mxu0 0
        %6027 = vmatpush1.bf16.msra.mxu0 0
        %6028 = vmatprep.subr.bf16.mxu0 0
        %6029 = vmatpush1.bf16.msra.mxu0 0
        %6030 = vmatprep.subr.bf16.mxu0 0
        %6031 = vmatpush1.bf16.msra.mxu0 0
        %6032 = vmatprep.subr.bf16.mxu0 0
        %6033 = vmatpush1.bf16.msra.mxu0 0
        %6034 = vmatprep.subr.bf16.mxu0 0
        %6035 = vmatpush1.bf16.msra.mxu0 0
        %6036 = vmatprep.subr.bf16.mxu0 0
        %6037 = vmatpush1.bf16.msra.mxu0 0
        %6038 = vmatprep.subr.bf16.mxu0 0
        %6039 = vmatpush1.bf16.msra.mxu0 0
        %6040 = vmatprep.subr.bf16.mxu0 0
        %6041 = vmatpush1.bf16.msra.mxu0 0
        %6042 = vmatprep.subr.bf16.mxu0 0
        %6043 = vmatpush1.bf16.msra.mxu0 0
        %6044 = vmatprep.subr.bf16.mxu0 0
        %6045 = vmatpush1.bf16.msra.mxu0 0
        %6046 = vmatprep.subr.bf16.mxu0 0
        %6047 = vmatpush1.bf16.msra.mxu0 0
        %6048 = vmatprep.subr.bf16.mxu0 0
        %6049 = vmatpush1.bf16.msra.mxu0 0
        %6050 = vmatprep.mubr.bf16.mxu0 0
        %6051 = vmatmul.mubr.bf16.gmra.mrb[0].mxu0 %v6004
        %v6052 = vpop.f32.mrb[0].mxu0
        %v6053 = vadd.f32 0.0, %v6052
        %v6054 = vpop.f32.mrb[0].mxu0
        %v6055 = vpop.f32.mrb[0].mxu0
        %v6056 = vadd.f32 0.0, %v6055
        %v6057 = vpop.f32.mrb[0].mxu0
        %6058 = vmatprep.mubr.bf16.mxu0 0
        %6059 = vmatmul.mubr.bf16.gmra.mrb[0].mxu0 %v6007
        %v6060 = vpop.f32.mrb[0].mxu0
        %v6061 = vadd.f32 0.0, %v6060
        %v6062 = vpop.f32.mrb[0].mxu0
        %v6063 = vpop.f32.mrb[0].mxu0
        %v6064 = vadd.f32 0.0, %v6063
        %v6065 = vpop.f32.mrb[0].mxu0
        %6066 = vmatprep.mubr.bf16.mxu0 0
        %6067 = vmatmul.mubr.bf16.gmra.mrb[0].mxu0 %v6010
        %v6068 = vpop.f32.mrb[0].mxu0
        %v6069 = vadd.f32 0.0, %v6068
        %v6070 = vpop.f32.mrb[0].mxu0
        %v6071 = vpop.f32.mrb[0].mxu0
        %v6072 = vadd.f32 0.0, %v6071
        %v6073 = vpop.f32.mrb[0].mxu0
        %6074 = vmatprep.mubr.bf16.mxu0 0
        %6075 = vmatmul.mubr.bf16.gmra.mrb[0].mxu0 %v6013
        %v6076 = vpop.f32.mrb[0].mxu0
        %v6077 = vadd.f32 0.0, %v6076
        %v6078 = vpop.f32.mrb[0].mxu0
        %v6079 = vpop.f32.mrb[0].mxu0
        %v6080 = vadd.f32 0.0, %v6079
        %v6081 = vpop.f32.mrb[0].mxu0
        %6082 = vdwg.mxu0
        %v6083 = vld [vmem:[#allocation2] sm:$0xff]
        %v6084 = vld [vmem:[#allocation2 + $0x8] sm:$0xff]
        %v6085 = vld [vmem:[#allocation2 + $0x10] sm:$0xff]
        %v6086 = vld [vmem:[#allocation2 + $0x18] sm:$0xff]
        %v6087 = vld [vmem:[#allocation2 + $0x20] sm:$0xff]
        %v6088 = vld [vmem:[#allocation2 + $0x28] sm:$0xff]
        %v6089 = vld [vmem:[#allocation2 + $0x30] sm:$0xff]
        %v6090 = vld [vmem:[#allocation2 + $0x38] sm:$0xff]
        %v6091 = vadd.f32 %v6083, %v6053
        %v6092 = vadd.f32 %v6084, %v6056
        %v6093 = vadd.f32 %v6085, %v6061
        %v6094 = vadd.f32 %v6086, %v6064
        %v6095 = vadd.f32 %v6087, %v6069
        %v6096 = vadd.f32 %v6088, %v6072
        %v6097 = vadd.f32 %v6089, %v6077
        %v6098 = vadd.f32 %v6090, %v6080
        %6099 = vst.msk [vmem:[#allocation2] sm:$0xff] %vm1503, %v6091
        %6100 = vst.msk [vmem:[#allocation2 + $0x8] sm:$0xff] %vm1503, %v6092
        %6101 = vst.msk [vmem:[#allocation2 + $0x10] sm:$0xff] %vm1503, %v6093
        %6102 = vst.msk [vmem:[#allocation2 + $0x18] sm:$0xff] %vm1503, %v6094
        %6103 = vst.msk [vmem:[#allocation2 + $0x20] sm:$0xff] %vm1503, %v6095
        %6104 = vst.msk [vmem:[#allocation2 + $0x28] sm:$0xff] %vm1503, %v6096
        %6105 = vst.msk [vmem:[#allocation2 + $0x30] sm:$0xff] %vm1503, %v6097
        %6106 = vst.msk [vmem:[#allocation2 + $0x38] sm:$0xff] %vm1503, %v6098
        %v6107 = vld [vmem:[#allocation2] sm:$0xff]
        %v6108 = vld [vmem:[#allocation2 + $0x8] sm:$0xff]
        %v6109 = vld [vmem:[#allocation2 + $0x10] sm:$0xff]
        %v6110 = vld [vmem:[#allocation2 + $0x18] sm:$0xff]
        %v6111 = vld [vmem:[#allocation2 + $0x20] sm:$0xff]
        %v6112 = vld [vmem:[#allocation2 + $0x28] sm:$0xff]
        %v6113 = vld [vmem:[#allocation2 + $0x30] sm:$0xff]
        %v6114 = vld [vmem:[#allocation2 + $0x38] sm:$0xff]
        %s6115 = scalar_lea.vmem %s2, 2
        %v6116 = vld [vmem:[%s6115] sm:$0x1]
        %v6118 = vlaneseq
        %v6119 = vshrl.u32 %v6118, 7
        %v6120 = vsub.s32 0, %v6119
        %v6121 = vrot.slane %v6116, %v6120
        %v6123 = vadd.f32 %v6107, %v6121
        %v6124 = vadd.f32 %v6108, %v6121
        %v6125 = vadd.f32 %v6109, %v6121
        %v6126 = vadd.f32 %v6110, %v6121
        %v6127 = vadd.f32 %v6111, %v6121
        %v6128 = vadd.f32 %v6112, %v6121
        %v6129 = vadd.f32 %v6113, %v6121
        %v6130 = vadd.f32 %v6114, %v6121
        %v6131 = vmax.f32 %v6123, 0.0
        %v6132 = vmax.f32 %v6124, 0.0
        %v6133 = vmax.f32 %v6125, 0.0
        %v6134 = vmax.f32 %v6126, 0.0
        %v6135 = vmax.f32 %v6127, 0.0
        %v6136 = vmax.f32 %v6128, 0.0
        %v6137 = vmax.f32 %v6129, 0.0
        %v6138 = vmax.f32 %v6130, 0.0
        %s6139 = scalar_lea.vmem %s1384, 128
        %6140 = vst.msk [vmem:[%s6139] sm:$0xff] %vm1503, %v6131
        %6141 = vst.msk [vmem:[%s6139 + $0x8] sm:$0xff] %vm1503, %v6132
        %6142 = vst.msk [vmem:[%s6139 + $0x10] sm:$0xff] %vm1503, %v6133
        %6143 = vst.msk [vmem:[%s6139 + $0x18] sm:$0xff] %vm1503, %v6134
        %6144 = vst.msk [vmem:[%s6139 + $0x20] sm:$0xff] %vm1503, %v6135
        %6145 = vst.msk [vmem:[%s6139 + $0x28] sm:$0xff] %vm1503, %v6136
        %6146 = vst.msk [vmem:[%s6139 + $0x30] sm:$0xff] %vm1503, %v6137
        %6147 = vst.msk [vmem:[%s6139 + $0x38] sm:$0xff] %vm1503, %v6138
        %s6148 = sadd.s32 %s1389, 54
        %s6149 = smul.addr %s6148, 4
        %s6150 = scalar_lea.vmem %s1349, %s6149 [#allocation3]
        %v6151 = vld [vmem:[%s6150] sm:$0xf]
        %v6152 = vld [vmem:[%s6150 + $0x8] sm:$0xf]
        %v6153 = vld [vmem:[%s6150 + $0x10] sm:$0xf]
        %v6154 = vld [vmem:[%s6150 + $0x18] sm:$0xf]
        %v6155 = vld [vmem:[%s6150 + $0x20] sm:$0xf]
        %v6156 = vld [vmem:[%s6150 + $0x28] sm:$0xf]
        %v6157 = vld [vmem:[%s6150 + $0x30] sm:$0xf]
        %v6158 = vld [vmem:[%s6150 + $0x38] sm:$0xf]
        %s6159 = scalar_lea.vmem %s1, 108
        %v6160 = vld [vmem:[%s6159] sm:$0xf]
        %v6169 = vunpack.c.l.b16 %v6151
        %v6170 = vunpack.c.l.b16 %v6152
        %v6171 = vunpack.c.l.b16 %v6153
        %v6172 = vunpack.c.l.b16 %v6154
        %v6173 = vunpack.c.l.b16 %v6155
        %v6174 = vunpack.c.l.b16 %v6156
        %v6175 = vunpack.c.l.b16 %v6157
        %v6176 = vunpack.c.l.b16 %v6158
        %v6177 = vpack.c.b16 %v6170, %v6169
        %v6178 = vpack.c.b16 %v6172, %v6171
        %v6179 = vpack.c.b16 %v6174, %v6173
        %v6180 = vpack.c.b16 %v6176, %v6175
        %v6182 = vsel %vm1421, %v6177, 0
        %v6185 = vsel %vm1421, %v6178, 0
        %v6188 = vsel %vm1421, %v6179, 0
        %v6191 = vsel %vm1421, %v6180, 0
        %v6194 = vsel %vm1434, %v6160, 0
        %6196 = vmatprep.subr.bf16.mxu0 0
        %6197 = vmatpush1.bf16.msra.mxu0 %v6194
        %6198 = vmatprep.subr.bf16.mxu0 0
        %6199 = vmatpush1.bf16.msra.mxu0 0
        %6200 = vmatprep.subr.bf16.mxu0 0
        %6201 = vmatpush1.bf16.msra.mxu0 0
        %6202 = vmatprep.subr.bf16.mxu0 0
        %6203 = vmatpush1.bf16.msra.mxu0 0
        %6204 = vmatprep.subr.bf16.mxu0 0
        %6205 = vmatpush1.bf16.msra.mxu0 0
        %6206 = vmatprep.subr.bf16.mxu0 0
        %6207 = vmatpush1.bf16.msra.mxu0 0
        %6208 = vmatprep.subr.bf16.mxu0 0
        %6209 = vmatpush1.bf16.msra.mxu0 0
        %6210 = vmatprep.subr.bf16.mxu0 0
        %6211 = vmatpush1.bf16.msra.mxu0 0
        %6212 = vmatprep.subr.bf16.mxu0 0
        %6213 = vmatpush1.bf16.msra.mxu0 0
        %6214 = vmatprep.subr.bf16.mxu0 0
        %6215 = vmatpush1.bf16.msra.mxu0 0
        %6216 = vmatprep.subr.bf16.mxu0 0
        %6217 = vmatpush1.bf16.msra.mxu0 0
        %6218 = vmatprep.subr.bf16.mxu0 0
        %6219 = vmatpush1.bf16.msra.mxu0 0
        %6220 = vmatprep.subr.bf16.mxu0 0
        %6221 = vmatpush1.bf16.msra.mxu0 0
        %6222 = vmatprep.subr.bf16.mxu0 0
        %6223 = vmatpush1.bf16.msra.mxu0 0
        %6224 = vmatprep.subr.bf16.mxu0 0
        %6225 = vmatpush1.bf16.msra.mxu0 0
        %6226 = vmatprep.subr.bf16.mxu0 0
        %6227 = vmatpush1.bf16.msra.mxu0 0
        %6228 = vmatprep.mubr.bf16.mxu0 0
        %6229 = vmatmul.mubr.bf16.gmra.mrb[0].mxu0 %v6182
        %v6230 = vpop.f32.mrb[0].mxu0
        %v6231 = vadd.f32 0.0, %v6230
        %v6232 = vpop.f32.mrb[0].mxu0
        %v6233 = vpop.f32.mrb[0].mxu0
        %v6234 = vadd.f32 0.0, %v6233
        %v6235 = vpop.f32.mrb[0].mxu0
        %6236 = vmatprep.mubr.bf16.mxu0 0
        %6237 = vmatmul.mubr.bf16.gmra.mrb[0].mxu0 %v6185
        %v6238 = vpop.f32.mrb[0].mxu0
        %v6239 = vadd.f32 0.0, %v6238
        %v6240 = vpop.f32.mrb[0].mxu0
        %v6241 = vpop.f32.mrb[0].mxu0
        %v6242 = vadd.f32 0.0, %v6241
        %v6243 = vpop.f32.mrb[0].mxu0
        %6244 = vmatprep.mubr.bf16.mxu0 0
        %6245 = vmatmul.mubr.bf16.gmra.mrb[0].mxu0 %v6188
        %v6246 = vpop.f32.mrb[0].mxu0
        %v6247 = vadd.f32 0.0, %v6246
        %v6248 = vpop.f32.mrb[0].mxu0
        %v6249 = vpop.f32.mrb[0].mxu0
        %v6250 = vadd.f32 0.0, %v6249
        %v6251 = vpop.f32.mrb[0].mxu0
        %6252 = vmatprep.mubr.bf16.mxu0 0
        %6253 = vmatmul.mubr.bf16.gmra.mrb[0].mxu0 %v6191
        %v6254 = vpop.f32.mrb[0].mxu0
        %v6255 = vadd.f32 0.0, %v6254
        %v6256 = vpop.f32.mrb[0].mxu0
        %v6257 = vpop.f32.mrb[0].mxu0
        %v6258 = vadd.f32 0.0, %v6257
        %v6259 = vpop.f32.mrb[0].mxu0
        %6260 = vdwg.mxu0
        %6261 = vst.msk [vmem:[#allocation2] sm:$0xff] %vm1503, %v6231
        %6262 = vst.msk [vmem:[#allocation2 + $0x8] sm:$0xff] %vm1503, %v6234
        %6263 = vst.msk [vmem:[#allocation2 + $0x10] sm:$0xff] %vm1503, %v6239
        %6264 = vst.msk [vmem:[#allocation2 + $0x18] sm:$0xff] %vm1503, %v6242
        %6265 = vst.msk [vmem:[#allocation2 + $0x20] sm:$0xff] %vm1503, %v6247
        %6266 = vst.msk [vmem:[#allocation2 + $0x28] sm:$0xff] %vm1503, %v6250
        %6267 = vst.msk [vmem:[#allocation2 + $0x30] sm:$0xff] %vm1503, %v6255
        %6268 = vst.msk [vmem:[#allocation2 + $0x38] sm:$0xff] %vm1503, %v6258
        %s6269 = sadd.s32 %s1389, 126
        %s6270 = smul.addr %s6269, 4
        %s6271 = scalar_lea.vmem %s1349, %s6270 [#allocation3]
        %v6272 = vld [vmem:[%s6271] sm:$0xf]
        %v6273 = vld [vmem:[%s6271 + $0x8] sm:$0xf]
        %v6274 = vld [vmem:[%s6271 + $0x10] sm:$0xf]
        %v6275 = vld [vmem:[%s6271 + $0x18] sm:$0xf]
        %v6276 = vld [vmem:[%s6271 + $0x20] sm:$0xf]
        %v6277 = vld [vmem:[%s6271 + $0x28] sm:$0xf]
        %v6278 = vld [vmem:[%s6271 + $0x30] sm:$0xf]
        %v6279 = vld [vmem:[%s6271 + $0x38] sm:$0xf]
        %s6280 = scalar_lea.vmem %s1, 112
        %v6281 = vld [vmem:[%s6280] sm:$0xf]
        %v6290 = vunpack.c.l.b16 %v6272
        %v6291 = vunpack.c.l.b16 %v6273
        %v6292 = vunpack.c.l.b16 %v6274
        %v6293 = vunpack.c.l.b16 %v6275
        %v6294 = vunpack.c.l.b16 %v6276
        %v6295 = vunpack.c.l.b16 %v6277
        %v6296 = vunpack.c.l.b16 %v6278
        %v6297 = vunpack.c.l.b16 %v6279
        %v6298 = vpack.c.b16 %v6291, %v6290
        %v6299 = vpack.c.b16 %v6293, %v6292
        %v6300 = vpack.c.b16 %v6295, %v6294
        %v6301 = vpack.c.b16 %v6297, %v6296
        %v6303 = vsel %vm1421, %v6298, 0
        %v6306 = vsel %vm1421, %v6299, 0
        %v6309 = vsel %vm1421, %v6300, 0
        %v6312 = vsel %vm1421, %v6301, 0
        %v6315 = vsel %vm1434, %v6281, 0
        %6317 = vmatprep.subr.bf16.mxu0 0
        %6318 = vmatpush1.bf16.msra.mxu0 %v6315
        %6319 = vmatprep.subr.bf16.mxu0 0
        %6320 = vmatpush1.bf16.msra.mxu0 0
        %6321 = vmatprep.subr.bf16.mxu0 0
        %6322 = vmatpush1.bf16.msra.mxu0 0
        %6323 = vmatprep.subr.bf16.mxu0 0
        %6324 = vmatpush1.bf16.msra.mxu0 0
        %6325 = vmatprep.subr.bf16.mxu0 0
        %6326 = vmatpush1.bf16.msra.mxu0 0
        %6327 = vmatprep.subr.bf16.mxu0 0
        %6328 = vmatpush1.bf16.msra.mxu0 0
        %6329 = vmatprep.subr.bf16.mxu0 0
        %6330 = vmatpush1.bf16.msra.mxu0 0
        %6331 = vmatprep.subr.bf16.mxu0 0
        %6332 = vmatpush1.bf16.msra.mxu0 0
        %6333 = vmatprep.subr.bf16.mxu0 0
        %6334 = vmatpush1.bf16.msra.mxu0 0
        %6335 = vmatprep.subr.bf16.mxu0 0
        %6336 = vmatpush1.bf16.msra.mxu0 0
        %6337 = vmatprep.subr.bf16.mxu0 0
        %6338 = vmatpush1.bf16.msra.mxu0 0
        %6339 = vmatprep.subr.bf16.mxu0 0
        %6340 = vmatpush1.bf16.msra.mxu0 0
        %6341 = vmatprep.subr.bf16.mxu0 0
        %6342 = vmatpush1.bf16.msra.mxu0 0
        %6343 = vmatprep.subr.bf16.mxu0 0
        %6344 = vmatpush1.bf16.msra.mxu0 0
        %6345 = vmatprep.subr.bf16.mxu0 0
        %6346 = vmatpush1.bf16.msra.mxu0 0
        %6347 = vmatprep.subr.bf16.mxu0 0
        %6348 = vmatpush1.bf16.msra.mxu0 0
        %6349 = vmatprep.mubr.bf16.mxu0 0
        %6350 = vmatmul.mubr.bf16.gmra.mrb[0].mxu0 %v6303
        %v6351 = vpop.f32.mrb[0].mxu0
        %v6352 = vadd.f32 0.0, %v6351
        %v6353 = vpop.f32.mrb[0].mxu0
        %v6354 = vpop.f32.mrb[0].mxu0
        %v6355 = vadd.f32 0.0, %v6354
        %v6356 = vpop.f32.mrb[0].mxu0
        %6357 = vmatprep.mubr.bf16.mxu0 0
        %6358 = vmatmul.mubr.bf16.gmra.mrb[0].mxu0 %v6306
        %v6359 = vpop.f32.mrb[0].mxu0
        %v6360 = vadd.f32 0.0, %v6359
        %v6361 = vpop.f32.mrb[0].mxu0
        %v6362 = vpop.f32.mrb[0].mxu0
        %v6363 = vadd.f32 0.0, %v6362
        %v6364 = vpop.f32.mrb[0].mxu0
        %6365 = vmatprep.mubr.bf16.mxu0 0
        %6366 = vmatmul.mubr.bf16.gmra.mrb[0].mxu0 %v6309
        %v6367 = vpop.f32.mrb[0].mxu0
        %v6368 = vadd.f32 0.0, %v6367
        %v6369 = vpop.f32.mrb[0].mxu0
        %v6370 = vpop.f32.mrb[0].mxu0
        %v6371 = vadd.f32 0.0, %v6370
        %v6372 = vpop.f32.mrb[0].mxu0
        %6373 = vmatprep.mubr.bf16.mxu0 0
        %6374 = vmatmul.mubr.bf16.gmra.mrb[0].mxu0 %v6312
        %v6375 = vpop.f32.mrb[0].mxu0
        %v6376 = vadd.f32 0.0, %v6375
        %v6377 = vpop.f32.mrb[0].mxu0
        %v6378 = vpop.f32.mrb[0].mxu0
        %v6379 = vadd.f32 0.0, %v6378
        %v6380 = vpop.f32.mrb[0].mxu0
        %6381 = vdwg.mxu0
        %v6382 = vld [vmem:[#allocation2] sm:$0xff]
        %v6383 = vld [vmem:[#allocation2 + $0x8] sm:$0xff]
        %v6384 = vld [vmem:[#allocation2 + $0x10] sm:$0xff]
        %v6385 = vld [vmem:[#allocation2 + $0x18] sm:$0xff]
        %v6386 = vld [vmem:[#allocation2 + $0x20] sm:$0xff]
        %v6387 = vld [vmem:[#allocation2 + $0x28] sm:$0xff]
        %v6388 = vld [vmem:[#allocation2 + $0x30] sm:$0xff]
        %v6389 = vld [vmem:[#allocation2 + $0x38] sm:$0xff]
        %v6390 = vadd.f32 %v6382, %v6352
        %v6391 = vadd.f32 %v6383, %v6355
        %v6392 = vadd.f32 %v6384, %v6360
        %v6393 = vadd.f32 %v6385, %v6363
        %v6394 = vadd.f32 %v6386, %v6368
        %v6395 = vadd.f32 %v6387, %v6371
        %v6396 = vadd.f32 %v6388, %v6376
        %v6397 = vadd.f32 %v6389, %v6379
        %6398 = vst.msk [vmem:[#allocation2] sm:$0xff] %vm1503, %v6390
        %6399 = vst.msk [vmem:[#allocation2 + $0x8] sm:$0xff] %vm1503, %v6391
        %6400 = vst.msk [vmem:[#allocation2 + $0x10] sm:$0xff] %vm1503, %v6392
        %6401 = vst.msk [vmem:[#allocation2 + $0x18] sm:$0xff] %vm1503, %v6393
        %6402 = vst.msk [vmem:[#allocation2 + $0x20] sm:$0xff] %vm1503, %v6394
        %6403 = vst.msk [vmem:[#allocation2 + $0x28] sm:$0xff] %vm1503, %v6395
        %6404 = vst.msk [vmem:[#allocation2 + $0x30] sm:$0xff] %vm1503, %v6396
        %6405 = vst.msk [vmem:[#allocation2 + $0x38] sm:$0xff] %vm1503, %v6397
        %v6406 = vld [vmem:[%s6150] sm:$0xf]
        %v6407 = vld [vmem:[%s6150 + $0x4] sm:$0x1]
        %v6408 = vld [vmem:[%s6150 + $0x8] sm:$0xf]
        %v6409 = vld [vmem:[%s6150 + $0xc] sm:$0x1]
        %v6410 = vld [vmem:[%s6150 + $0x10] sm:$0xf]
        %v6411 = vld [vmem:[%s6150 + $0x14] sm:$0x1]
        %v6412 = vld [vmem:[%s6150 + $0x18] sm:$0xf]
        %v6413 = vld [vmem:[%s6150 + $0x1c] sm:$0x1]
        %v6414 = vld [vmem:[%s6150 + $0x20] sm:$0xf]
        %v6415 = vld [vmem:[%s6150 + $0x24] sm:$0x1]
        %v6416 = vld [vmem:[%s6150 + $0x28] sm:$0xf]
        %v6417 = vld [vmem:[%s6150 + $0x2c] sm:$0x1]
        %v6418 = vld [vmem:[%s6150 + $0x30] sm:$0xf]
        %v6419 = vld [vmem:[%s6150 + $0x34] sm:$0x1]
        %v6420 = vld [vmem:[%s6150 + $0x38] sm:$0xf]
        %v6421 = vld [vmem:[%s6150 + $0x3c] sm:$0x1]
        %v6423 = vshrl.u32 %v6406, 16
        %v6425 = vrot.slane %v6423, 4
        %v6426 = vshll.u32 %v6406, 16
        %v6428 = vrot.slane %v6426, 5
        %v6429 = vor.u32 %v6425, %v6428
        %v6430 = vrot.slane %v6429, 4
        %v6432 = vshll.u32 %v6407, 16
        %v6434 = vrot.slane %v6432, 5
        %v6435 = vsel %vm1667, %v6430, %v6434
        %v6437 = vshrl.u32 %v6408, 16
        %v6439 = vrot.slane %v6437, 4
        %v6440 = vshll.u32 %v6408, 16
        %v6442 = vrot.slane %v6440, 5
        %v6443 = vor.u32 %v6439, %v6442
        %v6444 = vrot.slane %v6443, 4
        %v6446 = vshll.u32 %v6409, 16
        %v6448 = vrot.slane %v6446, 5
        %v6449 = vsel %vm1667, %v6444, %v6448
        %v6451 = vshrl.u32 %v6410, 16
        %v6453 = vrot.slane %v6451, 4
        %v6454 = vshll.u32 %v6410, 16
        %v6456 = vrot.slane %v6454, 5
        %v6457 = vor.u32 %v6453, %v6456
        %v6458 = vrot.slane %v6457, 4
        %v6460 = vshll.u32 %v6411, 16
        %v6462 = vrot.slane %v6460, 5
        %v6463 = vsel %vm1667, %v6458, %v6462
        %v6465 = vshrl.u32 %v6412, 16
        %v6467 = vrot.slane %v6465, 4
        %v6468 = vshll.u32 %v6412, 16
        %v6470 = vrot.slane %v6468, 5
        %v6471 = vor.u32 %v6467, %v6470
        %v6472 = vrot.slane %v6471, 4
        %v6474 = vshll.u32 %v6413, 16
        %v6476 = vrot.slane %v6474, 5
        %v6477 = vsel %vm1667, %v6472, %v6476
        %v6479 = vshrl.u32 %v6414, 16
        %v6481 = vrot.slane %v6479, 4
        %v6482 = vshll.u32 %v6414, 16
        %v6484 = vrot.slane %v6482, 5
        %v6485 = vor.u32 %v6481, %v6484
        %v6486 = vrot.slane %v6485, 4
        %v6488 = vshll.u32 %v6415, 16
        %v6490 = vrot.slane %v6488, 5
        %v6491 = vsel %vm1667, %v6486, %v6490
        %v6493 = vshrl.u32 %v6416, 16
        %v6495 = vrot.slane %v6493, 4
        %v6496 = vshll.u32 %v6416, 16
        %v6498 = vrot.slane %v6496, 5
        %v6499 = vor.u32 %v6495, %v6498
        %v6500 = vrot.slane %v6499, 4
        %v6502 = vshll.u32 %v6417, 16
        %v6504 = vrot.slane %v6502, 5
        %v6505 = vsel %vm1667, %v6500, %v6504
        %v6507 = vshrl.u32 %v6418, 16
        %v6509 = vrot.slane %v6507, 4
        %v6510 = vshll.u32 %v6418, 16
        %v6512 = vrot.slane %v6510, 5
        %v6513 = vor.u32 %v6509, %v6512
        %v6514 = vrot.slane %v6513, 4
        %v6516 = vshll.u32 %v6419, 16
        %v6518 = vrot.slane %v6516, 5
        %v6519 = vsel %vm1667, %v6514, %v6518
        %v6521 = vshrl.u32 %v6420, 16
        %v6523 = vrot.slane %v6521, 4
        %v6524 = vshll.u32 %v6420, 16
        %v6526 = vrot.slane %v6524, 5
        %v6527 = vor.u32 %v6523, %v6526
        %v6528 = vrot.slane %v6527, 4
        %v6530 = vshll.u32 %v6421, 16
        %v6532 = vrot.slane %v6530, 5
        %v6533 = vsel %vm1667, %v6528, %v6532
        %s6534 = scalar_lea.vmem %s1, 116
        %v6535 = vld [vmem:[%s6534] sm:$0xf]
        %v6536 = vunpack.c.l.b16 %v6435
        %v6537 = vunpack.c.l.b16 %v6449
        %v6538 = vunpack.c.l.b16 %v6463
        %v6539 = vunpack.c.l.b16 %v6477
        %v6540 = vunpack.c.l.b16 %v6491
        %v6541 = vunpack.c.l.b16 %v6505
        %v6542 = vunpack.c.l.b16 %v6519
        %v6543 = vunpack.c.l.b16 %v6533
        %v6544 = vpack.c.b16 %v6537, %v6536
        %v6545 = vpack.c.b16 %v6539, %v6538
        %v6546 = vpack.c.b16 %v6541, %v6540
        %v6547 = vpack.c.b16 %v6543, %v6542
        %v6549 = vsel %vm1421, %v6544, 0
        %v6552 = vsel %vm1421, %v6545, 0
        %v6555 = vsel %vm1421, %v6546, 0
        %v6558 = vsel %vm1421, %v6547, 0
        %v6561 = vsel %vm1434, %v6535, 0
        %6563 = vmatprep.subr.bf16.mxu0 0
        %6564 = vmatpush1.bf16.msra.mxu0 %v6561
        %6565 = vmatprep.subr.bf16.mxu0 0
        %6566 = vmatpush1.bf16.msra.mxu0 0
        %6567 = vmatprep.subr.bf16.mxu0 0
        %6568 = vmatpush1.bf16.msra.mxu0 0
        %6569 = vmatprep.subr.bf16.mxu0 0
        %6570 = vmatpush1.bf16.msra.mxu0 0
        %6571 = vmatprep.subr.bf16.mxu0 0
        %6572 = vmatpush1.bf16.msra.mxu0 0
        %6573 = vmatprep.subr.bf16.mxu0 0
        %6574 = vmatpush1.bf16.msra.mxu0 0
        %6575 = vmatprep.subr.bf16.mxu0 0
        %6576 = vmatpush1.bf16.msra.mxu0 0
        %6577 = vmatprep.subr.bf16.mxu0 0
        %6578 = vmatpush1.bf16.msra.mxu0 0
        %6579 = vmatprep.subr.bf16.mxu0 0
        %6580 = vmatpush1.bf16.msra.mxu0 0
        %6581 = vmatprep.subr.bf16.mxu0 0
        %6582 = vmatpush1.bf16.msra.mxu0 0
        %6583 = vmatprep.subr.bf16.mxu0 0
        %6584 = vmatpush1.bf16.msra.mxu0 0
        %6585 = vmatprep.subr.bf16.mxu0 0
        %6586 = vmatpush1.bf16.msra.mxu0 0
        %6587 = vmatprep.subr.bf16.mxu0 0
        %6588 = vmatpush1.bf16.msra.mxu0 0
        %6589 = vmatprep.subr.bf16.mxu0 0
        %6590 = vmatpush1.bf16.msra.mxu0 0
        %6591 = vmatprep.subr.bf16.mxu0 0
        %6592 = vmatpush1.bf16.msra.mxu0 0
        %6593 = vmatprep.subr.bf16.mxu0 0
        %6594 = vmatpush1.bf16.msra.mxu0 0
        %6595 = vmatprep.mubr.bf16.mxu0 0
        %6596 = vmatmul.mubr.bf16.gmra.mrb[0].mxu0 %v6549
        %v6597 = vpop.f32.mrb[0].mxu0
        %v6598 = vadd.f32 0.0, %v6597
        %v6599 = vpop.f32.mrb[0].mxu0
        %v6600 = vpop.f32.mrb[0].mxu0
        %v6601 = vadd.f32 0.0, %v6600
        %v6602 = vpop.f32.mrb[0].mxu0
        %6603 = vmatprep.mubr.bf16.mxu0 0
        %6604 = vmatmul.mubr.bf16.gmra.mrb[0].mxu0 %v6552
        %v6605 = vpop.f32.mrb[0].mxu0
        %v6606 = vadd.f32 0.0, %v6605
        %v6607 = vpop.f32.mrb[0].mxu0
        %v6608 = vpop.f32.mrb[0].mxu0
        %v6609 = vadd.f32 0.0, %v6608
        %v6610 = vpop.f32.mrb[0].mxu0
        %6611 = vmatprep.mubr.bf16.mxu0 0
        %6612 = vmatmul.mubr.bf16.gmra.mrb[0].mxu0 %v6555
        %v6613 = vpop.f32.mrb[0].mxu0
        %v6614 = vadd.f32 0.0, %v6613
        %v6615 = vpop.f32.mrb[0].mxu0
        %v6616 = vpop.f32.mrb[0].mxu0
        %v6617 = vadd.f32 0.0, %v6616
        %v6618 = vpop.f32.mrb[0].mxu0
        %6619 = vmatprep.mubr.bf16.mxu0 0
        %6620 = vmatmul.mubr.bf16.gmra.mrb[0].mxu0 %v6558
        %v6621 = vpop.f32.mrb[0].mxu0
        %v6622 = vadd.f32 0.0, %v6621
        %v6623 = vpop.f32.mrb[0].mxu0
        %v6624 = vpop.f32.mrb[0].mxu0
        %v6625 = vadd.f32 0.0, %v6624
        %v6626 = vpop.f32.mrb[0].mxu0
        %6627 = vdwg.mxu0
        %v6628 = vld [vmem:[#allocation2] sm:$0xff]
        %v6629 = vld [vmem:[#allocation2 + $0x8] sm:$0xff]
        %v6630 = vld [vmem:[#allocation2 + $0x10] sm:$0xff]
        %v6631 = vld [vmem:[#allocation2 + $0x18] sm:$0xff]
        %v6632 = vld [vmem:[#allocation2 + $0x20] sm:$0xff]
        %v6633 = vld [vmem:[#allocation2 + $0x28] sm:$0xff]
        %v6634 = vld [vmem:[#allocation2 + $0x30] sm:$0xff]
        %v6635 = vld [vmem:[#allocation2 + $0x38] sm:$0xff]
        %v6636 = vadd.f32 %v6628, %v6598
        %v6637 = vadd.f32 %v6629, %v6601
        %v6638 = vadd.f32 %v6630, %v6606
        %v6639 = vadd.f32 %v6631, %v6609
        %v6640 = vadd.f32 %v6632, %v6614
        %v6641 = vadd.f32 %v6633, %v6617
        %v6642 = vadd.f32 %v6634, %v6622
        %v6643 = vadd.f32 %v6635, %v6625
        %6644 = vst.msk [vmem:[#allocation2] sm:$0xff] %vm1503, %v6636
        %6645 = vst.msk [vmem:[#allocation2 + $0x8] sm:$0xff] %vm1503, %v6637
        %6646 = vst.msk [vmem:[#allocation2 + $0x10] sm:$0xff] %vm1503, %v6638
        %6647 = vst.msk [vmem:[#allocation2 + $0x18] sm:$0xff] %vm1503, %v6639
        %6648 = vst.msk [vmem:[#allocation2 + $0x20] sm:$0xff] %vm1503, %v6640
        %6649 = vst.msk [vmem:[#allocation2 + $0x28] sm:$0xff] %vm1503, %v6641
        %6650 = vst.msk [vmem:[#allocation2 + $0x30] sm:$0xff] %vm1503, %v6642
        %6651 = vst.msk [vmem:[#allocation2 + $0x38] sm:$0xff] %vm1503, %v6643
        %s6652 = sadd.s32 %s1389, 198
        %s6653 = smul.addr %s6652, 4
        %s6654 = scalar_lea.vmem %s1349, %s6653 [#allocation3]
        %v6655 = vld [vmem:[%s6654] sm:$0xf]
        %v6656 = vld [vmem:[%s6654 + $0x8] sm:$0xf]
        %v6657 = vld [vmem:[%s6654 + $0x10] sm:$0xf]
        %v6658 = vld [vmem:[%s6654 + $0x18] sm:$0xf]
        %v6659 = vld [vmem:[%s6654 + $0x20] sm:$0xf]
        %v6660 = vld [vmem:[%s6654 + $0x28] sm:$0xf]
        %v6661 = vld [vmem:[%s6654 + $0x30] sm:$0xf]
        %v6662 = vld [vmem:[%s6654 + $0x38] sm:$0xf]
        %s6663 = scalar_lea.vmem %s1, 120
        %v6664 = vld [vmem:[%s6663] sm:$0xf]
        %v6673 = vunpack.c.l.b16 %v6655
        %v6674 = vunpack.c.l.b16 %v6656
        %v6675 = vunpack.c.l.b16 %v6657
        %v6676 = vunpack.c.l.b16 %v6658
        %v6677 = vunpack.c.l.b16 %v6659
        %v6678 = vunpack.c.l.b16 %v6660
        %v6679 = vunpack.c.l.b16 %v6661
        %v6680 = vunpack.c.l.b16 %v6662
        %v6681 = vpack.c.b16 %v6674, %v6673
        %v6682 = vpack.c.b16 %v6676, %v6675
        %v6683 = vpack.c.b16 %v6678, %v6677
        %v6684 = vpack.c.b16 %v6680, %v6679
        %v6686 = vsel %vm1421, %v6681, 0
        %v6689 = vsel %vm1421, %v6682, 0
        %v6692 = vsel %vm1421, %v6683, 0
        %v6695 = vsel %vm1421, %v6684, 0
        %v6698 = vsel %vm1434, %v6664, 0
        %6700 = vmatprep.subr.bf16.mxu0 0
        %6701 = vmatpush1.bf16.msra.mxu0 %v6698
        %6702 = vmatprep.subr.bf16.mxu0 0
        %6703 = vmatpush1.bf16.msra.mxu0 0
        %6704 = vmatprep.subr.bf16.mxu0 0
        %6705 = vmatpush1.bf16.msra.mxu0 0
        %6706 = vmatprep.subr.bf16.mxu0 0
        %6707 = vmatpush1.bf16.msra.mxu0 0
        %6708 = vmatprep.subr.bf16.mxu0 0
        %6709 = vmatpush1.bf16.msra.mxu0 0
        %6710 = vmatprep.subr.bf16.mxu0 0
        %6711 = vmatpush1.bf16.msra.mxu0 0
        %6712 = vmatprep.subr.bf16.mxu0 0
        %6713 = vmatpush1.bf16.msra.mxu0 0
        %6714 = vmatprep.subr.bf16.mxu0 0
        %6715 = vmatpush1.bf16.msra.mxu0 0
        %6716 = vmatprep.subr.bf16.mxu0 0
        %6717 = vmatpush1.bf16.msra.mxu0 0
        %6718 = vmatprep.subr.bf16.mxu0 0
        %6719 = vmatpush1.bf16.msra.mxu0 0
        %6720 = vmatprep.subr.bf16.mxu0 0
        %6721 = vmatpush1.bf16.msra.mxu0 0
        %6722 = vmatprep.subr.bf16.mxu0 0
        %6723 = vmatpush1.bf16.msra.mxu0 0
        %6724 = vmatprep.subr.bf16.mxu0 0
        %6725 = vmatpush1.bf16.msra.mxu0 0
        %6726 = vmatprep.subr.bf16.mxu0 0
        %6727 = vmatpush1.bf16.msra.mxu0 0
        %6728 = vmatprep.subr.bf16.mxu0 0
        %6729 = vmatpush1.bf16.msra.mxu0 0
        %6730 = vmatprep.subr.bf16.mxu0 0
        %6731 = vmatpush1.bf16.msra.mxu0 0
        %6732 = vmatprep.mubr.bf16.mxu0 0
        %6733 = vmatmul.mubr.bf16.gmra.mrb[0].mxu0 %v6686
        %v6734 = vpop.f32.mrb[0].mxu0
        %v6735 = vadd.f32 0.0, %v6734
        %v6736 = vpop.f32.mrb[0].mxu0
        %v6737 = vpop.f32.mrb[0].mxu0
        %v6738 = vadd.f32 0.0, %v6737
        %v6739 = vpop.f32.mrb[0].mxu0
        %6740 = vmatprep.mubr.bf16.mxu0 0
        %6741 = vmatmul.mubr.bf16.gmra.mrb[0].mxu0 %v6689
        %v6742 = vpop.f32.mrb[0].mxu0
        %v6743 = vadd.f32 0.0, %v6742
        %v6744 = vpop.f32.mrb[0].mxu0
        %v6745 = vpop.f32.mrb[0].mxu0
        %v6746 = vadd.f32 0.0, %v6745
        %v6747 = vpop.f32.mrb[0].mxu0
        %6748 = vmatprep.mubr.bf16.mxu0 0
        %6749 = vmatmul.mubr.bf16.gmra.mrb[0].mxu0 %v6692
        %v6750 = vpop.f32.mrb[0].mxu0
        %v6751 = vadd.f32 0.0, %v6750
        %v6752 = vpop.f32.mrb[0].mxu0
        %v6753 = vpop.f32.mrb[0].mxu0
        %v6754 = vadd.f32 0.0, %v6753
        %v6755 = vpop.f32.mrb[0].mxu0
        %6756 = vmatprep.mubr.bf16.mxu0 0
        %6757 = vmatmul.mubr.bf16.gmra.mrb[0].mxu0 %v6695
        %v6758 = vpop.f32.mrb[0].mxu0
        %v6759 = vadd.f32 0.0, %v6758
        %v6760 = vpop.f32.mrb[0].mxu0
        %v6761 = vpop.f32.mrb[0].mxu0
        %v6762 = vadd.f32 0.0, %v6761
        %v6763 = vpop.f32.mrb[0].mxu0
        %6764 = vdwg.mxu0
        %v6765 = vld [vmem:[#allocation2] sm:$0xff]
        %v6766 = vld [vmem:[#allocation2 + $0x8] sm:$0xff]
        %v6767 = vld [vmem:[#allocation2 + $0x10] sm:$0xff]
        %v6768 = vld [vmem:[#allocation2 + $0x18] sm:$0xff]
        %v6769 = vld [vmem:[#allocation2 + $0x20] sm:$0xff]
        %v6770 = vld [vmem:[#allocation2 + $0x28] sm:$0xff]
        %v6771 = vld [vmem:[#allocation2 + $0x30] sm:$0xff]
        %v6772 = vld [vmem:[#allocation2 + $0x38] sm:$0xff]
        %v6773 = vadd.f32 %v6765, %v6735
        %v6774 = vadd.f32 %v6766, %v6738
        %v6775 = vadd.f32 %v6767, %v6743
        %v6776 = vadd.f32 %v6768, %v6746
        %v6777 = vadd.f32 %v6769, %v6751
        %v6778 = vadd.f32 %v6770, %v6754
        %v6779 = vadd.f32 %v6771, %v6759
        %v6780 = vadd.f32 %v6772, %v6762
        %6781 = vst.msk [vmem:[#allocation2] sm:$0xff] %vm1503, %v6773
        %6782 = vst.msk [vmem:[#allocation2 + $0x8] sm:$0xff] %vm1503, %v6774
        %6783 = vst.msk [vmem:[#allocation2 + $0x10] sm:$0xff] %vm1503, %v6775
        %6784 = vst.msk [vmem:[#allocation2 + $0x18] sm:$0xff] %vm1503, %v6776
        %6785 = vst.msk [vmem:[#allocation2 + $0x20] sm:$0xff] %vm1503, %v6777
        %6786 = vst.msk [vmem:[#allocation2 + $0x28] sm:$0xff] %vm1503, %v6778
        %6787 = vst.msk [vmem:[#allocation2 + $0x30] sm:$0xff] %vm1503, %v6779
        %6788 = vst.msk [vmem:[#allocation2 + $0x38] sm:$0xff] %vm1503, %v6780
        %s6789 = sadd.s32 %s1389, 270
        %s6790 = smul.addr %s6789, 4
        %s6791 = scalar_lea.vmem %s1349, %s6790 [#allocation3]
        %v6792 = vld [vmem:[%s6791] sm:$0xf]
        %v6793 = vld [vmem:[%s6791 + $0x8] sm:$0xf]
        %v6794 = vld [vmem:[%s6791 + $0x10] sm:$0xf]
        %v6795 = vld [vmem:[%s6791 + $0x18] sm:$0xf]
        %v6796 = vld [vmem:[%s6791 + $0x20] sm:$0xf]
        %v6797 = vld [vmem:[%s6791 + $0x28] sm:$0xf]
        %v6798 = vld [vmem:[%s6791 + $0x30] sm:$0xf]
        %v6799 = vld [vmem:[%s6791 + $0x38] sm:$0xf]
        %s6800 = scalar_lea.vmem %s1, 124
        %v6801 = vld [vmem:[%s6800] sm:$0xf]
        %v6810 = vunpack.c.l.b16 %v6792
        %v6811 = vunpack.c.l.b16 %v6793
        %v6812 = vunpack.c.l.b16 %v6794
        %v6813 = vunpack.c.l.b16 %v6795
        %v6814 = vunpack.c.l.b16 %v6796
        %v6815 = vunpack.c.l.b16 %v6797
        %v6816 = vunpack.c.l.b16 %v6798
        %v6817 = vunpack.c.l.b16 %v6799
        %v6818 = vpack.c.b16 %v6811, %v6810
        %v6819 = vpack.c.b16 %v6813, %v6812
        %v6820 = vpack.c.b16 %v6815, %v6814
        %v6821 = vpack.c.b16 %v6817, %v6816
        %v6823 = vsel %vm1421, %v6818, 0
        %v6826 = vsel %vm1421, %v6819, 0
        %v6829 = vsel %vm1421, %v6820, 0
        %v6832 = vsel %vm1421, %v6821, 0
        %v6835 = vsel %vm1434, %v6801, 0
        %6837 = vmatprep.subr.bf16.mxu0 0
        %6838 = vmatpush1.bf16.msra.mxu0 %v6835
        %6839 = vmatprep.subr.bf16.mxu0 0
        %6840 = vmatpush1.bf16.msra.mxu0 0
        %6841 = vmatprep.subr.bf16.mxu0 0
        %6842 = vmatpush1.bf16.msra.mxu0 0
        %6843 = vmatprep.subr.bf16.mxu0 0
        %6844 = vmatpush1.bf16.msra.mxu0 0
        %6845 = vmatprep.subr.bf16.mxu0 0
        %6846 = vmatpush1.bf16.msra.mxu0 0
        %6847 = vmatprep.subr.bf16.mxu0 0
        %6848 = vmatpush1.bf16.msra.mxu0 0
        %6849 = vmatprep.subr.bf16.mxu0 0
        %6850 = vmatpush1.bf16.msra.mxu0 0
        %6851 = vmatprep.subr.bf16.mxu0 0
        %6852 = vmatpush1.bf16.msra.mxu0 0
        %6853 = vmatprep.subr.bf16.mxu0 0
        %6854 = vmatpush1.bf16.msra.mxu0 0
        %6855 = vmatprep.subr.bf16.mxu0 0
        %6856 = vmatpush1.bf16.msra.mxu0 0
        %6857 = vmatprep.subr.bf16.mxu0 0
        %6858 = vmatpush1.bf16.msra.mxu0 0
        %6859 = vmatprep.subr.bf16.mxu0 0
        %6860 = vmatpush1.bf16.msra.mxu0 0
        %6861 = vmatprep.subr.bf16.mxu0 0
        %6862 = vmatpush1.bf16.msra.mxu0 0
        %6863 = vmatprep.subr.bf16.mxu0 0
        %6864 = vmatpush1.bf16.msra.mxu0 0
        %6865 = vmatprep.subr.bf16.mxu0 0
        %6866 = vmatpush1.bf16.msra.mxu0 0
        %6867 = vmatprep.subr.bf16.mxu0 0
        %6868 = vmatpush1.bf16.msra.mxu0 0
        %6869 = vmatprep.mubr.bf16.mxu0 0
        %6870 = vmatmul.mubr.bf16.gmra.mrb[0].mxu0 %v6823
        %v6871 = vpop.f32.mrb[0].mxu0
        %v6872 = vadd.f32 0.0, %v6871
        %v6873 = vpop.f32.mrb[0].mxu0
        %v6874 = vpop.f32.mrb[0].mxu0
        %v6875 = vadd.f32 0.0, %v6874
        %v6876 = vpop.f32.mrb[0].mxu0
        %6877 = vmatprep.mubr.bf16.mxu0 0
        %6878 = vmatmul.mubr.bf16.gmra.mrb[0].mxu0 %v6826
        %v6879 = vpop.f32.mrb[0].mxu0
        %v6880 = vadd.f32 0.0, %v6879
        %v6881 = vpop.f32.mrb[0].mxu0
        %v6882 = vpop.f32.mrb[0].mxu0
        %v6883 = vadd.f32 0.0, %v6882
        %v6884 = vpop.f32.mrb[0].mxu0
        %6885 = vmatprep.mubr.bf16.mxu0 0
        %6886 = vmatmul.mubr.bf16.gmra.mrb[0].mxu0 %v6829
        %v6887 = vpop.f32.mrb[0].mxu0
        %v6888 = vadd.f32 0.0, %v6887
        %v6889 = vpop.f32.mrb[0].mxu0
        %v6890 = vpop.f32.mrb[0].mxu0
        %v6891 = vadd.f32 0.0, %v6890
        %v6892 = vpop.f32.mrb[0].mxu0
        %6893 = vmatprep.mubr.bf16.mxu0 0
        %6894 = vmatmul.mubr.bf16.gmra.mrb[0].mxu0 %v6832
        %v6895 = vpop.f32.mrb[0].mxu0
        %v6896 = vadd.f32 0.0, %v6895
        %v6897 = vpop.f32.mrb[0].mxu0
        %v6898 = vpop.f32.mrb[0].mxu0
        %v6899 = vadd.f32 0.0, %v6898
        %v6900 = vpop.f32.mrb[0].mxu0
        %6901 = vdwg.mxu0
        %v6902 = vld [vmem:[#allocation2] sm:$0xff]
        %v6903 = vld [vmem:[#allocation2 + $0x8] sm:$0xff]
        %v6904 = vld [vmem:[#allocation2 + $0x10] sm:$0xff]
        %v6905 = vld [vmem:[#allocation2 + $0x18] sm:$0xff]
        %v6906 = vld [vmem:[#allocation2 + $0x20] sm:$0xff]
        %v6907 = vld [vmem:[#allocation2 + $0x28] sm:$0xff]
        %v6908 = vld [vmem:[#allocation2 + $0x30] sm:$0xff]
        %v6909 = vld [vmem:[#allocation2 + $0x38] sm:$0xff]
        %v6910 = vadd.f32 %v6902, %v6872
        %v6911 = vadd.f32 %v6903, %v6875
        %v6912 = vadd.f32 %v6904, %v6880
        %v6913 = vadd.f32 %v6905, %v6883
        %v6914 = vadd.f32 %v6906, %v6888
        %v6915 = vadd.f32 %v6907, %v6891
        %v6916 = vadd.f32 %v6908, %v6896
        %v6917 = vadd.f32 %v6909, %v6899
        %6918 = vst.msk [vmem:[#allocation2] sm:$0xff] %vm1503, %v6910
        %6919 = vst.msk [vmem:[#allocation2 + $0x8] sm:$0xff] %vm1503, %v6911
        %6920 = vst.msk [vmem:[#allocation2 + $0x10] sm:$0xff] %vm1503, %v6912
        %6921 = vst.msk [vmem:[#allocation2 + $0x18] sm:$0xff] %vm1503, %v6913
        %6922 = vst.msk [vmem:[#allocation2 + $0x20] sm:$0xff] %vm1503, %v6914
        %6923 = vst.msk [vmem:[#allocation2 + $0x28] sm:$0xff] %vm1503, %v6915
        %6924 = vst.msk [vmem:[#allocation2 + $0x30] sm:$0xff] %vm1503, %v6916
        %6925 = vst.msk [vmem:[#allocation2 + $0x38] sm:$0xff] %vm1503, %v6917
        %v6926 = vld [vmem:[%s6654] sm:$0xf]
        %v6927 = vld [vmem:[%s6654 + $0x4] sm:$0x1]
        %v6928 = vld [vmem:[%s6654 + $0x8] sm:$0xf]
        %v6929 = vld [vmem:[%s6654 + $0xc] sm:$0x1]
        %v6930 = vld [vmem:[%s6654 + $0x10] sm:$0xf]
        %v6931 = vld [vmem:[%s6654 + $0x14] sm:$0x1]
        %v6932 = vld [vmem:[%s6654 + $0x18] sm:$0xf]
        %v6933 = vld [vmem:[%s6654 + $0x1c] sm:$0x1]
        %v6934 = vld [vmem:[%s6654 + $0x20] sm:$0xf]
        %v6935 = vld [vmem:[%s6654 + $0x24] sm:$0x1]
        %v6936 = vld [vmem:[%s6654 + $0x28] sm:$0xf]
        %v6937 = vld [vmem:[%s6654 + $0x2c] sm:$0x1]
        %v6938 = vld [vmem:[%s6654 + $0x30] sm:$0xf]
        %v6939 = vld [vmem:[%s6654 + $0x34] sm:$0x1]
        %v6940 = vld [vmem:[%s6654 + $0x38] sm:$0xf]
        %v6941 = vld [vmem:[%s6654 + $0x3c] sm:$0x1]
        %v6943 = vshrl.u32 %v6926, 16
        %v6945 = vrot.slane %v6943, 4
        %v6946 = vshll.u32 %v6926, 16
        %v6948 = vrot.slane %v6946, 5
        %v6949 = vor.u32 %v6945, %v6948
        %v6950 = vrot.slane %v6949, 4
        %v6952 = vshll.u32 %v6927, 16
        %v6954 = vrot.slane %v6952, 5
        %v6955 = vsel %vm1667, %v6950, %v6954
        %v6957 = vshrl.u32 %v6928, 16
        %v6959 = vrot.slane %v6957, 4
        %v6960 = vshll.u32 %v6928, 16
        %v6962 = vrot.slane %v6960, 5
        %v6963 = vor.u32 %v6959, %v6962
        %v6964 = vrot.slane %v6963, 4
        %v6966 = vshll.u32 %v6929, 16
        %v6968 = vrot.slane %v6966, 5
        %v6969 = vsel %vm1667, %v6964, %v6968
        %v6971 = vshrl.u32 %v6930, 16
        %v6973 = vrot.slane %v6971, 4
        %v6974 = vshll.u32 %v6930, 16
        %v6976 = vrot.slane %v6974, 5
        %v6977 = vor.u32 %v6973, %v6976
        %v6978 = vrot.slane %v6977, 4
        %v6980 = vshll.u32 %v6931, 16
        %v6982 = vrot.slane %v6980, 5
        %v6983 = vsel %vm1667, %v6978, %v6982
        %v6985 = vshrl.u32 %v6932, 16
        %v6987 = vrot.slane %v6985, 4
        %v6988 = vshll.u32 %v6932, 16
        %v6990 = vrot.slane %v6988, 5
        %v6991 = vor.u32 %v6987, %v6990
        %v6992 = vrot.slane %v6991, 4
        %v6994 = vshll.u32 %v6933, 16
        %v6996 = vrot.slane %v6994, 5
        %v6997 = vsel %vm1667, %v6992, %v6996
        %v6999 = vshrl.u32 %v6934, 16
        %v7001 = vrot.slane %v6999, 4
        %v7002 = vshll.u32 %v6934, 16
        %v7004 = vrot.slane %v7002, 5
        %v7005 = vor.u32 %v7001, %v7004
        %v7006 = vrot.slane %v7005, 4
        %v7008 = vshll.u32 %v6935, 16
        %v7010 = vrot.slane %v7008, 5
        %v7011 = vsel %vm1667, %v7006, %v7010
        %v7013 = vshrl.u32 %v6936, 16
        %v7015 = vrot.slane %v7013, 4
        %v7016 = vshll.u32 %v6936, 16
        %v7018 = vrot.slane %v7016, 5
        %v7019 = vor.u32 %v7015, %v7018
        %v7020 = vrot.slane %v7019, 4
        %v7022 = vshll.u32 %v6937, 16
        %v7024 = vrot.slane %v7022, 5
        %v7025 = vsel %vm1667, %v7020, %v7024
        %v7027 = vshrl.u32 %v6938, 16
        %v7029 = vrot.slane %v7027, 4
        %v7030 = vshll.u32 %v6938, 16
        %v7032 = vrot.slane %v7030, 5
        %v7033 = vor.u32 %v7029, %v7032
        %v7034 = vrot.slane %v7033, 4
        %v7036 = vshll.u32 %v6939, 16
        %v7038 = vrot.slane %v7036, 5
        %v7039 = vsel %vm1667, %v7034, %v7038
        %v7041 = vshrl.u32 %v6940, 16
        %v7043 = vrot.slane %v7041, 4
        %v7044 = vshll.u32 %v6940, 16
        %v7046 = vrot.slane %v7044, 5
        %v7047 = vor.u32 %v7043, %v7046
        %v7048 = vrot.slane %v7047, 4
        %v7050 = vshll.u32 %v6941, 16
        %v7052 = vrot.slane %v7050, 5
        %v7053 = vsel %vm1667, %v7048, %v7052
        %s7054 = scalar_lea.vmem %s1, 128
        %v7055 = vld [vmem:[%s7054] sm:$0xf]
        %v7056 = vunpack.c.l.b16 %v6955
        %v7057 = vunpack.c.l.b16 %v6969
        %v7058 = vunpack.c.l.b16 %v6983
        %v7059 = vunpack.c.l.b16 %v6997
        %v7060 = vunpack.c.l.b16 %v7011
        %v7061 = vunpack.c.l.b16 %v7025
        %v7062 = vunpack.c.l.b16 %v7039
        %v7063 = vunpack.c.l.b16 %v7053
        %v7064 = vpack.c.b16 %v7057, %v7056
        %v7065 = vpack.c.b16 %v7059, %v7058
        %v7066 = vpack.c.b16 %v7061, %v7060
        %v7067 = vpack.c.b16 %v7063, %v7062
        %v7069 = vsel %vm1421, %v7064, 0
        %v7072 = vsel %vm1421, %v7065, 0
        %v7075 = vsel %vm1421, %v7066, 0
        %v7078 = vsel %vm1421, %v7067, 0
        %v7081 = vsel %vm1434, %v7055, 0
        %7083 = vmatprep.subr.bf16.mxu0 0
        %7084 = vmatpush1.bf16.msra.mxu0 %v7081
        %7085 = vmatprep.subr.bf16.mxu0 0
        %7086 = vmatpush1.bf16.msra.mxu0 0
        %7087 = vmatprep.subr.bf16.mxu0 0
        %7088 = vmatpush1.bf16.msra.mxu0 0
        %7089 = vmatprep.subr.bf16.mxu0 0
        %7090 = vmatpush1.bf16.msra.mxu0 0
        %7091 = vmatprep.subr.bf16.mxu0 0
        %7092 = vmatpush1.bf16.msra.mxu0 0
        %7093 = vmatprep.subr.bf16.mxu0 0
        %7094 = vmatpush1.bf16.msra.mxu0 0
        %7095 = vmatprep.subr.bf16.mxu0 0
        %7096 = vmatpush1.bf16.msra.mxu0 0
        %7097 = vmatprep.subr.bf16.mxu0 0
        %7098 = vmatpush1.bf16.msra.mxu0 0
        %7099 = vmatprep.subr.bf16.mxu0 0
        %7100 = vmatpush1.bf16.msra.mxu0 0
        %7101 = vmatprep.subr.bf16.mxu0 0
        %7102 = vmatpush1.bf16.msra.mxu0 0
        %7103 = vmatprep.subr.bf16.mxu0 0
        %7104 = vmatpush1.bf16.msra.mxu0 0
        %7105 = vmatprep.subr.bf16.mxu0 0
        %7106 = vmatpush1.bf16.msra.mxu0 0
        %7107 = vmatprep.subr.bf16.mxu0 0
        %7108 = vmatpush1.bf16.msra.mxu0 0
        %7109 = vmatprep.subr.bf16.mxu0 0
        %7110 = vmatpush1.bf16.msra.mxu0 0
        %7111 = vmatprep.subr.bf16.mxu0 0
        %7112 = vmatpush1.bf16.msra.mxu0 0
        %7113 = vmatprep.subr.bf16.mxu0 0
        %7114 = vmatpush1.bf16.msra.mxu0 0
        %7115 = vmatprep.mubr.bf16.mxu0 0
        %7116 = vmatmul.mubr.bf16.gmra.mrb[0].mxu0 %v7069
        %v7117 = vpop.f32.mrb[0].mxu0
        %v7118 = vadd.f32 0.0, %v7117
        %v7119 = vpop.f32.mrb[0].mxu0
        %v7120 = vpop.f32.mrb[0].mxu0
        %v7121 = vadd.f32 0.0, %v7120
        %v7122 = vpop.f32.mrb[0].mxu0
        %7123 = vmatprep.mubr.bf16.mxu0 0
        %7124 = vmatmul.mubr.bf16.gmra.mrb[0].mxu0 %v7072
        %v7125 = vpop.f32.mrb[0].mxu0
        %v7126 = vadd.f32 0.0, %v7125
        %v7127 = vpop.f32.mrb[0].mxu0
        %v7128 = vpop.f32.mrb[0].mxu0
        %v7129 = vadd.f32 0.0, %v7128
        %v7130 = vpop.f32.mrb[0].mxu0
        %7131 = vmatprep.mubr.bf16.mxu0 0
        %7132 = vmatmul.mubr.bf16.gmra.mrb[0].mxu0 %v7075
        %v7133 = vpop.f32.mrb[0].mxu0
        %v7134 = vadd.f32 0.0, %v7133
        %v7135 = vpop.f32.mrb[0].mxu0
        %v7136 = vpop.f32.mrb[0].mxu0
        %v7137 = vadd.f32 0.0, %v7136
        %v7138 = vpop.f32.mrb[0].mxu0
        %7139 = vmatprep.mubr.bf16.mxu0 0
        %7140 = vmatmul.mubr.bf16.gmra.mrb[0].mxu0 %v7078
        %v7141 = vpop.f32.mrb[0].mxu0
        %v7142 = vadd.f32 0.0, %v7141
        %v7143 = vpop.f32.mrb[0].mxu0
        %v7144 = vpop.f32.mrb[0].mxu0
        %v7145 = vadd.f32 0.0, %v7144
        %v7146 = vpop.f32.mrb[0].mxu0
        %7147 = vdwg.mxu0
        %v7148 = vld [vmem:[#allocation2] sm:$0xff]
        %v7149 = vld [vmem:[#allocation2 + $0x8] sm:$0xff]
        %v7150 = vld [vmem:[#allocation2 + $0x10] sm:$0xff]
        %v7151 = vld [vmem:[#allocation2 + $0x18] sm:$0xff]
        %v7152 = vld [vmem:[#allocation2 + $0x20] sm:$0xff]
        %v7153 = vld [vmem:[#allocation2 + $0x28] sm:$0xff]
        %v7154 = vld [vmem:[#allocation2 + $0x30] sm:$0xff]
        %v7155 = vld [vmem:[#allocation2 + $0x38] sm:$0xff]
        %v7156 = vadd.f32 %v7148, %v7118
        %v7157 = vadd.f32 %v7149, %v7121
        %v7158 = vadd.f32 %v7150, %v7126
        %v7159 = vadd.f32 %v7151, %v7129
        %v7160 = vadd.f32 %v7152, %v7134
        %v7161 = vadd.f32 %v7153, %v7137
        %v7162 = vadd.f32 %v7154, %v7142
        %v7163 = vadd.f32 %v7155, %v7145
        %7164 = vst.msk [vmem:[#allocation2] sm:$0xff] %vm1503, %v7156
        %7165 = vst.msk [vmem:[#allocation2 + $0x8] sm:$0xff] %vm1503, %v7157
        %7166 = vst.msk [vmem:[#allocation2 + $0x10] sm:$0xff] %vm1503, %v7158
        %7167 = vst.msk [vmem:[#allocation2 + $0x18] sm:$0xff] %vm1503, %v7159
        %7168 = vst.msk [vmem:[#allocation2 + $0x20] sm:$0xff] %vm1503, %v7160
        %7169 = vst.msk [vmem:[#allocation2 + $0x28] sm:$0xff] %vm1503, %v7161
        %7170 = vst.msk [vmem:[#allocation2 + $0x30] sm:$0xff] %vm1503, %v7162
        %7171 = vst.msk [vmem:[#allocation2 + $0x38] sm:$0xff] %vm1503, %v7163
        %s7172 = sadd.s32 %s2419, 54
        %s7173 = smul.addr %s7172, 4
        %s7174 = scalar_lea.vmem %s1349, %s7173 [#allocation3]
        %v7175 = vld [vmem:[%s7174] sm:$0xf]
        %v7176 = vld [vmem:[%s7174 + $0x8] sm:$0xf]
        %v7177 = vld [vmem:[%s7174 + $0x10] sm:$0xf]
        %v7178 = vld [vmem:[%s7174 + $0x18] sm:$0xf]
        %v7179 = vld [vmem:[%s7174 + $0x20] sm:$0xf]
        %v7180 = vld [vmem:[%s7174 + $0x28] sm:$0xf]
        %v7181 = vld [vmem:[%s7174 + $0x30] sm:$0xf]
        %v7182 = vld [vmem:[%s7174 + $0x38] sm:$0xf]
        %s7183 = scalar_lea.vmem %s1, 132
        %v7184 = vld [vmem:[%s7183] sm:$0xf]
        %v7193 = vunpack.c.l.b16 %v7175
        %v7194 = vunpack.c.l.b16 %v7176
        %v7195 = vunpack.c.l.b16 %v7177
        %v7196 = vunpack.c.l.b16 %v7178
        %v7197 = vunpack.c.l.b16 %v7179
        %v7198 = vunpack.c.l.b16 %v7180
        %v7199 = vunpack.c.l.b16 %v7181
        %v7200 = vunpack.c.l.b16 %v7182
        %v7201 = vpack.c.b16 %v7194, %v7193
        %v7202 = vpack.c.b16 %v7196, %v7195
        %v7203 = vpack.c.b16 %v7198, %v7197
        %v7204 = vpack.c.b16 %v7200, %v7199
        %v7206 = vsel %vm1421, %v7201, 0
        %v7209 = vsel %vm1421, %v7202, 0
        %v7212 = vsel %vm1421, %v7203, 0
        %v7215 = vsel %vm1421, %v7204, 0
        %v7218 = vsel %vm1434, %v7184, 0
        %7220 = vmatprep.subr.bf16.mxu0 0
        %7221 = vmatpush1.bf16.msra.mxu0 %v7218
        %7222 = vmatprep.subr.bf16.mxu0 0
        %7223 = vmatpush1.bf16.msra.mxu0 0
        %7224 = vmatprep.subr.bf16.mxu0 0
        %7225 = vmatpush1.bf16.msra.mxu0 0
        %7226 = vmatprep.subr.bf16.mxu0 0
        %7227 = vmatpush1.bf16.msra.mxu0 0
        %7228 = vmatprep.subr.bf16.mxu0 0
        %7229 = vmatpush1.bf16.msra.mxu0 0
        %7230 = vmatprep.subr.bf16.mxu0 0
        %7231 = vmatpush1.bf16.msra.mxu0 0
        %7232 = vmatprep.subr.bf16.mxu0 0
        %7233 = vmatpush1.bf16.msra.mxu0 0
        %7234 = vmatprep.subr.bf16.mxu0 0
        %7235 = vmatpush1.bf16.msra.mxu0 0
        %7236 = vmatprep.subr.bf16.mxu0 0
        %7237 = vmatpush1.bf16.msra.mxu0 0
        %7238 = vmatprep.subr.bf16.mxu0 0
        %7239 = vmatpush1.bf16.msra.mxu0 0
        %7240 = vmatprep.subr.bf16.mxu0 0
        %7241 = vmatpush1.bf16.msra.mxu0 0
        %7242 = vmatprep.subr.bf16.mxu0 0
        %7243 = vmatpush1.bf16.msra.mxu0 0
        %7244 = vmatprep.subr.bf16.mxu0 0
        %7245 = vmatpush1.bf16.msra.mxu0 0
        %7246 = vmatprep.subr.bf16.mxu0 0
        %7247 = vmatpush1.bf16.msra.mxu0 0
        %7248 = vmatprep.subr.bf16.mxu0 0
        %7249 = vmatpush1.bf16.msra.mxu0 0
        %7250 = vmatprep.subr.bf16.mxu0 0
        %7251 = vmatpush1.bf16.msra.mxu0 0
        %7252 = vmatprep.mubr.bf16.mxu0 0
        %7253 = vmatmul.mubr.bf16.gmra.mrb[0].mxu0 %v7206
        %v7254 = vpop.f32.mrb[0].mxu0
        %v7255 = vadd.f32 0.0, %v7254
        %v7256 = vpop.f32.mrb[0].mxu0
        %v7257 = vpop.f32.mrb[0].mxu0
        %v7258 = vadd.f32 0.0, %v7257
        %v7259 = vpop.f32.mrb[0].mxu0
        %7260 = vmatprep.mubr.bf16.mxu0 0
        %7261 = vmatmul.mubr.bf16.gmra.mrb[0].mxu0 %v7209
        %v7262 = vpop.f32.mrb[0].mxu0
        %v7263 = vadd.f32 0.0, %v7262
        %v7264 = vpop.f32.mrb[0].mxu0
        %v7265 = vpop.f32.mrb[0].mxu0
        %v7266 = vadd.f32 0.0, %v7265
        %v7267 = vpop.f32.mrb[0].mxu0
        %7268 = vmatprep.mubr.bf16.mxu0 0
        %7269 = vmatmul.mubr.bf16.gmra.mrb[0].mxu0 %v7212
        %v7270 = vpop.f32.mrb[0].mxu0
        %v7271 = vadd.f32 0.0, %v7270
        %v7272 = vpop.f32.mrb[0].mxu0
        %v7273 = vpop.f32.mrb[0].mxu0
        %v7274 = vadd.f32 0.0, %v7273
        %v7275 = vpop.f32.mrb[0].mxu0
        %7276 = vmatprep.mubr.bf16.mxu0 0
        %7277 = vmatmul.mubr.bf16.gmra.mrb[0].mxu0 %v7215
        %v7278 = vpop.f32.mrb[0].mxu0
        %v7279 = vadd.f32 0.0, %v7278
        %v7280 = vpop.f32.mrb[0].mxu0
        %v7281 = vpop.f32.mrb[0].mxu0
        %v7282 = vadd.f32 0.0, %v7281
        %v7283 = vpop.f32.mrb[0].mxu0
        %7284 = vdwg.mxu0
        %v7285 = vld [vmem:[#allocation2] sm:$0xff]
        %v7286 = vld [vmem:[#allocation2 + $0x8] sm:$0xff]
        %v7287 = vld [vmem:[#allocation2 + $0x10] sm:$0xff]
        %v7288 = vld [vmem:[#allocation2 + $0x18] sm:$0xff]
        %v7289 = vld [vmem:[#allocation2 + $0x20] sm:$0xff]
        %v7290 = vld [vmem:[#allocation2 + $0x28] sm:$0xff]
        %v7291 = vld [vmem:[#allocation2 + $0x30] sm:$0xff]
        %v7292 = vld [vmem:[#allocation2 + $0x38] sm:$0xff]
        %v7293 = vadd.f32 %v7285, %v7255
        %v7294 = vadd.f32 %v7286, %v7258
        %v7295 = vadd.f32 %v7287, %v7263
        %v7296 = vadd.f32 %v7288, %v7266
        %v7297 = vadd.f32 %v7289, %v7271
        %v7298 = vadd.f32 %v7290, %v7274
        %v7299 = vadd.f32 %v7291, %v7279
        %v7300 = vadd.f32 %v7292, %v7282
        %7301 = vst.msk [vmem:[#allocation2] sm:$0xff] %vm1503, %v7293
        %7302 = vst.msk [vmem:[#allocation2 + $0x8] sm:$0xff] %vm1503, %v7294
        %7303 = vst.msk [vmem:[#allocation2 + $0x10] sm:$0xff] %vm1503, %v7295
        %7304 = vst.msk [vmem:[#allocation2 + $0x18] sm:$0xff] %vm1503, %v7296
        %7305 = vst.msk [vmem:[#allocation2 + $0x20] sm:$0xff] %vm1503, %v7297
        %7306 = vst.msk [vmem:[#allocation2 + $0x28] sm:$0xff] %vm1503, %v7298
        %7307 = vst.msk [vmem:[#allocation2 + $0x30] sm:$0xff] %vm1503, %v7299
        %7308 = vst.msk [vmem:[#allocation2 + $0x38] sm:$0xff] %vm1503, %v7300
        %s7309 = sadd.s32 %s2419, 126
        %s7310 = smul.addr %s7309, 4
        %s7311 = scalar_lea.vmem %s1349, %s7310 [#allocation3]
        %v7312 = vld [vmem:[%s7311] sm:$0xf]
        %v7313 = vld [vmem:[%s7311 + $0x8] sm:$0xf]
        %v7314 = vld [vmem:[%s7311 + $0x10] sm:$0xf]
        %v7315 = vld [vmem:[%s7311 + $0x18] sm:$0xf]
        %v7316 = vld [vmem:[%s7311 + $0x20] sm:$0xf]
        %v7317 = vld [vmem:[%s7311 + $0x28] sm:$0xf]
        %v7318 = vld [vmem:[%s7311 + $0x30] sm:$0xf]
        %v7319 = vld [vmem:[%s7311 + $0x38] sm:$0xf]
        %s7320 = scalar_lea.vmem %s1, 136
        %v7321 = vld [vmem:[%s7320] sm:$0xf]
        %v7330 = vunpack.c.l.b16 %v7312
        %v7331 = vunpack.c.l.b16 %v7313
        %v7332 = vunpack.c.l.b16 %v7314
        %v7333 = vunpack.c.l.b16 %v7315
        %v7334 = vunpack.c.l.b16 %v7316
        %v7335 = vunpack.c.l.b16 %v7317
        %v7336 = vunpack.c.l.b16 %v7318
        %v7337 = vunpack.c.l.b16 %v7319
        %v7338 = vpack.c.b16 %v7331, %v7330
        %v7339 = vpack.c.b16 %v7333, %v7332
        %v7340 = vpack.c.b16 %v7335, %v7334
        %v7341 = vpack.c.b16 %v7337, %v7336
        %v7343 = vsel %vm1421, %v7338, 0
        %v7346 = vsel %vm1421, %v7339, 0
        %v7349 = vsel %vm1421, %v7340, 0
        %v7352 = vsel %vm1421, %v7341, 0
        %v7355 = vsel %vm1434, %v7321, 0
        %7357 = vmatprep.subr.bf16.mxu0 0
        %7358 = vmatpush1.bf16.msra.mxu0 %v7355
        %7359 = vmatprep.subr.bf16.mxu0 0
        %7360 = vmatpush1.bf16.msra.mxu0 0
        %7361 = vmatprep.subr.bf16.mxu0 0
        %7362 = vmatpush1.bf16.msra.mxu0 0
        %7363 = vmatprep.subr.bf16.mxu0 0
        %7364 = vmatpush1.bf16.msra.mxu0 0
        %7365 = vmatprep.subr.bf16.mxu0 0
        %7366 = vmatpush1.bf16.msra.mxu0 0
        %7367 = vmatprep.subr.bf16.mxu0 0
        %7368 = vmatpush1.bf16.msra.mxu0 0
        %7369 = vmatprep.subr.bf16.mxu0 0
        %7370 = vmatpush1.bf16.msra.mxu0 0
        %7371 = vmatprep.subr.bf16.mxu0 0
        %7372 = vmatpush1.bf16.msra.mxu0 0
        %7373 = vmatprep.subr.bf16.mxu0 0
        %7374 = vmatpush1.bf16.msra.mxu0 0
        %7375 = vmatprep.subr.bf16.mxu0 0
        %7376 = vmatpush1.bf16.msra.mxu0 0
        %7377 = vmatprep.subr.bf16.mxu0 0
        %7378 = vmatpush1.bf16.msra.mxu0 0
        %7379 = vmatprep.subr.bf16.mxu0 0
        %7380 = vmatpush1.bf16.msra.mxu0 0
        %7381 = vmatprep.subr.bf16.mxu0 0
        %7382 = vmatpush1.bf16.msra.mxu0 0
        %7383 = vmatprep.subr.bf16.mxu0 0
        %7384 = vmatpush1.bf16.msra.mxu0 0
        %7385 = vmatprep.subr.bf16.mxu0 0
        %7386 = vmatpush1.bf16.msra.mxu0 0
        %7387 = vmatprep.subr.bf16.mxu0 0
        %7388 = vmatpush1.bf16.msra.mxu0 0
        %7389 = vmatprep.mubr.bf16.mxu0 0
        %7390 = vmatmul.mubr.bf16.gmra.mrb[0].mxu0 %v7343
        %v7391 = vpop.f32.mrb[0].mxu0
        %v7392 = vadd.f32 0.0, %v7391
        %v7393 = vpop.f32.mrb[0].mxu0
        %v7394 = vpop.f32.mrb[0].mxu0
        %v7395 = vadd.f32 0.0, %v7394
        %v7396 = vpop.f32.mrb[0].mxu0
        %7397 = vmatprep.mubr.bf16.mxu0 0
        %7398 = vmatmul.mubr.bf16.gmra.mrb[0].mxu0 %v7346
        %v7399 = vpop.f32.mrb[0].mxu0
        %v7400 = vadd.f32 0.0, %v7399
        %v7401 = vpop.f32.mrb[0].mxu0
        %v7402 = vpop.f32.mrb[0].mxu0
        %v7403 = vadd.f32 0.0, %v7402
        %v7404 = vpop.f32.mrb[0].mxu0
        %7405 = vmatprep.mubr.bf16.mxu0 0
        %7406 = vmatmul.mubr.bf16.gmra.mrb[0].mxu0 %v7349
        %v7407 = vpop.f32.mrb[0].mxu0
        %v7408 = vadd.f32 0.0, %v7407
        %v7409 = vpop.f32.mrb[0].mxu0
        %v7410 = vpop.f32.mrb[0].mxu0
        %v7411 = vadd.f32 0.0, %v7410
        %v7412 = vpop.f32.mrb[0].mxu0
        %7413 = vmatprep.mubr.bf16.mxu0 0
        %7414 = vmatmul.mubr.bf16.gmra.mrb[0].mxu0 %v7352
        %v7415 = vpop.f32.mrb[0].mxu0
        %v7416 = vadd.f32 0.0, %v7415
        %v7417 = vpop.f32.mrb[0].mxu0
        %v7418 = vpop.f32.mrb[0].mxu0
        %v7419 = vadd.f32 0.0, %v7418
        %v7420 = vpop.f32.mrb[0].mxu0
        %7421 = vdwg.mxu0
        %v7422 = vld [vmem:[#allocation2] sm:$0xff]
        %v7423 = vld [vmem:[#allocation2 + $0x8] sm:$0xff]
        %v7424 = vld [vmem:[#allocation2 + $0x10] sm:$0xff]
        %v7425 = vld [vmem:[#allocation2 + $0x18] sm:$0xff]
        %v7426 = vld [vmem:[#allocation2 + $0x20] sm:$0xff]
        %v7427 = vld [vmem:[#allocation2 + $0x28] sm:$0xff]
        %v7428 = vld [vmem:[#allocation2 + $0x30] sm:$0xff]
        %v7429 = vld [vmem:[#allocation2 + $0x38] sm:$0xff]
        %v7430 = vadd.f32 %v7422, %v7392
        %v7431 = vadd.f32 %v7423, %v7395
        %v7432 = vadd.f32 %v7424, %v7400
        %v7433 = vadd.f32 %v7425, %v7403
        %v7434 = vadd.f32 %v7426, %v7408
        %v7435 = vadd.f32 %v7427, %v7411
        %v7436 = vadd.f32 %v7428, %v7416
        %v7437 = vadd.f32 %v7429, %v7419
        %7438 = vst.msk [vmem:[#allocation2] sm:$0xff] %vm1503, %v7430
        %7439 = vst.msk [vmem:[#allocation2 + $0x8] sm:$0xff] %vm1503, %v7431
        %7440 = vst.msk [vmem:[#allocation2 + $0x10] sm:$0xff] %vm1503, %v7432
        %7441 = vst.msk [vmem:[#allocation2 + $0x18] sm:$0xff] %vm1503, %v7433
        %7442 = vst.msk [vmem:[#allocation2 + $0x20] sm:$0xff] %vm1503, %v7434
        %7443 = vst.msk [vmem:[#allocation2 + $0x28] sm:$0xff] %vm1503, %v7435
        %7444 = vst.msk [vmem:[#allocation2 + $0x30] sm:$0xff] %vm1503, %v7436
        %7445 = vst.msk [vmem:[#allocation2 + $0x38] sm:$0xff] %vm1503, %v7437
        %v7446 = vld [vmem:[%s7174] sm:$0xf]
        %v7447 = vld [vmem:[%s7174 + $0x4] sm:$0x1]
        %v7448 = vld [vmem:[%s7174 + $0x8] sm:$0xf]
        %v7449 = vld [vmem:[%s7174 + $0xc] sm:$0x1]
        %v7450 = vld [vmem:[%s7174 + $0x10] sm:$0xf]
        %v7451 = vld [vmem:[%s7174 + $0x14] sm:$0x1]
        %v7452 = vld [vmem:[%s7174 + $0x18] sm:$0xf]
        %v7453 = vld [vmem:[%s7174 + $0x1c] sm:$0x1]
        %v7454 = vld [vmem:[%s7174 + $0x20] sm:$0xf]
        %v7455 = vld [vmem:[%s7174 + $0x24] sm:$0x1]
        %v7456 = vld [vmem:[%s7174 + $0x28] sm:$0xf]
        %v7457 = vld [vmem:[%s7174 + $0x2c] sm:$0x1]
        %v7458 = vld [vmem:[%s7174 + $0x30] sm:$0xf]
        %v7459 = vld [vmem:[%s7174 + $0x34] sm:$0x1]
        %v7460 = vld [vmem:[%s7174 + $0x38] sm:$0xf]
        %v7461 = vld [vmem:[%s7174 + $0x3c] sm:$0x1]
        %v7463 = vshrl.u32 %v7446, 16
        %v7465 = vrot.slane %v7463, 4
        %v7466 = vshll.u32 %v7446, 16
        %v7468 = vrot.slane %v7466, 5
        %v7469 = vor.u32 %v7465, %v7468
        %v7470 = vrot.slane %v7469, 4
        %v7472 = vshll.u32 %v7447, 16
        %v7474 = vrot.slane %v7472, 5
        %v7475 = vsel %vm1667, %v7470, %v7474
        %v7477 = vshrl.u32 %v7448, 16
        %v7479 = vrot.slane %v7477, 4
        %v7480 = vshll.u32 %v7448, 16
        %v7482 = vrot.slane %v7480, 5
        %v7483 = vor.u32 %v7479, %v7482
        %v7484 = vrot.slane %v7483, 4
        %v7486 = vshll.u32 %v7449, 16
        %v7488 = vrot.slane %v7486, 5
        %v7489 = vsel %vm1667, %v7484, %v7488
        %v7491 = vshrl.u32 %v7450, 16
        %v7493 = vrot.slane %v7491, 4
        %v7494 = vshll.u32 %v7450, 16
        %v7496 = vrot.slane %v7494, 5
        %v7497 = vor.u32 %v7493, %v7496
        %v7498 = vrot.slane %v7497, 4
        %v7500 = vshll.u32 %v7451, 16
        %v7502 = vrot.slane %v7500, 5
        %v7503 = vsel %vm1667, %v7498, %v7502
        %v7505 = vshrl.u32 %v7452, 16
        %v7507 = vrot.slane %v7505, 4
        %v7508 = vshll.u32 %v7452, 16
        %v7510 = vrot.slane %v7508, 5
        %v7511 = vor.u32 %v7507, %v7510
        %v7512 = vrot.slane %v7511, 4
        %v7514 = vshll.u32 %v7453, 16
        %v7516 = vrot.slane %v7514, 5
        %v7517 = vsel %vm1667, %v7512, %v7516
        %v7519 = vshrl.u32 %v7454, 16
        %v7521 = vrot.slane %v7519, 4
        %v7522 = vshll.u32 %v7454, 16
        %v7524 = vrot.slane %v7522, 5
        %v7525 = vor.u32 %v7521, %v7524
        %v7526 = vrot.slane %v7525, 4
        %v7528 = vshll.u32 %v7455, 16
        %v7530 = vrot.slane %v7528, 5
        %v7531 = vsel %vm1667, %v7526, %v7530
        %v7533 = vshrl.u32 %v7456, 16
        %v7535 = vrot.slane %v7533, 4
        %v7536 = vshll.u32 %v7456, 16
        %v7538 = vrot.slane %v7536, 5
        %v7539 = vor.u32 %v7535, %v7538
        %v7540 = vrot.slane %v7539, 4
        %v7542 = vshll.u32 %v7457, 16
        %v7544 = vrot.slane %v7542, 5
        %v7545 = vsel %vm1667, %v7540, %v7544
        %v7547 = vshrl.u32 %v7458, 16
        %v7549 = vrot.slane %v7547, 4
        %v7550 = vshll.u32 %v7458, 16
        %v7552 = vrot.slane %v7550, 5
        %v7553 = vor.u32 %v7549, %v7552
        %v7554 = vrot.slane %v7553, 4
        %v7556 = vshll.u32 %v7459, 16
        %v7558 = vrot.slane %v7556, 5
        %v7559 = vsel %vm1667, %v7554, %v7558
        %v7561 = vshrl.u32 %v7460, 16
        %v7563 = vrot.slane %v7561, 4
        %v7564 = vshll.u32 %v7460, 16
        %v7566 = vrot.slane %v7564, 5
        %v7567 = vor.u32 %v7563, %v7566
        %v7568 = vrot.slane %v7567, 4
        %v7570 = vshll.u32 %v7461, 16
        %v7572 = vrot.slane %v7570, 5
        %v7573 = vsel %vm1667, %v7568, %v7572
        %s7574 = scalar_lea.vmem %s1, 140
        %v7575 = vld [vmem:[%s7574] sm:$0xf]
        %v7576 = vunpack.c.l.b16 %v7475
        %v7577 = vunpack.c.l.b16 %v7489
        %v7578 = vunpack.c.l.b16 %v7503
        %v7579 = vunpack.c.l.b16 %v7517
        %v7580 = vunpack.c.l.b16 %v7531
        %v7581 = vunpack.c.l.b16 %v7545
        %v7582 = vunpack.c.l.b16 %v7559
        %v7583 = vunpack.c.l.b16 %v7573
        %v7584 = vpack.c.b16 %v7577, %v7576
        %v7585 = vpack.c.b16 %v7579, %v7578
        %v7586 = vpack.c.b16 %v7581, %v7580
        %v7587 = vpack.c.b16 %v7583, %v7582
        %v7589 = vsel %vm1421, %v7584, 0
        %v7592 = vsel %vm1421, %v7585, 0
        %v7595 = vsel %vm1421, %v7586, 0
        %v7598 = vsel %vm1421, %v7587, 0
        %v7601 = vsel %vm1434, %v7575, 0
        %7603 = vmatprep.subr.bf16.mxu0 0
        %7604 = vmatpush1.bf16.msra.mxu0 %v7601
        %7605 = vmatprep.subr.bf16.mxu0 0
        %7606 = vmatpush1.bf16.msra.mxu0 0
        %7607 = vmatprep.subr.bf16.mxu0 0
        %7608 = vmatpush1.bf16.msra.mxu0 0
        %7609 = vmatprep.subr.bf16.mxu0 0
        %7610 = vmatpush1.bf16.msra.mxu0 0
        %7611 = vmatprep.subr.bf16.mxu0 0
        %7612 = vmatpush1.bf16.msra.mxu0 0
        %7613 = vmatprep.subr.bf16.mxu0 0
        %7614 = vmatpush1.bf16.msra.mxu0 0
        %7615 = vmatprep.subr.bf16.mxu0 0
        %7616 = vmatpush1.bf16.msra.mxu0 0
        %7617 = vmatprep.subr.bf16.mxu0 0
        %7618 = vmatpush1.bf16.msra.mxu0 0
        %7619 = vmatprep.subr.bf16.mxu0 0
        %7620 = vmatpush1.bf16.msra.mxu0 0
        %7621 = vmatprep.subr.bf16.mxu0 0
        %7622 = vmatpush1.bf16.msra.mxu0 0
        %7623 = vmatprep.subr.bf16.mxu0 0
        %7624 = vmatpush1.bf16.msra.mxu0 0
        %7625 = vmatprep.subr.bf16.mxu0 0
        %7626 = vmatpush1.bf16.msra.mxu0 0
        %7627 = vmatprep.subr.bf16.mxu0 0
        %7628 = vmatpush1.bf16.msra.mxu0 0
        %7629 = vmatprep.subr.bf16.mxu0 0
        %7630 = vmatpush1.bf16.msra.mxu0 0
        %7631 = vmatprep.subr.bf16.mxu0 0
        %7632 = vmatpush1.bf16.msra.mxu0 0
        %7633 = vmatprep.subr.bf16.mxu0 0
        %7634 = vmatpush1.bf16.msra.mxu0 0
        %7635 = vmatprep.mubr.bf16.mxu0 0
        %7636 = vmatmul.mubr.bf16.gmra.mrb[0].mxu0 %v7589
        %v7637 = vpop.f32.mrb[0].mxu0
        %v7638 = vadd.f32 0.0, %v7637
        %v7639 = vpop.f32.mrb[0].mxu0
        %v7640 = vpop.f32.mrb[0].mxu0
        %v7641 = vadd.f32 0.0, %v7640
        %v7642 = vpop.f32.mrb[0].mxu0
        %7643 = vmatprep.mubr.bf16.mxu0 0
        %7644 = vmatmul.mubr.bf16.gmra.mrb[0].mxu0 %v7592
        %v7645 = vpop.f32.mrb[0].mxu0
        %v7646 = vadd.f32 0.0, %v7645
        %v7647 = vpop.f32.mrb[0].mxu0
        %v7648 = vpop.f32.mrb[0].mxu0
        %v7649 = vadd.f32 0.0, %v7648
        %v7650 = vpop.f32.mrb[0].mxu0
        %7651 = vmatprep.mubr.bf16.mxu0 0
        %7652 = vmatmul.mubr.bf16.gmra.mrb[0].mxu0 %v7595
        %v7653 = vpop.f32.mrb[0].mxu0
        %v7654 = vadd.f32 0.0, %v7653
        %v7655 = vpop.f32.mrb[0].mxu0
        %v7656 = vpop.f32.mrb[0].mxu0
        %v7657 = vadd.f32 0.0, %v7656
        %v7658 = vpop.f32.mrb[0].mxu0
        %7659 = vmatprep.mubr.bf16.mxu0 0
        %7660 = vmatmul.mubr.bf16.gmra.mrb[0].mxu0 %v7598
        %v7661 = vpop.f32.mrb[0].mxu0
        %v7662 = vadd.f32 0.0, %v7661
        %v7663 = vpop.f32.mrb[0].mxu0
        %v7664 = vpop.f32.mrb[0].mxu0
        %v7665 = vadd.f32 0.0, %v7664
        %v7666 = vpop.f32.mrb[0].mxu0
        %7667 = vdwg.mxu0
        %v7668 = vld [vmem:[#allocation2] sm:$0xff]
        %v7669 = vld [vmem:[#allocation2 + $0x8] sm:$0xff]
        %v7670 = vld [vmem:[#allocation2 + $0x10] sm:$0xff]
        %v7671 = vld [vmem:[#allocation2 + $0x18] sm:$0xff]
        %v7672 = vld [vmem:[#allocation2 + $0x20] sm:$0xff]
        %v7673 = vld [vmem:[#allocation2 + $0x28] sm:$0xff]
        %v7674 = vld [vmem:[#allocation2 + $0x30] sm:$0xff]
        %v7675 = vld [vmem:[#allocation2 + $0x38] sm:$0xff]
        %v7676 = vadd.f32 %v7668, %v7638
        %v7677 = vadd.f32 %v7669, %v7641
        %v7678 = vadd.f32 %v7670, %v7646
        %v7679 = vadd.f32 %v7671, %v7649
        %v7680 = vadd.f32 %v7672, %v7654
        %v7681 = vadd.f32 %v7673, %v7657
        %v7682 = vadd.f32 %v7674, %v7662
        %v7683 = vadd.f32 %v7675, %v7665
        %7684 = vst.msk [vmem:[#allocation2] sm:$0xff] %vm1503, %v7676
        %7685 = vst.msk [vmem:[#allocation2 + $0x8] sm:$0xff] %vm1503, %v7677
        %7686 = vst.msk [vmem:[#allocation2 + $0x10] sm:$0xff] %vm1503, %v7678
        %7687 = vst.msk [vmem:[#allocation2 + $0x18] sm:$0xff] %vm1503, %v7679
        %7688 = vst.msk [vmem:[#allocation2 + $0x20] sm:$0xff] %vm1503, %v7680
        %7689 = vst.msk [vmem:[#allocation2 + $0x28] sm:$0xff] %vm1503, %v7681
        %7690 = vst.msk [vmem:[#allocation2 + $0x30] sm:$0xff] %vm1503, %v7682
        %7691 = vst.msk [vmem:[#allocation2 + $0x38] sm:$0xff] %vm1503, %v7683
        %v7692 = vld [vmem:[#allocation2] sm:$0xff]
        %v7693 = vld [vmem:[#allocation2 + $0x8] sm:$0xff]
        %v7694 = vld [vmem:[#allocation2 + $0x10] sm:$0xff]
        %v7695 = vld [vmem:[#allocation2 + $0x18] sm:$0xff]
        %v7696 = vld [vmem:[#allocation2 + $0x20] sm:$0xff]
        %v7697 = vld [vmem:[#allocation2 + $0x28] sm:$0xff]
        %v7698 = vld [vmem:[#allocation2 + $0x30] sm:$0xff]
        %v7699 = vld [vmem:[#allocation2 + $0x38] sm:$0xff]
        %s7700 = scalar_lea.vmem %s2, 3
        %v7701 = vld [vmem:[%s7700] sm:$0x1]
        %v7703 = vlaneseq
        %v7704 = vshrl.u32 %v7703, 7
        %v7705 = vsub.s32 0, %v7704
        %v7706 = vrot.slane %v7701, %v7705
        %v7708 = vadd.f32 %v7692, %v7706
        %v7709 = vadd.f32 %v7693, %v7706
        %v7710 = vadd.f32 %v7694, %v7706
        %v7711 = vadd.f32 %v7695, %v7706
        %v7712 = vadd.f32 %v7696, %v7706
        %v7713 = vadd.f32 %v7697, %v7706
        %v7714 = vadd.f32 %v7698, %v7706
        %v7715 = vadd.f32 %v7699, %v7706
        %v7716 = vmax.f32 %v7708, 0.0
        %v7717 = vmax.f32 %v7709, 0.0
        %v7718 = vmax.f32 %v7710, 0.0
        %v7719 = vmax.f32 %v7711, 0.0
        %v7720 = vmax.f32 %v7712, 0.0
        %v7721 = vmax.f32 %v7713, 0.0
        %v7722 = vmax.f32 %v7714, 0.0
        %v7723 = vmax.f32 %v7715, 0.0
        %s7724 = scalar_lea.vmem %s1384, 192
        %7725 = vst.msk [vmem:[%s7724] sm:$0xff] %vm1503, %v7716
        %7726 = vst.msk [vmem:[%s7724 + $0x8] sm:$0xff] %vm1503, %v7717
        %7727 = vst.msk [vmem:[%s7724 + $0x10] sm:$0xff] %vm1503, %v7718
        %7728 = vst.msk [vmem:[%s7724 + $0x18] sm:$0xff] %vm1503, %v7719
        %7729 = vst.msk [vmem:[%s7724 + $0x20] sm:$0xff] %vm1503, %v7720
        %7730 = vst.msk [vmem:[%s7724 + $0x28] sm:$0xff] %vm1503, %v7721
        %7731 = vst.msk [vmem:[%s7724 + $0x30] sm:$0xff] %vm1503, %v7722
        %7732 = vst.msk [vmem:[%s7724 + $0x38] sm:$0xff] %vm1503, %v7723
        %s7733 = smul.u32 4, %s18
        %s7734 = smul.u32 8, %s19
        %p7735 = scmp.lt.s32.totalorder %s7733, 7
        %s7736 = scalar_select %p7735, %s7733, 7
        %p7737 = scmp.lt.s32.totalorder %s7734, 7
        %s7738 = scalar_select %p7737, %s7734, 7
        %s7739 = smul.addr %s7736, 8
        %s7740 = sadd.s32 %s7738, %s7739
        %s7741 = smul.addr %s7740, 8
        %s7742 = scalar_lea.vmem %s3, %s7741
        // Predicated region
        $region74: #{tpu_custom_call.1} parent=68 // pred_check
          %p7743 = pneg %p114
        $region75: #{tpu_custom_call.1} parent=68 // pred_check_branch
          %7745 = sbr.rel (%p7743) target = $region77
        $region76: #{tpu_custom_call.1} parent=68 // pred_region
          %s7746 = smul.u32 4, %s18
          %s7747 = smul.u32 8, %s19
        $region77: #{tpu_custom_call.1} parent=68 // pred_fallthru
          _
      $region69: #{tpu_custom_call.1} parent=5 // pred_fallthru
        _
      %p7748 = scmp.le.s32.totalorder 2, %s9
      // Predicated region
      $region78: #{tpu_custom_call.1} parent=5 // pred_check
        %p7749 = pneg %p7748
      $region79: #{tpu_custom_call.1} parent=5 // pred_check_branch
        %7751 = sbr.rel (%p7749) target = $region81
      $region80: #{tpu_custom_call.1} parent=5 // pred_region
        %s7752 = ssub.s32 %s9, 2
        // Predicated region
        $region82: #{tpu_custom_call.1} parent=80 // pred_check
          %p7753 = pneg %p120
        $region83: #{tpu_custom_call.1} parent=80 // pred_check_branch
          %7755 = sbr.rel (%p7753) target = $region85
        $region84: #{tpu_custom_call.1} parent=80 // pred_region
          %s7756 = smul.u32 4, %s20
          %s7757 = smul.u32 8, %s21
          %p7758 = scmp.lt.s32.totalorder %s7756, 7
          %s7759 = scalar_select %p7758, %s7756, 7
          %p7760 = scmp.lt.s32.totalorder %s7757, 7
          %s7761 = scalar_select %p7760, %s7757, 7
          %s7762 = smul.addr %s7759, 8
          %s7763 = sadd.s32 %s7761, %s7762
          %s7764 = smul.addr %s7763, 8
          %s7765 = scalar_lea.vmem %s3, %s7764
        $region85: #{tpu_custom_call.1} parent=80 // pred_fallthru
          _
      $region81: #{tpu_custom_call.1} parent=5 // pred_fallthru
        _
    $region6: #{tpu_custom_call.1} parent=1 // loop_footer
      %s13 = sadd.s32 1, %s9
    $region7: #{tpu_custom_call.1} parent=1 // loop_footer_branch
      %8 = sbr.rel target = $region3
    $region8: #{tpu_custom_call.1} parent=1 // loop_exit
      _

</llo_original>
